<compile_context>
chip_gen: v7x
topology: tpu7x:2x2x1
jax: 0.10.0
libtpu: 0.0.40
codegen_flags: <defaults>
</compile_context>

<pallas_src>
import functools

import jax
import jax.numpy as jnp
from jax import lax
from jax.experimental import pallas as pl
from jax.experimental.pallas import tpu as pltpu

EPS = 1e-5
LANE = 128  # TPU lane width; channel axes are padded to a multiple of this.


def _round_up(v, m):
    return (v + m - 1) // m * m


# ----------------------------- kernel helpers -----------------------------
def _bn_train(x, gamma, beta):
    """Training-mode BatchNorm on (M, C): single pass, fused scale/shift."""
    m = x.shape[0]
    inv_m = 1.0 / m
    s1 = jnp.sum(x, axis=0, keepdims=True)
    s2 = jnp.sum(x * x, axis=0, keepdims=True)
    mean = s1 * inv_m
    var = jnp.maximum(s2 * inv_m - mean * mean, 0.0)      # biased variance
    scale = lax.rsqrt(var + EPS) * gamma                   # (1, C)
    shift = beta - mean * scale                            # (1, C)
    return x * scale + shift                               # 1 mul + 1 add / elem


def _im2col_3x3(xpad, stride, hout, wout, mxu_dtype):
    """Build the (M, 9*C) im2col matrix for a padded NHWC activation.

    C is a multiple of 128, so the lane-dim concatenation is 128-aligned.
    Taps are cast to `mxu_dtype` (bf16) — MXU operands only; stats stay f32.
    """
    n, _, _, c = xpad.shape
    m = n * hout * wout
    taps = []
    for di in range(3):
        for dj in range(3):
            patch = lax.slice(
                xpad,
                (0, di, dj, 0),
                (n, di + (hout - 1) * stride + 1,
                 dj + (wout - 1) * stride + 1, c),
                (1, stride, stride, 1),
            )
            taps.append(patch.reshape(m, c).astype(mxu_dtype))
    return jnp.concatenate(taps, axis=-1)                  # (M, 9*C)


# --------------------------------- kernel ---------------------------------
def basic_block_kernel(*refs, stride, has_proj, hout, wout):
    if has_proj:
        (xpad_ref, w1_ref, g1_ref, b1_ref, w2_ref, g2_ref, b2_ref,
         wsc_ref, gsc_ref, bsc_ref, out_ref, pad_ref) = refs
    else:
        (xpad_ref, w1_ref, g1_ref, b1_ref, w2_ref, g2_ref, b2_ref,
         out_ref, pad_ref) = refs

    xpad = xpad_ref[...]                    # (N, H+2, W+2, Cin_p) f32
    n = xpad.shape[0]
    cin_p = xpad.shape[3]
    cout_p = g1_ref.shape[1]
    m = n * hout * wout

    # ---- conv1: one im2col matmul (bf16 operands, f32 accumulation) ----
    lhs1 = _im2col_3x3(xpad, stride, hout, wout, jnp.bfloat16)
    out1 = jnp.dot(lhs1, w1_ref[...], preferred_element_type=jnp.float32)
    out1 = jnp.maximum(_bn_train(out1, g1_ref[...], b1_ref[...]), 0.0)

    # ---- spatial zero-pad of conv1 activation (border-only zeroing) ----
    z_row = jnp.zeros((n, 1, wout + 2, cout_p), jnp.float32)
    z_col = jnp.zeros((n, hout + 2, 1, cout_p), jnp.float32)
    pad_ref[:, 0:1, :, :] = z_row
    pad_ref[:, hout + 1:hout + 2, :, :] = z_row
    pad_ref[:, :, 0:1, :] = z_col
    pad_ref[:, :, wout + 1:wout + 2, :] = z_col
    pad_ref[:, 1:hout + 1, 1:wout + 1, :] = out1.reshape(n, hout, wout, cout_p)

    # ---- conv2 + bn2 ----
    lhs2 = _im2col_3x3(pad_ref[...], 1, hout, wout, jnp.bfloat16)
    out2 = jnp.dot(lhs2, w2_ref[...], preferred_element_type=jnp.float32)
    out2 = _bn_train(out2, g2_ref[...], b2_ref[...])

    # ---- shortcut ----
    if has_proj:
        xs = lax.slice(
            xpad,
            (0, 1, 1, 0),
            (n, 1 + (hout - 1) * stride + 1, 1 + (wout - 1) * stride + 1, cin_p),
            (1, stride, stride, 1),
        )
        sc = jnp.dot(xs.reshape(m, cin_p).astype(jnp.bfloat16), wsc_ref[...],
                     preferred_element_type=jnp.float32)
        sc = _bn_train(sc, gsc_ref[...], bsc_ref[...])
    else:
        # identity shortcut (cin_p == cout_p here)
        sc = xpad[:, 1:hout + 1, 1:wout + 1, :].reshape(m, cout_p)

    # ---- residual add + ReLU, lane-dense (M, Cout_p) store ----
    out_ref[...] = jnp.maximum(out2 + sc, 0.0)


# -------------------------------- wrapper ---------------------------------
def _prep_conv3x3(w_oihw, cin_p, cout_p):
    """OIHW 3x3 weight -> (9*cin_p, cout_p) bf16, channel-zero-padded."""
    hwio = jnp.transpose(w_oihw, (2, 3, 1, 0)).astype(jnp.float32)
    cin, cout = hwio.shape[2], hwio.shape[3]
    hwio = jnp.pad(hwio, ((0, 0), (0, 0), (0, cin_p - cin), (0, cout_p - cout)))
    return hwio.reshape(9 * cin_p, cout_p).astype(jnp.bfloat16)


def _prep_gamma(g, cout_p):
    g = g.astype(jnp.float32)
    return jnp.pad(g, (0, cout_p - g.shape[0]), constant_values=1.0).reshape(1, cout_p)


def _prep_beta(b, cout_p):
    b = b.astype(jnp.float32)
    return jnp.pad(b, (0, cout_p - b.shape[0])).reshape(1, cout_p)


def basic_block_forward(x_nchw, params, stride):
    n, cin, h, w = x_nchw.shape
    cout = params["w1"].shape[0]                 # PyTorch OIHW
    has_proj = (stride != 1) or (cin != cout)
    h1 = (h - 1) // stride + 1
    w1_sz = (w - 1) // stride + 1
    cin_p = _round_up(cin, LANE)
    cout_p = _round_up(cout, LANE)

    # NCHW -> NHWC, spatial pad 1, channel pad to lane multiple (zeros).
    x = jnp.transpose(x_nchw, (0, 2, 3, 1)).astype(jnp.float32)
    xpad = jnp.pad(x, ((0, 0), (1, 1), (1, 1), (0, cin_p - cin)))

    args = [
        xpad,
        _prep_conv3x3(params["w1"], cin_p, cout_p),
        _prep_gamma(params["g1"], cout_p), _prep_beta(params["b1"], cout_p),
        _prep_conv3x3(params["w2"], cout_p, cout_p),
        _prep_gamma(params["g2"], cout_p), _prep_beta(params["b2"], cout_p),
    ]
    if has_proj:
        wsc = jnp.transpose(params["wsc"][:, :, 0, 0], (1, 0)).astype(jnp.float32)
        wsc = jnp.pad(wsc, ((0, cin_p - cin), (0, cout_p - cout))).astype(jnp.bfloat16)
        args += [wsc, _prep_gamma(params["gsc"], cout_p),
                 _prep_beta(params["bsc"], cout_p)]

    vmem = pl.BlockSpec(memory_space=pltpu.MemorySpace.VMEM)
    kernel = functools.partial(basic_block_kernel, stride=stride,
                               has_proj=has_proj, hout=h1, wout=w1_sz)

    out2d = pl.pallas_call(
        kernel,
        out_shape=jax.ShapeDtypeStruct((n * h1 * w1_sz, cout_p), jnp.float32),
        in_specs=[vmem] * len(args),
        out_specs=vmem,
        scratch_shapes=[pltpu.VMEM((n, h1 + 2, w1_sz + 2, cout_p), jnp.float32)],
    )(*args)

    out = out2d.reshape(n, h1, w1_sz, cout_p)[..., :cout]
    return jnp.transpose(out, (0, 3, 1, 2))


# ----------------------- pure-JAX reference (NCHW, f32) --------------------
def basic_block_ref(x, params, stride):
    def conv(x, w, s, pad):
        return lax.conv_general_dilated(
            x, w, (s, s), ((pad, pad), (pad, pad)),
            dimension_numbers=("NCHW", "OIHW", "NCHW"))

    def bn(x, g, b):
        mean = jnp.mean(x, axis=(0, 2, 3), keepdims=True)
        var = jnp.mean((x - mean) ** 2, axis=(0, 2, 3), keepdims=True)
        return (x - mean) * lax.rsqrt(var + EPS) * g.reshape(1, -1, 1, 1) \
            + b.reshape(1, -1, 1, 1)

    cin = x.shape[1]
    cout = params["w1"].shape[0]
    out = jax.nn.relu(bn(conv(x, params["w1"], stride, 1), params["g1"], params["b1"]))
    out = bn(conv(out, params["w2"], 1, 1), params["g2"], params["b2"])
    if stride != 1 or cin != cout:
        sc = bn(conv(x, params["wsc"], stride, 0), params["gsc"], params["bsc"])
    else:
        sc = x
    return jax.nn.relu(out + sc)


# ---------------------------------- main ----------------------------------
if __name__ == "__main__":
    key = jax.random.PRNGKey(0)
    ks = jax.random.split(key, 9)

    # Tolerance accounts for bf16 MXU inputs (f32 accumulation).
    TOL = dict(atol=2e-2, rtol=2e-2)

    # --- block with projection shortcut (in_planes != planes) ---
    N, IN_PLANES, PLANES, H, W, STRIDE = 2, 4, 8, 16, 16, 1
    params = {
        "w1": 0.1 * jax.random.normal(ks[0], (PLANES, IN_PLANES, 3, 3), jnp.float32),
        "g1": 1.0 + 0.1 * jax.random.normal(ks[1], (PLANES,), jnp.float32),
        "b1": 0.1 * jax.random.normal(ks[2], (PLANES,), jnp.float32),
        "w2": 0.1 * jax.random.normal(ks[3], (PLANES, PLANES, 3, 3), jnp.float32),
        "g2": 1.0 + 0.1 * jax.random.normal(ks[4], (PLANES,), jnp.float32),
        "b2": 0.1 * jax.random.normal(ks[5], (PLANES,), jnp.float32),
        "wsc": 0.1 * jax.random.normal(ks[6], (PLANES, IN_PLANES, 1, 1), jnp.float32),
        "gsc": 1.0 + 0.1 * jax.random.normal(ks[7], (PLANES,), jnp.float32),
        "bsc": 0.1 * jax.random.normal(ks[8], (PLANES,), jnp.float32),
    }
    x = jax.random.normal(jax.random.PRNGKey(42), (N, IN_PLANES, H, W), jnp.float32)

    out = jax.block_until_ready(basic_block_forward(x, params, STRIDE))
    ref = jax.block_until_ready(basic_block_ref(x, params, STRIDE))
    assert out.shape == ref.shape, (out.shape, ref.shape)
    assert jnp.allclose(out, ref, **TOL), float(jnp.max(jnp.abs(out - ref)))

    # --- block with identity shortcut (in_planes == planes, stride 1) ---
    ks2 = jax.random.split(jax.random.PRNGKey(1), 6)
    P2, H2 = 8, 8
    params2 = {
        "w1": 0.1 * jax.random.normal(ks2[0], (P2, P2, 3, 3), jnp.float32),
        "g1": 1.0 + 0.1 * jax.random.normal(ks2[1], (P2,), jnp.float32),
        "b1": 0.1 * jax.random.normal(ks2[2], (P2,), jnp.float32),
        "w2": 0.1 * jax.random.normal(ks2[3], (P2, P2, 3, 3), jnp.float32),
        "g2": 1.0 + 0.1 * jax.random.normal(ks2[4], (P2,), jnp.float32),
        "b2": 0.1 * jax.random.normal(ks2[5], (P2,), jnp.float32),
    }
    x2 = jax.random.normal(jax.random.PRNGKey(7), (2, P2, H2, H2), jnp.float32)

    out2 = jax.block_until_ready(basic_block_forward(x2, params2, 1))
    ref2 = jax.block_until_ready(basic_block_ref(x2, params2, 1))
    assert out2.shape == ref2.shape, (out2.shape, ref2.shape)
    assert jnp.allclose(out2, ref2, **TOL), float(jnp.max(jnp.abs(out2 - ref2)))

    print("KERNEL_OK")
</pallas_src>

<mosaic_0001>
module attributes {stable_mosaic.version = 11 : i64} {
  func.func @basic_block_kernel(%arg0: memref<2x18x18x128xf32, #tpu.memory_space<vmem>>, %arg1: memref<1152x128xbf16, #tpu.memory_space<vmem>>, %arg2: memref<1x128xf32, #tpu.memory_space<vmem>>, %arg3: memref<1x128xf32, #tpu.memory_space<vmem>>, %arg4: memref<1152x128xbf16, #tpu.memory_space<vmem>>, %arg5: memref<1x128xf32, #tpu.memory_space<vmem>>, %arg6: memref<1x128xf32, #tpu.memory_space<vmem>>, %arg7: memref<128x128xbf16, #tpu.memory_space<vmem>>, %arg8: memref<1x128xf32, #tpu.memory_space<vmem>>, %arg9: memref<1x128xf32, #tpu.memory_space<vmem>>, %arg10: memref<512x128xf32, #tpu.memory_space<vmem>>, %arg11: memref<2x18x18x128xf32, #tpu.memory_space<vmem>>) attributes {dimension_semantics = [], scalar_prefetch = 0 : i64, scratch_operands = 1 : i64, tpu.core_type = #tpu.core_type<tc>} {
    %c0 = arith.constant 0 : index
    %c0_0 = arith.constant 0 : index
    %c0_1 = arith.constant 0 : index
    %c0_2 = arith.constant 0 : index
    %0 = vector.load %arg0[%c0, %c0_0, %c0_1, %c0_2] : memref<2x18x18x128xf32, #tpu.memory_space<vmem>>, vector<2x18x18x128xf32>
    %1 = vector.extract_strided_slice %0 {offsets = [0, 0, 0, 0], sizes = [2, 16, 16, 128], strides = [1, 1, 1, 1]} : vector<2x18x18x128xf32> to vector<2x16x16x128xf32>
    %2 = vector.shape_cast %1 : vector<2x16x16x128xf32> to vector<512x128xf32>
    %3 = arith.truncf %2 : vector<512x128xf32> to vector<512x128xbf16>
    %4 = vector.extract_strided_slice %0 {offsets = [0, 0, 1, 0], sizes = [2, 16, 16, 128], strides = [1, 1, 1, 1]} : vector<2x18x18x128xf32> to vector<2x16x16x128xf32>
    %5 = vector.shape_cast %4 : vector<2x16x16x128xf32> to vector<512x128xf32>
    %6 = arith.truncf %5 : vector<512x128xf32> to vector<512x128xbf16>
    %7 = vector.extract_strided_slice %0 {offsets = [0, 0, 2, 0], sizes = [2, 16, 16, 128], strides = [1, 1, 1, 1]} : vector<2x18x18x128xf32> to vector<2x16x16x128xf32>
    %8 = vector.shape_cast %7 : vector<2x16x16x128xf32> to vector<512x128xf32>
    %9 = arith.truncf %8 : vector<512x128xf32> to vector<512x128xbf16>
    %10 = vector.extract_strided_slice %0 {offsets = [0, 1, 0, 0], sizes = [2, 16, 16, 128], strides = [1, 1, 1, 1]} : vector<2x18x18x128xf32> to vector<2x16x16x128xf32>
    %11 = vector.shape_cast %10 : vector<2x16x16x128xf32> to vector<512x128xf32>
    %12 = arith.truncf %11 : vector<512x128xf32> to vector<512x128xbf16>
    %13 = vector.extract_strided_slice %0 {offsets = [0, 1, 1, 0], sizes = [2, 16, 16, 128], strides = [1, 1, 1, 1]} : vector<2x18x18x128xf32> to vector<2x16x16x128xf32>
    %14 = vector.shape_cast %13 : vector<2x16x16x128xf32> to vector<512x128xf32>
    %15 = arith.truncf %14 : vector<512x128xf32> to vector<512x128xbf16>
    %16 = vector.extract_strided_slice %0 {offsets = [0, 1, 2, 0], sizes = [2, 16, 16, 128], strides = [1, 1, 1, 1]} : vector<2x18x18x128xf32> to vector<2x16x16x128xf32>
    %17 = vector.shape_cast %16 : vector<2x16x16x128xf32> to vector<512x128xf32>
    %18 = arith.truncf %17 : vector<512x128xf32> to vector<512x128xbf16>
    %19 = vector.extract_strided_slice %0 {offsets = [0, 2, 0, 0], sizes = [2, 16, 16, 128], strides = [1, 1, 1, 1]} : vector<2x18x18x128xf32> to vector<2x16x16x128xf32>
    %20 = vector.shape_cast %19 : vector<2x16x16x128xf32> to vector<512x128xf32>
    %21 = arith.truncf %20 : vector<512x128xf32> to vector<512x128xbf16>
    %22 = vector.extract_strided_slice %0 {offsets = [0, 2, 1, 0], sizes = [2, 16, 16, 128], strides = [1, 1, 1, 1]} : vector<2x18x18x128xf32> to vector<2x16x16x128xf32>
    %23 = vector.shape_cast %22 : vector<2x16x16x128xf32> to vector<512x128xf32>
    %24 = arith.truncf %23 : vector<512x128xf32> to vector<512x128xbf16>
    %25 = vector.extract_strided_slice %0 {offsets = [0, 2, 2, 0], sizes = [2, 16, 16, 128], strides = [1, 1, 1, 1]} : vector<2x18x18x128xf32> to vector<2x16x16x128xf32>
    %26 = vector.shape_cast %25 : vector<2x16x16x128xf32> to vector<512x128xf32>
    %27 = arith.truncf %26 : vector<512x128xf32> to vector<512x128xbf16>
    %28 = tpu.concatenate %3, %6, %9, %12, %15, %18, %21, %24, %27 in 1 : vector<512x128xbf16>, vector<512x128xbf16>, vector<512x128xbf16>, vector<512x128xbf16>, vector<512x128xbf16>, vector<512x128xbf16>, vector<512x128xbf16>, vector<512x128xbf16>, vector<512x128xbf16> -> vector<512x1152xbf16>
    %c0_3 = arith.constant 0 : index
    %c0_4 = arith.constant 0 : index
    %29 = vector.load %arg1[%c0_3, %c0_4] : memref<1152x128xbf16, #tpu.memory_space<vmem>>, vector<1152x128xbf16>
    %cst = arith.constant dense<0.000000e+00> : vector<512x128xf32>
    %30 = tpu.matmul %28, %29, %cst {dimension_numbers = #tpu.dot_dimension_numbers<[1], [0], [0], [1], [0, 0, 1, 1], [], []>} : vector<512x1152xbf16>, vector<1152x128xbf16>, vector<512x128xf32> -> vector<512x128xf32>
    %c0_5 = arith.constant 0 : index
    %c0_6 = arith.constant 0 : index
    %31 = vector.load %arg2[%c0_5, %c0_6] : memref<1x128xf32, #tpu.memory_space<vmem>>, vector<1x128xf32>
    %c0_7 = arith.constant 0 : index
    %c0_8 = arith.constant 0 : index
    %32 = vector.load %arg3[%c0_7, %c0_8] : memref<1x128xf32, #tpu.memory_space<vmem>>, vector<1x128xf32>
    %cst_9 = arith.constant dense<0.000000e+00> : vector<128xf32>
    %33 = vector.multi_reduction <add>, %30, %cst_9 [0] : vector<512x128xf32> to vector<128xf32>
    %34 = vector.shape_cast %33 : vector<128xf32> to vector<1x128xf32>
    %35 = arith.mulf %30, %30 : vector<512x128xf32>
    %cst_10 = arith.constant dense<0.000000e+00> : vector<128xf32>
    %36 = vector.multi_reduction <add>, %35, %cst_10 [0] : vector<512x128xf32> to vector<128xf32>
    %37 = vector.shape_cast %36 : vector<128xf32> to vector<1x128xf32>
    %cst_11 = arith.constant 0.001953125 : f32
    %38 = vector.broadcast %cst_11 : f32 to vector<1x128xf32>
    %39 = arith.mulf %34, %38 : vector<1x128xf32>
    %cst_12 = arith.constant 0.001953125 : f32
    %40 = vector.broadcast %cst_12 : f32 to vector<1x128xf32>
    %41 = arith.mulf %37, %40 : vector<1x128xf32>
    %42 = arith.mulf %39, %39 : vector<1x128xf32>
    %43 = arith.subf %41, %42 : vector<1x128xf32>
    %cst_13 = arith.constant 0.000000e+00 : f32
    %44 = vector.broadcast %cst_13 : f32 to vector<1x128xf32>
    %45 = arith.maximumf %43, %44 : vector<1x128xf32>
    %cst_14 = arith.constant 9.99999974E-6 : f32
    %46 = vector.broadcast %cst_14 : f32 to vector<1x128xf32>
    %47 = arith.addf %45, %46 : vector<1x128xf32>
    %48 = math.rsqrt %47 : vector<1x128xf32>
    %49 = arith.mulf %48, %31 : vector<1x128xf32>
    %50 = arith.mulf %39, %49 : vector<1x128xf32>
    %51 = arith.subf %32, %50 : vector<1x128xf32>
    %52 = vector.broadcast %49 : vector<1x128xf32> to vector<512x128xf32>
    %53 = arith.mulf %30, %52 : vector<512x128xf32>
    %54 = vector.broadcast %51 : vector<1x128xf32> to vector<512x128xf32>
    %55 = arith.addf %53, %54 : vector<512x128xf32>
    %cst_15 = arith.constant 0.000000e+00 : f32
    %56 = vector.broadcast %cst_15 : f32 to vector<512x128xf32>
    %57 = arith.maximumf %55, %56 : vector<512x128xf32>
    %cst_16 = arith.constant 0.000000e+00 : f32
    %58 = vector.broadcast %cst_16 : f32 to vector<2x1x18x128xf32>
    %cst_17 = arith.constant 0.000000e+00 : f32
    %59 = vector.broadcast %cst_17 : f32 to vector<2x18x1x128xf32>
    %c0_18 = arith.constant 0 : index
    %c0_19 = arith.constant 0 : index
    %c0_20 = arith.constant 0 : index
    %c0_21 = arith.constant 0 : index
    %60 = vector.load %arg11[%c0_18, %c0_19, %c0_20, %c0_21] : memref<2x18x18x128xf32, #tpu.memory_space<vmem>>, vector<2x1x18x128xf32>
    tpu.vector_store %arg11[%c0_18, %c0_19, %c0_20, %c0_21], %58 {strides = array<i32>} : memref<2x18x18x128xf32, #tpu.memory_space<vmem>>, vector<2x1x18x128xf32>,
    %c0_22 = arith.constant 0 : index
    %c17 = arith.constant 17 : index
    %c0_23 = arith.constant 0 : index
    %c0_24 = arith.constant 0 : index
    %61 = vector.load %arg11[%c0_22, %c17, %c0_23, %c0_24] : memref<2x18x18x128xf32, #tpu.memory_space<vmem>>, vector<2x1x18x128xf32>
    tpu.vector_store %arg11[%c0_22, %c17, %c0_23, %c0_24], %58 {strides = array<i32>} : memref<2x18x18x128xf32, #tpu.memory_space<vmem>>, vector<2x1x18x128xf32>,
    %c0_25 = arith.constant 0 : index
    %c0_26 = arith.constant 0 : index
    %c0_27 = arith.constant 0 : index
    %c0_28 = arith.constant 0 : index
    %62 = vector.load %arg11[%c0_25, %c0_26, %c0_27, %c0_28] : memref<2x18x18x128xf32, #tpu.memory_space<vmem>>, vector<2x18x1x128xf32>
    tpu.vector_store %arg11[%c0_25, %c0_26, %c0_27, %c0_28], %59 {strides = array<i32>} : memref<2x18x18x128xf32, #tpu.memory_space<vmem>>, vector<2x18x1x128xf32>,
    %c0_29 = arith.constant 0 : index
    %c0_30 = arith.constant 0 : index
    %c17_31 = arith.constant 17 : index
    %c0_32 = arith.constant 0 : index
    %63 = vector.load %arg11[%c0_29, %c0_30, %c17_31, %c0_32] : memref<2x18x18x128xf32, #tpu.memory_space<vmem>>, vector<2x18x1x128xf32>
    tpu.vector_store %arg11[%c0_29, %c0_30, %c17_31, %c0_32], %59 {strides = array<i32>} : memref<2x18x18x128xf32, #tpu.memory_space<vmem>>, vector<2x18x1x128xf32>,
    %64 = vector.shape_cast %57 : vector<512x128xf32> to vector<2x16x16x128xf32>
    %c0_33 = arith.constant 0 : index
    %c1 = arith.constant 1 : index
    %c1_34 = arith.constant 1 : index
    %c0_35 = arith.constant 0 : index
    %65 = vector.load %arg11[%c0_33, %c1, %c1_34, %c0_35] : memref<2x18x18x128xf32, #tpu.memory_space<vmem>>, vector<2x16x16x128xf32>
    tpu.vector_store %arg11[%c0_33, %c1, %c1_34, %c0_35], %64 {strides = array<i32>} : memref<2x18x18x128xf32, #tpu.memory_space<vmem>>, vector<2x16x16x128xf32>,
    %c0_36 = arith.constant 0 : index
    %c0_37 = arith.constant 0 : index
    %c0_38 = arith.constant 0 : index
    %c0_39 = arith.constant 0 : index
    %66 = vector.load %arg11[%c0_36, %c0_37, %c0_38, %c0_39] : memref<2x18x18x128xf32, #tpu.memory_space<vmem>>, vector<2x18x18x128xf32>
    %67 = vector.extract_strided_slice %66 {offsets = [0, 0, 0, 0], sizes = [2, 16, 16, 128], strides = [1, 1, 1, 1]} : vector<2x18x18x128xf32> to vector<2x16x16x128xf32>
    %68 = vector.shape_cast %67 : vector<2x16x16x128xf32> to vector<512x128xf32>
    %69 = arith.truncf %68 : vector<512x128xf32> to vector<512x128xbf16>
    %70 = vector.extract_strided_slice %66 {offsets = [0, 0, 1, 0], sizes = [2, 16, 16, 128], strides = [1, 1, 1, 1]} : vector<2x18x18x128xf32> to vector<2x16x16x128xf32>
    %71 = vector.shape_cast %70 : vector<2x16x16x128xf32> to vector<512x128xf32>
    %72 = arith.truncf %71 : vector<512x128xf32> to vector<512x128xbf16>
    %73 = vector.extract_strided_slice %66 {offsets = [0, 0, 2, 0], sizes = [2, 16, 16, 128], strides = [1, 1, 1, 1]} : vector<2x18x18x128xf32> to vector<2x16x16x128xf32>
    %74 = vector.shape_cast %73 : vector<2x16x16x128xf32> to vector<512x128xf32>
    %75 = arith.truncf %74 : vector<512x128xf32> to vector<512x128xbf16>
    %76 = vector.extract_strided_slice %66 {offsets = [0, 1, 0, 0], sizes = [2, 16, 16, 128], strides = [1, 1, 1, 1]} : vector<2x18x18x128xf32> to vector<2x16x16x128xf32>
    %77 = vector.shape_cast %76 : vector<2x16x16x128xf32> to vector<512x128xf32>
    %78 = arith.truncf %77 : vector<512x128xf32> to vector<512x128xbf16>
    %79 = vector.extract_strided_slice %66 {offsets = [0, 1, 1, 0], sizes = [2, 16, 16, 128], strides = [1, 1, 1, 1]} : vector<2x18x18x128xf32> to vector<2x16x16x128xf32>
    %80 = vector.shape_cast %79 : vector<2x16x16x128xf32> to vector<512x128xf32>
    %81 = arith.truncf %80 : vector<512x128xf32> to vector<512x128xbf16>
    %82 = vector.extract_strided_slice %66 {offsets = [0, 1, 2, 0], sizes = [2, 16, 16, 128], strides = [1, 1, 1, 1]} : vector<2x18x18x128xf32> to vector<2x16x16x128xf32>
    %83 = vector.shape_cast %82 : vector<2x16x16x128xf32> to vector<512x128xf32>
    %84 = arith.truncf %83 : vector<512x128xf32> to vector<512x128xbf16>
    %85 = vector.extract_strided_slice %66 {offsets = [0, 2, 0, 0], sizes = [2, 16, 16, 128], strides = [1, 1, 1, 1]} : vector<2x18x18x128xf32> to vector<2x16x16x128xf32>
    %86 = vector.shape_cast %85 : vector<2x16x16x128xf32> to vector<512x128xf32>
    %87 = arith.truncf %86 : vector<512x128xf32> to vector<512x128xbf16>
    %88 = vector.extract_strided_slice %66 {offsets = [0, 2, 1, 0], sizes = [2, 16, 16, 128], strides = [1, 1, 1, 1]} : vector<2x18x18x128xf32> to vector<2x16x16x128xf32>
    %89 = vector.shape_cast %88 : vector<2x16x16x128xf32> to vector<512x128xf32>
    %90 = arith.truncf %89 : vector<512x128xf32> to vector<512x128xbf16>
    %91 = vector.extract_strided_slice %66 {offsets = [0, 2, 2, 0], sizes = [2, 16, 16, 128], strides = [1, 1, 1, 1]} : vector<2x18x18x128xf32> to vector<2x16x16x128xf32>
    %92 = vector.shape_cast %91 : vector<2x16x16x128xf32> to vector<512x128xf32>
    %93 = arith.truncf %92 : vector<512x128xf32> to vector<512x128xbf16>
    %94 = tpu.concatenate %69, %72, %75, %78, %81, %84, %87, %90, %93 in 1 : vector<512x128xbf16>, vector<512x128xbf16>, vector<512x128xbf16>, vector<512x128xbf16>, vector<512x128xbf16>, vector<512x128xbf16>, vector<512x128xbf16>, vector<512x128xbf16>, vector<512x128xbf16> -> vector<512x1152xbf16>
    %c0_40 = arith.constant 0 : index
    %c0_41 = arith.constant 0 : index
    %95 = vector.load %arg4[%c0_40, %c0_41] : memref<1152x128xbf16, #tpu.memory_space<vmem>>, vector<1152x128xbf16>
    %cst_42 = arith.constant dense<0.000000e+00> : vector<512x128xf32>
    %96 = tpu.matmul %94, %95, %cst_42 {dimension_numbers = #tpu.dot_dimension_numbers<[1], [0], [0], [1], [0, 0, 1, 1], [], []>} : vector<512x1152xbf16>, vector<1152x128xbf16>, vector<512x128xf32> -> vector<512x128xf32>
    %c0_43 = arith.constant 0 : index
    %c0_44 = arith.constant 0 : index
    %97 = vector.load %arg5[%c0_43, %c0_44] : memref<1x128xf32, #tpu.memory_space<vmem>>, vector<1x128xf32>
    %c0_45 = arith.constant 0 : index
    %c0_46 = arith.constant 0 : index
    %98 = vector.load %arg6[%c0_45, %c0_46] : memref<1x128xf32, #tpu.memory_space<vmem>>, vector<1x128xf32>
    %cst_47 = arith.constant dense<0.000000e+00> : vector<128xf32>
    %99 = vector.multi_reduction <add>, %96, %cst_47 [0] : vector<512x128xf32> to vector<128xf32>
    %100 = vector.shape_cast %99 : vector<128xf32> to vector<1x128xf32>
    %101 = arith.mulf %96, %96 : vector<512x128xf32>
    %cst_48 = arith.constant dense<0.000000e+00> : vector<128xf32>
    %102 = vector.multi_reduction <add>, %101, %cst_48 [0] : vector<512x128xf32> to vector<128xf32>
    %103 = vector.shape_cast %102 : vector<128xf32> to vector<1x128xf32>
    %cst_49 = arith.constant 0.001953125 : f32
    %104 = vector.broadcast %cst_49 : f32 to vector<1x128xf32>
    %105 = arith.mulf %100, %104 : vector<1x128xf32>
    %cst_50 = arith.constant 0.001953125 : f32
    %106 = vector.broadcast %cst_50 : f32 to vector<1x128xf32>
    %107 = arith.mulf %103, %106 : vector<1x128xf32>
    %108 = arith.mulf %105, %105 : vector<1x128xf32>
    %109 = arith.subf %107, %108 : vector<1x128xf32>
    %cst_51 = arith.constant 0.000000e+00 : f32
    %110 = vector.broadcast %cst_51 : f32 to vector<1x128xf32>
    %111 = arith.maximumf %109, %110 : vector<1x128xf32>
    %cst_52 = arith.constant 9.99999974E-6 : f32
    %112 = vector.broadcast %cst_52 : f32 to vector<1x128xf32>
    %113 = arith.addf %111, %112 : vector<1x128xf32>
    %114 = math.rsqrt %113 : vector<1x128xf32>
    %115 = arith.mulf %114, %97 : vector<1x128xf32>
    %116 = arith.mulf %105, %115 : vector<1x128xf32>
    %117 = arith.subf %98, %116 : vector<1x128xf32>
    %118 = vector.broadcast %115 : vector<1x128xf32> to vector<512x128xf32>
    %119 = arith.mulf %96, %118 : vector<512x128xf32>
    %120 = vector.broadcast %117 : vector<1x128xf32> to vector<512x128xf32>
    %121 = arith.addf %119, %120 : vector<512x128xf32>
    %122 = vector.extract_strided_slice %0 {offsets = [0, 1, 1, 0], sizes = [2, 16, 16, 128], strides = [1, 1, 1, 1]} : vector<2x18x18x128xf32> to vector<2x16x16x128xf32>
    %123 = vector.shape_cast %122 : vector<2x16x16x128xf32> to vector<512x128xf32>
    %124 = arith.truncf %123 : vector<512x128xf32> to vector<512x128xbf16>
    %c0_53 = arith.constant 0 : index
    %c0_54 = arith.constant 0 : index
    %125 = vector.load %arg7[%c0_53, %c0_54] : memref<128x128xbf16, #tpu.memory_space<vmem>>, vector<128x128xbf16>
    %cst_55 = arith.constant dense<0.000000e+00> : vector<512x128xf32>
    %126 = tpu.matmul %124, %125, %cst_55 {dimension_numbers = #tpu.dot_dimension_numbers<[1], [0], [0], [1], [0, 0, 1, 1], [], []>} : vector<512x128xbf16>, vector<128x128xbf16>, vector<512x128xf32> -> vector<512x128xf32>
    %c0_56 = arith.constant 0 : index
    %c0_57 = arith.constant 0 : index
    %127 = vector.load %arg8[%c0_56, %c0_57] : memref<1x128xf32, #tpu.memory_space<vmem>>, vector<1x128xf32>
    %c0_58 = arith.constant 0 : index
    %c0_59 = arith.constant 0 : index
    %128 = vector.load %arg9[%c0_58, %c0_59] : memref<1x128xf32, #tpu.memory_space<vmem>>, vector<1x128xf32>
    %cst_60 = arith.constant dense<0.000000e+00> : vector<128xf32>
    %129 = vector.multi_reduction <add>, %126, %cst_60 [0] : vector<512x128xf32> to vector<128xf32>
    %130 = vector.shape_cast %129 : vector<128xf32> to vector<1x128xf32>
    %131 = arith.mulf %126, %126 : vector<512x128xf32>
    %cst_61 = arith.constant dense<0.000000e+00> : vector<128xf32>
    %132 = vector.multi_reduction <add>, %131, %cst_61 [0] : vector<512x128xf32> to vector<128xf32>
    %133 = vector.shape_cast %132 : vector<128xf32> to vector<1x128xf32>
    %cst_62 = arith.constant 0.001953125 : f32
    %134 = vector.broadcast %cst_62 : f32 to vector<1x128xf32>
    %135 = arith.mulf %130, %134 : vector<1x128xf32>
    %cst_63 = arith.constant 0.001953125 : f32
    %136 = vector.broadcast %cst_63 : f32 to vector<1x128xf32>
    %137 = arith.mulf %133, %136 : vector<1x128xf32>
    %138 = arith.mulf %135, %135 : vector<1x128xf32>
    %139 = arith.subf %137, %138 : vector<1x128xf32>
    %cst_64 = arith.constant 0.000000e+00 : f32
    %140 = vector.broadcast %cst_64 : f32 to vector<1x128xf32>
    %141 = arith.maximumf %139, %140 : vector<1x128xf32>
    %cst_65 = arith.constant 9.99999974E-6 : f32
    %142 = vector.broadcast %cst_65 : f32 to vector<1x128xf32>
    %143 = arith.addf %141, %142 : vector<1x128xf32>
    %144 = math.rsqrt %143 : vector<1x128xf32>
    %145 = arith.mulf %144, %127 : vector<1x128xf32>
    %146 = arith.mulf %135, %145 : vector<1x128xf32>
    %147 = arith.subf %128, %146 : vector<1x128xf32>
    %148 = vector.broadcast %145 : vector<1x128xf32> to vector<512x128xf32>
    %149 = arith.mulf %126, %148 : vector<512x128xf32>
    %150 = vector.broadcast %147 : vector<1x128xf32> to vector<512x128xf32>
    %151 = arith.addf %149, %150 : vector<512x128xf32>
    %152 = arith.addf %121, %151 : vector<512x128xf32>
    %cst_66 = arith.constant 0.000000e+00 : f32
    %153 = vector.broadcast %cst_66 : f32 to vector<512x128xf32>
    %154 = arith.maximumf %152, %153 : vector<512x128xf32>
    %c0_67 = arith.constant 0 : index
    %c0_68 = arith.constant 0 : index
    %155 = vector.load %arg10[%c0_67, %c0_68] : memref<512x128xf32, #tpu.memory_space<vmem>>, vector<512x128xf32>
    tpu.vector_store %arg10[%c0_67, %c0_68], %154 {strides = array<i32>} : memref<512x128xf32, #tpu.memory_space<vmem>>, vector<512x128xf32>,
    return
  }
}

</mosaic_0001>

<llo_original>
// kernel: tpu_custom_call.1
$region0: #{tpu_custom_call.1}
  #allocation0 [shape = 'u32[]', space=smem, size = 0x4, offset = 0x4, fixed_abs, tag = 'smem constant byte address 0x4 - core index']
  #allocation1 [shape = 'u32[144,128]{1,0:T(1,128)}', space=vmem, size = 0x12000, scoped, tag = 'internal scratch']
  #allocation2 [shape = 'f32[2,18,18,128]{3,2,1,0:T(8,128)}', space=vmem, size = 0x6c000, scoped, tag = 'scratch operand']
  %s0 = inlined_call_operand.vmem [shape: f32[2,18,18,128], index: 0, kind: input, shape index: {}]
  %s1 = inlined_call_operand.vmem [shape: bf16[1152,128], index: 1, kind: input, shape index: {}]
  %s2 = inlined_call_operand.vmem [shape: f32[1,128], index: 2, kind: input, shape index: {}]
  %s3 = inlined_call_operand.vmem [shape: f32[1,128], index: 3, kind: input, shape index: {}]
  %s4 = inlined_call_operand.vmem [shape: bf16[1152,128], index: 4, kind: input, shape index: {}]
  %s5 = inlined_call_operand.vmem [shape: f32[1,128], index: 5, kind: input, shape index: {}]
  %s6 = inlined_call_operand.vmem [shape: f32[1,128], index: 6, kind: input, shape index: {}]
  %s7 = inlined_call_operand.vmem [shape: bf16[128,128], index: 7, kind: input, shape index: {}]
  %s8 = inlined_call_operand.vmem [shape: f32[1,128], index: 8, kind: input, shape index: {}]
  %s9 = inlined_call_operand.vmem [shape: f32[1,128], index: 9, kind: input, shape index: {}]
  %s10 = inlined_call_operand.hbm [shape: f32[512,128], index: 10, kind: output, shape index: {}]
  %s11 = sld [smem:[#allocation0]]
  $region50: #{tpu_custom_call.1} parent=0
    _
  %s13 = ssub.s32 1, %s11
  %s14 = scalar_select 0, %s13, %s11
  $region1: #{tpu_custom_call.1} parent=0
    #allocation3 [shape = 'u8[262144]{0}', space=vmem, size = 0x40000, scoped, tag = 'output window, operand 0, single buffered']
    #allocation4 [shape = 's32[1]{0}', space=sflag, size = 0x4, scoped, tag = 'scoped memory for tpu_custom_call.1']
    %15 = vsyncpa [#allocation4], 0
    // Predicated region
    $region2: #{tpu_custom_call.1} parent=1 // pred_check
      _
    $region3: #{tpu_custom_call.1} parent=1 // pred_check_branch
      %17 = sbr.rel (0) target = $region5
    $region4: #{tpu_custom_call.1} parent=1 // pred_region
      _
    $region5: #{tpu_custom_call.1} parent=1 // pred_fallthru
      _
    // Predicated region
    $region6: #{tpu_custom_call.1} parent=1 // pred_check
      _
    $region7: #{tpu_custom_call.1} parent=1 // pred_check_branch
      %19 = sbr.rel (0) target = $region9
    $region8: #{tpu_custom_call.1} parent=1 // pred_region
      _
    $region9: #{tpu_custom_call.1} parent=1 // pred_fallthru
      _
    // Predicated region
    $region10: #{tpu_custom_call.1} parent=1 // pred_check
      _
    $region11: #{tpu_custom_call.1} parent=1 // pred_check_branch
      %21 = sbr.rel (0) target = $region13
    $region12: #{tpu_custom_call.1} parent=1 // pred_region
      _
    $region13: #{tpu_custom_call.1} parent=1 // pred_fallthru
      _
    // Predicated region
    $region14: #{tpu_custom_call.1} parent=1 // pred_check
      _
    $region15: #{tpu_custom_call.1} parent=1 // pred_check_branch
      %23 = sbr.rel (0) target = $region17
    $region16: #{tpu_custom_call.1} parent=1 // pred_region
      _
    $region17: #{tpu_custom_call.1} parent=1 // pred_fallthru
      _
    // Predicated region
    $region18: #{tpu_custom_call.1} parent=1 // pred_check
      _
    $region19: #{tpu_custom_call.1} parent=1 // pred_check_branch
      %25 = sbr.rel (0) target = $region21
    $region20: #{tpu_custom_call.1} parent=1 // pred_region
      _
    $region21: #{tpu_custom_call.1} parent=1 // pred_fallthru
      _
    // Predicated region
    $region22: #{tpu_custom_call.1} parent=1 // pred_check
      _
    $region23: #{tpu_custom_call.1} parent=1 // pred_check_branch
      %27 = sbr.rel (0) target = $region25
    $region24: #{tpu_custom_call.1} parent=1 // pred_region
      _
    $region25: #{tpu_custom_call.1} parent=1 // pred_fallthru
      _
    // Predicated region
    $region26: #{tpu_custom_call.1} parent=1 // pred_check
      _
    $region27: #{tpu_custom_call.1} parent=1 // pred_check_branch
      %29 = sbr.rel (0) target = $region29
    $region28: #{tpu_custom_call.1} parent=1 // pred_region
      _
    $region29: #{tpu_custom_call.1} parent=1 // pred_fallthru
      _
    // Predicated region
    $region30: #{tpu_custom_call.1} parent=1 // pred_check
      _
    $region31: #{tpu_custom_call.1} parent=1 // pred_check_branch
      %31 = sbr.rel (0) target = $region33
    $region32: #{tpu_custom_call.1} parent=1 // pred_region
      _
    $region33: #{tpu_custom_call.1} parent=1 // pred_fallthru
      _
    // Predicated region
    $region34: #{tpu_custom_call.1} parent=1 // pred_check
      _
    $region35: #{tpu_custom_call.1} parent=1 // pred_check_branch
      %33 = sbr.rel (0) target = $region37
    $region36: #{tpu_custom_call.1} parent=1 // pred_region
      _
    $region37: #{tpu_custom_call.1} parent=1 // pred_fallthru
      _
    // Predicated region
    $region38: #{tpu_custom_call.1} parent=1 // pred_check
      _
    $region39: #{tpu_custom_call.1} parent=1 // pred_check_branch
      %35 = sbr.rel (0) target = $region41
    $region40: #{tpu_custom_call.1} parent=1 // pred_region
      _
    $region41: #{tpu_custom_call.1} parent=1 // pred_fallthru
      _
    %v37 = vld [vmem:[%s0] sm:$0xff]
    %v38 = vld [vmem:[%s0 + $0x8] sm:$0xff]
    %v39 = vld [vmem:[%s0 + $0x10] sm:$0x3]
    %v40 = vld [vmem:[%s0 + $0x18] sm:$0xff]
    %v41 = vld [vmem:[%s0 + $0x20] sm:$0xff]
    %v42 = vld [vmem:[%s0 + $0x28] sm:$0x3]
    %v43 = vld [vmem:[%s0 + $0x30] sm:$0xff]
    %v44 = vld [vmem:[%s0 + $0x38] sm:$0xff]
    %v45 = vld [vmem:[%s0 + $0x40] sm:$0x3]
    %v46 = vld [vmem:[%s0 + $0x48] sm:$0xff]
    %v47 = vld [vmem:[%s0 + $0x50] sm:$0xff]
    %v48 = vld [vmem:[%s0 + $0x58] sm:$0x3]
    %v49 = vld [vmem:[%s0 + $0x60] sm:$0xff]
    %v50 = vld [vmem:[%s0 + $0x68] sm:$0xff]
    %v51 = vld [vmem:[%s0 + $0x70] sm:$0x3]
    %v52 = vld [vmem:[%s0 + $0x78] sm:$0xff]
    %v53 = vld [vmem:[%s0 + $0x80] sm:$0xff]
    %v54 = vld [vmem:[%s0 + $0x88] sm:$0x3]
    %v55 = vld [vmem:[%s0 + $0x90] sm:$0xff]
    %v56 = vld [vmem:[%s0 + $0x98] sm:$0xff]
    %v57 = vld [vmem:[%s0 + $0xa0] sm:$0x3]
    %v58 = vld [vmem:[%s0 + $0xa8] sm:$0xff]
    %v59 = vld [vmem:[%s0 + $0xb0] sm:$0xff]
    %v60 = vld [vmem:[%s0 + $0xb8] sm:$0x3]
    %v61 = vld [vmem:[%s0 + $0xc0] sm:$0xff]
    %v62 = vld [vmem:[%s0 + $0xc8] sm:$0xff]
    %v63 = vld [vmem:[%s0 + $0xd0] sm:$0x3]
    %v64 = vld [vmem:[%s0 + $0xd8] sm:$0xff]
    %v65 = vld [vmem:[%s0 + $0xe0] sm:$0xff]
    %v66 = vld [vmem:[%s0 + $0xe8] sm:$0x3]
    %v67 = vld [vmem:[%s0 + $0xf0] sm:$0xff]
    %v68 = vld [vmem:[%s0 + $0xf8] sm:$0xff]
    %v69 = vld [vmem:[%s0 + $0x100] sm:$0x3]
    %v70 = vld [vmem:[%s0 + $0x108] sm:$0xff]
    %v71 = vld [vmem:[%s0 + $0x110] sm:$0xff]
    %v72 = vld [vmem:[%s0 + $0x118] sm:$0x3]
    %v73 = vld [vmem:[%s0 + $0x120] sm:$0xff]
    %v74 = vld [vmem:[%s0 + $0x128] sm:$0xff]
    %v75 = vld [vmem:[%s0 + $0x130] sm:$0x3]
    %v76 = vld [vmem:[%s0 + $0x138] sm:$0xff]
    %v77 = vld [vmem:[%s0 + $0x140] sm:$0xff]
    %v78 = vld [vmem:[%s0 + $0x148] sm:$0x3]
    %v79 = vld [vmem:[%s0 + $0x150] sm:$0xff]
    %v80 = vld [vmem:[%s0 + $0x158] sm:$0xff]
    %v81 = vld [vmem:[%s0 + $0x160] sm:$0x3]
    %v82 = vld [vmem:[%s0 + $0x168] sm:$0xff]
    %v83 = vld [vmem:[%s0 + $0x170] sm:$0xff]
    %v84 = vld [vmem:[%s0 + $0x178] sm:$0x3]
    %v85 = vld [vmem:[%s0 + $0x180] sm:$0xff]
    %v86 = vld [vmem:[%s0 + $0x188] sm:$0xff]
    %v87 = vld [vmem:[%s0 + $0x190] sm:$0x3]
    %v88 = vld [vmem:[%s0 + $0x198] sm:$0xff]
    %v89 = vld [vmem:[%s0 + $0x1a0] sm:$0xff]
    %v90 = vld [vmem:[%s0 + $0x1a8] sm:$0x3]
    %v91 = vld [vmem:[%s0 + $0x1b0] sm:$0xff]
    %v92 = vld [vmem:[%s0 + $0x1b8] sm:$0xff]
    %v93 = vld [vmem:[%s0 + $0x1c0] sm:$0x3]
    %v94 = vld [vmem:[%s0 + $0x1c8] sm:$0xff]
    %v95 = vld [vmem:[%s0 + $0x1d0] sm:$0xff]
    %v96 = vld [vmem:[%s0 + $0x1d8] sm:$0x3]
    %v97 = vld [vmem:[%s0 + $0x1e0] sm:$0xff]
    %v98 = vld [vmem:[%s0 + $0x1e8] sm:$0xff]
    %v99 = vld [vmem:[%s0 + $0x1f0] sm:$0x3]
    %v100 = vld [vmem:[%s0 + $0x1f8] sm:$0xff]
    %v101 = vld [vmem:[%s0 + $0x200] sm:$0xff]
    %v102 = vld [vmem:[%s0 + $0x208] sm:$0x3]
    %v103 = vld [vmem:[%s0 + $0x210] sm:$0xff]
    %v104 = vld [vmem:[%s0 + $0x218] sm:$0xff]
    %v105 = vld [vmem:[%s0 + $0x220] sm:$0x3]
    %v106 = vld [vmem:[%s0 + $0x228] sm:$0xff]
    %v107 = vld [vmem:[%s0 + $0x230] sm:$0xff]
    %v108 = vld [vmem:[%s0 + $0x238] sm:$0x3]
    %v109 = vld [vmem:[%s0 + $0x240] sm:$0xff]
    %v110 = vld [vmem:[%s0 + $0x248] sm:$0xff]
    %v111 = vld [vmem:[%s0 + $0x250] sm:$0x3]
    %v112 = vld [vmem:[%s0 + $0x258] sm:$0xff]
    %v113 = vld [vmem:[%s0 + $0x260] sm:$0xff]
    %v114 = vld [vmem:[%s0 + $0x268] sm:$0x3]
    %v115 = vld [vmem:[%s0 + $0x270] sm:$0xff]
    %v116 = vld [vmem:[%s0 + $0x278] sm:$0xff]
    %v117 = vld [vmem:[%s0 + $0x280] sm:$0x3]
    %v118 = vld [vmem:[%s0 + $0x288] sm:$0xff]
    %v119 = vld [vmem:[%s0 + $0x290] sm:$0xff]
    %v120 = vld [vmem:[%s0 + $0x298] sm:$0x3]
    %v121 = vld [vmem:[%s0 + $0x2a0] sm:$0xff]
    %v122 = vld [vmem:[%s0 + $0x2a8] sm:$0xff]
    %v123 = vld [vmem:[%s0 + $0x2b0] sm:$0x3]
    %v124 = vld [vmem:[%s0 + $0x2b8] sm:$0xff]
    %v125 = vld [vmem:[%s0 + $0x2c0] sm:$0xff]
    %v126 = vld [vmem:[%s0 + $0x2c8] sm:$0x3]
    %v127 = vld [vmem:[%s0 + $0x2d0] sm:$0xff]
    %v128 = vld [vmem:[%s0 + $0x2d8] sm:$0xff]
    %v129 = vld [vmem:[%s0 + $0x2e0] sm:$0x3]
    %v130 = vld [vmem:[%s0 + $0x2e8] sm:$0xff]
    %v131 = vld [vmem:[%s0 + $0x2f0] sm:$0xff]
    %v132 = vld [vmem:[%s0 + $0x2f8] sm:$0x3]
    %v133 = vld [vmem:[%s0 + $0x300] sm:$0xff]
    %v134 = vld [vmem:[%s0 + $0x308] sm:$0xff]
    %v135 = vld [vmem:[%s0 + $0x310] sm:$0x3]
    %v136 = vld [vmem:[%s0 + $0x318] sm:$0xff]
    %v137 = vld [vmem:[%s0 + $0x320] sm:$0xff]
    %v138 = vld [vmem:[%s0 + $0x328] sm:$0x3]
    %v139 = vld [vmem:[%s0 + $0x330] sm:$0xff]
    %v140 = vld [vmem:[%s0 + $0x338] sm:$0xff]
    %v141 = vld [vmem:[%s0 + $0x340] sm:$0x3]
    %v142 = vld [vmem:[%s0 + $0x348] sm:$0xff]
    %v143 = vld [vmem:[%s0 + $0x350] sm:$0xff]
    %v144 = vld [vmem:[%s0 + $0x358] sm:$0x3]
    %v145 = vpack.c.bf16 %v38, %v37
    %v146 = vpack.c.bf16 %v41, %v40
    %v147 = vpack.c.bf16 %v44, %v43
    %v148 = vpack.c.bf16 %v47, %v46
    %v149 = vpack.c.bf16 %v50, %v49
    %v150 = vpack.c.bf16 %v53, %v52
    %v151 = vpack.c.bf16 %v56, %v55
    %v152 = vpack.c.bf16 %v59, %v58
    %v153 = vpack.c.bf16 %v62, %v61
    %v154 = vpack.c.bf16 %v65, %v64
    %v155 = vpack.c.bf16 %v68, %v67
    %v156 = vpack.c.bf16 %v71, %v70
    %v157 = vpack.c.bf16 %v74, %v73
    %v158 = vpack.c.bf16 %v77, %v76
    %v159 = vpack.c.bf16 %v80, %v79
    %v160 = vpack.c.bf16 %v83, %v82
    %v161 = vpack.c.bf16 %v92, %v91
    %v162 = vpack.c.bf16 %v95, %v94
    %v163 = vpack.c.bf16 %v98, %v97
    %v164 = vpack.c.bf16 %v101, %v100
    %v165 = vpack.c.bf16 %v104, %v103
    %v166 = vpack.c.bf16 %v107, %v106
    %v167 = vpack.c.bf16 %v110, %v109
    %v168 = vpack.c.bf16 %v113, %v112
    %v169 = vpack.c.bf16 %v116, %v115
    %v170 = vpack.c.bf16 %v119, %v118
    %v171 = vpack.c.bf16 %v122, %v121
    %v172 = vpack.c.bf16 %v125, %v124
    %v173 = vpack.c.bf16 %v128, %v127
    %v174 = vpack.c.bf16 %v131, %v130
    %v175 = vpack.c.bf16 %v134, %v133
    %v176 = vpack.c.bf16 %v137, %v136
    %vm273 = vcmask 1046528
    %v274 = vrot.slane %v37, 1
    %v275 = vrot.slane %v38, 1
    %v276 = vsel %vm273, %v274, %v275
    %v277 = vrot.slane %v39, 1
    %v278 = vsel %vm273, %v275, %v277
    %v279 = vrot.slane %v40, 1
    %v280 = vrot.slane %v41, 1
    %v281 = vsel %vm273, %v279, %v280
    %v282 = vrot.slane %v42, 1
    %v283 = vsel %vm273, %v280, %v282
    %v284 = vrot.slane %v43, 1
    %v285 = vrot.slane %v44, 1
    %v286 = vsel %vm273, %v284, %v285
    %v287 = vrot.slane %v45, 1
    %v288 = vsel %vm273, %v285, %v287
    %v289 = vrot.slane %v46, 1
    %v290 = vrot.slane %v47, 1
    %v291 = vsel %vm273, %v289, %v290
    %v292 = vrot.slane %v48, 1
    %v293 = vsel %vm273, %v290, %v292
    %v294 = vrot.slane %v49, 1
    %v295 = vrot.slane %v50, 1
    %v296 = vsel %vm273, %v294, %v295
    %v297 = vrot.slane %v51, 1
    %v298 = vsel %vm273, %v295, %v297
    %v299 = vrot.slane %v52, 1
    %v300 = vrot.slane %v53, 1
    %v301 = vsel %vm273, %v299, %v300
    %v302 = vrot.slane %v54, 1
    %v303 = vsel %vm273, %v300, %v302
    %v304 = vrot.slane %v55, 1
    %v305 = vrot.slane %v56, 1
    %v306 = vsel %vm273, %v304, %v305
    %v307 = vrot.slane %v57, 1
    %v308 = vsel %vm273, %v305, %v307
    %v309 = vrot.slane %v58, 1
    %v310 = vrot.slane %v59, 1
    %v311 = vsel %vm273, %v309, %v310
    %v312 = vrot.slane %v60, 1
    %v313 = vsel %vm273, %v310, %v312
    %v314 = vrot.slane %v61, 1
    %v315 = vrot.slane %v62, 1
    %v316 = vsel %vm273, %v314, %v315
    %v317 = vrot.slane %v63, 1
    %v318 = vsel %vm273, %v315, %v317
    %v319 = vrot.slane %v64, 1
    %v320 = vrot.slane %v65, 1
    %v321 = vsel %vm273, %v319, %v320
    %v322 = vrot.slane %v66, 1
    %v323 = vsel %vm273, %v320, %v322
    %v324 = vrot.slane %v67, 1
    %v325 = vrot.slane %v68, 1
    %v326 = vsel %vm273, %v324, %v325
    %v327 = vrot.slane %v69, 1
    %v328 = vsel %vm273, %v325, %v327
    %v329 = vrot.slane %v70, 1
    %v330 = vrot.slane %v71, 1
    %v331 = vsel %vm273, %v329, %v330
    %v332 = vrot.slane %v72, 1
    %v333 = vsel %vm273, %v330, %v332
    %v334 = vrot.slane %v73, 1
    %v335 = vrot.slane %v74, 1
    %v336 = vsel %vm273, %v334, %v335
    %v337 = vrot.slane %v75, 1
    %v338 = vsel %vm273, %v335, %v337
    %v339 = vrot.slane %v76, 1
    %v340 = vrot.slane %v77, 1
    %v341 = vsel %vm273, %v339, %v340
    %v342 = vrot.slane %v78, 1
    %v343 = vsel %vm273, %v340, %v342
    %v344 = vrot.slane %v79, 1
    %v345 = vrot.slane %v80, 1
    %v346 = vsel %vm273, %v344, %v345
    %v347 = vrot.slane %v81, 1
    %v348 = vsel %vm273, %v345, %v347
    %v349 = vrot.slane %v82, 1
    %v350 = vrot.slane %v83, 1
    %v351 = vsel %vm273, %v349, %v350
    %v352 = vrot.slane %v84, 1
    %v353 = vsel %vm273, %v350, %v352
    %v354 = vrot.slane %v91, 1
    %v355 = vrot.slane %v92, 1
    %v356 = vsel %vm273, %v354, %v355
    %v357 = vrot.slane %v93, 1
    %v358 = vsel %vm273, %v355, %v357
    %v359 = vrot.slane %v94, 1
    %v360 = vrot.slane %v95, 1
    %v361 = vsel %vm273, %v359, %v360
    %v362 = vrot.slane %v96, 1
    %v363 = vsel %vm273, %v360, %v362
    %v364 = vrot.slane %v97, 1
    %v365 = vrot.slane %v98, 1
    %v366 = vsel %vm273, %v364, %v365
    %v367 = vrot.slane %v99, 1
    %v368 = vsel %vm273, %v365, %v367
    %v369 = vrot.slane %v100, 1
    %v370 = vrot.slane %v101, 1
    %v371 = vsel %vm273, %v369, %v370
    %v372 = vrot.slane %v102, 1
    %v373 = vsel %vm273, %v370, %v372
    %v374 = vrot.slane %v103, 1
    %v375 = vrot.slane %v104, 1
    %v376 = vsel %vm273, %v374, %v375
    %v377 = vrot.slane %v105, 1
    %v378 = vsel %vm273, %v375, %v377
    %v379 = vrot.slane %v106, 1
    %v380 = vrot.slane %v107, 1
    %v381 = vsel %vm273, %v379, %v380
    %v382 = vrot.slane %v108, 1
    %v383 = vsel %vm273, %v380, %v382
    %v384 = vrot.slane %v109, 1
    %v385 = vrot.slane %v110, 1
    %v386 = vsel %vm273, %v384, %v385
    %v387 = vrot.slane %v111, 1
    %v388 = vsel %vm273, %v385, %v387
    %v389 = vrot.slane %v112, 1
    %v390 = vrot.slane %v113, 1
    %v391 = vsel %vm273, %v389, %v390
    %v392 = vrot.slane %v114, 1
    %v393 = vsel %vm273, %v390, %v392
    %v394 = vrot.slane %v115, 1
    %v395 = vrot.slane %v116, 1
    %v396 = vsel %vm273, %v394, %v395
    %v397 = vrot.slane %v117, 1
    %v398 = vsel %vm273, %v395, %v397
    %v399 = vrot.slane %v118, 1
    %v400 = vrot.slane %v119, 1
    %v401 = vsel %vm273, %v399, %v400
    %v402 = vrot.slane %v120, 1
    %v403 = vsel %vm273, %v400, %v402
    %v404 = vrot.slane %v121, 1
    %v405 = vrot.slane %v122, 1
    %v406 = vsel %vm273, %v404, %v405
    %v407 = vrot.slane %v123, 1
    %v408 = vsel %vm273, %v405, %v407
    %v409 = vrot.slane %v124, 1
    %v410 = vrot.slane %v125, 1
    %v411 = vsel %vm273, %v409, %v410
    %v412 = vrot.slane %v126, 1
    %v413 = vsel %vm273, %v410, %v412
    %v414 = vrot.slane %v127, 1
    %v415 = vrot.slane %v128, 1
    %v416 = vsel %vm273, %v414, %v415
    %v417 = vrot.slane %v129, 1
    %v418 = vsel %vm273, %v415, %v417
    %v419 = vrot.slane %v130, 1
    %v420 = vrot.slane %v131, 1
    %v421 = vsel %vm273, %v419, %v420
    %v422 = vrot.slane %v132, 1
    %v423 = vsel %vm273, %v420, %v422
    %v424 = vrot.slane %v133, 1
    %v425 = vrot.slane %v134, 1
    %v426 = vsel %vm273, %v424, %v425
    %v427 = vrot.slane %v135, 1
    %v428 = vsel %vm273, %v425, %v427
    %v429 = vrot.slane %v136, 1
    %v430 = vrot.slane %v137, 1
    %v431 = vsel %vm273, %v429, %v430
    %v432 = vrot.slane %v138, 1
    %v433 = vsel %vm273, %v430, %v432
    %v498 = vpack.c.bf16 %v278, %v276
    %v499 = vpack.c.bf16 %v283, %v281
    %v500 = vpack.c.bf16 %v288, %v286
    %v501 = vpack.c.bf16 %v293, %v291
    %v502 = vpack.c.bf16 %v298, %v296
    %v503 = vpack.c.bf16 %v303, %v301
    %v504 = vpack.c.bf16 %v308, %v306
    %v505 = vpack.c.bf16 %v313, %v311
    %v506 = vpack.c.bf16 %v318, %v316
    %v507 = vpack.c.bf16 %v323, %v321
    %v508 = vpack.c.bf16 %v328, %v326
    %v509 = vpack.c.bf16 %v333, %v331
    %v510 = vpack.c.bf16 %v338, %v336
    %v511 = vpack.c.bf16 %v343, %v341
    %v512 = vpack.c.bf16 %v348, %v346
    %v513 = vpack.c.bf16 %v353, %v351
    %v514 = vpack.c.bf16 %v358, %v356
    %v515 = vpack.c.bf16 %v363, %v361
    %v516 = vpack.c.bf16 %v368, %v366
    %v517 = vpack.c.bf16 %v373, %v371
    %v518 = vpack.c.bf16 %v378, %v376
    %v519 = vpack.c.bf16 %v383, %v381
    %v520 = vpack.c.bf16 %v388, %v386
    %v521 = vpack.c.bf16 %v393, %v391
    %v522 = vpack.c.bf16 %v398, %v396
    %v523 = vpack.c.bf16 %v403, %v401
    %v524 = vpack.c.bf16 %v408, %v406
    %v525 = vpack.c.bf16 %v413, %v411
    %v526 = vpack.c.bf16 %v418, %v416
    %v527 = vpack.c.bf16 %v423, %v421
    %v528 = vpack.c.bf16 %v428, %v426
    %v529 = vpack.c.bf16 %v433, %v431
    %vm530 = vcmask 1045504
    %v531 = vrot.slane %v37, 2
    %v532 = vrot.slane %v38, 2
    %v533 = vsel %vm530, %v531, %v532
    %v534 = vrot.slane %v39, 2
    %v535 = vsel %vm530, %v532, %v534
    %v536 = vrot.slane %v40, 2
    %v537 = vrot.slane %v41, 2
    %v538 = vsel %vm530, %v536, %v537
    %v539 = vrot.slane %v42, 2
    %v540 = vsel %vm530, %v537, %v539
    %v541 = vrot.slane %v43, 2
    %v542 = vrot.slane %v44, 2
    %v543 = vsel %vm530, %v541, %v542
    %v544 = vrot.slane %v45, 2
    %v545 = vsel %vm530, %v542, %v544
    %v546 = vrot.slane %v46, 2
    %v547 = vrot.slane %v47, 2
    %v548 = vsel %vm530, %v546, %v547
    %v549 = vrot.slane %v48, 2
    %v550 = vsel %vm530, %v547, %v549
    %v551 = vrot.slane %v49, 2
    %v552 = vrot.slane %v50, 2
    %v553 = vsel %vm530, %v551, %v552
    %v554 = vrot.slane %v51, 2
    %v555 = vsel %vm530, %v552, %v554
    %v556 = vrot.slane %v52, 2
    %v557 = vrot.slane %v53, 2
    %v558 = vsel %vm530, %v556, %v557
    %v559 = vrot.slane %v54, 2
    %v560 = vsel %vm530, %v557, %v559
    %v561 = vrot.slane %v55, 2
    %v562 = vrot.slane %v56, 2
    %v563 = vsel %vm530, %v561, %v562
    %v564 = vrot.slane %v57, 2
    %v565 = vsel %vm530, %v562, %v564
    %v566 = vrot.slane %v58, 2
    %v567 = vrot.slane %v59, 2
    %v568 = vsel %vm530, %v566, %v567
    %v569 = vrot.slane %v60, 2
    %v570 = vsel %vm530, %v567, %v569
    %v571 = vrot.slane %v61, 2
    %v572 = vrot.slane %v62, 2
    %v573 = vsel %vm530, %v571, %v572
    %v574 = vrot.slane %v63, 2
    %v575 = vsel %vm530, %v572, %v574
    %v576 = vrot.slane %v64, 2
    %v577 = vrot.slane %v65, 2
    %v578 = vsel %vm530, %v576, %v577
    %v579 = vrot.slane %v66, 2
    %v580 = vsel %vm530, %v577, %v579
    %v581 = vrot.slane %v67, 2
    %v582 = vrot.slane %v68, 2
    %v583 = vsel %vm530, %v581, %v582
    %v584 = vrot.slane %v69, 2
    %v585 = vsel %vm530, %v582, %v584
    %v586 = vrot.slane %v70, 2
    %v587 = vrot.slane %v71, 2
    %v588 = vsel %vm530, %v586, %v587
    %v589 = vrot.slane %v72, 2
    %v590 = vsel %vm530, %v587, %v589
    %v591 = vrot.slane %v73, 2
    %v592 = vrot.slane %v74, 2
    %v593 = vsel %vm530, %v591, %v592
    %v594 = vrot.slane %v75, 2
    %v595 = vsel %vm530, %v592, %v594
    %v596 = vrot.slane %v76, 2
    %v597 = vrot.slane %v77, 2
    %v598 = vsel %vm530, %v596, %v597
    %v599 = vrot.slane %v78, 2
    %v600 = vsel %vm530, %v597, %v599
    %v601 = vrot.slane %v79, 2
    %v602 = vrot.slane %v80, 2
    %v603 = vsel %vm530, %v601, %v602
    %v604 = vrot.slane %v81, 2
    %v605 = vsel %vm530, %v602, %v604
    %v606 = vrot.slane %v82, 2
    %v607 = vrot.slane %v83, 2
    %v608 = vsel %vm530, %v606, %v607
    %v609 = vrot.slane %v84, 2
    %v610 = vsel %vm530, %v607, %v609
    %v611 = vrot.slane %v91, 2
    %v612 = vrot.slane %v92, 2
    %v613 = vsel %vm530, %v611, %v612
    %v614 = vrot.slane %v93, 2
    %v615 = vsel %vm530, %v612, %v614
    %v616 = vrot.slane %v94, 2
    %v617 = vrot.slane %v95, 2
    %v618 = vsel %vm530, %v616, %v617
    %v619 = vrot.slane %v96, 2
    %v620 = vsel %vm530, %v617, %v619
    %v621 = vrot.slane %v97, 2
    %v622 = vrot.slane %v98, 2
    %v623 = vsel %vm530, %v621, %v622
    %v624 = vrot.slane %v99, 2
    %v625 = vsel %vm530, %v622, %v624
    %v626 = vrot.slane %v100, 2
    %v627 = vrot.slane %v101, 2
    %v628 = vsel %vm530, %v626, %v627
    %v629 = vrot.slane %v102, 2
    %v630 = vsel %vm530, %v627, %v629
    %v631 = vrot.slane %v103, 2
    %v632 = vrot.slane %v104, 2
    %v633 = vsel %vm530, %v631, %v632
    %v634 = vrot.slane %v105, 2
    %v635 = vsel %vm530, %v632, %v634
    %v636 = vrot.slane %v106, 2
    %v637 = vrot.slane %v107, 2
    %v638 = vsel %vm530, %v636, %v637
    %v639 = vrot.slane %v108, 2
    %v640 = vsel %vm530, %v637, %v639
    %v641 = vrot.slane %v109, 2
    %v642 = vrot.slane %v110, 2
    %v643 = vsel %vm530, %v641, %v642
    %v644 = vrot.slane %v111, 2
    %v645 = vsel %vm530, %v642, %v644
    %v646 = vrot.slane %v112, 2
    %v647 = vrot.slane %v113, 2
    %v648 = vsel %vm530, %v646, %v647
    %v649 = vrot.slane %v114, 2
    %v650 = vsel %vm530, %v647, %v649
    %v651 = vrot.slane %v115, 2
    %v652 = vrot.slane %v116, 2
    %v653 = vsel %vm530, %v651, %v652
    %v654 = vrot.slane %v117, 2
    %v655 = vsel %vm530, %v652, %v654
    %v656 = vrot.slane %v118, 2
    %v657 = vrot.slane %v119, 2
    %v658 = vsel %vm530, %v656, %v657
    %v659 = vrot.slane %v120, 2
    %v660 = vsel %vm530, %v657, %v659
    %v661 = vrot.slane %v121, 2
    %v662 = vrot.slane %v122, 2
    %v663 = vsel %vm530, %v661, %v662
    %v664 = vrot.slane %v123, 2
    %v665 = vsel %vm530, %v662, %v664
    %v666 = vrot.slane %v124, 2
    %v667 = vrot.slane %v125, 2
    %v668 = vsel %vm530, %v666, %v667
    %v669 = vrot.slane %v126, 2
    %v670 = vsel %vm530, %v667, %v669
    %v671 = vrot.slane %v127, 2
    %v672 = vrot.slane %v128, 2
    %v673 = vsel %vm530, %v671, %v672
    %v674 = vrot.slane %v129, 2
    %v675 = vsel %vm530, %v672, %v674
    %v676 = vrot.slane %v130, 2
    %v677 = vrot.slane %v131, 2
    %v678 = vsel %vm530, %v676, %v677
    %v679 = vrot.slane %v132, 2
    %v680 = vsel %vm530, %v677, %v679
    %v681 = vrot.slane %v133, 2
    %v682 = vrot.slane %v134, 2
    %v683 = vsel %vm530, %v681, %v682
    %v684 = vrot.slane %v135, 2
    %v685 = vsel %vm530, %v682, %v684
    %v686 = vrot.slane %v136, 2
    %v687 = vrot.slane %v137, 2
    %v688 = vsel %vm530, %v686, %v687
    %v689 = vrot.slane %v138, 2
    %v690 = vsel %vm530, %v687, %v689
    %v755 = vpack.c.bf16 %v535, %v533
    %v756 = vpack.c.bf16 %v540, %v538
    %v757 = vpack.c.bf16 %v545, %v543
    %v758 = vpack.c.bf16 %v550, %v548
    %v759 = vpack.c.bf16 %v555, %v553
    %v760 = vpack.c.bf16 %v560, %v558
    %v761 = vpack.c.bf16 %v565, %v563
    %v762 = vpack.c.bf16 %v570, %v568
    %v763 = vpack.c.bf16 %v575, %v573
    %v764 = vpack.c.bf16 %v580, %v578
    %v765 = vpack.c.bf16 %v585, %v583
    %v766 = vpack.c.bf16 %v590, %v588
    %v767 = vpack.c.bf16 %v595, %v593
    %v768 = vpack.c.bf16 %v600, %v598
    %v769 = vpack.c.bf16 %v605, %v603
    %v770 = vpack.c.bf16 %v610, %v608
    %v771 = vpack.c.bf16 %v615, %v613
    %v772 = vpack.c.bf16 %v620, %v618
    %v773 = vpack.c.bf16 %v625, %v623
    %v774 = vpack.c.bf16 %v630, %v628
    %v775 = vpack.c.bf16 %v635, %v633
    %v776 = vpack.c.bf16 %v640, %v638
    %v777 = vpack.c.bf16 %v645, %v643
    %v778 = vpack.c.bf16 %v650, %v648
    %v779 = vpack.c.bf16 %v655, %v653
    %v780 = vpack.c.bf16 %v660, %v658
    %v781 = vpack.c.bf16 %v665, %v663
    %v782 = vpack.c.bf16 %v670, %v668
    %v783 = vpack.c.bf16 %v675, %v673
    %v784 = vpack.c.bf16 %v680, %v678
    %v785 = vpack.c.bf16 %v685, %v683
    %v786 = vpack.c.bf16 %v690, %v688
    %v787 = vpack.c.bf16 %v86, %v85
    %v788 = vpack.c.bf16 %v140, %v139
    %v795 = vrot.slane %v85, 1
    %v796 = vrot.slane %v86, 1
    %v797 = vsel %vm273, %v795, %v796
    %v798 = vrot.slane %v87, 1
    %v799 = vsel %vm273, %v796, %v798
    %v800 = vrot.slane %v139, 1
    %v801 = vrot.slane %v140, 1
    %v802 = vsel %vm273, %v800, %v801
    %v803 = vrot.slane %v141, 1
    %v804 = vsel %vm273, %v801, %v803
    %v809 = vpack.c.bf16 %v799, %v797
    %v810 = vpack.c.bf16 %v804, %v802
    %v811 = vrot.slane %v85, 2
    %v812 = vrot.slane %v86, 2
    %v813 = vsel %vm530, %v811, %v812
    %v814 = vrot.slane %v87, 2
    %v815 = vsel %vm530, %v812, %v814
    %v816 = vrot.slane %v139, 2
    %v817 = vrot.slane %v140, 2
    %v818 = vsel %vm530, %v816, %v817
    %v819 = vrot.slane %v141, 2
    %v820 = vsel %vm530, %v817, %v819
    %v825 = vpack.c.bf16 %v815, %v813
    %v826 = vpack.c.bf16 %v820, %v818
    %v827 = vpack.c.bf16 %v89, %v88
    %v828 = vpack.c.bf16 %v143, %v142
    %v835 = vrot.slane %v88, 1
    %v836 = vrot.slane %v89, 1
    %v837 = vsel %vm273, %v835, %v836
    %v838 = vrot.slane %v90, 1
    %v839 = vsel %vm273, %v836, %v838
    %v840 = vrot.slane %v142, 1
    %v841 = vrot.slane %v143, 1
    %v842 = vsel %vm273, %v840, %v841
    %v843 = vrot.slane %v144, 1
    %v844 = vsel %vm273, %v841, %v843
    %v849 = vpack.c.bf16 %v839, %v837
    %v850 = vpack.c.bf16 %v844, %v842
    %v851 = vrot.slane %v88, 2
    %v852 = vrot.slane %v89, 2
    %v853 = vsel %vm530, %v851, %v852
    %v854 = vrot.slane %v90, 2
    %v855 = vsel %vm530, %v852, %v854
    %v856 = vrot.slane %v142, 2
    %v857 = vrot.slane %v143, 2
    %v858 = vsel %vm530, %v856, %v857
    %v859 = vrot.slane %v144, 2
    %v860 = vsel %vm530, %v857, %v859
    %v865 = vpack.c.bf16 %v855, %v853
    %v866 = vpack.c.bf16 %v860, %v858
    %v867 = vld [vmem:[%s1] sm:$0xf]
    %v868 = vld [vmem:[%s1 + $0x4] sm:$0xf]
    %v869 = vld [vmem:[%s1 + $0x8] sm:$0xf]
    %v870 = vld [vmem:[%s1 + $0xc] sm:$0xf]
    %v871 = vld [vmem:[%s1 + $0x10] sm:$0xf]
    %v872 = vld [vmem:[%s1 + $0x14] sm:$0xf]
    %v873 = vld [vmem:[%s1 + $0x18] sm:$0xf]
    %v874 = vld [vmem:[%s1 + $0x1c] sm:$0xf]
    %v875 = vld [vmem:[%s1 + $0x20] sm:$0xf]
    %v876 = vld [vmem:[%s1 + $0x24] sm:$0xf]
    %v877 = vld [vmem:[%s1 + $0x28] sm:$0xf]
    %v878 = vld [vmem:[%s1 + $0x2c] sm:$0xf]
    %v879 = vld [vmem:[%s1 + $0x30] sm:$0xf]
    %v880 = vld [vmem:[%s1 + $0x34] sm:$0xf]
    %v881 = vld [vmem:[%s1 + $0x38] sm:$0xf]
    %v882 = vld [vmem:[%s1 + $0x3c] sm:$0xf]
    %v883 = vld [vmem:[%s1 + $0x40] sm:$0xf]
    %v884 = vld [vmem:[%s1 + $0x44] sm:$0xf]
    %v885 = vld [vmem:[%s1 + $0x48] sm:$0xf]
    %v886 = vld [vmem:[%s1 + $0x4c] sm:$0xf]
    %v887 = vld [vmem:[%s1 + $0x50] sm:$0xf]
    %v888 = vld [vmem:[%s1 + $0x54] sm:$0xf]
    %v889 = vld [vmem:[%s1 + $0x58] sm:$0xf]
    %v890 = vld [vmem:[%s1 + $0x5c] sm:$0xf]
    %v891 = vld [vmem:[%s1 + $0x60] sm:$0xf]
    %v892 = vld [vmem:[%s1 + $0x64] sm:$0xf]
    %v893 = vld [vmem:[%s1 + $0x68] sm:$0xf]
    %v894 = vld [vmem:[%s1 + $0x6c] sm:$0xf]
    %v895 = vld [vmem:[%s1 + $0x70] sm:$0xf]
    %v896 = vld [vmem:[%s1 + $0x74] sm:$0xf]
    %v897 = vld [vmem:[%s1 + $0x78] sm:$0xf]
    %v898 = vld [vmem:[%s1 + $0x7c] sm:$0xf]
    %v899 = vld [vmem:[%s1 + $0x80] sm:$0xf]
    %v900 = vld [vmem:[%s1 + $0x84] sm:$0xf]
    %v901 = vld [vmem:[%s1 + $0x88] sm:$0xf]
    %v902 = vld [vmem:[%s1 + $0x8c] sm:$0xf]
    %v903 = vld [vmem:[%s1 + $0x90] sm:$0xf]
    %v904 = vld [vmem:[%s1 + $0x94] sm:$0xf]
    %v905 = vld [vmem:[%s1 + $0x98] sm:$0xf]
    %v906 = vld [vmem:[%s1 + $0x9c] sm:$0xf]
    %v907 = vld [vmem:[%s1 + $0xa0] sm:$0xf]
    %v908 = vld [vmem:[%s1 + $0xa4] sm:$0xf]
    %v909 = vld [vmem:[%s1 + $0xa8] sm:$0xf]
    %v910 = vld [vmem:[%s1 + $0xac] sm:$0xf]
    %v911 = vld [vmem:[%s1 + $0xb0] sm:$0xf]
    %v912 = vld [vmem:[%s1 + $0xb4] sm:$0xf]
    %v913 = vld [vmem:[%s1 + $0xb8] sm:$0xf]
    %v914 = vld [vmem:[%s1 + $0xbc] sm:$0xf]
    %v915 = vld [vmem:[%s1 + $0xc0] sm:$0xf]
    %v916 = vld [vmem:[%s1 + $0xc4] sm:$0xf]
    %v917 = vld [vmem:[%s1 + $0xc8] sm:$0xf]
    %v918 = vld [vmem:[%s1 + $0xcc] sm:$0xf]
    %v919 = vld [vmem:[%s1 + $0xd0] sm:$0xf]
    %v920 = vld [vmem:[%s1 + $0xd4] sm:$0xf]
    %v921 = vld [vmem:[%s1 + $0xd8] sm:$0xf]
    %v922 = vld [vmem:[%s1 + $0xdc] sm:$0xf]
    %v923 = vld [vmem:[%s1 + $0xe0] sm:$0xf]
    %v924 = vld [vmem:[%s1 + $0xe4] sm:$0xf]
    %v925 = vld [vmem:[%s1 + $0xe8] sm:$0xf]
    %v926 = vld [vmem:[%s1 + $0xec] sm:$0xf]
    %v927 = vld [vmem:[%s1 + $0xf0] sm:$0xf]
    %v928 = vld [vmem:[%s1 + $0xf4] sm:$0xf]
    %v929 = vld [vmem:[%s1 + $0xf8] sm:$0xf]
    %v930 = vld [vmem:[%s1 + $0xfc] sm:$0xf]
    %v931 = vld [vmem:[%s1 + $0x100] sm:$0xf]
    %v932 = vld [vmem:[%s1 + $0x104] sm:$0xf]
    %v933 = vld [vmem:[%s1 + $0x108] sm:$0xf]
    %v934 = vld [vmem:[%s1 + $0x10c] sm:$0xf]
    %v935 = vld [vmem:[%s1 + $0x110] sm:$0xf]
    %v936 = vld [vmem:[%s1 + $0x114] sm:$0xf]
    %v937 = vld [vmem:[%s1 + $0x118] sm:$0xf]
    %v938 = vld [vmem:[%s1 + $0x11c] sm:$0xf]
    %v939 = vld [vmem:[%s1 + $0x120] sm:$0xf]
    %v940 = vld [vmem:[%s1 + $0x124] sm:$0xf]
    %v941 = vld [vmem:[%s1 + $0x128] sm:$0xf]
    %v942 = vld [vmem:[%s1 + $0x12c] sm:$0xf]
    %v943 = vld [vmem:[%s1 + $0x130] sm:$0xf]
    %v944 = vld [vmem:[%s1 + $0x134] sm:$0xf]
    %v945 = vld [vmem:[%s1 + $0x138] sm:$0xf]
    %v946 = vld [vmem:[%s1 + $0x13c] sm:$0xf]
    %v947 = vld [vmem:[%s1 + $0x140] sm:$0xf]
    %v948 = vld [vmem:[%s1 + $0x144] sm:$0xf]
    %v949 = vld [vmem:[%s1 + $0x148] sm:$0xf]
    %v950 = vld [vmem:[%s1 + $0x14c] sm:$0xf]
    %v951 = vld [vmem:[%s1 + $0x150] sm:$0xf]
    %v952 = vld [vmem:[%s1 + $0x154] sm:$0xf]
    %v953 = vld [vmem:[%s1 + $0x158] sm:$0xf]
    %v954 = vld [vmem:[%s1 + $0x15c] sm:$0xf]
    %v955 = vld [vmem:[%s1 + $0x160] sm:$0xf]
    %v956 = vld [vmem:[%s1 + $0x164] sm:$0xf]
    %v957 = vld [vmem:[%s1 + $0x168] sm:$0xf]
    %v958 = vld [vmem:[%s1 + $0x16c] sm:$0xf]
    %v959 = vld [vmem:[%s1 + $0x170] sm:$0xf]
    %v960 = vld [vmem:[%s1 + $0x174] sm:$0xf]
    %v961 = vld [vmem:[%s1 + $0x178] sm:$0xf]
    %v962 = vld [vmem:[%s1 + $0x17c] sm:$0xf]
    %v963 = vld [vmem:[%s1 + $0x180] sm:$0xf]
    %v964 = vld [vmem:[%s1 + $0x184] sm:$0xf]
    %v965 = vld [vmem:[%s1 + $0x188] sm:$0xf]
    %v966 = vld [vmem:[%s1 + $0x18c] sm:$0xf]
    %v967 = vld [vmem:[%s1 + $0x190] sm:$0xf]
    %v968 = vld [vmem:[%s1 + $0x194] sm:$0xf]
    %v969 = vld [vmem:[%s1 + $0x198] sm:$0xf]
    %v970 = vld [vmem:[%s1 + $0x19c] sm:$0xf]
    %v971 = vld [vmem:[%s1 + $0x1a0] sm:$0xf]
    %v972 = vld [vmem:[%s1 + $0x1a4] sm:$0xf]
    %v973 = vld [vmem:[%s1 + $0x1a8] sm:$0xf]
    %v974 = vld [vmem:[%s1 + $0x1ac] sm:$0xf]
    %v975 = vld [vmem:[%s1 + $0x1b0] sm:$0xf]
    %v976 = vld [vmem:[%s1 + $0x1b4] sm:$0xf]
    %v977 = vld [vmem:[%s1 + $0x1b8] sm:$0xf]
    %v978 = vld [vmem:[%s1 + $0x1bc] sm:$0xf]
    %v979 = vld [vmem:[%s1 + $0x1c0] sm:$0xf]
    %v980 = vld [vmem:[%s1 + $0x1c4] sm:$0xf]
    %v981 = vld [vmem:[%s1 + $0x1c8] sm:$0xf]
    %v982 = vld [vmem:[%s1 + $0x1cc] sm:$0xf]
    %v983 = vld [vmem:[%s1 + $0x1d0] sm:$0xf]
    %v984 = vld [vmem:[%s1 + $0x1d4] sm:$0xf]
    %v985 = vld [vmem:[%s1 + $0x1d8] sm:$0xf]
    %v986 = vld [vmem:[%s1 + $0x1dc] sm:$0xf]
    %v987 = vld [vmem:[%s1 + $0x1e0] sm:$0xf]
    %v988 = vld [vmem:[%s1 + $0x1e4] sm:$0xf]
    %v989 = vld [vmem:[%s1 + $0x1e8] sm:$0xf]
    %v990 = vld [vmem:[%s1 + $0x1ec] sm:$0xf]
    %v991 = vld [vmem:[%s1 + $0x1f0] sm:$0xf]
    %v992 = vld [vmem:[%s1 + $0x1f4] sm:$0xf]
    %v993 = vld [vmem:[%s1 + $0x1f8] sm:$0xf]
    %v994 = vld [vmem:[%s1 + $0x1fc] sm:$0xf]
    %v995 = vld [vmem:[%s1 + $0x200] sm:$0xf]
    %v996 = vld [vmem:[%s1 + $0x204] sm:$0xf]
    %v997 = vld [vmem:[%s1 + $0x208] sm:$0xf]
    %v998 = vld [vmem:[%s1 + $0x20c] sm:$0xf]
    %v999 = vld [vmem:[%s1 + $0x210] sm:$0xf]
    %v1000 = vld [vmem:[%s1 + $0x214] sm:$0xf]
    %v1001 = vld [vmem:[%s1 + $0x218] sm:$0xf]
    %v1002 = vld [vmem:[%s1 + $0x21c] sm:$0xf]
    %v1003 = vld [vmem:[%s1 + $0x220] sm:$0xf]
    %v1004 = vld [vmem:[%s1 + $0x224] sm:$0xf]
    %v1005 = vld [vmem:[%s1 + $0x228] sm:$0xf]
    %v1006 = vld [vmem:[%s1 + $0x22c] sm:$0xf]
    %v1007 = vld [vmem:[%s1 + $0x230] sm:$0xf]
    %v1008 = vld [vmem:[%s1 + $0x234] sm:$0xf]
    %v1009 = vld [vmem:[%s1 + $0x238] sm:$0xf]
    %v1010 = vld [vmem:[%s1 + $0x23c] sm:$0xf]
    %v1155 = vunpack.c.l.b16 %v867
    %v1156 = vunpack.c.l.b16 %v868
    %v1157 = vunpack.c.l.b16 %v869
    %v1158 = vunpack.c.l.b16 %v870
    %v1159 = vunpack.c.l.b16 %v871
    %v1160 = vunpack.c.l.b16 %v872
    %v1161 = vunpack.c.l.b16 %v873
    %v1162 = vunpack.c.l.b16 %v874
    %v1163 = vunpack.c.l.b16 %v875
    %v1164 = vunpack.c.l.b16 %v876
    %v1165 = vunpack.c.l.b16 %v877
    %v1166 = vunpack.c.l.b16 %v878
    %v1167 = vunpack.c.l.b16 %v879
    %v1168 = vunpack.c.l.b16 %v880
    %v1169 = vunpack.c.l.b16 %v881
    %v1170 = vunpack.c.l.b16 %v882
    %v1171 = vunpack.c.l.b16 %v883
    %v1172 = vunpack.c.l.b16 %v884
    %v1173 = vunpack.c.l.b16 %v885
    %v1174 = vunpack.c.l.b16 %v886
    %v1175 = vunpack.c.l.b16 %v887
    %v1176 = vunpack.c.l.b16 %v888
    %v1177 = vunpack.c.l.b16 %v889
    %v1178 = vunpack.c.l.b16 %v890
    %v1179 = vunpack.c.l.b16 %v891
    %v1180 = vunpack.c.l.b16 %v892
    %v1181 = vunpack.c.l.b16 %v893
    %v1182 = vunpack.c.l.b16 %v894
    %v1183 = vunpack.c.l.b16 %v895
    %v1184 = vunpack.c.l.b16 %v896
    %v1185 = vunpack.c.l.b16 %v897
    %v1186 = vunpack.c.l.b16 %v898
    %v1187 = vunpack.c.l.b16 %v899
    %v1188 = vunpack.c.l.b16 %v900
    %v1189 = vunpack.c.l.b16 %v901
    %v1190 = vunpack.c.l.b16 %v902
    %v1191 = vunpack.c.l.b16 %v903
    %v1192 = vunpack.c.l.b16 %v904
    %v1193 = vunpack.c.l.b16 %v905
    %v1194 = vunpack.c.l.b16 %v906
    %v1195 = vunpack.c.l.b16 %v907
    %v1196 = vunpack.c.l.b16 %v908
    %v1197 = vunpack.c.l.b16 %v909
    %v1198 = vunpack.c.l.b16 %v910
    %v1199 = vunpack.c.l.b16 %v911
    %v1200 = vunpack.c.l.b16 %v912
    %v1201 = vunpack.c.l.b16 %v913
    %v1202 = vunpack.c.l.b16 %v914
    %v1203 = vunpack.c.l.b16 %v915
    %v1204 = vunpack.c.l.b16 %v916
    %v1205 = vunpack.c.l.b16 %v917
    %v1206 = vunpack.c.l.b16 %v918
    %v1207 = vunpack.c.l.b16 %v919
    %v1208 = vunpack.c.l.b16 %v920
    %v1209 = vunpack.c.l.b16 %v921
    %v1210 = vunpack.c.l.b16 %v922
    %v1211 = vunpack.c.l.b16 %v923
    %v1212 = vunpack.c.l.b16 %v924
    %v1213 = vunpack.c.l.b16 %v925
    %v1214 = vunpack.c.l.b16 %v926
    %v1215 = vunpack.c.l.b16 %v927
    %v1216 = vunpack.c.l.b16 %v928
    %v1217 = vunpack.c.l.b16 %v929
    %v1218 = vunpack.c.l.b16 %v930
    %v1219 = vunpack.c.l.b16 %v931
    %v1220 = vunpack.c.l.b16 %v932
    %v1221 = vunpack.c.l.b16 %v933
    %v1222 = vunpack.c.l.b16 %v934
    %v1223 = vunpack.c.l.b16 %v935
    %v1224 = vunpack.c.l.b16 %v936
    %v1225 = vunpack.c.l.b16 %v937
    %v1226 = vunpack.c.l.b16 %v938
    %v1227 = vunpack.c.l.b16 %v939
    %v1228 = vunpack.c.l.b16 %v940
    %v1229 = vunpack.c.l.b16 %v941
    %v1230 = vunpack.c.l.b16 %v942
    %v1231 = vunpack.c.l.b16 %v943
    %v1232 = vunpack.c.l.b16 %v944
    %v1233 = vunpack.c.l.b16 %v945
    %v1234 = vunpack.c.l.b16 %v946
    %v1235 = vunpack.c.l.b16 %v947
    %v1236 = vunpack.c.l.b16 %v948
    %v1237 = vunpack.c.l.b16 %v949
    %v1238 = vunpack.c.l.b16 %v950
    %v1239 = vunpack.c.l.b16 %v951
    %v1240 = vunpack.c.l.b16 %v952
    %v1241 = vunpack.c.l.b16 %v953
    %v1242 = vunpack.c.l.b16 %v954
    %v1243 = vunpack.c.l.b16 %v955
    %v1244 = vunpack.c.l.b16 %v956
    %v1245 = vunpack.c.l.b16 %v957
    %v1246 = vunpack.c.l.b16 %v958
    %v1247 = vunpack.c.l.b16 %v959
    %v1248 = vunpack.c.l.b16 %v960
    %v1249 = vunpack.c.l.b16 %v961
    %v1250 = vunpack.c.l.b16 %v962
    %v1251 = vunpack.c.l.b16 %v963
    %v1252 = vunpack.c.l.b16 %v964
    %v1253 = vunpack.c.l.b16 %v965
    %v1254 = vunpack.c.l.b16 %v966
    %v1255 = vunpack.c.l.b16 %v967
    %v1256 = vunpack.c.l.b16 %v968
    %v1257 = vunpack.c.l.b16 %v969
    %v1258 = vunpack.c.l.b16 %v970
    %v1259 = vunpack.c.l.b16 %v971
    %v1260 = vunpack.c.l.b16 %v972
    %v1261 = vunpack.c.l.b16 %v973
    %v1262 = vunpack.c.l.b16 %v974
    %v1263 = vunpack.c.l.b16 %v975
    %v1264 = vunpack.c.l.b16 %v976
    %v1265 = vunpack.c.l.b16 %v977
    %v1266 = vunpack.c.l.b16 %v978
    %v1267 = vunpack.c.l.b16 %v979
    %v1268 = vunpack.c.l.b16 %v980
    %v1269 = vunpack.c.l.b16 %v981
    %v1270 = vunpack.c.l.b16 %v982
    %v1271 = vunpack.c.l.b16 %v983
    %v1272 = vunpack.c.l.b16 %v984
    %v1273 = vunpack.c.l.b16 %v985
    %v1274 = vunpack.c.l.b16 %v986
    %v1275 = vunpack.c.l.b16 %v987
    %v1276 = vunpack.c.l.b16 %v988
    %v1277 = vunpack.c.l.b16 %v989
    %v1278 = vunpack.c.l.b16 %v990
    %v1279 = vunpack.c.l.b16 %v991
    %v1280 = vunpack.c.l.b16 %v992
    %v1281 = vunpack.c.l.b16 %v993
    %v1282 = vunpack.c.l.b16 %v994
    %v1283 = vunpack.c.l.b16 %v995
    %v1284 = vunpack.c.l.b16 %v996
    %v1285 = vunpack.c.l.b16 %v997
    %v1286 = vunpack.c.l.b16 %v998
    %v1287 = vunpack.c.l.b16 %v999
    %v1288 = vunpack.c.l.b16 %v1000
    %v1289 = vunpack.c.l.b16 %v1001
    %v1290 = vunpack.c.l.b16 %v1002
    %v1291 = vunpack.c.l.b16 %v1003
    %v1292 = vunpack.c.l.b16 %v1004
    %v1293 = vunpack.c.l.b16 %v1005
    %v1294 = vunpack.c.l.b16 %v1006
    %v1295 = vunpack.c.l.b16 %v1007
    %v1296 = vunpack.c.l.b16 %v1008
    %v1297 = vunpack.c.l.b16 %v1009
    %v1298 = vunpack.c.l.b16 %v1010
    %v1299 = vpack.c.b16 %v1156, %v1155
    %v1300 = vpack.c.b16 %v1158, %v1157
    %v1301 = vpack.c.b16 %v1160, %v1159
    %v1302 = vpack.c.b16 %v1162, %v1161
    %v1303 = vpack.c.b16 %v1164, %v1163
    %v1304 = vpack.c.b16 %v1166, %v1165
    %v1305 = vpack.c.b16 %v1168, %v1167
    %v1306 = vpack.c.b16 %v1170, %v1169
    %v1307 = vpack.c.b16 %v1172, %v1171
    %v1308 = vpack.c.b16 %v1174, %v1173
    %v1309 = vpack.c.b16 %v1176, %v1175
    %v1310 = vpack.c.b16 %v1178, %v1177
    %v1311 = vpack.c.b16 %v1180, %v1179
    %v1312 = vpack.c.b16 %v1182, %v1181
    %v1313 = vpack.c.b16 %v1184, %v1183
    %v1314 = vpack.c.b16 %v1186, %v1185
    %v1315 = vpack.c.b16 %v1188, %v1187
    %v1316 = vpack.c.b16 %v1190, %v1189
    %v1317 = vpack.c.b16 %v1192, %v1191
    %v1318 = vpack.c.b16 %v1194, %v1193
    %v1319 = vpack.c.b16 %v1196, %v1195
    %v1320 = vpack.c.b16 %v1198, %v1197
    %v1321 = vpack.c.b16 %v1200, %v1199
    %v1322 = vpack.c.b16 %v1202, %v1201
    %v1323 = vpack.c.b16 %v1204, %v1203
    %v1324 = vpack.c.b16 %v1206, %v1205
    %v1325 = vpack.c.b16 %v1208, %v1207
    %v1326 = vpack.c.b16 %v1210, %v1209
    %v1327 = vpack.c.b16 %v1212, %v1211
    %v1328 = vpack.c.b16 %v1214, %v1213
    %v1329 = vpack.c.b16 %v1216, %v1215
    %v1330 = vpack.c.b16 %v1218, %v1217
    %v1331 = vpack.c.b16 %v1220, %v1219
    %v1332 = vpack.c.b16 %v1222, %v1221
    %v1333 = vpack.c.b16 %v1224, %v1223
    %v1334 = vpack.c.b16 %v1226, %v1225
    %v1335 = vpack.c.b16 %v1228, %v1227
    %v1336 = vpack.c.b16 %v1230, %v1229
    %v1337 = vpack.c.b16 %v1232, %v1231
    %v1338 = vpack.c.b16 %v1234, %v1233
    %v1339 = vpack.c.b16 %v1236, %v1235
    %v1340 = vpack.c.b16 %v1238, %v1237
    %v1341 = vpack.c.b16 %v1240, %v1239
    %v1342 = vpack.c.b16 %v1242, %v1241
    %v1343 = vpack.c.b16 %v1244, %v1243
    %v1344 = vpack.c.b16 %v1246, %v1245
    %v1345 = vpack.c.b16 %v1248, %v1247
    %v1346 = vpack.c.b16 %v1250, %v1249
    %v1347 = vpack.c.b16 %v1252, %v1251
    %v1348 = vpack.c.b16 %v1254, %v1253
    %v1349 = vpack.c.b16 %v1256, %v1255
    %v1350 = vpack.c.b16 %v1258, %v1257
    %v1351 = vpack.c.b16 %v1260, %v1259
    %v1352 = vpack.c.b16 %v1262, %v1261
    %v1353 = vpack.c.b16 %v1264, %v1263
    %v1354 = vpack.c.b16 %v1266, %v1265
    %v1355 = vpack.c.b16 %v1268, %v1267
    %v1356 = vpack.c.b16 %v1270, %v1269
    %v1357 = vpack.c.b16 %v1272, %v1271
    %v1358 = vpack.c.b16 %v1274, %v1273
    %v1359 = vpack.c.b16 %v1276, %v1275
    %v1360 = vpack.c.b16 %v1278, %v1277
    %v1361 = vpack.c.b16 %v1280, %v1279
    %v1362 = vpack.c.b16 %v1282, %v1281
    %v1363 = vpack.c.b16 %v1284, %v1283
    %v1364 = vpack.c.b16 %v1286, %v1285
    %v1365 = vpack.c.b16 %v1288, %v1287
    %v1366 = vpack.c.b16 %v1290, %v1289
    %v1367 = vpack.c.b16 %v1292, %v1291
    %v1368 = vpack.c.b16 %v1294, %v1293
    %v1369 = vpack.c.b16 %v1296, %v1295
    %v1370 = vpack.c.b16 %v1298, %v1297
    %1443 = vmatprep.subr.bf16.mxu0 0
    %1444 = vmatpush1.bf16.msra.mxu0 %v1299
    %1445 = vmatprep.subr.bf16.mxu0 0
    %1446 = vmatpush1.bf16.msra.mxu0 %v1300
    %1447 = vmatprep.subr.bf16.mxu0 0
    %1448 = vmatpush1.bf16.msra.mxu0 %v1301
    %1449 = vmatprep.subr.bf16.mxu0 0
    %1450 = vmatpush1.bf16.msra.mxu0 %v1302
    %1451 = vmatprep.subr.bf16.mxu0 0
    %1452 = vmatpush1.bf16.msra.mxu0 %v1303
    %1453 = vmatprep.subr.bf16.mxu0 0
    %1454 = vmatpush1.bf16.msra.mxu0 %v1304
    %1455 = vmatprep.subr.bf16.mxu0 0
    %1456 = vmatpush1.bf16.msra.mxu0 %v1305
    %1457 = vmatprep.subr.bf16.mxu0 0
    %1458 = vmatpush1.bf16.msra.mxu0 %v1306
    %1459 = vmatprep.subr.bf16.mxu0 0
    %1460 = vmatpush1.bf16.msra.mxu0 %v1307
    %1461 = vmatprep.subr.bf16.mxu0 0
    %1462 = vmatpush1.bf16.msra.mxu0 %v1308
    %1463 = vmatprep.subr.bf16.mxu0 0
    %1464 = vmatpush1.bf16.msra.mxu0 %v1309
    %1465 = vmatprep.subr.bf16.mxu0 0
    %1466 = vmatpush1.bf16.msra.mxu0 %v1310
    %1467 = vmatprep.subr.bf16.mxu0 0
    %1468 = vmatpush1.bf16.msra.mxu0 %v1311
    %1469 = vmatprep.subr.bf16.mxu0 0
    %1470 = vmatpush1.bf16.msra.mxu0 %v1312
    %1471 = vmatprep.subr.bf16.mxu0 0
    %1472 = vmatpush1.bf16.msra.mxu0 %v1313
    %1473 = vmatprep.subr.bf16.mxu0 0
    %1474 = vmatpush1.bf16.msra.mxu0 %v1314
    %1475 = vmatprep.mubr.bf16.mxu0 %v498
    %1476 = vmatmul.mubr.bf16.gmra.mrb[0].mxu0 %v145
    %v1477 = vpop.f32.mrb[0].mxu0
    %v1478 = vadd.f32 0.0, %v1477
    %v1479 = vpop.f32.mrb[0].mxu0
    %v1480 = vpop.f32.mrb[0].mxu0
    %v1481 = vadd.f32 0.0, %v1480
    %v1482 = vpop.f32.mrb[0].mxu0
    %1483 = vmatprep.mubr.bf16.mxu0 %v499
    %1484 = vmatmul.mubr.bf16.gmra.mrb[0].mxu0 %v146
    %v1485 = vpop.f32.mrb[0].mxu0
    %v1486 = vadd.f32 0.0, %v1485
    %v1487 = vpop.f32.mrb[0].mxu0
    %v1488 = vpop.f32.mrb[0].mxu0
    %v1489 = vadd.f32 0.0, %v1488
    %v1490 = vpop.f32.mrb[0].mxu0
    %1491 = vmatprep.mubr.bf16.mxu0 %v500
    %1492 = vmatmul.mubr.bf16.gmra.mrb[0].mxu0 %v147
    %v1493 = vpop.f32.mrb[0].mxu0
    %v1494 = vadd.f32 0.0, %v1493
    %v1495 = vpop.f32.mrb[0].mxu0
    %v1496 = vpop.f32.mrb[0].mxu0
    %v1497 = vadd.f32 0.0, %v1496
    %v1498 = vpop.f32.mrb[0].mxu0
    %1499 = vmatprep.mubr.bf16.mxu0 %v501
    %1500 = vmatmul.mubr.bf16.gmra.mrb[0].mxu0 %v148
    %v1501 = vpop.f32.mrb[0].mxu0
    %v1502 = vadd.f32 0.0, %v1501
    %v1503 = vpop.f32.mrb[0].mxu0
    %v1504 = vpop.f32.mrb[0].mxu0
    %v1505 = vadd.f32 0.0, %v1504
    %v1506 = vpop.f32.mrb[0].mxu0
    %1507 = vmatprep.mubr.bf16.mxu0 %v502
    %1508 = vmatmul.mubr.bf16.gmra.mrb[0].mxu0 %v149
    %v1509 = vpop.f32.mrb[0].mxu0
    %v1510 = vadd.f32 0.0, %v1509
    %v1511 = vpop.f32.mrb[0].mxu0
    %v1512 = vpop.f32.mrb[0].mxu0
    %v1513 = vadd.f32 0.0, %v1512
    %v1514 = vpop.f32.mrb[0].mxu0
    %1515 = vmatprep.mubr.bf16.mxu0 %v503
    %1516 = vmatmul.mubr.bf16.gmra.mrb[0].mxu0 %v150
    %v1517 = vpop.f32.mrb[0].mxu0
    %v1518 = vadd.f32 0.0, %v1517
    %v1519 = vpop.f32.mrb[0].mxu0
    %v1520 = vpop.f32.mrb[0].mxu0
    %v1521 = vadd.f32 0.0, %v1520
    %v1522 = vpop.f32.mrb[0].mxu0
    %1523 = vmatprep.mubr.bf16.mxu0 %v504
    %1524 = vmatmul.mubr.bf16.gmra.mrb[0].mxu0 %v151
    %v1525 = vpop.f32.mrb[0].mxu0
    %v1526 = vadd.f32 0.0, %v1525
    %v1527 = vpop.f32.mrb[0].mxu0
    %v1528 = vpop.f32.mrb[0].mxu0
    %v1529 = vadd.f32 0.0, %v1528
    %v1530 = vpop.f32.mrb[0].mxu0
    %1531 = vmatprep.mubr.bf16.mxu0 %v505
    %1532 = vmatmul.mubr.bf16.gmra.mrb[0].mxu0 %v152
    %v1533 = vpop.f32.mrb[0].mxu0
    %v1534 = vadd.f32 0.0, %v1533
    %v1535 = vpop.f32.mrb[0].mxu0
    %v1536 = vpop.f32.mrb[0].mxu0
    %v1537 = vadd.f32 0.0, %v1536
    %v1538 = vpop.f32.mrb[0].mxu0
    %1539 = vmatprep.mubr.bf16.mxu0 %v506
    %1540 = vmatmul.mubr.bf16.gmra.mrb[0].mxu0 %v153
    %v1541 = vpop.f32.mrb[0].mxu0
    %v1542 = vadd.f32 0.0, %v1541
    %v1543 = vpop.f32.mrb[0].mxu0
    %v1544 = vpop.f32.mrb[0].mxu0
    %v1545 = vadd.f32 0.0, %v1544
    %v1546 = vpop.f32.mrb[0].mxu0
    %1547 = vmatprep.mubr.bf16.mxu0 %v507
    %1548 = vmatmul.mubr.bf16.gmra.mrb[0].mxu0 %v154
    %v1549 = vpop.f32.mrb[0].mxu0
    %v1550 = vadd.f32 0.0, %v1549
    %v1551 = vpop.f32.mrb[0].mxu0
    %v1552 = vpop.f32.mrb[0].mxu0
    %v1553 = vadd.f32 0.0, %v1552
    %v1554 = vpop.f32.mrb[0].mxu0
    %1555 = vmatprep.mubr.bf16.mxu0 %v508
    %1556 = vmatmul.mubr.bf16.gmra.mrb[0].mxu0 %v155
    %v1557 = vpop.f32.mrb[0].mxu0
    %v1558 = vadd.f32 0.0, %v1557
    %v1559 = vpop.f32.mrb[0].mxu0
    %v1560 = vpop.f32.mrb[0].mxu0
    %v1561 = vadd.f32 0.0, %v1560
    %v1562 = vpop.f32.mrb[0].mxu0
    %1563 = vmatprep.mubr.bf16.mxu0 %v509
    %1564 = vmatmul.mubr.bf16.gmra.mrb[0].mxu0 %v156
    %v1565 = vpop.f32.mrb[0].mxu0
    %v1566 = vadd.f32 0.0, %v1565
    %v1567 = vpop.f32.mrb[0].mxu0
    %v1568 = vpop.f32.mrb[0].mxu0
    %v1569 = vadd.f32 0.0, %v1568
    %v1570 = vpop.f32.mrb[0].mxu0
    %1571 = vmatprep.mubr.bf16.mxu0 %v510
    %1572 = vmatmul.mubr.bf16.gmra.mrb[0].mxu0 %v157
    %v1573 = vpop.f32.mrb[0].mxu0
    %v1574 = vadd.f32 0.0, %v1573
    %v1575 = vpop.f32.mrb[0].mxu0
    %v1576 = vpop.f32.mrb[0].mxu0
    %v1577 = vadd.f32 0.0, %v1576
    %v1578 = vpop.f32.mrb[0].mxu0
    %1579 = vmatprep.mubr.bf16.mxu0 %v511
    %1580 = vmatmul.mubr.bf16.gmra.mrb[0].mxu0 %v158
    %v1581 = vpop.f32.mrb[0].mxu0
    %v1582 = vadd.f32 0.0, %v1581
    %v1583 = vpop.f32.mrb[0].mxu0
    %v1584 = vpop.f32.mrb[0].mxu0
    %v1585 = vadd.f32 0.0, %v1584
    %v1586 = vpop.f32.mrb[0].mxu0
    %1587 = vmatprep.mubr.bf16.mxu0 %v512
    %1588 = vmatmul.mubr.bf16.gmra.mrb[0].mxu0 %v159
    %v1589 = vpop.f32.mrb[0].mxu0
    %v1590 = vadd.f32 0.0, %v1589
    %v1591 = vpop.f32.mrb[0].mxu0
    %v1592 = vpop.f32.mrb[0].mxu0
    %v1593 = vadd.f32 0.0, %v1592
    %v1594 = vpop.f32.mrb[0].mxu0
    %1595 = vmatprep.mubr.bf16.mxu0 %v513
    %1596 = vmatmul.mubr.bf16.gmra.mrb[0].mxu0 %v160
    %v1597 = vpop.f32.mrb[0].mxu0
    %v1598 = vadd.f32 0.0, %v1597
    %v1599 = vpop.f32.mrb[0].mxu0
    %v1600 = vpop.f32.mrb[0].mxu0
    %v1601 = vadd.f32 0.0, %v1600
    %v1602 = vpop.f32.mrb[0].mxu0
    %1603 = vmatprep.mubr.bf16.mxu0 %v514
    %1604 = vmatmul.mubr.bf16.gmra.mrb[0].mxu0 %v161
    %v1605 = vpop.f32.mrb[0].mxu0
    %v1606 = vadd.f32 0.0, %v1605
    %v1607 = vpop.f32.mrb[0].mxu0
    %v1608 = vpop.f32.mrb[0].mxu0
    %v1609 = vadd.f32 0.0, %v1608
    %v1610 = vpop.f32.mrb[0].mxu0
    %1611 = vmatprep.mubr.bf16.mxu0 %v515
    %1612 = vmatmul.mubr.bf16.gmra.mrb[0].mxu0 %v162
    %v1613 = vpop.f32.mrb[0].mxu0
    %v1614 = vadd.f32 0.0, %v1613
    %v1615 = vpop.f32.mrb[0].mxu0
    %v1616 = vpop.f32.mrb[0].mxu0
    %v1617 = vadd.f32 0.0, %v1616
    %v1618 = vpop.f32.mrb[0].mxu0
    %1619 = vmatprep.mubr.bf16.mxu0 %v516
    %1620 = vmatmul.mubr.bf16.gmra.mrb[0].mxu0 %v163
    %v1621 = vpop.f32.mrb[0].mxu0
    %v1622 = vadd.f32 0.0, %v1621
    %v1623 = vpop.f32.mrb[0].mxu0
    %v1624 = vpop.f32.mrb[0].mxu0
    %v1625 = vadd.f32 0.0, %v1624
    %v1626 = vpop.f32.mrb[0].mxu0
    %1627 = vmatprep.mubr.bf16.mxu0 %v517
    %1628 = vmatmul.mubr.bf16.gmra.mrb[0].mxu0 %v164
    %v1629 = vpop.f32.mrb[0].mxu0
    %v1630 = vadd.f32 0.0, %v1629
    %v1631 = vpop.f32.mrb[0].mxu0
    %v1632 = vpop.f32.mrb[0].mxu0
    %v1633 = vadd.f32 0.0, %v1632
    %v1634 = vpop.f32.mrb[0].mxu0
    %1635 = vmatprep.mubr.bf16.mxu0 %v518
    %1636 = vmatmul.mubr.bf16.gmra.mrb[0].mxu0 %v165
    %v1637 = vpop.f32.mrb[0].mxu0
    %v1638 = vadd.f32 0.0, %v1637
    %v1639 = vpop.f32.mrb[0].mxu0
    %v1640 = vpop.f32.mrb[0].mxu0
    %v1641 = vadd.f32 0.0, %v1640
    %v1642 = vpop.f32.mrb[0].mxu0
    %1643 = vmatprep.mubr.bf16.mxu0 %v519
    %1644 = vmatmul.mubr.bf16.gmra.mrb[0].mxu0 %v166
    %v1645 = vpop.f32.mrb[0].mxu0
    %v1646 = vadd.f32 0.0, %v1645
    %v1647 = vpop.f32.mrb[0].mxu0
    %v1648 = vpop.f32.mrb[0].mxu0
    %v1649 = vadd.f32 0.0, %v1648
    %v1650 = vpop.f32.mrb[0].mxu0
    %1651 = vmatprep.mubr.bf16.mxu0 %v520
    %1652 = vmatmul.mubr.bf16.gmra.mrb[0].mxu0 %v167
    %v1653 = vpop.f32.mrb[0].mxu0
    %v1654 = vadd.f32 0.0, %v1653
    %v1655 = vpop.f32.mrb[0].mxu0
    %v1656 = vpop.f32.mrb[0].mxu0
    %v1657 = vadd.f32 0.0, %v1656
    %v1658 = vpop.f32.mrb[0].mxu0
    %1659 = vmatprep.mubr.bf16.mxu0 %v521
    %1660 = vmatmul.mubr.bf16.gmra.mrb[0].mxu0 %v168
    %v1661 = vpop.f32.mrb[0].mxu0
    %v1662 = vadd.f32 0.0, %v1661
    %v1663 = vpop.f32.mrb[0].mxu0
    %v1664 = vpop.f32.mrb[0].mxu0
    %v1665 = vadd.f32 0.0, %v1664
    %v1666 = vpop.f32.mrb[0].mxu0
    %1667 = vmatprep.mubr.bf16.mxu0 %v522
    %1668 = vmatmul.mubr.bf16.gmra.mrb[0].mxu0 %v169
    %v1669 = vpop.f32.mrb[0].mxu0
    %v1670 = vadd.f32 0.0, %v1669
    %v1671 = vpop.f32.mrb[0].mxu0
    %v1672 = vpop.f32.mrb[0].mxu0
    %v1673 = vadd.f32 0.0, %v1672
    %v1674 = vpop.f32.mrb[0].mxu0
    %1675 = vmatprep.mubr.bf16.mxu0 %v523
    %1676 = vmatmul.mubr.bf16.gmra.mrb[0].mxu0 %v170
    %v1677 = vpop.f32.mrb[0].mxu0
    %v1678 = vadd.f32 0.0, %v1677
    %v1679 = vpop.f32.mrb[0].mxu0
    %v1680 = vpop.f32.mrb[0].mxu0
    %v1681 = vadd.f32 0.0, %v1680
    %v1682 = vpop.f32.mrb[0].mxu0
    %1683 = vmatprep.mubr.bf16.mxu0 %v524
    %1684 = vmatmul.mubr.bf16.gmra.mrb[0].mxu0 %v171
    %v1685 = vpop.f32.mrb[0].mxu0
    %v1686 = vadd.f32 0.0, %v1685
    %v1687 = vpop.f32.mrb[0].mxu0
    %v1688 = vpop.f32.mrb[0].mxu0
    %v1689 = vadd.f32 0.0, %v1688
    %v1690 = vpop.f32.mrb[0].mxu0
    %1691 = vmatprep.mubr.bf16.mxu0 %v525
    %1692 = vmatmul.mubr.bf16.gmra.mrb[0].mxu0 %v172
    %v1693 = vpop.f32.mrb[0].mxu0
    %v1694 = vadd.f32 0.0, %v1693
    %v1695 = vpop.f32.mrb[0].mxu0
    %v1696 = vpop.f32.mrb[0].mxu0
    %v1697 = vadd.f32 0.0, %v1696
    %v1698 = vpop.f32.mrb[0].mxu0
    %1699 = vmatprep.mubr.bf16.mxu0 %v526
    %1700 = vmatmul.mubr.bf16.gmra.mrb[0].mxu0 %v173
    %v1701 = vpop.f32.mrb[0].mxu0
    %v1702 = vadd.f32 0.0, %v1701
    %v1703 = vpop.f32.mrb[0].mxu0
    %v1704 = vpop.f32.mrb[0].mxu0
    %v1705 = vadd.f32 0.0, %v1704
    %v1706 = vpop.f32.mrb[0].mxu0
    %1707 = vmatprep.mubr.bf16.mxu0 %v527
    %1708 = vmatmul.mubr.bf16.gmra.mrb[0].mxu0 %v174
    %v1709 = vpop.f32.mrb[0].mxu0
    %v1710 = vadd.f32 0.0, %v1709
    %v1711 = vpop.f32.mrb[0].mxu0
    %v1712 = vpop.f32.mrb[0].mxu0
    %v1713 = vadd.f32 0.0, %v1712
    %v1714 = vpop.f32.mrb[0].mxu0
    %1715 = vmatprep.mubr.bf16.mxu0 %v528
    %1716 = vmatmul.mubr.bf16.gmra.mrb[0].mxu0 %v175
    %v1717 = vpop.f32.mrb[0].mxu0
    %v1718 = vadd.f32 0.0, %v1717
    %v1719 = vpop.f32.mrb[0].mxu0
    %v1720 = vpop.f32.mrb[0].mxu0
    %v1721 = vadd.f32 0.0, %v1720
    %v1722 = vpop.f32.mrb[0].mxu0
    %1723 = vmatprep.mubr.bf16.mxu0 %v529
    %1724 = vmatmul.mubr.bf16.gmra.mrb[0].mxu0 %v176
    %v1725 = vpop.f32.mrb[0].mxu0
    %v1726 = vadd.f32 0.0, %v1725
    %v1727 = vpop.f32.mrb[0].mxu0
    %v1728 = vpop.f32.mrb[0].mxu0
    %v1729 = vadd.f32 0.0, %v1728
    %v1730 = vpop.f32.mrb[0].mxu0
    %1731 = vdwg.mxu0
    %1732 = vmatprep.subr.bf16.mxu0 0
    %1733 = vmatpush1.bf16.msra.mxu0 %v1315
    %1734 = vmatprep.subr.bf16.mxu0 0
    %1735 = vmatpush1.bf16.msra.mxu0 %v1316
    %1736 = vmatprep.subr.bf16.mxu0 0
    %1737 = vmatpush1.bf16.msra.mxu0 %v1317
    %1738 = vmatprep.subr.bf16.mxu0 0
    %1739 = vmatpush1.bf16.msra.mxu0 %v1318
    %1740 = vmatprep.subr.bf16.mxu0 0
    %1741 = vmatpush1.bf16.msra.mxu0 %v1319
    %1742 = vmatprep.subr.bf16.mxu0 0
    %1743 = vmatpush1.bf16.msra.mxu0 %v1320
    %1744 = vmatprep.subr.bf16.mxu0 0
    %1745 = vmatpush1.bf16.msra.mxu0 %v1321
    %1746 = vmatprep.subr.bf16.mxu0 0
    %1747 = vmatpush1.bf16.msra.mxu0 %v1322
    %1748 = vmatprep.subr.bf16.mxu0 0
    %1749 = vmatpush1.bf16.msra.mxu0 %v1323
    %1750 = vmatprep.subr.bf16.mxu0 0
    %1751 = vmatpush1.bf16.msra.mxu0 %v1324
    %1752 = vmatprep.subr.bf16.mxu0 0
    %1753 = vmatpush1.bf16.msra.mxu0 %v1325
    %1754 = vmatprep.subr.bf16.mxu0 0
    %1755 = vmatpush1.bf16.msra.mxu0 %v1326
    %1756 = vmatprep.subr.bf16.mxu0 0
    %1757 = vmatpush1.bf16.msra.mxu0 %v1327
    %1758 = vmatprep.subr.bf16.mxu0 0
    %1759 = vmatpush1.bf16.msra.mxu0 %v1328
    %1760 = vmatprep.subr.bf16.mxu0 0
    %1761 = vmatpush1.bf16.msra.mxu0 %v1329
    %1762 = vmatprep.subr.bf16.mxu0 0
    %1763 = vmatpush1.bf16.msra.mxu0 %v1330
    %1764 = vmatprep.mubr.bf16.mxu0 %v146
    %1765 = vmatmul.mubr.bf16.gmra.mrb[0].mxu0 %v755
    %v1766 = vpop.f32.mrb[0].mxu0
    %v1767 = vadd.f32 %v1478, %v1766
    %v1768 = vpop.f32.mrb[0].mxu0
    %v1769 = vpop.f32.mrb[0].mxu0
    %v1770 = vadd.f32 %v1481, %v1769
    %v1771 = vpop.f32.mrb[0].mxu0
    %1772 = vmatprep.mubr.bf16.mxu0 %v147
    %1773 = vmatmul.mubr.bf16.gmra.mrb[0].mxu0 %v756
    %v1774 = vpop.f32.mrb[0].mxu0
    %v1775 = vadd.f32 %v1486, %v1774
    %v1776 = vpop.f32.mrb[0].mxu0
    %v1777 = vpop.f32.mrb[0].mxu0
    %v1778 = vadd.f32 %v1489, %v1777
    %v1779 = vpop.f32.mrb[0].mxu0
    %1780 = vmatprep.mubr.bf16.mxu0 %v148
    %1781 = vmatmul.mubr.bf16.gmra.mrb[0].mxu0 %v757
    %v1782 = vpop.f32.mrb[0].mxu0
    %v1783 = vadd.f32 %v1494, %v1782
    %v1784 = vpop.f32.mrb[0].mxu0
    %v1785 = vpop.f32.mrb[0].mxu0
    %v1786 = vadd.f32 %v1497, %v1785
    %v1787 = vpop.f32.mrb[0].mxu0
    %1788 = vmatprep.mubr.bf16.mxu0 %v149
    %1789 = vmatmul.mubr.bf16.gmra.mrb[0].mxu0 %v758
    %v1790 = vpop.f32.mrb[0].mxu0
    %v1791 = vadd.f32 %v1502, %v1790
    %v1792 = vpop.f32.mrb[0].mxu0
    %v1793 = vpop.f32.mrb[0].mxu0
    %v1794 = vadd.f32 %v1505, %v1793
    %v1795 = vpop.f32.mrb[0].mxu0
    %1796 = vmatprep.mubr.bf16.mxu0 %v150
    %1797 = vmatmul.mubr.bf16.gmra.mrb[0].mxu0 %v759
    %v1798 = vpop.f32.mrb[0].mxu0
    %v1799 = vadd.f32 %v1510, %v1798
    %v1800 = vpop.f32.mrb[0].mxu0
    %v1801 = vpop.f32.mrb[0].mxu0
    %v1802 = vadd.f32 %v1513, %v1801
    %v1803 = vpop.f32.mrb[0].mxu0
    %1804 = vmatprep.mubr.bf16.mxu0 %v151
    %1805 = vmatmul.mubr.bf16.gmra.mrb[0].mxu0 %v760
    %v1806 = vpop.f32.mrb[0].mxu0
    %v1807 = vadd.f32 %v1518, %v1806
    %v1808 = vpop.f32.mrb[0].mxu0
    %v1809 = vpop.f32.mrb[0].mxu0
    %v1810 = vadd.f32 %v1521, %v1809
    %v1811 = vpop.f32.mrb[0].mxu0
    %1812 = vmatprep.mubr.bf16.mxu0 %v152
    %1813 = vmatmul.mubr.bf16.gmra.mrb[0].mxu0 %v761
    %v1814 = vpop.f32.mrb[0].mxu0
    %v1815 = vadd.f32 %v1526, %v1814
    %v1816 = vpop.f32.mrb[0].mxu0
    %v1817 = vpop.f32.mrb[0].mxu0
    %v1818 = vadd.f32 %v1529, %v1817
    %v1819 = vpop.f32.mrb[0].mxu0
    %1820 = vmatprep.mubr.bf16.mxu0 %v153
    %1821 = vmatmul.mubr.bf16.gmra.mrb[0].mxu0 %v762
    %v1822 = vpop.f32.mrb[0].mxu0
    %v1823 = vadd.f32 %v1534, %v1822
    %v1824 = vpop.f32.mrb[0].mxu0
    %v1825 = vpop.f32.mrb[0].mxu0
    %v1826 = vadd.f32 %v1537, %v1825
    %v1827 = vpop.f32.mrb[0].mxu0
    %1828 = vmatprep.mubr.bf16.mxu0 %v154
    %1829 = vmatmul.mubr.bf16.gmra.mrb[0].mxu0 %v763
    %v1830 = vpop.f32.mrb[0].mxu0
    %v1831 = vadd.f32 %v1542, %v1830
    %v1832 = vpop.f32.mrb[0].mxu0
    %v1833 = vpop.f32.mrb[0].mxu0
    %v1834 = vadd.f32 %v1545, %v1833
    %v1835 = vpop.f32.mrb[0].mxu0
    %1836 = vmatprep.mubr.bf16.mxu0 %v155
    %1837 = vmatmul.mubr.bf16.gmra.mrb[0].mxu0 %v764
    %v1838 = vpop.f32.mrb[0].mxu0
    %v1839 = vadd.f32 %v1550, %v1838
    %v1840 = vpop.f32.mrb[0].mxu0
    %v1841 = vpop.f32.mrb[0].mxu0
    %v1842 = vadd.f32 %v1553, %v1841
    %v1843 = vpop.f32.mrb[0].mxu0
    %1844 = vmatprep.mubr.bf16.mxu0 %v156
    %1845 = vmatmul.mubr.bf16.gmra.mrb[0].mxu0 %v765
    %v1846 = vpop.f32.mrb[0].mxu0
    %v1847 = vadd.f32 %v1558, %v1846
    %v1848 = vpop.f32.mrb[0].mxu0
    %v1849 = vpop.f32.mrb[0].mxu0
    %v1850 = vadd.f32 %v1561, %v1849
    %v1851 = vpop.f32.mrb[0].mxu0
    %1852 = vmatprep.mubr.bf16.mxu0 %v157
    %1853 = vmatmul.mubr.bf16.gmra.mrb[0].mxu0 %v766
    %v1854 = vpop.f32.mrb[0].mxu0
    %v1855 = vadd.f32 %v1566, %v1854
    %v1856 = vpop.f32.mrb[0].mxu0
    %v1857 = vpop.f32.mrb[0].mxu0
    %v1858 = vadd.f32 %v1569, %v1857
    %v1859 = vpop.f32.mrb[0].mxu0
    %1860 = vmatprep.mubr.bf16.mxu0 %v158
    %1861 = vmatmul.mubr.bf16.gmra.mrb[0].mxu0 %v767
    %v1862 = vpop.f32.mrb[0].mxu0
    %v1863 = vadd.f32 %v1574, %v1862
    %v1864 = vpop.f32.mrb[0].mxu0
    %v1865 = vpop.f32.mrb[0].mxu0
    %v1866 = vadd.f32 %v1577, %v1865
    %v1867 = vpop.f32.mrb[0].mxu0
    %1868 = vmatprep.mubr.bf16.mxu0 %v159
    %1869 = vmatmul.mubr.bf16.gmra.mrb[0].mxu0 %v768
    %v1870 = vpop.f32.mrb[0].mxu0
    %v1871 = vadd.f32 %v1582, %v1870
    %v1872 = vpop.f32.mrb[0].mxu0
    %v1873 = vpop.f32.mrb[0].mxu0
    %v1874 = vadd.f32 %v1585, %v1873
    %v1875 = vpop.f32.mrb[0].mxu0
    %1876 = vmatprep.mubr.bf16.mxu0 %v160
    %1877 = vmatmul.mubr.bf16.gmra.mrb[0].mxu0 %v769
    %v1878 = vpop.f32.mrb[0].mxu0
    %v1879 = vadd.f32 %v1590, %v1878
    %v1880 = vpop.f32.mrb[0].mxu0
    %v1881 = vpop.f32.mrb[0].mxu0
    %v1882 = vadd.f32 %v1593, %v1881
    %v1883 = vpop.f32.mrb[0].mxu0
    %1884 = vmatprep.mubr.bf16.mxu0 %v787
    %1885 = vmatmul.mubr.bf16.gmra.mrb[0].mxu0 %v770
    %v1886 = vpop.f32.mrb[0].mxu0
    %v1887 = vadd.f32 %v1598, %v1886
    %v1888 = vpop.f32.mrb[0].mxu0
    %v1889 = vpop.f32.mrb[0].mxu0
    %v1890 = vadd.f32 %v1601, %v1889
    %v1891 = vpop.f32.mrb[0].mxu0
    %1892 = vmatprep.mubr.bf16.mxu0 %v162
    %1893 = vmatmul.mubr.bf16.gmra.mrb[0].mxu0 %v771
    %v1894 = vpop.f32.mrb[0].mxu0
    %v1895 = vadd.f32 %v1606, %v1894
    %v1896 = vpop.f32.mrb[0].mxu0
    %v1897 = vpop.f32.mrb[0].mxu0
    %v1898 = vadd.f32 %v1609, %v1897
    %v1899 = vpop.f32.mrb[0].mxu0
    %1900 = vmatprep.mubr.bf16.mxu0 %v163
    %1901 = vmatmul.mubr.bf16.gmra.mrb[0].mxu0 %v772
    %v1902 = vpop.f32.mrb[0].mxu0
    %v1903 = vadd.f32 %v1614, %v1902
    %v1904 = vpop.f32.mrb[0].mxu0
    %v1905 = vpop.f32.mrb[0].mxu0
    %v1906 = vadd.f32 %v1617, %v1905
    %v1907 = vpop.f32.mrb[0].mxu0
    %1908 = vmatprep.mubr.bf16.mxu0 %v164
    %1909 = vmatmul.mubr.bf16.gmra.mrb[0].mxu0 %v773
    %v1910 = vpop.f32.mrb[0].mxu0
    %v1911 = vadd.f32 %v1622, %v1910
    %v1912 = vpop.f32.mrb[0].mxu0
    %v1913 = vpop.f32.mrb[0].mxu0
    %v1914 = vadd.f32 %v1625, %v1913
    %v1915 = vpop.f32.mrb[0].mxu0
    %1916 = vmatprep.mubr.bf16.mxu0 %v165
    %1917 = vmatmul.mubr.bf16.gmra.mrb[0].mxu0 %v774
    %v1918 = vpop.f32.mrb[0].mxu0
    %v1919 = vadd.f32 %v1630, %v1918
    %v1920 = vpop.f32.mrb[0].mxu0
    %v1921 = vpop.f32.mrb[0].mxu0
    %v1922 = vadd.f32 %v1633, %v1921
    %v1923 = vpop.f32.mrb[0].mxu0
    %1924 = vmatprep.mubr.bf16.mxu0 %v166
    %1925 = vmatmul.mubr.bf16.gmra.mrb[0].mxu0 %v775
    %v1926 = vpop.f32.mrb[0].mxu0
    %v1927 = vadd.f32 %v1638, %v1926
    %v1928 = vpop.f32.mrb[0].mxu0
    %v1929 = vpop.f32.mrb[0].mxu0
    %v1930 = vadd.f32 %v1641, %v1929
    %v1931 = vpop.f32.mrb[0].mxu0
    %1932 = vmatprep.mubr.bf16.mxu0 %v167
    %1933 = vmatmul.mubr.bf16.gmra.mrb[0].mxu0 %v776
    %v1934 = vpop.f32.mrb[0].mxu0
    %v1935 = vadd.f32 %v1646, %v1934
    %v1936 = vpop.f32.mrb[0].mxu0
    %v1937 = vpop.f32.mrb[0].mxu0
    %v1938 = vadd.f32 %v1649, %v1937
    %v1939 = vpop.f32.mrb[0].mxu0
    %1940 = vmatprep.mubr.bf16.mxu0 %v168
    %1941 = vmatmul.mubr.bf16.gmra.mrb[0].mxu0 %v777
    %v1942 = vpop.f32.mrb[0].mxu0
    %v1943 = vadd.f32 %v1654, %v1942
    %v1944 = vpop.f32.mrb[0].mxu0
    %v1945 = vpop.f32.mrb[0].mxu0
    %v1946 = vadd.f32 %v1657, %v1945
    %v1947 = vpop.f32.mrb[0].mxu0
    %1948 = vmatprep.mubr.bf16.mxu0 %v169
    %1949 = vmatmul.mubr.bf16.gmra.mrb[0].mxu0 %v778
    %v1950 = vpop.f32.mrb[0].mxu0
    %v1951 = vadd.f32 %v1662, %v1950
    %v1952 = vpop.f32.mrb[0].mxu0
    %v1953 = vpop.f32.mrb[0].mxu0
    %v1954 = vadd.f32 %v1665, %v1953
    %v1955 = vpop.f32.mrb[0].mxu0
    %1956 = vmatprep.mubr.bf16.mxu0 %v170
    %1957 = vmatmul.mubr.bf16.gmra.mrb[0].mxu0 %v779
    %v1958 = vpop.f32.mrb[0].mxu0
    %v1959 = vadd.f32 %v1670, %v1958
    %v1960 = vpop.f32.mrb[0].mxu0
    %v1961 = vpop.f32.mrb[0].mxu0
    %v1962 = vadd.f32 %v1673, %v1961
    %v1963 = vpop.f32.mrb[0].mxu0
    %1964 = vmatprep.mubr.bf16.mxu0 %v171
    %1965 = vmatmul.mubr.bf16.gmra.mrb[0].mxu0 %v780
    %v1966 = vpop.f32.mrb[0].mxu0
    %v1967 = vadd.f32 %v1678, %v1966
    %v1968 = vpop.f32.mrb[0].mxu0
    %v1969 = vpop.f32.mrb[0].mxu0
    %v1970 = vadd.f32 %v1681, %v1969
    %v1971 = vpop.f32.mrb[0].mxu0
    %1972 = vmatprep.mubr.bf16.mxu0 %v172
    %1973 = vmatmul.mubr.bf16.gmra.mrb[0].mxu0 %v781
    %v1974 = vpop.f32.mrb[0].mxu0
    %v1975 = vadd.f32 %v1686, %v1974
    %v1976 = vpop.f32.mrb[0].mxu0
    %v1977 = vpop.f32.mrb[0].mxu0
    %v1978 = vadd.f32 %v1689, %v1977
    %v1979 = vpop.f32.mrb[0].mxu0
    %1980 = vmatprep.mubr.bf16.mxu0 %v173
    %1981 = vmatmul.mubr.bf16.gmra.mrb[0].mxu0 %v782
    %v1982 = vpop.f32.mrb[0].mxu0
    %v1983 = vadd.f32 %v1694, %v1982
    %v1984 = vpop.f32.mrb[0].mxu0
    %v1985 = vpop.f32.mrb[0].mxu0
    %v1986 = vadd.f32 %v1697, %v1985
    %v1987 = vpop.f32.mrb[0].mxu0
    %1988 = vmatprep.mubr.bf16.mxu0 %v174
    %1989 = vmatmul.mubr.bf16.gmra.mrb[0].mxu0 %v783
    %v1990 = vpop.f32.mrb[0].mxu0
    %v1991 = vadd.f32 %v1702, %v1990
    %v1992 = vpop.f32.mrb[0].mxu0
    %v1993 = vpop.f32.mrb[0].mxu0
    %v1994 = vadd.f32 %v1705, %v1993
    %v1995 = vpop.f32.mrb[0].mxu0
    %1996 = vmatprep.mubr.bf16.mxu0 %v175
    %1997 = vmatmul.mubr.bf16.gmra.mrb[0].mxu0 %v784
    %v1998 = vpop.f32.mrb[0].mxu0
    %v1999 = vadd.f32 %v1710, %v1998
    %v2000 = vpop.f32.mrb[0].mxu0
    %v2001 = vpop.f32.mrb[0].mxu0
    %v2002 = vadd.f32 %v1713, %v2001
    %v2003 = vpop.f32.mrb[0].mxu0
    %2004 = vmatprep.mubr.bf16.mxu0 %v176
    %2005 = vmatmul.mubr.bf16.gmra.mrb[0].mxu0 %v785
    %v2006 = vpop.f32.mrb[0].mxu0
    %v2007 = vadd.f32 %v1718, %v2006
    %v2008 = vpop.f32.mrb[0].mxu0
    %v2009 = vpop.f32.mrb[0].mxu0
    %v2010 = vadd.f32 %v1721, %v2009
    %v2011 = vpop.f32.mrb[0].mxu0
    %2012 = vmatprep.mubr.bf16.mxu0 %v788
    %2013 = vmatmul.mubr.bf16.gmra.mrb[0].mxu0 %v786
    %v2014 = vpop.f32.mrb[0].mxu0
    %v2015 = vadd.f32 %v1726, %v2014
    %v2016 = vpop.f32.mrb[0].mxu0
    %v2017 = vpop.f32.mrb[0].mxu0
    %v2018 = vadd.f32 %v1729, %v2017
    %v2019 = vpop.f32.mrb[0].mxu0
    %2020 = vdwg.mxu0
    %2021 = vmatprep.subr.bf16.mxu0 0
    %2022 = vmatpush1.bf16.msra.mxu0 %v1331
    %2023 = vmatprep.subr.bf16.mxu0 0
    %2024 = vmatpush1.bf16.msra.mxu0 %v1332
    %2025 = vmatprep.subr.bf16.mxu0 0
    %2026 = vmatpush1.bf16.msra.mxu0 %v1333
    %2027 = vmatprep.subr.bf16.mxu0 0
    %2028 = vmatpush1.bf16.msra.mxu0 %v1334
    %2029 = vmatprep.subr.bf16.mxu0 0
    %2030 = vmatpush1.bf16.msra.mxu0 %v1335
    %2031 = vmatprep.subr.bf16.mxu0 0
    %2032 = vmatpush1.bf16.msra.mxu0 %v1336
    %2033 = vmatprep.subr.bf16.mxu0 0
    %2034 = vmatpush1.bf16.msra.mxu0 %v1337
    %2035 = vmatprep.subr.bf16.mxu0 0
    %2036 = vmatpush1.bf16.msra.mxu0 %v1338
    %2037 = vmatprep.subr.bf16.mxu0 0
    %2038 = vmatpush1.bf16.msra.mxu0 %v1339
    %2039 = vmatprep.subr.bf16.mxu0 0
    %2040 = vmatpush1.bf16.msra.mxu0 %v1340
    %2041 = vmatprep.subr.bf16.mxu0 0
    %2042 = vmatpush1.bf16.msra.mxu0 %v1341
    %2043 = vmatprep.subr.bf16.mxu0 0
    %2044 = vmatpush1.bf16.msra.mxu0 %v1342
    %2045 = vmatprep.subr.bf16.mxu0 0
    %2046 = vmatpush1.bf16.msra.mxu0 %v1343
    %2047 = vmatprep.subr.bf16.mxu0 0
    %2048 = vmatpush1.bf16.msra.mxu0 %v1344
    %2049 = vmatprep.subr.bf16.mxu0 0
    %2050 = vmatpush1.bf16.msra.mxu0 %v1345
    %2051 = vmatprep.subr.bf16.mxu0 0
    %2052 = vmatpush1.bf16.msra.mxu0 %v1346
    %2053 = vmatprep.mubr.bf16.mxu0 %v756
    %2054 = vmatmul.mubr.bf16.gmra.mrb[0].mxu0 %v499
    %v2055 = vpop.f32.mrb[0].mxu0
    %v2056 = vadd.f32 %v1767, %v2055
    %v2057 = vpop.f32.mrb[0].mxu0
    %v2058 = vpop.f32.mrb[0].mxu0
    %v2059 = vadd.f32 %v1770, %v2058
    %v2060 = vpop.f32.mrb[0].mxu0
    %2061 = vmatprep.mubr.bf16.mxu0 %v757
    %2062 = vmatmul.mubr.bf16.gmra.mrb[0].mxu0 %v500
    %v2063 = vpop.f32.mrb[0].mxu0
    %v2064 = vadd.f32 %v1775, %v2063
    %v2065 = vpop.f32.mrb[0].mxu0
    %v2066 = vpop.f32.mrb[0].mxu0
    %v2067 = vadd.f32 %v1778, %v2066
    %v2068 = vpop.f32.mrb[0].mxu0
    %2069 = vmatprep.mubr.bf16.mxu0 %v758
    %2070 = vmatmul.mubr.bf16.gmra.mrb[0].mxu0 %v501
    %v2071 = vpop.f32.mrb[0].mxu0
    %v2072 = vadd.f32 %v1783, %v2071
    %v2073 = vpop.f32.mrb[0].mxu0
    %v2074 = vpop.f32.mrb[0].mxu0
    %v2075 = vadd.f32 %v1786, %v2074
    %v2076 = vpop.f32.mrb[0].mxu0
    %2077 = vmatprep.mubr.bf16.mxu0 %v759
    %2078 = vmatmul.mubr.bf16.gmra.mrb[0].mxu0 %v502
    %v2079 = vpop.f32.mrb[0].mxu0
    %v2080 = vadd.f32 %v1791, %v2079
    %v2081 = vpop.f32.mrb[0].mxu0
    %v2082 = vpop.f32.mrb[0].mxu0
    %v2083 = vadd.f32 %v1794, %v2082
    %v2084 = vpop.f32.mrb[0].mxu0
    %2085 = vmatprep.mubr.bf16.mxu0 %v760
    %2086 = vmatmul.mubr.bf16.gmra.mrb[0].mxu0 %v503
    %v2087 = vpop.f32.mrb[0].mxu0
    %v2088 = vadd.f32 %v1799, %v2087
    %v2089 = vpop.f32.mrb[0].mxu0
    %v2090 = vpop.f32.mrb[0].mxu0
    %v2091 = vadd.f32 %v1802, %v2090
    %v2092 = vpop.f32.mrb[0].mxu0
    %2093 = vmatprep.mubr.bf16.mxu0 %v761
    %2094 = vmatmul.mubr.bf16.gmra.mrb[0].mxu0 %v504
    %v2095 = vpop.f32.mrb[0].mxu0
    %v2096 = vadd.f32 %v1807, %v2095
    %v2097 = vpop.f32.mrb[0].mxu0
    %v2098 = vpop.f32.mrb[0].mxu0
    %v2099 = vadd.f32 %v1810, %v2098
    %v2100 = vpop.f32.mrb[0].mxu0
    %2101 = vmatprep.mubr.bf16.mxu0 %v762
    %2102 = vmatmul.mubr.bf16.gmra.mrb[0].mxu0 %v505
    %v2103 = vpop.f32.mrb[0].mxu0
    %v2104 = vadd.f32 %v1815, %v2103
    %v2105 = vpop.f32.mrb[0].mxu0
    %v2106 = vpop.f32.mrb[0].mxu0
    %v2107 = vadd.f32 %v1818, %v2106
    %v2108 = vpop.f32.mrb[0].mxu0
    %2109 = vmatprep.mubr.bf16.mxu0 %v763
    %2110 = vmatmul.mubr.bf16.gmra.mrb[0].mxu0 %v506
    %v2111 = vpop.f32.mrb[0].mxu0
    %v2112 = vadd.f32 %v1823, %v2111
    %v2113 = vpop.f32.mrb[0].mxu0
    %v2114 = vpop.f32.mrb[0].mxu0
    %v2115 = vadd.f32 %v1826, %v2114
    %v2116 = vpop.f32.mrb[0].mxu0
    %2117 = vmatprep.mubr.bf16.mxu0 %v764
    %2118 = vmatmul.mubr.bf16.gmra.mrb[0].mxu0 %v507
    %v2119 = vpop.f32.mrb[0].mxu0
    %v2120 = vadd.f32 %v1831, %v2119
    %v2121 = vpop.f32.mrb[0].mxu0
    %v2122 = vpop.f32.mrb[0].mxu0
    %v2123 = vadd.f32 %v1834, %v2122
    %v2124 = vpop.f32.mrb[0].mxu0
    %2125 = vmatprep.mubr.bf16.mxu0 %v765
    %2126 = vmatmul.mubr.bf16.gmra.mrb[0].mxu0 %v508
    %v2127 = vpop.f32.mrb[0].mxu0
    %v2128 = vadd.f32 %v1839, %v2127
    %v2129 = vpop.f32.mrb[0].mxu0
    %v2130 = vpop.f32.mrb[0].mxu0
    %v2131 = vadd.f32 %v1842, %v2130
    %v2132 = vpop.f32.mrb[0].mxu0
    %2133 = vmatprep.mubr.bf16.mxu0 %v766
    %2134 = vmatmul.mubr.bf16.gmra.mrb[0].mxu0 %v509
    %v2135 = vpop.f32.mrb[0].mxu0
    %v2136 = vadd.f32 %v1847, %v2135
    %v2137 = vpop.f32.mrb[0].mxu0
    %v2138 = vpop.f32.mrb[0].mxu0
    %v2139 = vadd.f32 %v1850, %v2138
    %v2140 = vpop.f32.mrb[0].mxu0
    %2141 = vmatprep.mubr.bf16.mxu0 %v767
    %2142 = vmatmul.mubr.bf16.gmra.mrb[0].mxu0 %v510
    %v2143 = vpop.f32.mrb[0].mxu0
    %v2144 = vadd.f32 %v1855, %v2143
    %v2145 = vpop.f32.mrb[0].mxu0
    %v2146 = vpop.f32.mrb[0].mxu0
    %v2147 = vadd.f32 %v1858, %v2146
    %v2148 = vpop.f32.mrb[0].mxu0
    %2149 = vmatprep.mubr.bf16.mxu0 %v768
    %2150 = vmatmul.mubr.bf16.gmra.mrb[0].mxu0 %v511
    %v2151 = vpop.f32.mrb[0].mxu0
    %v2152 = vadd.f32 %v1863, %v2151
    %v2153 = vpop.f32.mrb[0].mxu0
    %v2154 = vpop.f32.mrb[0].mxu0
    %v2155 = vadd.f32 %v1866, %v2154
    %v2156 = vpop.f32.mrb[0].mxu0
    %2157 = vmatprep.mubr.bf16.mxu0 %v769
    %2158 = vmatmul.mubr.bf16.gmra.mrb[0].mxu0 %v512
    %v2159 = vpop.f32.mrb[0].mxu0
    %v2160 = vadd.f32 %v1871, %v2159
    %v2161 = vpop.f32.mrb[0].mxu0
    %v2162 = vpop.f32.mrb[0].mxu0
    %v2163 = vadd.f32 %v1874, %v2162
    %v2164 = vpop.f32.mrb[0].mxu0
    %2165 = vmatprep.mubr.bf16.mxu0 %v770
    %2166 = vmatmul.mubr.bf16.gmra.mrb[0].mxu0 %v513
    %v2167 = vpop.f32.mrb[0].mxu0
    %v2168 = vadd.f32 %v1879, %v2167
    %v2169 = vpop.f32.mrb[0].mxu0
    %v2170 = vpop.f32.mrb[0].mxu0
    %v2171 = vadd.f32 %v1882, %v2170
    %v2172 = vpop.f32.mrb[0].mxu0
    %2173 = vmatprep.mubr.bf16.mxu0 %v825
    %2174 = vmatmul.mubr.bf16.gmra.mrb[0].mxu0 %v809
    %v2175 = vpop.f32.mrb[0].mxu0
    %v2176 = vadd.f32 %v1887, %v2175
    %v2177 = vpop.f32.mrb[0].mxu0
    %v2178 = vpop.f32.mrb[0].mxu0
    %v2179 = vadd.f32 %v1890, %v2178
    %v2180 = vpop.f32.mrb[0].mxu0
    %2181 = vmatprep.mubr.bf16.mxu0 %v772
    %2182 = vmatmul.mubr.bf16.gmra.mrb[0].mxu0 %v515
    %v2183 = vpop.f32.mrb[0].mxu0
    %v2184 = vadd.f32 %v1895, %v2183
    %v2185 = vpop.f32.mrb[0].mxu0
    %v2186 = vpop.f32.mrb[0].mxu0
    %v2187 = vadd.f32 %v1898, %v2186
    %v2188 = vpop.f32.mrb[0].mxu0
    %2189 = vmatprep.mubr.bf16.mxu0 %v773
    %2190 = vmatmul.mubr.bf16.gmra.mrb[0].mxu0 %v516
    %v2191 = vpop.f32.mrb[0].mxu0
    %v2192 = vadd.f32 %v1903, %v2191
    %v2193 = vpop.f32.mrb[0].mxu0
    %v2194 = vpop.f32.mrb[0].mxu0
    %v2195 = vadd.f32 %v1906, %v2194
    %v2196 = vpop.f32.mrb[0].mxu0
    %2197 = vmatprep.mubr.bf16.mxu0 %v774
    %2198 = vmatmul.mubr.bf16.gmra.mrb[0].mxu0 %v517
    %v2199 = vpop.f32.mrb[0].mxu0
    %v2200 = vadd.f32 %v1911, %v2199
    %v2201 = vpop.f32.mrb[0].mxu0
    %v2202 = vpop.f32.mrb[0].mxu0
    %v2203 = vadd.f32 %v1914, %v2202
    %v2204 = vpop.f32.mrb[0].mxu0
    %2205 = vmatprep.mubr.bf16.mxu0 %v775
    %2206 = vmatmul.mubr.bf16.gmra.mrb[0].mxu0 %v518
    %v2207 = vpop.f32.mrb[0].mxu0
    %v2208 = vadd.f32 %v1919, %v2207
    %v2209 = vpop.f32.mrb[0].mxu0
    %v2210 = vpop.f32.mrb[0].mxu0
    %v2211 = vadd.f32 %v1922, %v2210
    %v2212 = vpop.f32.mrb[0].mxu0
    %2213 = vmatprep.mubr.bf16.mxu0 %v776
    %2214 = vmatmul.mubr.bf16.gmra.mrb[0].mxu0 %v519
    %v2215 = vpop.f32.mrb[0].mxu0
    %v2216 = vadd.f32 %v1927, %v2215
    %v2217 = vpop.f32.mrb[0].mxu0
    %v2218 = vpop.f32.mrb[0].mxu0
    %v2219 = vadd.f32 %v1930, %v2218
    %v2220 = vpop.f32.mrb[0].mxu0
    %2221 = vmatprep.mubr.bf16.mxu0 %v777
    %2222 = vmatmul.mubr.bf16.gmra.mrb[0].mxu0 %v520
    %v2223 = vpop.f32.mrb[0].mxu0
    %v2224 = vadd.f32 %v1935, %v2223
    %v2225 = vpop.f32.mrb[0].mxu0
    %v2226 = vpop.f32.mrb[0].mxu0
    %v2227 = vadd.f32 %v1938, %v2226
    %v2228 = vpop.f32.mrb[0].mxu0
    %2229 = vmatprep.mubr.bf16.mxu0 %v778
    %2230 = vmatmul.mubr.bf16.gmra.mrb[0].mxu0 %v521
    %v2231 = vpop.f32.mrb[0].mxu0
    %v2232 = vadd.f32 %v1943, %v2231
    %v2233 = vpop.f32.mrb[0].mxu0
    %v2234 = vpop.f32.mrb[0].mxu0
    %v2235 = vadd.f32 %v1946, %v2234
    %v2236 = vpop.f32.mrb[0].mxu0
    %2237 = vmatprep.mubr.bf16.mxu0 %v779
    %2238 = vmatmul.mubr.bf16.gmra.mrb[0].mxu0 %v522
    %v2239 = vpop.f32.mrb[0].mxu0
    %v2240 = vadd.f32 %v1951, %v2239
    %v2241 = vpop.f32.mrb[0].mxu0
    %v2242 = vpop.f32.mrb[0].mxu0
    %v2243 = vadd.f32 %v1954, %v2242
    %v2244 = vpop.f32.mrb[0].mxu0
    %2245 = vmatprep.mubr.bf16.mxu0 %v780
    %2246 = vmatmul.mubr.bf16.gmra.mrb[0].mxu0 %v523
    %v2247 = vpop.f32.mrb[0].mxu0
    %v2248 = vadd.f32 %v1959, %v2247
    %v2249 = vpop.f32.mrb[0].mxu0
    %v2250 = vpop.f32.mrb[0].mxu0
    %v2251 = vadd.f32 %v1962, %v2250
    %v2252 = vpop.f32.mrb[0].mxu0
    %2253 = vmatprep.mubr.bf16.mxu0 %v781
    %2254 = vmatmul.mubr.bf16.gmra.mrb[0].mxu0 %v524
    %v2255 = vpop.f32.mrb[0].mxu0
    %v2256 = vadd.f32 %v1967, %v2255
    %v2257 = vpop.f32.mrb[0].mxu0
    %v2258 = vpop.f32.mrb[0].mxu0
    %v2259 = vadd.f32 %v1970, %v2258
    %v2260 = vpop.f32.mrb[0].mxu0
    %2261 = vmatprep.mubr.bf16.mxu0 %v782
    %2262 = vmatmul.mubr.bf16.gmra.mrb[0].mxu0 %v525
    %v2263 = vpop.f32.mrb[0].mxu0
    %v2264 = vadd.f32 %v1975, %v2263
    %v2265 = vpop.f32.mrb[0].mxu0
    %v2266 = vpop.f32.mrb[0].mxu0
    %v2267 = vadd.f32 %v1978, %v2266
    %v2268 = vpop.f32.mrb[0].mxu0
    %2269 = vmatprep.mubr.bf16.mxu0 %v783
    %2270 = vmatmul.mubr.bf16.gmra.mrb[0].mxu0 %v526
    %v2271 = vpop.f32.mrb[0].mxu0
    %v2272 = vadd.f32 %v1983, %v2271
    %v2273 = vpop.f32.mrb[0].mxu0
    %v2274 = vpop.f32.mrb[0].mxu0
    %v2275 = vadd.f32 %v1986, %v2274
    %v2276 = vpop.f32.mrb[0].mxu0
    %2277 = vmatprep.mubr.bf16.mxu0 %v784
    %2278 = vmatmul.mubr.bf16.gmra.mrb[0].mxu0 %v527
    %v2279 = vpop.f32.mrb[0].mxu0
    %v2280 = vadd.f32 %v1991, %v2279
    %v2281 = vpop.f32.mrb[0].mxu0
    %v2282 = vpop.f32.mrb[0].mxu0
    %v2283 = vadd.f32 %v1994, %v2282
    %v2284 = vpop.f32.mrb[0].mxu0
    %2285 = vmatprep.mubr.bf16.mxu0 %v785
    %2286 = vmatmul.mubr.bf16.gmra.mrb[0].mxu0 %v528
    %v2287 = vpop.f32.mrb[0].mxu0
    %v2288 = vadd.f32 %v1999, %v2287
    %v2289 = vpop.f32.mrb[0].mxu0
    %v2290 = vpop.f32.mrb[0].mxu0
    %v2291 = vadd.f32 %v2002, %v2290
    %v2292 = vpop.f32.mrb[0].mxu0
    %2293 = vmatprep.mubr.bf16.mxu0 %v786
    %2294 = vmatmul.mubr.bf16.gmra.mrb[0].mxu0 %v529
    %v2295 = vpop.f32.mrb[0].mxu0
    %v2296 = vadd.f32 %v2007, %v2295
    %v2297 = vpop.f32.mrb[0].mxu0
    %v2298 = vpop.f32.mrb[0].mxu0
    %v2299 = vadd.f32 %v2010, %v2298
    %v2300 = vpop.f32.mrb[0].mxu0
    %2301 = vmatprep.mubr.bf16.mxu0 %v826
    %2302 = vmatmul.mubr.bf16.gmra.mrb[0].mxu0 %v810
    %v2303 = vpop.f32.mrb[0].mxu0
    %v2304 = vadd.f32 %v2015, %v2303
    %v2305 = vpop.f32.mrb[0].mxu0
    %v2306 = vpop.f32.mrb[0].mxu0
    %v2307 = vadd.f32 %v2018, %v2306
    %v2308 = vpop.f32.mrb[0].mxu0
    %2309 = vdwg.mxu0
    %2310 = vmatprep.subr.bf16.mxu0 0
    %2311 = vmatpush1.bf16.msra.mxu0 %v1347
    %2312 = vmatprep.subr.bf16.mxu0 0
    %2313 = vmatpush1.bf16.msra.mxu0 %v1348
    %2314 = vmatprep.subr.bf16.mxu0 0
    %2315 = vmatpush1.bf16.msra.mxu0 %v1349
    %2316 = vmatprep.subr.bf16.mxu0 0
    %2317 = vmatpush1.bf16.msra.mxu0 %v1350
    %2318 = vmatprep.subr.bf16.mxu0 0
    %2319 = vmatpush1.bf16.msra.mxu0 %v1351
    %2320 = vmatprep.subr.bf16.mxu0 0
    %2321 = vmatpush1.bf16.msra.mxu0 %v1352
    %2322 = vmatprep.subr.bf16.mxu0 0
    %2323 = vmatpush1.bf16.msra.mxu0 %v1353
    %2324 = vmatprep.subr.bf16.mxu0 0
    %2325 = vmatpush1.bf16.msra.mxu0 %v1354
    %2326 = vmatprep.subr.bf16.mxu0 0
    %2327 = vmatpush1.bf16.msra.mxu0 %v1355
    %2328 = vmatprep.subr.bf16.mxu0 0
    %2329 = vmatpush1.bf16.msra.mxu0 %v1356
    %2330 = vmatprep.subr.bf16.mxu0 0
    %2331 = vmatpush1.bf16.msra.mxu0 %v1357
    %2332 = vmatprep.subr.bf16.mxu0 0
    %2333 = vmatpush1.bf16.msra.mxu0 %v1358
    %2334 = vmatprep.subr.bf16.mxu0 0
    %2335 = vmatpush1.bf16.msra.mxu0 %v1359
    %2336 = vmatprep.subr.bf16.mxu0 0
    %2337 = vmatpush1.bf16.msra.mxu0 %v1360
    %2338 = vmatprep.subr.bf16.mxu0 0
    %2339 = vmatpush1.bf16.msra.mxu0 %v1361
    %2340 = vmatprep.subr.bf16.mxu0 0
    %2341 = vmatpush1.bf16.msra.mxu0 %v1362
    %2342 = vmatprep.mubr.bf16.mxu0 %v500
    %2343 = vmatmul.mubr.bf16.gmra.mrb[0].mxu0 %v147
    %v2344 = vpop.f32.mrb[0].mxu0
    %v2345 = vadd.f32 %v2056, %v2344
    %v2346 = vpop.f32.mrb[0].mxu0
    %v2347 = vpop.f32.mrb[0].mxu0
    %v2348 = vadd.f32 %v2059, %v2347
    %v2349 = vpop.f32.mrb[0].mxu0
    %2350 = vmatprep.mubr.bf16.mxu0 %v501
    %2351 = vmatmul.mubr.bf16.gmra.mrb[0].mxu0 %v148
    %v2352 = vpop.f32.mrb[0].mxu0
    %v2353 = vadd.f32 %v2064, %v2352
    %v2354 = vpop.f32.mrb[0].mxu0
    %v2355 = vpop.f32.mrb[0].mxu0
    %v2356 = vadd.f32 %v2067, %v2355
    %v2357 = vpop.f32.mrb[0].mxu0
    %2358 = vmatprep.mubr.bf16.mxu0 %v502
    %2359 = vmatmul.mubr.bf16.gmra.mrb[0].mxu0 %v149
    %v2360 = vpop.f32.mrb[0].mxu0
    %v2361 = vadd.f32 %v2072, %v2360
    %v2362 = vpop.f32.mrb[0].mxu0
    %v2363 = vpop.f32.mrb[0].mxu0
    %v2364 = vadd.f32 %v2075, %v2363
    %v2365 = vpop.f32.mrb[0].mxu0
    %2366 = vmatprep.mubr.bf16.mxu0 %v503
    %2367 = vmatmul.mubr.bf16.gmra.mrb[0].mxu0 %v150
    %v2368 = vpop.f32.mrb[0].mxu0
    %v2369 = vadd.f32 %v2080, %v2368
    %v2370 = vpop.f32.mrb[0].mxu0
    %v2371 = vpop.f32.mrb[0].mxu0
    %v2372 = vadd.f32 %v2083, %v2371
    %v2373 = vpop.f32.mrb[0].mxu0
    %2374 = vmatprep.mubr.bf16.mxu0 %v504
    %2375 = vmatmul.mubr.bf16.gmra.mrb[0].mxu0 %v151
    %v2376 = vpop.f32.mrb[0].mxu0
    %v2377 = vadd.f32 %v2088, %v2376
    %v2378 = vpop.f32.mrb[0].mxu0
    %v2379 = vpop.f32.mrb[0].mxu0
    %v2380 = vadd.f32 %v2091, %v2379
    %v2381 = vpop.f32.mrb[0].mxu0
    %2382 = vmatprep.mubr.bf16.mxu0 %v505
    %2383 = vmatmul.mubr.bf16.gmra.mrb[0].mxu0 %v152
    %v2384 = vpop.f32.mrb[0].mxu0
    %v2385 = vadd.f32 %v2096, %v2384
    %v2386 = vpop.f32.mrb[0].mxu0
    %v2387 = vpop.f32.mrb[0].mxu0
    %v2388 = vadd.f32 %v2099, %v2387
    %v2389 = vpop.f32.mrb[0].mxu0
    %2390 = vmatprep.mubr.bf16.mxu0 %v506
    %2391 = vmatmul.mubr.bf16.gmra.mrb[0].mxu0 %v153
    %v2392 = vpop.f32.mrb[0].mxu0
    %v2393 = vadd.f32 %v2104, %v2392
    %v2394 = vpop.f32.mrb[0].mxu0
    %v2395 = vpop.f32.mrb[0].mxu0
    %v2396 = vadd.f32 %v2107, %v2395
    %v2397 = vpop.f32.mrb[0].mxu0
    %2398 = vmatprep.mubr.bf16.mxu0 %v507
    %2399 = vmatmul.mubr.bf16.gmra.mrb[0].mxu0 %v154
    %v2400 = vpop.f32.mrb[0].mxu0
    %v2401 = vadd.f32 %v2112, %v2400
    %v2402 = vpop.f32.mrb[0].mxu0
    %v2403 = vpop.f32.mrb[0].mxu0
    %v2404 = vadd.f32 %v2115, %v2403
    %v2405 = vpop.f32.mrb[0].mxu0
    %2406 = vmatprep.mubr.bf16.mxu0 %v508
    %2407 = vmatmul.mubr.bf16.gmra.mrb[0].mxu0 %v155
    %v2408 = vpop.f32.mrb[0].mxu0
    %v2409 = vadd.f32 %v2120, %v2408
    %v2410 = vpop.f32.mrb[0].mxu0
    %v2411 = vpop.f32.mrb[0].mxu0
    %v2412 = vadd.f32 %v2123, %v2411
    %v2413 = vpop.f32.mrb[0].mxu0
    %2414 = vmatprep.mubr.bf16.mxu0 %v509
    %2415 = vmatmul.mubr.bf16.gmra.mrb[0].mxu0 %v156
    %v2416 = vpop.f32.mrb[0].mxu0
    %v2417 = vadd.f32 %v2128, %v2416
    %v2418 = vpop.f32.mrb[0].mxu0
    %v2419 = vpop.f32.mrb[0].mxu0
    %v2420 = vadd.f32 %v2131, %v2419
    %v2421 = vpop.f32.mrb[0].mxu0
    %2422 = vmatprep.mubr.bf16.mxu0 %v510
    %2423 = vmatmul.mubr.bf16.gmra.mrb[0].mxu0 %v157
    %v2424 = vpop.f32.mrb[0].mxu0
    %v2425 = vadd.f32 %v2136, %v2424
    %v2426 = vpop.f32.mrb[0].mxu0
    %v2427 = vpop.f32.mrb[0].mxu0
    %v2428 = vadd.f32 %v2139, %v2427
    %v2429 = vpop.f32.mrb[0].mxu0
    %2430 = vmatprep.mubr.bf16.mxu0 %v511
    %2431 = vmatmul.mubr.bf16.gmra.mrb[0].mxu0 %v158
    %v2432 = vpop.f32.mrb[0].mxu0
    %v2433 = vadd.f32 %v2144, %v2432
    %v2434 = vpop.f32.mrb[0].mxu0
    %v2435 = vpop.f32.mrb[0].mxu0
    %v2436 = vadd.f32 %v2147, %v2435
    %v2437 = vpop.f32.mrb[0].mxu0
    %2438 = vmatprep.mubr.bf16.mxu0 %v512
    %2439 = vmatmul.mubr.bf16.gmra.mrb[0].mxu0 %v159
    %v2440 = vpop.f32.mrb[0].mxu0
    %v2441 = vadd.f32 %v2152, %v2440
    %v2442 = vpop.f32.mrb[0].mxu0
    %v2443 = vpop.f32.mrb[0].mxu0
    %v2444 = vadd.f32 %v2155, %v2443
    %v2445 = vpop.f32.mrb[0].mxu0
    %2446 = vmatprep.mubr.bf16.mxu0 %v513
    %2447 = vmatmul.mubr.bf16.gmra.mrb[0].mxu0 %v160
    %v2448 = vpop.f32.mrb[0].mxu0
    %v2449 = vadd.f32 %v2160, %v2448
    %v2450 = vpop.f32.mrb[0].mxu0
    %v2451 = vpop.f32.mrb[0].mxu0
    %v2452 = vadd.f32 %v2163, %v2451
    %v2453 = vpop.f32.mrb[0].mxu0
    %2454 = vmatprep.mubr.bf16.mxu0 %v809
    %2455 = vmatmul.mubr.bf16.gmra.mrb[0].mxu0 %v787
    %v2456 = vpop.f32.mrb[0].mxu0
    %v2457 = vadd.f32 %v2168, %v2456
    %v2458 = vpop.f32.mrb[0].mxu0
    %v2459 = vpop.f32.mrb[0].mxu0
    %v2460 = vadd.f32 %v2171, %v2459
    %v2461 = vpop.f32.mrb[0].mxu0
    %2462 = vmatprep.mubr.bf16.mxu0 %v849
    %2463 = vmatmul.mubr.bf16.gmra.mrb[0].mxu0 %v827
    %v2464 = vpop.f32.mrb[0].mxu0
    %v2465 = vadd.f32 %v2176, %v2464
    %v2466 = vpop.f32.mrb[0].mxu0
    %v2467 = vpop.f32.mrb[0].mxu0
    %v2468 = vadd.f32 %v2179, %v2467
    %v2469 = vpop.f32.mrb[0].mxu0
    %2470 = vmatprep.mubr.bf16.mxu0 %v516
    %2471 = vmatmul.mubr.bf16.gmra.mrb[0].mxu0 %v163
    %v2472 = vpop.f32.mrb[0].mxu0
    %v2473 = vadd.f32 %v2184, %v2472
    %v2474 = vpop.f32.mrb[0].mxu0
    %v2475 = vpop.f32.mrb[0].mxu0
    %v2476 = vadd.f32 %v2187, %v2475
    %v2477 = vpop.f32.mrb[0].mxu0
    %2478 = vmatprep.mubr.bf16.mxu0 %v517
    %2479 = vmatmul.mubr.bf16.gmra.mrb[0].mxu0 %v164
    %v2480 = vpop.f32.mrb[0].mxu0
    %v2481 = vadd.f32 %v2192, %v2480
    %v2482 = vpop.f32.mrb[0].mxu0
    %v2483 = vpop.f32.mrb[0].mxu0
    %v2484 = vadd.f32 %v2195, %v2483
    %v2485 = vpop.f32.mrb[0].mxu0
    %2486 = vmatprep.mubr.bf16.mxu0 %v518
    %2487 = vmatmul.mubr.bf16.gmra.mrb[0].mxu0 %v165
    %v2488 = vpop.f32.mrb[0].mxu0
    %v2489 = vadd.f32 %v2200, %v2488
    %v2490 = vpop.f32.mrb[0].mxu0
    %v2491 = vpop.f32.mrb[0].mxu0
    %v2492 = vadd.f32 %v2203, %v2491
    %v2493 = vpop.f32.mrb[0].mxu0
    %2494 = vmatprep.mubr.bf16.mxu0 %v519
    %2495 = vmatmul.mubr.bf16.gmra.mrb[0].mxu0 %v166
    %v2496 = vpop.f32.mrb[0].mxu0
    %v2497 = vadd.f32 %v2208, %v2496
    %v2498 = vpop.f32.mrb[0].mxu0
    %v2499 = vpop.f32.mrb[0].mxu0
    %v2500 = vadd.f32 %v2211, %v2499
    %v2501 = vpop.f32.mrb[0].mxu0
    %2502 = vmatprep.mubr.bf16.mxu0 %v520
    %2503 = vmatmul.mubr.bf16.gmra.mrb[0].mxu0 %v167
    %v2504 = vpop.f32.mrb[0].mxu0
    %v2505 = vadd.f32 %v2216, %v2504
    %v2506 = vpop.f32.mrb[0].mxu0
    %v2507 = vpop.f32.mrb[0].mxu0
    %v2508 = vadd.f32 %v2219, %v2507
    %v2509 = vpop.f32.mrb[0].mxu0
    %2510 = vmatprep.mubr.bf16.mxu0 %v521
    %2511 = vmatmul.mubr.bf16.gmra.mrb[0].mxu0 %v168
    %v2512 = vpop.f32.mrb[0].mxu0
    %v2513 = vadd.f32 %v2224, %v2512
    %v2514 = vpop.f32.mrb[0].mxu0
    %v2515 = vpop.f32.mrb[0].mxu0
    %v2516 = vadd.f32 %v2227, %v2515
    %v2517 = vpop.f32.mrb[0].mxu0
    %2518 = vmatprep.mubr.bf16.mxu0 %v522
    %2519 = vmatmul.mubr.bf16.gmra.mrb[0].mxu0 %v169
    %v2520 = vpop.f32.mrb[0].mxu0
    %v2521 = vadd.f32 %v2232, %v2520
    %v2522 = vpop.f32.mrb[0].mxu0
    %v2523 = vpop.f32.mrb[0].mxu0
    %v2524 = vadd.f32 %v2235, %v2523
    %v2525 = vpop.f32.mrb[0].mxu0
    %2526 = vmatprep.mubr.bf16.mxu0 %v523
    %2527 = vmatmul.mubr.bf16.gmra.mrb[0].mxu0 %v170
    %v2528 = vpop.f32.mrb[0].mxu0
    %v2529 = vadd.f32 %v2240, %v2528
    %v2530 = vpop.f32.mrb[0].mxu0
    %v2531 = vpop.f32.mrb[0].mxu0
    %v2532 = vadd.f32 %v2243, %v2531
    %v2533 = vpop.f32.mrb[0].mxu0
    %2534 = vmatprep.mubr.bf16.mxu0 %v524
    %2535 = vmatmul.mubr.bf16.gmra.mrb[0].mxu0 %v171
    %v2536 = vpop.f32.mrb[0].mxu0
    %v2537 = vadd.f32 %v2248, %v2536
    %v2538 = vpop.f32.mrb[0].mxu0
    %v2539 = vpop.f32.mrb[0].mxu0
    %v2540 = vadd.f32 %v2251, %v2539
    %v2541 = vpop.f32.mrb[0].mxu0
    %2542 = vmatprep.mubr.bf16.mxu0 %v525
    %2543 = vmatmul.mubr.bf16.gmra.mrb[0].mxu0 %v172
    %v2544 = vpop.f32.mrb[0].mxu0
    %v2545 = vadd.f32 %v2256, %v2544
    %v2546 = vpop.f32.mrb[0].mxu0
    %v2547 = vpop.f32.mrb[0].mxu0
    %v2548 = vadd.f32 %v2259, %v2547
    %v2549 = vpop.f32.mrb[0].mxu0
    %2550 = vmatprep.mubr.bf16.mxu0 %v526
    %2551 = vmatmul.mubr.bf16.gmra.mrb[0].mxu0 %v173
    %v2552 = vpop.f32.mrb[0].mxu0
    %v2553 = vadd.f32 %v2264, %v2552
    %v2554 = vpop.f32.mrb[0].mxu0
    %v2555 = vpop.f32.mrb[0].mxu0
    %v2556 = vadd.f32 %v2267, %v2555
    %v2557 = vpop.f32.mrb[0].mxu0
    %2558 = vmatprep.mubr.bf16.mxu0 %v527
    %2559 = vmatmul.mubr.bf16.gmra.mrb[0].mxu0 %v174
    %v2560 = vpop.f32.mrb[0].mxu0
    %v2561 = vadd.f32 %v2272, %v2560
    %v2562 = vpop.f32.mrb[0].mxu0
    %v2563 = vpop.f32.mrb[0].mxu0
    %v2564 = vadd.f32 %v2275, %v2563
    %v2565 = vpop.f32.mrb[0].mxu0
    %2566 = vmatprep.mubr.bf16.mxu0 %v528
    %2567 = vmatmul.mubr.bf16.gmra.mrb[0].mxu0 %v175
    %v2568 = vpop.f32.mrb[0].mxu0
    %v2569 = vadd.f32 %v2280, %v2568
    %v2570 = vpop.f32.mrb[0].mxu0
    %v2571 = vpop.f32.mrb[0].mxu0
    %v2572 = vadd.f32 %v2283, %v2571
    %v2573 = vpop.f32.mrb[0].mxu0
    %2574 = vmatprep.mubr.bf16.mxu0 %v529
    %2575 = vmatmul.mubr.bf16.gmra.mrb[0].mxu0 %v176
    %v2576 = vpop.f32.mrb[0].mxu0
    %v2577 = vadd.f32 %v2288, %v2576
    %v2578 = vpop.f32.mrb[0].mxu0
    %v2579 = vpop.f32.mrb[0].mxu0
    %v2580 = vadd.f32 %v2291, %v2579
    %v2581 = vpop.f32.mrb[0].mxu0
    %2582 = vmatprep.mubr.bf16.mxu0 %v810
    %2583 = vmatmul.mubr.bf16.gmra.mrb[0].mxu0 %v788
    %v2584 = vpop.f32.mrb[0].mxu0
    %v2585 = vadd.f32 %v2296, %v2584
    %v2586 = vpop.f32.mrb[0].mxu0
    %v2587 = vpop.f32.mrb[0].mxu0
    %v2588 = vadd.f32 %v2299, %v2587
    %v2589 = vpop.f32.mrb[0].mxu0
    %2590 = vmatprep.mubr.bf16.mxu0 %v850
    %2591 = vmatmul.mubr.bf16.gmra.mrb[0].mxu0 %v828
    %v2592 = vpop.f32.mrb[0].mxu0
    %v2593 = vadd.f32 %v2304, %v2592
    %v2594 = vpop.f32.mrb[0].mxu0
    %v2595 = vpop.f32.mrb[0].mxu0
    %v2596 = vadd.f32 %v2307, %v2595
    %v2597 = vpop.f32.mrb[0].mxu0
    %2598 = vdwg.mxu0
    %2599 = vmatprep.subr.bf16.mxu0 0
    %2600 = vmatpush1.bf16.msra.mxu0 %v1363
    %2601 = vmatprep.subr.bf16.mxu0 0
    %2602 = vmatpush1.bf16.msra.mxu0 %v1364
    %2603 = vmatprep.subr.bf16.mxu0 0
    %2604 = vmatpush1.bf16.msra.mxu0 %v1365
    %2605 = vmatprep.subr.bf16.mxu0 0
    %2606 = vmatpush1.bf16.msra.mxu0 %v1366
    %2607 = vmatprep.subr.bf16.mxu0 0
    %2608 = vmatpush1.bf16.msra.mxu0 %v1367
    %2609 = vmatprep.subr.bf16.mxu0 0
    %2610 = vmatpush1.bf16.msra.mxu0 %v1368
    %2611 = vmatprep.subr.bf16.mxu0 0
    %2612 = vmatpush1.bf16.msra.mxu0 %v1369
    %2613 = vmatprep.subr.bf16.mxu0 0
    %2614 = vmatpush1.bf16.msra.mxu0 %v1370
    %2615 = vmatprep.subr.bf16.mxu0 0
    %2616 = vmatpush1.bf16.msra.mxu0 0
    %2617 = vmatprep.subr.bf16.mxu0 0
    %2618 = vmatpush1.bf16.msra.mxu0 0
    %2619 = vmatprep.subr.bf16.mxu0 0
    %2620 = vmatpush1.bf16.msra.mxu0 0
    %2621 = vmatprep.subr.bf16.mxu0 0
    %2622 = vmatpush1.bf16.msra.mxu0 0
    %2623 = vmatprep.subr.bf16.mxu0 0
    %2624 = vmatpush1.bf16.msra.mxu0 0
    %2625 = vmatprep.subr.bf16.mxu0 0
    %2626 = vmatpush1.bf16.msra.mxu0 0
    %2627 = vmatprep.subr.bf16.mxu0 0
    %2628 = vmatpush1.bf16.msra.mxu0 0
    %2629 = vmatprep.subr.bf16.mxu0 0
    %2630 = vmatpush1.bf16.msra.mxu0 0
    %2631 = vmatprep.mubr.bf16.mxu0 0
    %2632 = vmatmul.mubr.bf16.gmra.mrb[0].mxu0 %v757
    %v2633 = vpop.f32.mrb[0].mxu0
    %v2634 = vadd.f32 %v2345, %v2633
    %v2635 = vpop.f32.mrb[0].mxu0
    %v2636 = vpop.f32.mrb[0].mxu0
    %v2637 = vadd.f32 %v2348, %v2636
    %v2638 = vpop.f32.mrb[0].mxu0
    %2639 = vmatprep.mubr.bf16.mxu0 0
    %2640 = vmatmul.mubr.bf16.gmra.mrb[0].mxu0 %v758
    %v2641 = vpop.f32.mrb[0].mxu0
    %v2642 = vadd.f32 %v2353, %v2641
    %v2643 = vpop.f32.mrb[0].mxu0
    %v2644 = vpop.f32.mrb[0].mxu0
    %v2645 = vadd.f32 %v2356, %v2644
    %v2646 = vpop.f32.mrb[0].mxu0
    %2647 = vmatprep.mubr.bf16.mxu0 0
    %2648 = vmatmul.mubr.bf16.gmra.mrb[0].mxu0 %v759
    %v2649 = vpop.f32.mrb[0].mxu0
    %v2650 = vadd.f32 %v2361, %v2649
    %v2651 = vpop.f32.mrb[0].mxu0
    %v2652 = vpop.f32.mrb[0].mxu0
    %v2653 = vadd.f32 %v2364, %v2652
    %v2654 = vpop.f32.mrb[0].mxu0
    %2655 = vmatprep.mubr.bf16.mxu0 0
    %2656 = vmatmul.mubr.bf16.gmra.mrb[0].mxu0 %v760
    %v2657 = vpop.f32.mrb[0].mxu0
    %v2658 = vadd.f32 %v2369, %v2657
    %v2659 = vpop.f32.mrb[0].mxu0
    %v2660 = vpop.f32.mrb[0].mxu0
    %v2661 = vadd.f32 %v2372, %v2660
    %v2662 = vpop.f32.mrb[0].mxu0
    %2663 = vmatprep.mubr.bf16.mxu0 0
    %2664 = vmatmul.mubr.bf16.gmra.mrb[0].mxu0 %v761
    %v2665 = vpop.f32.mrb[0].mxu0
    %v2666 = vadd.f32 %v2377, %v2665
    %v2667 = vpop.f32.mrb[0].mxu0
    %v2668 = vpop.f32.mrb[0].mxu0
    %v2669 = vadd.f32 %v2380, %v2668
    %v2670 = vpop.f32.mrb[0].mxu0
    %2671 = vmatprep.mubr.bf16.mxu0 0
    %2672 = vmatmul.mubr.bf16.gmra.mrb[0].mxu0 %v762
    %v2673 = vpop.f32.mrb[0].mxu0
    %v2674 = vadd.f32 %v2385, %v2673
    %v2675 = vpop.f32.mrb[0].mxu0
    %v2676 = vpop.f32.mrb[0].mxu0
    %v2677 = vadd.f32 %v2388, %v2676
    %v2678 = vpop.f32.mrb[0].mxu0
    %2679 = vmatprep.mubr.bf16.mxu0 0
    %2680 = vmatmul.mubr.bf16.gmra.mrb[0].mxu0 %v763
    %v2681 = vpop.f32.mrb[0].mxu0
    %v2682 = vadd.f32 %v2393, %v2681
    %v2683 = vpop.f32.mrb[0].mxu0
    %v2684 = vpop.f32.mrb[0].mxu0
    %v2685 = vadd.f32 %v2396, %v2684
    %v2686 = vpop.f32.mrb[0].mxu0
    %2687 = vmatprep.mubr.bf16.mxu0 0
    %2688 = vmatmul.mubr.bf16.gmra.mrb[0].mxu0 %v764
    %v2689 = vpop.f32.mrb[0].mxu0
    %v2690 = vadd.f32 %v2401, %v2689
    %v2691 = vpop.f32.mrb[0].mxu0
    %v2692 = vpop.f32.mrb[0].mxu0
    %v2693 = vadd.f32 %v2404, %v2692
    %v2694 = vpop.f32.mrb[0].mxu0
    %2695 = vmatprep.mubr.bf16.mxu0 0
    %2696 = vmatmul.mubr.bf16.gmra.mrb[0].mxu0 %v765
    %v2697 = vpop.f32.mrb[0].mxu0
    %v2698 = vadd.f32 %v2409, %v2697
    %v2699 = vpop.f32.mrb[0].mxu0
    %v2700 = vpop.f32.mrb[0].mxu0
    %v2701 = vadd.f32 %v2412, %v2700
    %v2702 = vpop.f32.mrb[0].mxu0
    %2703 = vmatprep.mubr.bf16.mxu0 0
    %2704 = vmatmul.mubr.bf16.gmra.mrb[0].mxu0 %v766
    %v2705 = vpop.f32.mrb[0].mxu0
    %v2706 = vadd.f32 %v2417, %v2705
    %v2707 = vpop.f32.mrb[0].mxu0
    %v2708 = vpop.f32.mrb[0].mxu0
    %v2709 = vadd.f32 %v2420, %v2708
    %v2710 = vpop.f32.mrb[0].mxu0
    %2711 = vmatprep.mubr.bf16.mxu0 0
    %2712 = vmatmul.mubr.bf16.gmra.mrb[0].mxu0 %v767
    %v2713 = vpop.f32.mrb[0].mxu0
    %v2714 = vadd.f32 %v2425, %v2713
    %v2715 = vpop.f32.mrb[0].mxu0
    %v2716 = vpop.f32.mrb[0].mxu0
    %v2717 = vadd.f32 %v2428, %v2716
    %v2718 = vpop.f32.mrb[0].mxu0
    %2719 = vmatprep.mubr.bf16.mxu0 0
    %2720 = vmatmul.mubr.bf16.gmra.mrb[0].mxu0 %v768
    %v2721 = vpop.f32.mrb[0].mxu0
    %v2722 = vadd.f32 %v2433, %v2721
    %v2723 = vpop.f32.mrb[0].mxu0
    %v2724 = vpop.f32.mrb[0].mxu0
    %v2725 = vadd.f32 %v2436, %v2724
    %v2726 = vpop.f32.mrb[0].mxu0
    %2727 = vmatprep.mubr.bf16.mxu0 0
    %2728 = vmatmul.mubr.bf16.gmra.mrb[0].mxu0 %v769
    %v2729 = vpop.f32.mrb[0].mxu0
    %v2730 = vadd.f32 %v2441, %v2729
    %v2731 = vpop.f32.mrb[0].mxu0
    %v2732 = vpop.f32.mrb[0].mxu0
    %v2733 = vadd.f32 %v2444, %v2732
    %v2734 = vpop.f32.mrb[0].mxu0
    %2735 = vmatprep.mubr.bf16.mxu0 0
    %2736 = vmatmul.mubr.bf16.gmra.mrb[0].mxu0 %v770
    %v2737 = vpop.f32.mrb[0].mxu0
    %v2738 = vadd.f32 %v2449, %v2737
    %v2739 = vpop.f32.mrb[0].mxu0
    %v2740 = vpop.f32.mrb[0].mxu0
    %v2741 = vadd.f32 %v2452, %v2740
    %v2742 = vpop.f32.mrb[0].mxu0
    %2743 = vmatprep.mubr.bf16.mxu0 0
    %2744 = vmatmul.mubr.bf16.gmra.mrb[0].mxu0 %v825
    %v2745 = vpop.f32.mrb[0].mxu0
    %v2746 = vadd.f32 %v2457, %v2745
    %v2747 = vpop.f32.mrb[0].mxu0
    %v2748 = vpop.f32.mrb[0].mxu0
    %v2749 = vadd.f32 %v2460, %v2748
    %v2750 = vpop.f32.mrb[0].mxu0
    %2751 = vmatprep.mubr.bf16.mxu0 0
    %2752 = vmatmul.mubr.bf16.gmra.mrb[0].mxu0 %v865
    %v2753 = vpop.f32.mrb[0].mxu0
    %v2754 = vadd.f32 %v2465, %v2753
    %v2755 = vpop.f32.mrb[0].mxu0
    %v2756 = vpop.f32.mrb[0].mxu0
    %v2757 = vadd.f32 %v2468, %v2756
    %v2758 = vpop.f32.mrb[0].mxu0
    %2759 = vmatprep.mubr.bf16.mxu0 0
    %2760 = vmatmul.mubr.bf16.gmra.mrb[0].mxu0 %v773
    %v2761 = vpop.f32.mrb[0].mxu0
    %v2762 = vadd.f32 %v2473, %v2761
    %v2763 = vpop.f32.mrb[0].mxu0
    %v2764 = vpop.f32.mrb[0].mxu0
    %v2765 = vadd.f32 %v2476, %v2764
    %v2766 = vpop.f32.mrb[0].mxu0
    %2767 = vmatprep.mubr.bf16.mxu0 0
    %2768 = vmatmul.mubr.bf16.gmra.mrb[0].mxu0 %v774
    %v2769 = vpop.f32.mrb[0].mxu0
    %v2770 = vadd.f32 %v2481, %v2769
    %v2771 = vpop.f32.mrb[0].mxu0
    %v2772 = vpop.f32.mrb[0].mxu0
    %v2773 = vadd.f32 %v2484, %v2772
    %v2774 = vpop.f32.mrb[0].mxu0
    %2775 = vmatprep.mubr.bf16.mxu0 0
    %2776 = vmatmul.mubr.bf16.gmra.mrb[0].mxu0 %v775
    %v2777 = vpop.f32.mrb[0].mxu0
    %v2778 = vadd.f32 %v2489, %v2777
    %v2779 = vpop.f32.mrb[0].mxu0
    %v2780 = vpop.f32.mrb[0].mxu0
    %v2781 = vadd.f32 %v2492, %v2780
    %v2782 = vpop.f32.mrb[0].mxu0
    %2783 = vmatprep.mubr.bf16.mxu0 0
    %2784 = vmatmul.mubr.bf16.gmra.mrb[0].mxu0 %v776
    %v2785 = vpop.f32.mrb[0].mxu0
    %v2786 = vadd.f32 %v2497, %v2785
    %v2787 = vpop.f32.mrb[0].mxu0
    %v2788 = vpop.f32.mrb[0].mxu0
    %v2789 = vadd.f32 %v2500, %v2788
    %v2790 = vpop.f32.mrb[0].mxu0
    %2791 = vmatprep.mubr.bf16.mxu0 0
    %2792 = vmatmul.mubr.bf16.gmra.mrb[0].mxu0 %v777
    %v2793 = vpop.f32.mrb[0].mxu0
    %v2794 = vadd.f32 %v2505, %v2793
    %v2795 = vpop.f32.mrb[0].mxu0
    %v2796 = vpop.f32.mrb[0].mxu0
    %v2797 = vadd.f32 %v2508, %v2796
    %v2798 = vpop.f32.mrb[0].mxu0
    %2799 = vmatprep.mubr.bf16.mxu0 0
    %2800 = vmatmul.mubr.bf16.gmra.mrb[0].mxu0 %v778
    %v2801 = vpop.f32.mrb[0].mxu0
    %v2802 = vadd.f32 %v2513, %v2801
    %v2803 = vpop.f32.mrb[0].mxu0
    %v2804 = vpop.f32.mrb[0].mxu0
    %v2805 = vadd.f32 %v2516, %v2804
    %v2806 = vpop.f32.mrb[0].mxu0
    %2807 = vmatprep.mubr.bf16.mxu0 0
    %2808 = vmatmul.mubr.bf16.gmra.mrb[0].mxu0 %v779
    %v2809 = vpop.f32.mrb[0].mxu0
    %v2810 = vadd.f32 %v2521, %v2809
    %v2811 = vpop.f32.mrb[0].mxu0
    %v2812 = vpop.f32.mrb[0].mxu0
    %v2813 = vadd.f32 %v2524, %v2812
    %v2814 = vpop.f32.mrb[0].mxu0
    %2815 = vmatprep.mubr.bf16.mxu0 0
    %2816 = vmatmul.mubr.bf16.gmra.mrb[0].mxu0 %v780
    %v2817 = vpop.f32.mrb[0].mxu0
    %v2818 = vadd.f32 %v2529, %v2817
    %v2819 = vpop.f32.mrb[0].mxu0
    %v2820 = vpop.f32.mrb[0].mxu0
    %v2821 = vadd.f32 %v2532, %v2820
    %v2822 = vpop.f32.mrb[0].mxu0
    %2823 = vmatprep.mubr.bf16.mxu0 0
    %2824 = vmatmul.mubr.bf16.gmra.mrb[0].mxu0 %v781
    %v2825 = vpop.f32.mrb[0].mxu0
    %v2826 = vadd.f32 %v2537, %v2825
    %v2827 = vpop.f32.mrb[0].mxu0
    %v2828 = vpop.f32.mrb[0].mxu0
    %v2829 = vadd.f32 %v2540, %v2828
    %v2830 = vpop.f32.mrb[0].mxu0
    %2831 = vmatprep.mubr.bf16.mxu0 0
    %2832 = vmatmul.mubr.bf16.gmra.mrb[0].mxu0 %v782
    %v2833 = vpop.f32.mrb[0].mxu0
    %v2834 = vadd.f32 %v2545, %v2833
    %v2835 = vpop.f32.mrb[0].mxu0
    %v2836 = vpop.f32.mrb[0].mxu0
    %v2837 = vadd.f32 %v2548, %v2836
    %v2838 = vpop.f32.mrb[0].mxu0
    %2839 = vmatprep.mubr.bf16.mxu0 0
    %2840 = vmatmul.mubr.bf16.gmra.mrb[0].mxu0 %v783
    %v2841 = vpop.f32.mrb[0].mxu0
    %v2842 = vadd.f32 %v2553, %v2841
    %v2843 = vpop.f32.mrb[0].mxu0
    %v2844 = vpop.f32.mrb[0].mxu0
    %v2845 = vadd.f32 %v2556, %v2844
    %v2846 = vpop.f32.mrb[0].mxu0
    %2847 = vmatprep.mubr.bf16.mxu0 0
    %2848 = vmatmul.mubr.bf16.gmra.mrb[0].mxu0 %v784
    %v2849 = vpop.f32.mrb[0].mxu0
    %v2850 = vadd.f32 %v2561, %v2849
    %v2851 = vpop.f32.mrb[0].mxu0
    %v2852 = vpop.f32.mrb[0].mxu0
    %v2853 = vadd.f32 %v2564, %v2852
    %v2854 = vpop.f32.mrb[0].mxu0
    %2855 = vmatprep.mubr.bf16.mxu0 0
    %2856 = vmatmul.mubr.bf16.gmra.mrb[0].mxu0 %v785
    %v2857 = vpop.f32.mrb[0].mxu0
    %v2858 = vadd.f32 %v2569, %v2857
    %v2859 = vpop.f32.mrb[0].mxu0
    %v2860 = vpop.f32.mrb[0].mxu0
    %v2861 = vadd.f32 %v2572, %v2860
    %v2862 = vpop.f32.mrb[0].mxu0
    %2863 = vmatprep.mubr.bf16.mxu0 0
    %2864 = vmatmul.mubr.bf16.gmra.mrb[0].mxu0 %v786
    %v2865 = vpop.f32.mrb[0].mxu0
    %v2866 = vadd.f32 %v2577, %v2865
    %v2867 = vpop.f32.mrb[0].mxu0
    %v2868 = vpop.f32.mrb[0].mxu0
    %v2869 = vadd.f32 %v2580, %v2868
    %v2870 = vpop.f32.mrb[0].mxu0
    %2871 = vmatprep.mubr.bf16.mxu0 0
    %2872 = vmatmul.mubr.bf16.gmra.mrb[0].mxu0 %v826
    %v2873 = vpop.f32.mrb[0].mxu0
    %v2874 = vadd.f32 %v2585, %v2873
    %v2875 = vpop.f32.mrb[0].mxu0
    %v2876 = vpop.f32.mrb[0].mxu0
    %v2877 = vadd.f32 %v2588, %v2876
    %v2878 = vpop.f32.mrb[0].mxu0
    %2879 = vmatprep.mubr.bf16.mxu0 0
    %2880 = vmatmul.mubr.bf16.gmra.mrb[0].mxu0 %v866
    %v2881 = vpop.f32.mrb[0].mxu0
    %v2882 = vadd.f32 %v2593, %v2881
    %v2883 = vpop.f32.mrb[0].mxu0
    %v2884 = vpop.f32.mrb[0].mxu0
    %v2885 = vadd.f32 %v2596, %v2884
    %v2886 = vpop.f32.mrb[0].mxu0
    %2887 = vdwg.mxu0
    %v2888 = vld [vmem:[%s2] sm:$0x1]
    %v2889 = vld [vmem:[%s3] sm:$0x1]
    %v2890 = vadd.f32 %v2634, %v2637
    %v2891 = vadd.f32 %v2890, %v2642
    %v2892 = vadd.f32 %v2891, %v2645
    %v2893 = vadd.f32 %v2892, %v2650
    %v2894 = vadd.f32 %v2893, %v2653
    %v2895 = vadd.f32 %v2894, %v2658
    %v2896 = vadd.f32 %v2895, %v2661
    %v2897 = vadd.f32 %v2896, %v2666
    %v2898 = vadd.f32 %v2897, %v2669
    %v2899 = vadd.f32 %v2898, %v2674
    %v2900 = vadd.f32 %v2899, %v2677
    %v2901 = vadd.f32 %v2900, %v2682
    %v2902 = vadd.f32 %v2901, %v2685
    %v2903 = vadd.f32 %v2902, %v2690
    %v2904 = vadd.f32 %v2903, %v2693
    %v2905 = vadd.f32 %v2904, %v2698
    %v2906 = vadd.f32 %v2905, %v2701
    %v2907 = vadd.f32 %v2906, %v2706
    %v2908 = vadd.f32 %v2907, %v2709
    %v2909 = vadd.f32 %v2908, %v2714
    %v2910 = vadd.f32 %v2909, %v2717
    %v2911 = vadd.f32 %v2910, %v2722
    %v2912 = vadd.f32 %v2911, %v2725
    %v2913 = vadd.f32 %v2912, %v2730
    %v2914 = vadd.f32 %v2913, %v2733
    %v2915 = vadd.f32 %v2914, %v2738
    %v2916 = vadd.f32 %v2915, %v2741
    %v2917 = vadd.f32 %v2916, %v2746
    %v2918 = vadd.f32 %v2917, %v2749
    %v2919 = vadd.f32 %v2918, %v2754
    %v2920 = vadd.f32 %v2919, %v2757
    %v2921 = vadd.f32 %v2920, %v2762
    %v2922 = vadd.f32 %v2921, %v2765
    %v2923 = vadd.f32 %v2922, %v2770
    %v2924 = vadd.f32 %v2923, %v2773
    %v2925 = vadd.f32 %v2924, %v2778
    %v2926 = vadd.f32 %v2925, %v2781
    %v2927 = vadd.f32 %v2926, %v2786
    %v2928 = vadd.f32 %v2927, %v2789
    %v2929 = vadd.f32 %v2928, %v2794
    %v2930 = vadd.f32 %v2929, %v2797
    %v2931 = vadd.f32 %v2930, %v2802
    %v2932 = vadd.f32 %v2931, %v2805
    %v2933 = vadd.f32 %v2932, %v2810
    %v2934 = vadd.f32 %v2933, %v2813
    %v2935 = vadd.f32 %v2934, %v2818
    %v2936 = vadd.f32 %v2935, %v2821
    %v2937 = vadd.f32 %v2936, %v2826
    %v2938 = vadd.f32 %v2937, %v2829
    %v2939 = vadd.f32 %v2938, %v2834
    %v2940 = vadd.f32 %v2939, %v2837
    %v2941 = vadd.f32 %v2940, %v2842
    %v2942 = vadd.f32 %v2941, %v2845
    %v2943 = vadd.f32 %v2942, %v2850
    %v2944 = vadd.f32 %v2943, %v2853
    %v2945 = vadd.f32 %v2944, %v2858
    %v2946 = vadd.f32 %v2945, %v2861
    %v2947 = vadd.f32 %v2946, %v2866
    %v2948 = vadd.f32 %v2947, %v2869
    %v2949 = vadd.f32 %v2948, %v2874
    %v2950 = vadd.f32 %v2949, %v2877
    %v2951 = vadd.f32 %v2950, %v2882
    %v2952 = vadd.f32 %v2951, %v2885
    %v2953 = vrot.slane %v2952, 4
    %v2954 = vadd.f32 %v2952, %v2953
    %v2955 = vrot.slane %v2954, 2
    %v2956 = vadd.f32 %v2954, %v2955
    %v2957 = vrot.slane %v2956, 1
    %v2958 = vadd.f32 %v2956, %v2957
    %v2959 = vmul.f32 %v2634, %v2634
    %v2960 = vmul.f32 %v2637, %v2637
    %v2961 = vmul.f32 %v2642, %v2642
    %v2962 = vmul.f32 %v2645, %v2645
    %v2963 = vmul.f32 %v2650, %v2650
    %v2964 = vmul.f32 %v2653, %v2653
    %v2965 = vmul.f32 %v2658, %v2658
    %v2966 = vmul.f32 %v2661, %v2661
    %v2967 = vmul.f32 %v2666, %v2666
    %v2968 = vmul.f32 %v2669, %v2669
    %v2969 = vmul.f32 %v2674, %v2674
    %v2970 = vmul.f32 %v2677, %v2677
    %v2971 = vmul.f32 %v2682, %v2682
    %v2972 = vmul.f32 %v2685, %v2685
    %v2973 = vmul.f32 %v2690, %v2690
    %v2974 = vmul.f32 %v2693, %v2693
    %v2975 = vmul.f32 %v2698, %v2698
    %v2976 = vmul.f32 %v2701, %v2701
    %v2977 = vmul.f32 %v2706, %v2706
    %v2978 = vmul.f32 %v2709, %v2709
    %v2979 = vmul.f32 %v2714, %v2714
    %v2980 = vmul.f32 %v2717, %v2717
    %v2981 = vmul.f32 %v2722, %v2722
    %v2982 = vmul.f32 %v2725, %v2725
    %v2983 = vmul.f32 %v2730, %v2730
    %v2984 = vmul.f32 %v2733, %v2733
    %v2985 = vmul.f32 %v2738, %v2738
    %v2986 = vmul.f32 %v2741, %v2741
    %v2987 = vmul.f32 %v2746, %v2746
    %v2988 = vmul.f32 %v2749, %v2749
    %v2989 = vmul.f32 %v2754, %v2754
    %v2990 = vmul.f32 %v2757, %v2757
    %v2991 = vmul.f32 %v2762, %v2762
    %v2992 = vmul.f32 %v2765, %v2765
    %v2993 = vmul.f32 %v2770, %v2770
    %v2994 = vmul.f32 %v2773, %v2773
    %v2995 = vmul.f32 %v2778, %v2778
    %v2996 = vmul.f32 %v2781, %v2781
    %v2997 = vmul.f32 %v2786, %v2786
    %v2998 = vmul.f32 %v2789, %v2789
    %v2999 = vmul.f32 %v2794, %v2794
    %v3000 = vmul.f32 %v2797, %v2797
    %v3001 = vmul.f32 %v2802, %v2802
    %v3002 = vmul.f32 %v2805, %v2805
    %v3003 = vmul.f32 %v2810, %v2810
    %v3004 = vmul.f32 %v2813, %v2813
    %v3005 = vmul.f32 %v2818, %v2818
    %v3006 = vmul.f32 %v2821, %v2821
    %v3007 = vmul.f32 %v2826, %v2826
    %v3008 = vmul.f32 %v2829, %v2829
    %v3009 = vmul.f32 %v2834, %v2834
    %v3010 = vmul.f32 %v2837, %v2837
    %v3011 = vmul.f32 %v2842, %v2842
    %v3012 = vmul.f32 %v2845, %v2845
    %v3013 = vmul.f32 %v2850, %v2850
    %v3014 = vmul.f32 %v2853, %v2853
    %v3015 = vmul.f32 %v2858, %v2858
    %v3016 = vmul.f32 %v2861, %v2861
    %v3017 = vmul.f32 %v2866, %v2866
    %v3018 = vmul.f32 %v2869, %v2869
    %v3019 = vmul.f32 %v2874, %v2874
    %v3020 = vmul.f32 %v2877, %v2877
    %v3021 = vmul.f32 %v2882, %v2882
    %v3022 = vmul.f32 %v2885, %v2885
    %v3023 = vadd.f32 %v2959, %v2960
    %v3024 = vadd.f32 %v3023, %v2961
    %v3025 = vadd.f32 %v3024, %v2962
    %v3026 = vadd.f32 %v3025, %v2963
    %v3027 = vadd.f32 %v3026, %v2964
    %v3028 = vadd.f32 %v3027, %v2965
    %v3029 = vadd.f32 %v3028, %v2966
    %v3030 = vadd.f32 %v3029, %v2967
    %v3031 = vadd.f32 %v3030, %v2968
    %v3032 = vadd.f32 %v3031, %v2969
    %v3033 = vadd.f32 %v3032, %v2970
    %v3034 = vadd.f32 %v3033, %v2971
    %v3035 = vadd.f32 %v3034, %v2972
    %v3036 = vadd.f32 %v3035, %v2973
    %v3037 = vadd.f32 %v3036, %v2974
    %v3038 = vadd.f32 %v3037, %v2975
    %v3039 = vadd.f32 %v3038, %v2976
    %v3040 = vadd.f32 %v3039, %v2977
    %v3041 = vadd.f32 %v3040, %v2978
    %v3042 = vadd.f32 %v3041, %v2979
    %v3043 = vadd.f32 %v3042, %v2980
    %v3044 = vadd.f32 %v3043, %v2981
    %v3045 = vadd.f32 %v3044, %v2982
    %v3046 = vadd.f32 %v3045, %v2983
    %v3047 = vadd.f32 %v3046, %v2984
    %v3048 = vadd.f32 %v3047, %v2985
    %v3049 = vadd.f32 %v3048, %v2986
    %v3050 = vadd.f32 %v3049, %v2987
    %v3051 = vadd.f32 %v3050, %v2988
    %v3052 = vadd.f32 %v3051, %v2989
    %v3053 = vadd.f32 %v3052, %v2990
    %v3054 = vadd.f32 %v3053, %v2991
    %v3055 = vadd.f32 %v3054, %v2992
    %v3056 = vadd.f32 %v3055, %v2993
    %v3057 = vadd.f32 %v3056, %v2994
    %v3058 = vadd.f32 %v3057, %v2995
    %v3059 = vadd.f32 %v3058, %v2996
    %v3060 = vadd.f32 %v3059, %v2997
    %v3061 = vadd.f32 %v3060, %v2998
    %v3062 = vadd.f32 %v3061, %v2999
    %v3063 = vadd.f32 %v3062, %v3000
    %v3064 = vadd.f32 %v3063, %v3001
    %v3065 = vadd.f32 %v3064, %v3002
    %v3066 = vadd.f32 %v3065, %v3003
    %v3067 = vadd.f32 %v3066, %v3004
    %v3068 = vadd.f32 %v3067, %v3005
    %v3069 = vadd.f32 %v3068, %v3006
    %v3070 = vadd.f32 %v3069, %v3007
    %v3071 = vadd.f32 %v3070, %v3008
    %v3072 = vadd.f32 %v3071, %v3009
    %v3073 = vadd.f32 %v3072, %v3010
    %v3074 = vadd.f32 %v3073, %v3011
    %v3075 = vadd.f32 %v3074, %v3012
    %v3076 = vadd.f32 %v3075, %v3013
    %v3077 = vadd.f32 %v3076, %v3014
    %v3078 = vadd.f32 %v3077, %v3015
    %v3079 = vadd.f32 %v3078, %v3016
    %v3080 = vadd.f32 %v3079, %v3017
    %v3081 = vadd.f32 %v3080, %v3018
    %v3082 = vadd.f32 %v3081, %v3019
    %v3083 = vadd.f32 %v3082, %v3020
    %v3084 = vadd.f32 %v3083, %v3021
    %v3085 = vadd.f32 %v3084, %v3022
    %v3086 = vrot.slane %v3085, 4
    %v3087 = vadd.f32 %v3085, %v3086
    %v3088 = vrot.slane %v3087, 2
    %v3089 = vadd.f32 %v3087, %v3088
    %v3090 = vrot.slane %v3089, 1
    %v3091 = vadd.f32 %v3089, %v3090
    %v3092 = vmul.f32 %v2958, 0.001953125
    %v3093 = vmul.f32 %v3091, 0.001953125
    %v3094 = vmul.f32 %v3092, %v3092
    %v3095 = vsub.f32 %v3093, %v3094
    %v3096 = vmax.f32 %v3095, 0.0
    %v3097 = vadd.f32 %v3096, 1e-05
    %v3098 = vrsqrt.pop %v3097
    %v3099 = vmul.f32 %v3098, %v2888
    %v3100 = vmul.f32 %v3092, %v3099
    %v3101 = vsub.f32 %v2889, %v3100
    %v3102 = vlaneseq
    %v3103 = vshrl.u32 %v3102, 7
    %v3104 = vsub.s32 0, %v3103
    %v3105 = vrot.slane %v3099, %v3104
    %v3106 = vmul.f32 %v2634, %v3105
    %v3107 = vmul.f32 %v2637, %v3105
    %v3108 = vmul.f32 %v2642, %v3105
    %v3109 = vmul.f32 %v2645, %v3105
    %v3110 = vmul.f32 %v2650, %v3105
    %v3111 = vmul.f32 %v2653, %v3105
    %v3112 = vmul.f32 %v2658, %v3105
    %v3113 = vmul.f32 %v2661, %v3105
    %v3114 = vmul.f32 %v2666, %v3105
    %v3115 = vmul.f32 %v2669, %v3105
    %v3116 = vmul.f32 %v2674, %v3105
    %v3117 = vmul.f32 %v2677, %v3105
    %v3118 = vmul.f32 %v2682, %v3105
    %v3119 = vmul.f32 %v2685, %v3105
    %v3120 = vmul.f32 %v2690, %v3105
    %v3121 = vmul.f32 %v2693, %v3105
    %v3122 = vmul.f32 %v2698, %v3105
    %v3123 = vmul.f32 %v2701, %v3105
    %v3124 = vmul.f32 %v2706, %v3105
    %v3125 = vmul.f32 %v2709, %v3105
    %v3126 = vmul.f32 %v2714, %v3105
    %v3127 = vmul.f32 %v2717, %v3105
    %v3128 = vmul.f32 %v2722, %v3105
    %v3129 = vmul.f32 %v2725, %v3105
    %v3130 = vmul.f32 %v2730, %v3105
    %v3131 = vmul.f32 %v2733, %v3105
    %v3132 = vmul.f32 %v2738, %v3105
    %v3133 = vmul.f32 %v2741, %v3105
    %v3134 = vmul.f32 %v2746, %v3105
    %v3135 = vmul.f32 %v2749, %v3105
    %v3136 = vmul.f32 %v2754, %v3105
    %v3137 = vmul.f32 %v2757, %v3105
    %v3138 = vmul.f32 %v2762, %v3105
    %v3139 = vmul.f32 %v2765, %v3105
    %v3140 = vmul.f32 %v2770, %v3105
    %v3141 = vmul.f32 %v2773, %v3105
    %v3142 = vmul.f32 %v2778, %v3105
    %v3143 = vmul.f32 %v2781, %v3105
    %v3144 = vmul.f32 %v2786, %v3105
    %v3145 = vmul.f32 %v2789, %v3105
    %v3146 = vmul.f32 %v2794, %v3105
    %v3147 = vmul.f32 %v2797, %v3105
    %v3148 = vmul.f32 %v2802, %v3105
    %v3149 = vmul.f32 %v2805, %v3105
    %v3150 = vmul.f32 %v2810, %v3105
    %v3151 = vmul.f32 %v2813, %v3105
    %v3152 = vmul.f32 %v2818, %v3105
    %v3153 = vmul.f32 %v2821, %v3105
    %v3154 = vmul.f32 %v2826, %v3105
    %v3155 = vmul.f32 %v2829, %v3105
    %v3156 = vmul.f32 %v2834, %v3105
    %v3157 = vmul.f32 %v2837, %v3105
    %v3158 = vmul.f32 %v2842, %v3105
    %v3159 = vmul.f32 %v2845, %v3105
    %v3160 = vmul.f32 %v2850, %v3105
    %v3161 = vmul.f32 %v2853, %v3105
    %v3162 = vmul.f32 %v2858, %v3105
    %v3163 = vmul.f32 %v2861, %v3105
    %v3164 = vmul.f32 %v2866, %v3105
    %v3165 = vmul.f32 %v2869, %v3105
    %v3166 = vmul.f32 %v2874, %v3105
    %v3167 = vmul.f32 %v2877, %v3105
    %v3168 = vmul.f32 %v2882, %v3105
    %v3169 = vmul.f32 %v2885, %v3105
    %v3171 = vlaneseq
    %v3172 = vshrl.u32 %v3171, 7
    %v3173 = vsub.s32 0, %v3172
    %v3174 = vrot.slane %v3101, %v3173
    %v3176 = vadd.f32 %v3106, %v3174
    %v3177 = vadd.f32 %v3107, %v3174
    %v3178 = vadd.f32 %v3108, %v3174
    %v3179 = vadd.f32 %v3109, %v3174
    %v3180 = vadd.f32 %v3110, %v3174
    %v3181 = vadd.f32 %v3111, %v3174
    %v3182 = vadd.f32 %v3112, %v3174
    %v3183 = vadd.f32 %v3113, %v3174
    %v3184 = vadd.f32 %v3114, %v3174
    %v3185 = vadd.f32 %v3115, %v3174
    %v3186 = vadd.f32 %v3116, %v3174
    %v3187 = vadd.f32 %v3117, %v3174
    %v3188 = vadd.f32 %v3118, %v3174
    %v3189 = vadd.f32 %v3119, %v3174
    %v3190 = vadd.f32 %v3120, %v3174
    %v3191 = vadd.f32 %v3121, %v3174
    %v3192 = vadd.f32 %v3122, %v3174
    %v3193 = vadd.f32 %v3123, %v3174
    %v3194 = vadd.f32 %v3124, %v3174
    %v3195 = vadd.f32 %v3125, %v3174
    %v3196 = vadd.f32 %v3126, %v3174
    %v3197 = vadd.f32 %v3127, %v3174
    %v3198 = vadd.f32 %v3128, %v3174
    %v3199 = vadd.f32 %v3129, %v3174
    %v3200 = vadd.f32 %v3130, %v3174
    %v3201 = vadd.f32 %v3131, %v3174
    %v3202 = vadd.f32 %v3132, %v3174
    %v3203 = vadd.f32 %v3133, %v3174
    %v3204 = vadd.f32 %v3134, %v3174
    %v3205 = vadd.f32 %v3135, %v3174
    %v3206 = vadd.f32 %v3136, %v3174
    %v3207 = vadd.f32 %v3137, %v3174
    %v3208 = vadd.f32 %v3138, %v3174
    %v3209 = vadd.f32 %v3139, %v3174
    %v3210 = vadd.f32 %v3140, %v3174
    %v3211 = vadd.f32 %v3141, %v3174
    %v3212 = vadd.f32 %v3142, %v3174
    %v3213 = vadd.f32 %v3143, %v3174
    %v3214 = vadd.f32 %v3144, %v3174
    %v3215 = vadd.f32 %v3145, %v3174
    %v3216 = vadd.f32 %v3146, %v3174
    %v3217 = vadd.f32 %v3147, %v3174
    %v3218 = vadd.f32 %v3148, %v3174
    %v3219 = vadd.f32 %v3149, %v3174
    %v3220 = vadd.f32 %v3150, %v3174
    %v3221 = vadd.f32 %v3151, %v3174
    %v3222 = vadd.f32 %v3152, %v3174
    %v3223 = vadd.f32 %v3153, %v3174
    %v3224 = vadd.f32 %v3154, %v3174
    %v3225 = vadd.f32 %v3155, %v3174
    %v3226 = vadd.f32 %v3156, %v3174
    %v3227 = vadd.f32 %v3157, %v3174
    %v3228 = vadd.f32 %v3158, %v3174
    %v3229 = vadd.f32 %v3159, %v3174
    %v3230 = vadd.f32 %v3160, %v3174
    %v3231 = vadd.f32 %v3161, %v3174
    %v3232 = vadd.f32 %v3162, %v3174
    %v3233 = vadd.f32 %v3163, %v3174
    %v3234 = vadd.f32 %v3164, %v3174
    %v3235 = vadd.f32 %v3165, %v3174
    %v3236 = vadd.f32 %v3166, %v3174
    %v3237 = vadd.f32 %v3167, %v3174
    %v3238 = vadd.f32 %v3168, %v3174
    %v3239 = vadd.f32 %v3169, %v3174
    %v3240 = vmax.f32 %v3176, 0.0
    %v3241 = vmax.f32 %v3177, 0.0
    %v3242 = vmax.f32 %v3178, 0.0
    %v3243 = vmax.f32 %v3179, 0.0
    %v3244 = vmax.f32 %v3180, 0.0
    %v3245 = vmax.f32 %v3181, 0.0
    %v3246 = vmax.f32 %v3182, 0.0
    %v3247 = vmax.f32 %v3183, 0.0
    %v3248 = vmax.f32 %v3184, 0.0
    %v3249 = vmax.f32 %v3185, 0.0
    %v3250 = vmax.f32 %v3186, 0.0
    %v3251 = vmax.f32 %v3187, 0.0
    %v3252 = vmax.f32 %v3188, 0.0
    %v3253 = vmax.f32 %v3189, 0.0
    %v3254 = vmax.f32 %v3190, 0.0
    %v3255 = vmax.f32 %v3191, 0.0
    %v3256 = vmax.f32 %v3192, 0.0
    %v3257 = vmax.f32 %v3193, 0.0
    %v3258 = vmax.f32 %v3194, 0.0
    %v3259 = vmax.f32 %v3195, 0.0
    %v3260 = vmax.f32 %v3196, 0.0
    %v3261 = vmax.f32 %v3197, 0.0
    %v3262 = vmax.f32 %v3198, 0.0
    %v3263 = vmax.f32 %v3199, 0.0
    %v3264 = vmax.f32 %v3200, 0.0
    %v3265 = vmax.f32 %v3201, 0.0
    %v3266 = vmax.f32 %v3202, 0.0
    %v3267 = vmax.f32 %v3203, 0.0
    %v3268 = vmax.f32 %v3204, 0.0
    %v3269 = vmax.f32 %v3205, 0.0
    %v3270 = vmax.f32 %v3206, 0.0
    %v3271 = vmax.f32 %v3207, 0.0
    %v3272 = vmax.f32 %v3208, 0.0
    %v3273 = vmax.f32 %v3209, 0.0
    %v3274 = vmax.f32 %v3210, 0.0
    %v3275 = vmax.f32 %v3211, 0.0
    %v3276 = vmax.f32 %v3212, 0.0
    %v3277 = vmax.f32 %v3213, 0.0
    %v3278 = vmax.f32 %v3214, 0.0
    %v3279 = vmax.f32 %v3215, 0.0
    %v3280 = vmax.f32 %v3216, 0.0
    %v3281 = vmax.f32 %v3217, 0.0
    %v3282 = vmax.f32 %v3218, 0.0
    %v3283 = vmax.f32 %v3219, 0.0
    %v3284 = vmax.f32 %v3220, 0.0
    %v3285 = vmax.f32 %v3221, 0.0
    %v3286 = vmax.f32 %v3222, 0.0
    %v3287 = vmax.f32 %v3223, 0.0
    %v3288 = vmax.f32 %v3224, 0.0
    %v3289 = vmax.f32 %v3225, 0.0
    %v3290 = vmax.f32 %v3226, 0.0
    %v3291 = vmax.f32 %v3227, 0.0
    %v3292 = vmax.f32 %v3228, 0.0
    %v3293 = vmax.f32 %v3229, 0.0
    %v3294 = vmax.f32 %v3230, 0.0
    %v3295 = vmax.f32 %v3231, 0.0
    %v3296 = vmax.f32 %v3232, 0.0
    %v3297 = vmax.f32 %v3233, 0.0
    %v3298 = vmax.f32 %v3234, 0.0
    %v3299 = vmax.f32 %v3235, 0.0
    %v3300 = vmax.f32 %v3236, 0.0
    %v3301 = vmax.f32 %v3237, 0.0
    %v3302 = vmax.f32 %v3238, 0.0
    %v3303 = vmax.f32 %v3239, 0.0
    %3304 = vst [vmem:[#allocation2] sm:$0xff] 0.0
    %3305 = vst [vmem:[#allocation2 + $0x8] sm:$0xff] 0.0
    %3306 = vst [vmem:[#allocation2 + $0x10] sm:$0x3] 0.0
    %3307 = vst [vmem:[#allocation2 + $0x1b0] sm:$0xff] 0.0
    %3308 = vst [vmem:[#allocation2 + $0x1b8] sm:$0xff] 0.0
    %3309 = vst [vmem:[#allocation2 + $0x1c0] sm:$0x3] 0.0
    %s3310 = scalar_lea.vmem [#allocation2], 408
    %3311 = vst [vmem:[%s3310] sm:$0xff] 0.0
    %3312 = vst [vmem:[%s3310 + $0x8] sm:$0xff] 0.0
    %3313 = vst [vmem:[%s3310 + $0x10] sm:$0x3] 0.0
    %3314 = vst [vmem:[%s3310 + $0x1b0] sm:$0xff] 0.0
    %3315 = vst [vmem:[%s3310 + $0x1b8] sm:$0xff] 0.0
    %3316 = vst [vmem:[%s3310 + $0x1c0] sm:$0x3] 0.0
    %3317 = vst [vmem:[#allocation2] sm:$0x1] 0.0
    %3318 = vst [vmem:[#allocation2 + $0x18] sm:$0x1] 0.0
    %3319 = vst [vmem:[#allocation2 + $0x30] sm:$0x1] 0.0
    %3320 = vst [vmem:[#allocation2 + $0x48] sm:$0x1] 0.0
    %3321 = vst [vmem:[#allocation2 + $0x60] sm:$0x1] 0.0
    %3322 = vst [vmem:[#allocation2 + $0x78] sm:$0x1] 0.0
    %3323 = vst [vmem:[#allocation2 + $0x90] sm:$0x1] 0.0
    %3324 = vst [vmem:[#allocation2 + $0xa8] sm:$0x1] 0.0
    %3325 = vst [vmem:[#allocation2 + $0xc0] sm:$0x1] 0.0
    %3326 = vst [vmem:[#allocation2 + $0xd8] sm:$0x1] 0.0
    %3327 = vst [vmem:[#allocation2 + $0xf0] sm:$0x1] 0.0
    %3328 = vst [vmem:[#allocation2 + $0x108] sm:$0x1] 0.0
    %3329 = vst [vmem:[#allocation2 + $0x120] sm:$0x1] 0.0
    %3330 = vst [vmem:[#allocation2 + $0x138] sm:$0x1] 0.0
    %3331 = vst [vmem:[#allocation2 + $0x150] sm:$0x1] 0.0
    %3332 = vst [vmem:[#allocation2 + $0x168] sm:$0x1] 0.0
    %3333 = vst [vmem:[#allocation2 + $0x180] sm:$0x1] 0.0
    %3334 = vst [vmem:[#allocation2 + $0x198] sm:$0x1] 0.0
    %3335 = vst [vmem:[#allocation2 + $0x1b0] sm:$0x1] 0.0
    %3336 = vst [vmem:[#allocation2 + $0x1c8] sm:$0x1] 0.0
    %3337 = vst [vmem:[#allocation2 + $0x1e0] sm:$0x1] 0.0
    %3338 = vst [vmem:[#allocation2 + $0x1f8] sm:$0x1] 0.0
    %3339 = vst [vmem:[#allocation2 + $0x210] sm:$0x1] 0.0
    %3340 = vst [vmem:[#allocation2 + $0x228] sm:$0x1] 0.0
    %3341 = vst [vmem:[#allocation2 + $0x240] sm:$0x1] 0.0
    %3342 = vst [vmem:[#allocation2 + $0x258] sm:$0x1] 0.0
    %3343 = vst [vmem:[#allocation2 + $0x270] sm:$0x1] 0.0
    %3344 = vst [vmem:[#allocation2 + $0x288] sm:$0x1] 0.0
    %3345 = vst [vmem:[#allocation2 + $0x2a0] sm:$0x1] 0.0
    %3346 = vst [vmem:[#allocation2 + $0x2b8] sm:$0x1] 0.0
    %3347 = vst [vmem:[#allocation2 + $0x2d0] sm:$0x1] 0.0
    %3348 = vst [vmem:[#allocation2 + $0x2e8] sm:$0x1] 0.0
    %3349 = vst [vmem:[#allocation2 + $0x300] sm:$0x1] 0.0
    %3350 = vst [vmem:[#allocation2 + $0x318] sm:$0x1] 0.0
    %3351 = vst [vmem:[#allocation2 + $0x330] sm:$0x1] 0.0
    %3352 = vst [vmem:[#allocation2 + $0x348] sm:$0x1] 0.0
    %3353 = vst [vmem:[#allocation2 + $0x11] sm:$0x1] 0.0
    %3354 = vst [vmem:[#allocation2 + $0x29] sm:$0x1] 0.0
    %3355 = vst [vmem:[#allocation2 + $0x41] sm:$0x1] 0.0
    %3356 = vst [vmem:[#allocation2 + $0x59] sm:$0x1] 0.0
    %3357 = vst [vmem:[#allocation2 + $0x71] sm:$0x1] 0.0
    %3358 = vst [vmem:[#allocation2 + $0x89] sm:$0x1] 0.0
    %3359 = vst [vmem:[#allocation2 + $0xa1] sm:$0x1] 0.0
    %3360 = vst [vmem:[#allocation2 + $0xb9] sm:$0x1] 0.0
    %3361 = vst [vmem:[#allocation2 + $0xd1] sm:$0x1] 0.0
    %3362 = vst [vmem:[#allocation2 + $0xe9] sm:$0x1] 0.0
    %3363 = vst [vmem:[#allocation2 + $0x101] sm:$0x1] 0.0
    %3364 = vst [vmem:[#allocation2 + $0x119] sm:$0x1] 0.0
    %3365 = vst [vmem:[#allocation2 + $0x131] sm:$0x1] 0.0
    %3366 = vst [vmem:[#allocation2 + $0x149] sm:$0x1] 0.0
    %3367 = vst [vmem:[#allocation2 + $0x161] sm:$0x1] 0.0
    %3368 = vst [vmem:[#allocation2 + $0x179] sm:$0x1] 0.0
    %3369 = vst [vmem:[#allocation2 + $0x191] sm:$0x1] 0.0
    %3370 = vst [vmem:[#allocation2 + $0x1a9] sm:$0x1] 0.0
    %3371 = vst [vmem:[#allocation2 + $0x1c1] sm:$0x1] 0.0
    %3372 = vst [vmem:[#allocation2 + $0x1d9] sm:$0x1] 0.0
    %3373 = vst [vmem:[#allocation2 + $0x1f1] sm:$0x1] 0.0
    %3374 = vst [vmem:[#allocation2 + $0x209] sm:$0x1] 0.0
    %3375 = vst [vmem:[#allocation2 + $0x221] sm:$0x1] 0.0
    %3376 = vst [vmem:[#allocation2 + $0x239] sm:$0x1] 0.0
    %3377 = vst [vmem:[#allocation2 + $0x251] sm:$0x1] 0.0
    %3378 = vst [vmem:[#allocation2 + $0x269] sm:$0x1] 0.0
    %3379 = vst [vmem:[#allocation2 + $0x281] sm:$0x1] 0.0
    %3380 = vst [vmem:[#allocation2 + $0x299] sm:$0x1] 0.0
    %3381 = vst [vmem:[#allocation2 + $0x2b1] sm:$0x1] 0.0
    %3382 = vst [vmem:[#allocation2 + $0x2c9] sm:$0x1] 0.0
    %3383 = vst [vmem:[#allocation2 + $0x2e1] sm:$0x1] 0.0
    %3384 = vst [vmem:[#allocation2 + $0x2f9] sm:$0x1] 0.0
    %3385 = vst [vmem:[#allocation2 + $0x311] sm:$0x1] 0.0
    %3386 = vst [vmem:[#allocation2 + $0x329] sm:$0x1] 0.0
    %3387 = vst [vmem:[#allocation2 + $0x341] sm:$0x1] 0.0
    %3388 = vst [vmem:[#allocation2 + $0x359] sm:$0x1] 0.0
    %s3389 = scalar_lea.vmem [#allocation2], 24
    %3390 = vst [vmem:[%s3389 + $0x1] sm:$0xff] %v3240
    %3391 = vst [vmem:[%s3389 + $0x9] sm:$0xff] %v3241
    %3392 = vst [vmem:[%s3389 + $0x19] sm:$0xff] %v3242
    %3393 = vst [vmem:[%s3389 + $0x21] sm:$0xff] %v3243
    %3394 = vst [vmem:[%s3389 + $0x31] sm:$0xff] %v3244
    %3395 = vst [vmem:[%s3389 + $0x39] sm:$0xff] %v3245
    %3396 = vst [vmem:[%s3389 + $0x49] sm:$0xff] %v3246
    %3397 = vst [vmem:[%s3389 + $0x51] sm:$0xff] %v3247
    %3398 = vst [vmem:[%s3389 + $0x61] sm:$0xff] %v3248
    %3399 = vst [vmem:[%s3389 + $0x69] sm:$0xff] %v3249
    %3400 = vst [vmem:[%s3389 + $0x79] sm:$0xff] %v3250
    %3401 = vst [vmem:[%s3389 + $0x81] sm:$0xff] %v3251
    %3402 = vst [vmem:[%s3389 + $0x91] sm:$0xff] %v3252
    %3403 = vst [vmem:[%s3389 + $0x99] sm:$0xff] %v3253
    %3404 = vst [vmem:[%s3389 + $0xa9] sm:$0xff] %v3254
    %3405 = vst [vmem:[%s3389 + $0xb1] sm:$0xff] %v3255
    %3406 = vst [vmem:[%s3389 + $0xc1] sm:$0xff] %v3256
    %3407 = vst [vmem:[%s3389 + $0xc9] sm:$0xff] %v3257
    %3408 = vst [vmem:[%s3389 + $0xd9] sm:$0xff] %v3258
    %3409 = vst [vmem:[%s3389 + $0xe1] sm:$0xff] %v3259
    %3410 = vst [vmem:[%s3389 + $0xf1] sm:$0xff] %v3260
    %3411 = vst [vmem:[%s3389 + $0xf9] sm:$0xff] %v3261
    %3412 = vst [vmem:[%s3389 + $0x109] sm:$0xff] %v3262
    %3413 = vst [vmem:[%s3389 + $0x111] sm:$0xff] %v3263
    %3414 = vst [vmem:[%s3389 + $0x121] sm:$0xff] %v3264
    %3415 = vst [vmem:[%s3389 + $0x129] sm:$0xff] %v3265
    %3416 = vst [vmem:[%s3389 + $0x139] sm:$0xff] %v3266
    %3417 = vst [vmem:[%s3389 + $0x141] sm:$0xff] %v3267
    %3418 = vst [vmem:[%s3389 + $0x151] sm:$0xff] %v3268
    %3419 = vst [vmem:[%s3389 + $0x159] sm:$0xff] %v3269
    %3420 = vst [vmem:[%s3389 + $0x169] sm:$0xff] %v3270
    %3421 = vst [vmem:[%s3389 + $0x171] sm:$0xff] %v3271
    %3422 = vst [vmem:[%s3389 + $0x1b1] sm:$0xff] %v3272
    %3423 = vst [vmem:[%s3389 + $0x1b9] sm:$0xff] %v3273
    %3424 = vst [vmem:[%s3389 + $0x1c9] sm:$0xff] %v3274
    %3425 = vst [vmem:[%s3389 + $0x1d1] sm:$0xff] %v3275
    %3426 = vst [vmem:[%s3389 + $0x1e1] sm:$0xff] %v3276
    %3427 = vst [vmem:[%s3389 + $0x1e9] sm:$0xff] %v3277
    %3428 = vst [vmem:[%s3389 + $0x1f9] sm:$0xff] %v3278
    %3429 = vst [vmem:[%s3389 + $0x201] sm:$0xff] %v3279
    %3430 = vst [vmem:[%s3389 + $0x211] sm:$0xff] %v3280
    %3431 = vst [vmem:[%s3389 + $0x219] sm:$0xff] %v3281
    %3432 = vst [vmem:[%s3389 + $0x229] sm:$0xff] %v3282
    %3433 = vst [vmem:[%s3389 + $0x231] sm:$0xff] %v3283
    %3434 = vst [vmem:[%s3389 + $0x241] sm:$0xff] %v3284
    %3435 = vst [vmem:[%s3389 + $0x249] sm:$0xff] %v3285
    %3436 = vst [vmem:[%s3389 + $0x259] sm:$0xff] %v3286
    %3437 = vst [vmem:[%s3389 + $0x261] sm:$0xff] %v3287
    %3438 = vst [vmem:[%s3389 + $0x271] sm:$0xff] %v3288
    %3439 = vst [vmem:[%s3389 + $0x279] sm:$0xff] %v3289
    %3440 = vst [vmem:[%s3389 + $0x289] sm:$0xff] %v3290
    %3441 = vst [vmem:[%s3389 + $0x291] sm:$0xff] %v3291
    %3442 = vst [vmem:[%s3389 + $0x2a1] sm:$0xff] %v3292
    %3443 = vst [vmem:[%s3389 + $0x2a9] sm:$0xff] %v3293
    %3444 = vst [vmem:[%s3389 + $0x2b9] sm:$0xff] %v3294
    %3445 = vst [vmem:[%s3389 + $0x2c1] sm:$0xff] %v3295
    %3446 = vst [vmem:[%s3389 + $0x2d1] sm:$0xff] %v3296
    %3447 = vst [vmem:[%s3389 + $0x2d9] sm:$0xff] %v3297
    %3448 = vst [vmem:[%s3389 + $0x2e9] sm:$0xff] %v3298
    %3449 = vst [vmem:[%s3389 + $0x2f1] sm:$0xff] %v3299
    %3450 = vst [vmem:[%s3389 + $0x301] sm:$0xff] %v3300
    %3451 = vst [vmem:[%s3389 + $0x309] sm:$0xff] %v3301
    %3452 = vst [vmem:[%s3389 + $0x319] sm:$0xff] %v3302
    %3453 = vst [vmem:[%s3389 + $0x321] sm:$0xff] %v3303
    %v3454 = vld [vmem:[#allocation2] sm:$0xff]
    %v3455 = vld [vmem:[#allocation2 + $0x8] sm:$0xff]
    %v3456 = vld [vmem:[#allocation2 + $0x10] sm:$0x3]
    %v3457 = vld [vmem:[#allocation2 + $0x18] sm:$0xff]
    %v3458 = vld [vmem:[#allocation2 + $0x20] sm:$0xff]
    %v3459 = vld [vmem:[#allocation2 + $0x28] sm:$0x3]
    %v3460 = vld [vmem:[#allocation2 + $0x30] sm:$0xff]
    %v3461 = vld [vmem:[#allocation2 + $0x38] sm:$0xff]
    %v3462 = vld [vmem:[#allocation2 + $0x40] sm:$0x3]
    %v3463 = vld [vmem:[#allocation2 + $0x48] sm:$0xff]
    %v3464 = vld [vmem:[#allocation2 + $0x50] sm:$0xff]
    %v3465 = vld [vmem:[#allocation2 + $0x58] sm:$0x3]
    %v3466 = vld [vmem:[#allocation2 + $0x60] sm:$0xff]
    %v3467 = vld [vmem:[#allocation2 + $0x68] sm:$0xff]
    %v3468 = vld [vmem:[#allocation2 + $0x70] sm:$0x3]
    %v3469 = vld [vmem:[#allocation2 + $0x78] sm:$0xff]
    %v3470 = vld [vmem:[#allocation2 + $0x80] sm:$0xff]
    %v3471 = vld [vmem:[#allocation2 + $0x88] sm:$0x3]
    %v3472 = vld [vmem:[#allocation2 + $0x90] sm:$0xff]
    %v3473 = vld [vmem:[#allocation2 + $0x98] sm:$0xff]
    %v3474 = vld [vmem:[#allocation2 + $0xa0] sm:$0x3]
    %v3475 = vld [vmem:[#allocation2 + $0xa8] sm:$0xff]
    %v3476 = vld [vmem:[#allocation2 + $0xb0] sm:$0xff]
    %v3477 = vld [vmem:[#allocation2 + $0xb8] sm:$0x3]
    %v3478 = vld [vmem:[#allocation2 + $0xc0] sm:$0xff]
    %v3479 = vld [vmem:[#allocation2 + $0xc8] sm:$0xff]
    %v3480 = vld [vmem:[#allocation2 + $0xd0] sm:$0x3]
    %v3481 = vld [vmem:[#allocation2 + $0xd8] sm:$0xff]
    %v3482 = vld [vmem:[#allocation2 + $0xe0] sm:$0xff]
    %v3483 = vld [vmem:[#allocation2 + $0xe8] sm:$0x3]
    %v3484 = vld [vmem:[#allocation2 + $0xf0] sm:$0xff]
    %v3485 = vld [vmem:[#allocation2 + $0xf8] sm:$0xff]
    %v3486 = vld [vmem:[#allocation2 + $0x100] sm:$0x3]
    %v3487 = vld [vmem:[#allocation2 + $0x108] sm:$0xff]
    %v3488 = vld [vmem:[#allocation2 + $0x110] sm:$0xff]
    %v3489 = vld [vmem:[#allocation2 + $0x118] sm:$0x3]
    %v3490 = vld [vmem:[#allocation2 + $0x120] sm:$0xff]
    %v3491 = vld [vmem:[#allocation2 + $0x128] sm:$0xff]
    %v3492 = vld [vmem:[#allocation2 + $0x130] sm:$0x3]
    %v3493 = vld [vmem:[#allocation2 + $0x138] sm:$0xff]
    %v3494 = vld [vmem:[#allocation2 + $0x140] sm:$0xff]
    %v3495 = vld [vmem:[#allocation2 + $0x148] sm:$0x3]
    %v3496 = vld [vmem:[#allocation2 + $0x150] sm:$0xff]
    %v3497 = vld [vmem:[#allocation2 + $0x158] sm:$0xff]
    %v3498 = vld [vmem:[#allocation2 + $0x160] sm:$0x3]
    %v3499 = vld [vmem:[#allocation2 + $0x168] sm:$0xff]
    %v3500 = vld [vmem:[#allocation2 + $0x170] sm:$0xff]
    %v3501 = vld [vmem:[#allocation2 + $0x178] sm:$0x3]
    %v3502 = vld [vmem:[#allocation2 + $0x180] sm:$0xff]
    %v3503 = vld [vmem:[#allocation2 + $0x188] sm:$0xff]
    %v3504 = vld [vmem:[#allocation2 + $0x190] sm:$0x3]
    %v3505 = vld [vmem:[#allocation2 + $0x198] sm:$0xff]
    %v3506 = vld [vmem:[#allocation2 + $0x1a0] sm:$0xff]
    %v3507 = vld [vmem:[#allocation2 + $0x1a8] sm:$0x3]
    %v3508 = vld [vmem:[#allocation2 + $0x1b0] sm:$0xff]
    %v3509 = vld [vmem:[#allocation2 + $0x1b8] sm:$0xff]
    %v3510 = vld [vmem:[#allocation2 + $0x1c0] sm:$0x3]
    %v3511 = vld [vmem:[#allocation2 + $0x1c8] sm:$0xff]
    %v3512 = vld [vmem:[#allocation2 + $0x1d0] sm:$0xff]
    %v3513 = vld [vmem:[#allocation2 + $0x1d8] sm:$0x3]
    %v3514 = vld [vmem:[#allocation2 + $0x1e0] sm:$0xff]
    %v3515 = vld [vmem:[#allocation2 + $0x1e8] sm:$0xff]
    %v3516 = vld [vmem:[#allocation2 + $0x1f0] sm:$0x3]
    %v3517 = vld [vmem:[#allocation2 + $0x1f8] sm:$0xff]
    %v3518 = vld [vmem:[#allocation2 + $0x200] sm:$0xff]
    %v3519 = vld [vmem:[#allocation2 + $0x208] sm:$0x3]
    %v3520 = vld [vmem:[#allocation2 + $0x210] sm:$0xff]
    %v3521 = vld [vmem:[#allocation2 + $0x218] sm:$0xff]
    %v3522 = vld [vmem:[#allocation2 + $0x220] sm:$0x3]
    %v3523 = vld [vmem:[#allocation2 + $0x228] sm:$0xff]
    %v3524 = vld [vmem:[#allocation2 + $0x230] sm:$0xff]
    %v3525 = vld [vmem:[#allocation2 + $0x238] sm:$0x3]
    %v3526 = vld [vmem:[#allocation2 + $0x240] sm:$0xff]
    %v3527 = vld [vmem:[#allocation2 + $0x248] sm:$0xff]
    %v3528 = vld [vmem:[#allocation2 + $0x250] sm:$0x3]
    %v3529 = vld [vmem:[#allocation2 + $0x258] sm:$0xff]
    %v3530 = vld [vmem:[#allocation2 + $0x260] sm:$0xff]
    %v3531 = vld [vmem:[#allocation2 + $0x268] sm:$0x3]
    %v3532 = vld [vmem:[#allocation2 + $0x270] sm:$0xff]
    %v3533 = vld [vmem:[#allocation2 + $0x278] sm:$0xff]
    %v3534 = vld [vmem:[#allocation2 + $0x280] sm:$0x3]
    %v3535 = vld [vmem:[#allocation2 + $0x288] sm:$0xff]
    %v3536 = vld [vmem:[#allocation2 + $0x290] sm:$0xff]
    %v3537 = vld [vmem:[#allocation2 + $0x298] sm:$0x3]
    %v3538 = vld [vmem:[#allocation2 + $0x2a0] sm:$0xff]
    %v3539 = vld [vmem:[#allocation2 + $0x2a8] sm:$0xff]
    %v3540 = vld [vmem:[#allocation2 + $0x2b0] sm:$0x3]
    %v3541 = vld [vmem:[#allocation2 + $0x2b8] sm:$0xff]
    %v3542 = vld [vmem:[#allocation2 + $0x2c0] sm:$0xff]
    %v3543 = vld [vmem:[#allocation2 + $0x2c8] sm:$0x3]
    %v3544 = vld [vmem:[#allocation2 + $0x2d0] sm:$0xff]
    %v3545 = vld [vmem:[#allocation2 + $0x2d8] sm:$0xff]
    %v3546 = vld [vmem:[#allocation2 + $0x2e0] sm:$0x3]
    %v3547 = vld [vmem:[#allocation2 + $0x2e8] sm:$0xff]
    %v3548 = vld [vmem:[#allocation2 + $0x2f0] sm:$0xff]
    %v3549 = vld [vmem:[#allocation2 + $0x2f8] sm:$0x3]
    %v3550 = vld [vmem:[#allocation2 + $0x300] sm:$0xff]
    %v3551 = vld [vmem:[#allocation2 + $0x308] sm:$0xff]
    %v3552 = vld [vmem:[#allocation2 + $0x310] sm:$0x3]
    %v3553 = vld [vmem:[#allocation2 + $0x318] sm:$0xff]
    %v3554 = vld [vmem:[#allocation2 + $0x320] sm:$0xff]
    %v3555 = vld [vmem:[#allocation2 + $0x328] sm:$0x3]
    %v3556 = vld [vmem:[#allocation2 + $0x330] sm:$0xff]
    %v3557 = vld [vmem:[#allocation2 + $0x338] sm:$0xff]
    %v3558 = vld [vmem:[#allocation2 + $0x340] sm:$0x3]
    %v3559 = vld [vmem:[#allocation2 + $0x348] sm:$0xff]
    %v3560 = vld [vmem:[#allocation2 + $0x350] sm:$0xff]
    %v3561 = vld [vmem:[#allocation2 + $0x358] sm:$0x3]
    %v3562 = vpack.c.bf16 %v3455, %v3454
    %v3563 = vpack.c.bf16 %v3458, %v3457
    %v3564 = vpack.c.bf16 %v3461, %v3460
    %v3565 = vpack.c.bf16 %v3464, %v3463
    %v3566 = vpack.c.bf16 %v3467, %v3466
    %v3567 = vpack.c.bf16 %v3470, %v3469
    %v3568 = vpack.c.bf16 %v3473, %v3472
    %v3569 = vpack.c.bf16 %v3476, %v3475
    %v3570 = vpack.c.bf16 %v3479, %v3478
    %v3571 = vpack.c.bf16 %v3482, %v3481
    %v3572 = vpack.c.bf16 %v3485, %v3484
    %v3573 = vpack.c.bf16 %v3488, %v3487
    %v3574 = vpack.c.bf16 %v3491, %v3490
    %v3575 = vpack.c.bf16 %v3494, %v3493
    %v3576 = vpack.c.bf16 %v3497, %v3496
    %v3577 = vpack.c.bf16 %v3500, %v3499
    %v3578 = vpack.c.bf16 %v3509, %v3508
    %v3579 = vpack.c.bf16 %v3512, %v3511
    %v3580 = vpack.c.bf16 %v3515, %v3514
    %v3581 = vpack.c.bf16 %v3518, %v3517
    %v3582 = vpack.c.bf16 %v3521, %v3520
    %v3583 = vpack.c.bf16 %v3524, %v3523
    %v3584 = vpack.c.bf16 %v3527, %v3526
    %v3585 = vpack.c.bf16 %v3530, %v3529
    %v3586 = vpack.c.bf16 %v3533, %v3532
    %v3587 = vpack.c.bf16 %v3536, %v3535
    %v3588 = vpack.c.bf16 %v3539, %v3538
    %v3589 = vpack.c.bf16 %v3542, %v3541
    %v3590 = vpack.c.bf16 %v3545, %v3544
    %v3591 = vpack.c.bf16 %v3548, %v3547
    %v3592 = vpack.c.bf16 %v3551, %v3550
    %v3593 = vpack.c.bf16 %v3554, %v3553
    %v3690 = vrot.slane %v3454, 1
    %v3691 = vrot.slane %v3455, 1
    %v3692 = vsel %vm273, %v3690, %v3691
    %v3693 = vrot.slane %v3456, 1
    %v3694 = vsel %vm273, %v3691, %v3693
    %v3695 = vrot.slane %v3457, 1
    %v3696 = vrot.slane %v3458, 1
    %v3697 = vsel %vm273, %v3695, %v3696
    %v3698 = vrot.slane %v3459, 1
    %v3699 = vsel %vm273, %v3696, %v3698
    %v3700 = vrot.slane %v3460, 1
    %v3701 = vrot.slane %v3461, 1
    %v3702 = vsel %vm273, %v3700, %v3701
    %v3703 = vrot.slane %v3462, 1
    %v3704 = vsel %vm273, %v3701, %v3703
    %v3705 = vrot.slane %v3463, 1
    %v3706 = vrot.slane %v3464, 1
    %v3707 = vsel %vm273, %v3705, %v3706
    %v3708 = vrot.slane %v3465, 1
    %v3709 = vsel %vm273, %v3706, %v3708
    %v3710 = vrot.slane %v3466, 1
    %v3711 = vrot.slane %v3467, 1
    %v3712 = vsel %vm273, %v3710, %v3711
    %v3713 = vrot.slane %v3468, 1
    %v3714 = vsel %vm273, %v3711, %v3713
    %v3715 = vrot.slane %v3469, 1
    %v3716 = vrot.slane %v3470, 1
    %v3717 = vsel %vm273, %v3715, %v3716
    %v3718 = vrot.slane %v3471, 1
    %v3719 = vsel %vm273, %v3716, %v3718
    %v3720 = vrot.slane %v3472, 1
    %v3721 = vrot.slane %v3473, 1
    %v3722 = vsel %vm273, %v3720, %v3721
    %v3723 = vrot.slane %v3474, 1
    %v3724 = vsel %vm273, %v3721, %v3723
    %v3725 = vrot.slane %v3475, 1
    %v3726 = vrot.slane %v3476, 1
    %v3727 = vsel %vm273, %v3725, %v3726
    %v3728 = vrot.slane %v3477, 1
    %v3729 = vsel %vm273, %v3726, %v3728
    %v3730 = vrot.slane %v3478, 1
    %v3731 = vrot.slane %v3479, 1
    %v3732 = vsel %vm273, %v3730, %v3731
    %v3733 = vrot.slane %v3480, 1
    %v3734 = vsel %vm273, %v3731, %v3733
    %v3735 = vrot.slane %v3481, 1
    %v3736 = vrot.slane %v3482, 1
    %v3737 = vsel %vm273, %v3735, %v3736
    %v3738 = vrot.slane %v3483, 1
    %v3739 = vsel %vm273, %v3736, %v3738
    %v3740 = vrot.slane %v3484, 1
    %v3741 = vrot.slane %v3485, 1
    %v3742 = vsel %vm273, %v3740, %v3741
    %v3743 = vrot.slane %v3486, 1
    %v3744 = vsel %vm273, %v3741, %v3743
    %v3745 = vrot.slane %v3487, 1
    %v3746 = vrot.slane %v3488, 1
    %v3747 = vsel %vm273, %v3745, %v3746
    %v3748 = vrot.slane %v3489, 1
    %v3749 = vsel %vm273, %v3746, %v3748
    %v3750 = vrot.slane %v3490, 1
    %v3751 = vrot.slane %v3491, 1
    %v3752 = vsel %vm273, %v3750, %v3751
    %v3753 = vrot.slane %v3492, 1
    %v3754 = vsel %vm273, %v3751, %v3753
    %v3755 = vrot.slane %v3493, 1
    %v3756 = vrot.slane %v3494, 1
    %v3757 = vsel %vm273, %v3755, %v3756
    %v3758 = vrot.slane %v3495, 1
    %v3759 = vsel %vm273, %v3756, %v3758
    %v3760 = vrot.slane %v3496, 1
    %v3761 = vrot.slane %v3497, 1
    %v3762 = vsel %vm273, %v3760, %v3761
    %v3763 = vrot.slane %v3498, 1
    %v3764 = vsel %vm273, %v3761, %v3763
    %v3765 = vrot.slane %v3499, 1
    %v3766 = vrot.slane %v3500, 1
    %v3767 = vsel %vm273, %v3765, %v3766
    %v3768 = vrot.slane %v3501, 1
    %v3769 = vsel %vm273, %v3766, %v3768
    %v3770 = vrot.slane %v3508, 1
    %v3771 = vrot.slane %v3509, 1
    %v3772 = vsel %vm273, %v3770, %v3771
    %v3773 = vrot.slane %v3510, 1
    %v3774 = vsel %vm273, %v3771, %v3773
    %v3775 = vrot.slane %v3511, 1
    %v3776 = vrot.slane %v3512, 1
    %v3777 = vsel %vm273, %v3775, %v3776
    %v3778 = vrot.slane %v3513, 1
    %v3779 = vsel %vm273, %v3776, %v3778
    %v3780 = vrot.slane %v3514, 1
    %v3781 = vrot.slane %v3515, 1
    %v3782 = vsel %vm273, %v3780, %v3781
    %v3783 = vrot.slane %v3516, 1
    %v3784 = vsel %vm273, %v3781, %v3783
    %v3785 = vrot.slane %v3517, 1
    %v3786 = vrot.slane %v3518, 1
    %v3787 = vsel %vm273, %v3785, %v3786
    %v3788 = vrot.slane %v3519, 1
    %v3789 = vsel %vm273, %v3786, %v3788
    %v3790 = vrot.slane %v3520, 1
    %v3791 = vrot.slane %v3521, 1
    %v3792 = vsel %vm273, %v3790, %v3791
    %v3793 = vrot.slane %v3522, 1
    %v3794 = vsel %vm273, %v3791, %v3793
    %v3795 = vrot.slane %v3523, 1
    %v3796 = vrot.slane %v3524, 1
    %v3797 = vsel %vm273, %v3795, %v3796
    %v3798 = vrot.slane %v3525, 1
    %v3799 = vsel %vm273, %v3796, %v3798
    %v3800 = vrot.slane %v3526, 1
    %v3801 = vrot.slane %v3527, 1
    %v3802 = vsel %vm273, %v3800, %v3801
    %v3803 = vrot.slane %v3528, 1
    %v3804 = vsel %vm273, %v3801, %v3803
    %v3805 = vrot.slane %v3529, 1
    %v3806 = vrot.slane %v3530, 1
    %v3807 = vsel %vm273, %v3805, %v3806
    %v3808 = vrot.slane %v3531, 1
    %v3809 = vsel %vm273, %v3806, %v3808
    %v3810 = vrot.slane %v3532, 1
    %v3811 = vrot.slane %v3533, 1
    %v3812 = vsel %vm273, %v3810, %v3811
    %v3813 = vrot.slane %v3534, 1
    %v3814 = vsel %vm273, %v3811, %v3813
    %v3815 = vrot.slane %v3535, 1
    %v3816 = vrot.slane %v3536, 1
    %v3817 = vsel %vm273, %v3815, %v3816
    %v3818 = vrot.slane %v3537, 1
    %v3819 = vsel %vm273, %v3816, %v3818
    %v3820 = vrot.slane %v3538, 1
    %v3821 = vrot.slane %v3539, 1
    %v3822 = vsel %vm273, %v3820, %v3821
    %v3823 = vrot.slane %v3540, 1
    %v3824 = vsel %vm273, %v3821, %v3823
    %v3825 = vrot.slane %v3541, 1
    %v3826 = vrot.slane %v3542, 1
    %v3827 = vsel %vm273, %v3825, %v3826
    %v3828 = vrot.slane %v3543, 1
    %v3829 = vsel %vm273, %v3826, %v3828
    %v3830 = vrot.slane %v3544, 1
    %v3831 = vrot.slane %v3545, 1
    %v3832 = vsel %vm273, %v3830, %v3831
    %v3833 = vrot.slane %v3546, 1
    %v3834 = vsel %vm273, %v3831, %v3833
    %v3835 = vrot.slane %v3547, 1
    %v3836 = vrot.slane %v3548, 1
    %v3837 = vsel %vm273, %v3835, %v3836
    %v3838 = vrot.slane %v3549, 1
    %v3839 = vsel %vm273, %v3836, %v3838
    %v3840 = vrot.slane %v3550, 1
    %v3841 = vrot.slane %v3551, 1
    %v3842 = vsel %vm273, %v3840, %v3841
    %v3843 = vrot.slane %v3552, 1
    %v3844 = vsel %vm273, %v3841, %v3843
    %v3845 = vrot.slane %v3553, 1
    %v3846 = vrot.slane %v3554, 1
    %v3847 = vsel %vm273, %v3845, %v3846
    %v3848 = vrot.slane %v3555, 1
    %v3849 = vsel %vm273, %v3846, %v3848
    %v3914 = vpack.c.bf16 %v3694, %v3692
    %v3915 = vpack.c.bf16 %v3699, %v3697
    %v3916 = vpack.c.bf16 %v3704, %v3702
    %v3917 = vpack.c.bf16 %v3709, %v3707
    %v3918 = vpack.c.bf16 %v3714, %v3712
    %v3919 = vpack.c.bf16 %v3719, %v3717
    %v3920 = vpack.c.bf16 %v3724, %v3722
    %v3921 = vpack.c.bf16 %v3729, %v3727
    %v3922 = vpack.c.bf16 %v3734, %v3732
    %v3923 = vpack.c.bf16 %v3739, %v3737
    %v3924 = vpack.c.bf16 %v3744, %v3742
    %v3925 = vpack.c.bf16 %v3749, %v3747
    %v3926 = vpack.c.bf16 %v3754, %v3752
    %v3927 = vpack.c.bf16 %v3759, %v3757
    %v3928 = vpack.c.bf16 %v3764, %v3762
    %v3929 = vpack.c.bf16 %v3769, %v3767
    %v3930 = vpack.c.bf16 %v3774, %v3772
    %v3931 = vpack.c.bf16 %v3779, %v3777
    %v3932 = vpack.c.bf16 %v3784, %v3782
    %v3933 = vpack.c.bf16 %v3789, %v3787
    %v3934 = vpack.c.bf16 %v3794, %v3792
    %v3935 = vpack.c.bf16 %v3799, %v3797
    %v3936 = vpack.c.bf16 %v3804, %v3802
    %v3937 = vpack.c.bf16 %v3809, %v3807
    %v3938 = vpack.c.bf16 %v3814, %v3812
    %v3939 = vpack.c.bf16 %v3819, %v3817
    %v3940 = vpack.c.bf16 %v3824, %v3822
    %v3941 = vpack.c.bf16 %v3829, %v3827
    %v3942 = vpack.c.bf16 %v3834, %v3832
    %v3943 = vpack.c.bf16 %v3839, %v3837
    %v3944 = vpack.c.bf16 %v3844, %v3842
    %v3945 = vpack.c.bf16 %v3849, %v3847
    %v3946 = vrot.slane %v3454, 2
    %v3947 = vrot.slane %v3455, 2
    %v3948 = vsel %vm530, %v3946, %v3947
    %v3949 = vrot.slane %v3456, 2
    %v3950 = vsel %vm530, %v3947, %v3949
    %v3951 = vrot.slane %v3457, 2
    %v3952 = vrot.slane %v3458, 2
    %v3953 = vsel %vm530, %v3951, %v3952
    %v3954 = vrot.slane %v3459, 2
    %v3955 = vsel %vm530, %v3952, %v3954
    %v3956 = vrot.slane %v3460, 2
    %v3957 = vrot.slane %v3461, 2
    %v3958 = vsel %vm530, %v3956, %v3957
    %v3959 = vrot.slane %v3462, 2
    %v3960 = vsel %vm530, %v3957, %v3959
    %v3961 = vrot.slane %v3463, 2
    %v3962 = vrot.slane %v3464, 2
    %v3963 = vsel %vm530, %v3961, %v3962
    %v3964 = vrot.slane %v3465, 2
    %v3965 = vsel %vm530, %v3962, %v3964
    %v3966 = vrot.slane %v3466, 2
    %v3967 = vrot.slane %v3467, 2
    %v3968 = vsel %vm530, %v3966, %v3967
    %v3969 = vrot.slane %v3468, 2
    %v3970 = vsel %vm530, %v3967, %v3969
    %v3971 = vrot.slane %v3469, 2
    %v3972 = vrot.slane %v3470, 2
    %v3973 = vsel %vm530, %v3971, %v3972
    %v3974 = vrot.slane %v3471, 2
    %v3975 = vsel %vm530, %v3972, %v3974
    %v3976 = vrot.slane %v3472, 2
    %v3977 = vrot.slane %v3473, 2
    %v3978 = vsel %vm530, %v3976, %v3977
    %v3979 = vrot.slane %v3474, 2
    %v3980 = vsel %vm530, %v3977, %v3979
    %v3981 = vrot.slane %v3475, 2
    %v3982 = vrot.slane %v3476, 2
    %v3983 = vsel %vm530, %v3981, %v3982
    %v3984 = vrot.slane %v3477, 2
    %v3985 = vsel %vm530, %v3982, %v3984
    %v3986 = vrot.slane %v3478, 2
    %v3987 = vrot.slane %v3479, 2
    %v3988 = vsel %vm530, %v3986, %v3987
    %v3989 = vrot.slane %v3480, 2
    %v3990 = vsel %vm530, %v3987, %v3989
    %v3991 = vrot.slane %v3481, 2
    %v3992 = vrot.slane %v3482, 2
    %v3993 = vsel %vm530, %v3991, %v3992
    %v3994 = vrot.slane %v3483, 2
    %v3995 = vsel %vm530, %v3992, %v3994
    %v3996 = vrot.slane %v3484, 2
    %v3997 = vrot.slane %v3485, 2
    %v3998 = vsel %vm530, %v3996, %v3997
    %v3999 = vrot.slane %v3486, 2
    %v4000 = vsel %vm530, %v3997, %v3999
    %v4001 = vrot.slane %v3487, 2
    %v4002 = vrot.slane %v3488, 2
    %v4003 = vsel %vm530, %v4001, %v4002
    %v4004 = vrot.slane %v3489, 2
    %v4005 = vsel %vm530, %v4002, %v4004
    %v4006 = vrot.slane %v3490, 2
    %v4007 = vrot.slane %v3491, 2
    %v4008 = vsel %vm530, %v4006, %v4007
    %v4009 = vrot.slane %v3492, 2
    %v4010 = vsel %vm530, %v4007, %v4009
    %v4011 = vrot.slane %v3493, 2
    %v4012 = vrot.slane %v3494, 2
    %v4013 = vsel %vm530, %v4011, %v4012
    %v4014 = vrot.slane %v3495, 2
    %v4015 = vsel %vm530, %v4012, %v4014
    %v4016 = vrot.slane %v3496, 2
    %v4017 = vrot.slane %v3497, 2
    %v4018 = vsel %vm530, %v4016, %v4017
    %v4019 = vrot.slane %v3498, 2
    %v4020 = vsel %vm530, %v4017, %v4019
    %v4021 = vrot.slane %v3499, 2
    %v4022 = vrot.slane %v3500, 2
    %v4023 = vsel %vm530, %v4021, %v4022
    %v4024 = vrot.slane %v3501, 2
    %v4025 = vsel %vm530, %v4022, %v4024
    %v4026 = vrot.slane %v3508, 2
    %v4027 = vrot.slane %v3509, 2
    %v4028 = vsel %vm530, %v4026, %v4027
    %v4029 = vrot.slane %v3510, 2
    %v4030 = vsel %vm530, %v4027, %v4029
    %v4031 = vrot.slane %v3511, 2
    %v4032 = vrot.slane %v3512, 2
    %v4033 = vsel %vm530, %v4031, %v4032
    %v4034 = vrot.slane %v3513, 2
    %v4035 = vsel %vm530, %v4032, %v4034
    %v4036 = vrot.slane %v3514, 2
    %v4037 = vrot.slane %v3515, 2
    %v4038 = vsel %vm530, %v4036, %v4037
    %v4039 = vrot.slane %v3516, 2
    %v4040 = vsel %vm530, %v4037, %v4039
    %v4041 = vrot.slane %v3517, 2
    %v4042 = vrot.slane %v3518, 2
    %v4043 = vsel %vm530, %v4041, %v4042
    %v4044 = vrot.slane %v3519, 2
    %v4045 = vsel %vm530, %v4042, %v4044
    %v4046 = vrot.slane %v3520, 2
    %v4047 = vrot.slane %v3521, 2
    %v4048 = vsel %vm530, %v4046, %v4047
    %v4049 = vrot.slane %v3522, 2
    %v4050 = vsel %vm530, %v4047, %v4049
    %v4051 = vrot.slane %v3523, 2
    %v4052 = vrot.slane %v3524, 2
    %v4053 = vsel %vm530, %v4051, %v4052
    %v4054 = vrot.slane %v3525, 2
    %v4055 = vsel %vm530, %v4052, %v4054
    %v4056 = vrot.slane %v3526, 2
    %v4057 = vrot.slane %v3527, 2
    %v4058 = vsel %vm530, %v4056, %v4057
    %v4059 = vrot.slane %v3528, 2
    %v4060 = vsel %vm530, %v4057, %v4059
    %v4061 = vrot.slane %v3529, 2
    %v4062 = vrot.slane %v3530, 2
    %v4063 = vsel %vm530, %v4061, %v4062
    %v4064 = vrot.slane %v3531, 2
    %v4065 = vsel %vm530, %v4062, %v4064
    %v4066 = vrot.slane %v3532, 2
    %v4067 = vrot.slane %v3533, 2
    %v4068 = vsel %vm530, %v4066, %v4067
    %v4069 = vrot.slane %v3534, 2
    %v4070 = vsel %vm530, %v4067, %v4069
    %v4071 = vrot.slane %v3535, 2
    %v4072 = vrot.slane %v3536, 2
    %v4073 = vsel %vm530, %v4071, %v4072
    %v4074 = vrot.slane %v3537, 2
    %v4075 = vsel %vm530, %v4072, %v4074
    %v4076 = vrot.slane %v3538, 2
    %v4077 = vrot.slane %v3539, 2
    %v4078 = vsel %vm530, %v4076, %v4077
    %v4079 = vrot.slane %v3540, 2
    %v4080 = vsel %vm530, %v4077, %v4079
    %v4081 = vrot.slane %v3541, 2
    %v4082 = vrot.slane %v3542, 2
    %v4083 = vsel %vm530, %v4081, %v4082
    %v4084 = vrot.slane %v3543, 2
    %v4085 = vsel %vm530, %v4082, %v4084
    %v4086 = vrot.slane %v3544, 2
    %v4087 = vrot.slane %v3545, 2
    %v4088 = vsel %vm530, %v4086, %v4087
    %v4089 = vrot.slane %v3546, 2
    %v4090 = vsel %vm530, %v4087, %v4089
    %v4091 = vrot.slane %v3547, 2
    %v4092 = vrot.slane %v3548, 2
    %v4093 = vsel %vm530, %v4091, %v4092
    %v4094 = vrot.slane %v3549, 2
    %v4095 = vsel %vm530, %v4092, %v4094
    %v4096 = vrot.slane %v3550, 2
    %v4097 = vrot.slane %v3551, 2
    %v4098 = vsel %vm530, %v4096, %v4097
    %v4099 = vrot.slane %v3552, 2
    %v4100 = vsel %vm530, %v4097, %v4099
    %v4101 = vrot.slane %v3553, 2
    %v4102 = vrot.slane %v3554, 2
    %v4103 = vsel %vm530, %v4101, %v4102
    %v4104 = vrot.slane %v3555, 2
    %v4105 = vsel %vm530, %v4102, %v4104
    %v4170 = vpack.c.bf16 %v3950, %v3948
    %v4171 = vpack.c.bf16 %v3955, %v3953
    %v4172 = vpack.c.bf16 %v3960, %v3958
    %v4173 = vpack.c.bf16 %v3965, %v3963
    %v4174 = vpack.c.bf16 %v3970, %v3968
    %v4175 = vpack.c.bf16 %v3975, %v3973
    %v4176 = vpack.c.bf16 %v3980, %v3978
    %v4177 = vpack.c.bf16 %v3985, %v3983
    %v4178 = vpack.c.bf16 %v3990, %v3988
    %v4179 = vpack.c.bf16 %v3995, %v3993
    %v4180 = vpack.c.bf16 %v4000, %v3998
    %v4181 = vpack.c.bf16 %v4005, %v4003
    %v4182 = vpack.c.bf16 %v4010, %v4008
    %v4183 = vpack.c.bf16 %v4015, %v4013
    %v4184 = vpack.c.bf16 %v4020, %v4018
    %v4185 = vpack.c.bf16 %v4025, %v4023
    %v4186 = vpack.c.bf16 %v4030, %v4028
    %v4187 = vpack.c.bf16 %v4035, %v4033
    %v4188 = vpack.c.bf16 %v4040, %v4038
    %v4189 = vpack.c.bf16 %v4045, %v4043
    %v4190 = vpack.c.bf16 %v4050, %v4048
    %v4191 = vpack.c.bf16 %v4055, %v4053
    %v4192 = vpack.c.bf16 %v4060, %v4058
    %v4193 = vpack.c.bf16 %v4065, %v4063
    %v4194 = vpack.c.bf16 %v4070, %v4068
    %v4195 = vpack.c.bf16 %v4075, %v4073
    %v4196 = vpack.c.bf16 %v4080, %v4078
    %v4197 = vpack.c.bf16 %v4085, %v4083
    %v4198 = vpack.c.bf16 %v4090, %v4088
    %v4199 = vpack.c.bf16 %v4095, %v4093
    %v4200 = vpack.c.bf16 %v4100, %v4098
    %v4201 = vpack.c.bf16 %v4105, %v4103
    %v4202 = vpack.c.bf16 %v3503, %v3502
    %v4203 = vpack.c.bf16 %v3557, %v3556
    %v4210 = vrot.slane %v3502, 1
    %v4211 = vrot.slane %v3503, 1
    %v4212 = vsel %vm273, %v4210, %v4211
    %v4213 = vrot.slane %v3504, 1
    %v4214 = vsel %vm273, %v4211, %v4213
    %v4215 = vrot.slane %v3556, 1
    %v4216 = vrot.slane %v3557, 1
    %v4217 = vsel %vm273, %v4215, %v4216
    %v4218 = vrot.slane %v3558, 1
    %v4219 = vsel %vm273, %v4216, %v4218
    %v4224 = vpack.c.bf16 %v4214, %v4212
    %v4225 = vpack.c.bf16 %v4219, %v4217
    %v4226 = vrot.slane %v3502, 2
    %v4227 = vrot.slane %v3503, 2
    %v4228 = vsel %vm530, %v4226, %v4227
    %v4229 = vrot.slane %v3504, 2
    %v4230 = vsel %vm530, %v4227, %v4229
    %v4231 = vrot.slane %v3556, 2
    %v4232 = vrot.slane %v3557, 2
    %v4233 = vsel %vm530, %v4231, %v4232
    %v4234 = vrot.slane %v3558, 2
    %v4235 = vsel %vm530, %v4232, %v4234
    %v4240 = vpack.c.bf16 %v4230, %v4228
    %v4241 = vpack.c.bf16 %v4235, %v4233
    %v4242 = vpack.c.bf16 %v3506, %v3505
    %v4243 = vpack.c.bf16 %v3560, %v3559
    %v4250 = vrot.slane %v3505, 1
    %v4251 = vrot.slane %v3506, 1
    %v4252 = vsel %vm273, %v4250, %v4251
    %v4253 = vrot.slane %v3507, 1
    %v4254 = vsel %vm273, %v4251, %v4253
    %v4255 = vrot.slane %v3559, 1
    %v4256 = vrot.slane %v3560, 1
    %v4257 = vsel %vm273, %v4255, %v4256
    %v4258 = vrot.slane %v3561, 1
    %v4259 = vsel %vm273, %v4256, %v4258
    %v4264 = vpack.c.bf16 %v4254, %v4252
    %v4265 = vpack.c.bf16 %v4259, %v4257
    %v4266 = vrot.slane %v3505, 2
    %v4267 = vrot.slane %v3506, 2
    %v4268 = vsel %vm530, %v4266, %v4267
    %v4269 = vrot.slane %v3507, 2
    %v4270 = vsel %vm530, %v4267, %v4269
    %v4271 = vrot.slane %v3559, 2
    %v4272 = vrot.slane %v3560, 2
    %v4273 = vsel %vm530, %v4271, %v4272
    %v4274 = vrot.slane %v3561, 2
    %v4275 = vsel %vm530, %v4272, %v4274
    %v4280 = vpack.c.bf16 %v4270, %v4268
    %v4281 = vpack.c.bf16 %v4275, %v4273
    %v4282 = vld [vmem:[%s4] sm:$0xf]
    %v4283 = vld [vmem:[%s4 + $0x4] sm:$0xf]
    %v4284 = vld [vmem:[%s4 + $0x8] sm:$0xf]
    %v4285 = vld [vmem:[%s4 + $0xc] sm:$0xf]
    %v4286 = vld [vmem:[%s4 + $0x10] sm:$0xf]
    %v4287 = vld [vmem:[%s4 + $0x14] sm:$0xf]
    %v4288 = vld [vmem:[%s4 + $0x18] sm:$0xf]
    %v4289 = vld [vmem:[%s4 + $0x1c] sm:$0xf]
    %v4290 = vld [vmem:[%s4 + $0x20] sm:$0xf]
    %v4291 = vld [vmem:[%s4 + $0x24] sm:$0xf]
    %v4292 = vld [vmem:[%s4 + $0x28] sm:$0xf]
    %v4293 = vld [vmem:[%s4 + $0x2c] sm:$0xf]
    %v4294 = vld [vmem:[%s4 + $0x30] sm:$0xf]
    %v4295 = vld [vmem:[%s4 + $0x34] sm:$0xf]
    %v4296 = vld [vmem:[%s4 + $0x38] sm:$0xf]
    %v4297 = vld [vmem:[%s4 + $0x3c] sm:$0xf]
    %v4298 = vld [vmem:[%s4 + $0x40] sm:$0xf]
    %v4299 = vld [vmem:[%s4 + $0x44] sm:$0xf]
    %v4300 = vld [vmem:[%s4 + $0x48] sm:$0xf]
    %v4301 = vld [vmem:[%s4 + $0x4c] sm:$0xf]
    %v4302 = vld [vmem:[%s4 + $0x50] sm:$0xf]
    %v4303 = vld [vmem:[%s4 + $0x54] sm:$0xf]
    %v4304 = vld [vmem:[%s4 + $0x58] sm:$0xf]
    %v4305 = vld [vmem:[%s4 + $0x5c] sm:$0xf]
    %v4306 = vld [vmem:[%s4 + $0x60] sm:$0xf]
    %v4307 = vld [vmem:[%s4 + $0x64] sm:$0xf]
    %v4308 = vld [vmem:[%s4 + $0x68] sm:$0xf]
    %v4309 = vld [vmem:[%s4 + $0x6c] sm:$0xf]
    %v4310 = vld [vmem:[%s4 + $0x70] sm:$0xf]
    %v4311 = vld [vmem:[%s4 + $0x74] sm:$0xf]
    %v4312 = vld [vmem:[%s4 + $0x78] sm:$0xf]
    %v4313 = vld [vmem:[%s4 + $0x7c] sm:$0xf]
    %v4314 = vld [vmem:[%s4 + $0x80] sm:$0xf]
    %v4315 = vld [vmem:[%s4 + $0x84] sm:$0xf]
    %v4316 = vld [vmem:[%s4 + $0x88] sm:$0xf]
    %v4317 = vld [vmem:[%s4 + $0x8c] sm:$0xf]
    %v4318 = vld [vmem:[%s4 + $0x90] sm:$0xf]
    %v4319 = vld [vmem:[%s4 + $0x94] sm:$0xf]
    %v4320 = vld [vmem:[%s4 + $0x98] sm:$0xf]
    %v4321 = vld [vmem:[%s4 + $0x9c] sm:$0xf]
    %v4322 = vld [vmem:[%s4 + $0xa0] sm:$0xf]
    %v4323 = vld [vmem:[%s4 + $0xa4] sm:$0xf]
    %v4324 = vld [vmem:[%s4 + $0xa8] sm:$0xf]
    %v4325 = vld [vmem:[%s4 + $0xac] sm:$0xf]
    %v4326 = vld [vmem:[%s4 + $0xb0] sm:$0xf]
    %v4327 = vld [vmem:[%s4 + $0xb4] sm:$0xf]
    %v4328 = vld [vmem:[%s4 + $0xb8] sm:$0xf]
    %v4329 = vld [vmem:[%s4 + $0xbc] sm:$0xf]
    %v4330 = vld [vmem:[%s4 + $0xc0] sm:$0xf]
    %v4331 = vld [vmem:[%s4 + $0xc4] sm:$0xf]
    %v4332 = vld [vmem:[%s4 + $0xc8] sm:$0xf]
    %v4333 = vld [vmem:[%s4 + $0xcc] sm:$0xf]
    %v4334 = vld [vmem:[%s4 + $0xd0] sm:$0xf]
    %v4335 = vld [vmem:[%s4 + $0xd4] sm:$0xf]
    %v4336 = vld [vmem:[%s4 + $0xd8] sm:$0xf]
    %v4337 = vld [vmem:[%s4 + $0xdc] sm:$0xf]
    %v4338 = vld [vmem:[%s4 + $0xe0] sm:$0xf]
    %v4339 = vld [vmem:[%s4 + $0xe4] sm:$0xf]
    %v4340 = vld [vmem:[%s4 + $0xe8] sm:$0xf]
    %v4341 = vld [vmem:[%s4 + $0xec] sm:$0xf]
    %v4342 = vld [vmem:[%s4 + $0xf0] sm:$0xf]
    %v4343 = vld [vmem:[%s4 + $0xf4] sm:$0xf]
    %v4344 = vld [vmem:[%s4 + $0xf8] sm:$0xf]
    %v4345 = vld [vmem:[%s4 + $0xfc] sm:$0xf]
    %v4346 = vld [vmem:[%s4 + $0x100] sm:$0xf]
    %v4347 = vld [vmem:[%s4 + $0x104] sm:$0xf]
    %v4348 = vld [vmem:[%s4 + $0x108] sm:$0xf]
    %v4349 = vld [vmem:[%s4 + $0x10c] sm:$0xf]
    %v4350 = vld [vmem:[%s4 + $0x110] sm:$0xf]
    %v4351 = vld [vmem:[%s4 + $0x114] sm:$0xf]
    %v4352 = vld [vmem:[%s4 + $0x118] sm:$0xf]
    %v4353 = vld [vmem:[%s4 + $0x11c] sm:$0xf]
    %v4354 = vld [vmem:[%s4 + $0x120] sm:$0xf]
    %v4355 = vld [vmem:[%s4 + $0x124] sm:$0xf]
    %v4356 = vld [vmem:[%s4 + $0x128] sm:$0xf]
    %v4357 = vld [vmem:[%s4 + $0x12c] sm:$0xf]
    %v4358 = vld [vmem:[%s4 + $0x130] sm:$0xf]
    %v4359 = vld [vmem:[%s4 + $0x134] sm:$0xf]
    %v4360 = vld [vmem:[%s4 + $0x138] sm:$0xf]
    %v4361 = vld [vmem:[%s4 + $0x13c] sm:$0xf]
    %v4362 = vld [vmem:[%s4 + $0x140] sm:$0xf]
    %v4363 = vld [vmem:[%s4 + $0x144] sm:$0xf]
    %v4364 = vld [vmem:[%s4 + $0x148] sm:$0xf]
    %v4365 = vld [vmem:[%s4 + $0x14c] sm:$0xf]
    %v4366 = vld [vmem:[%s4 + $0x150] sm:$0xf]
    %v4367 = vld [vmem:[%s4 + $0x154] sm:$0xf]
    %v4368 = vld [vmem:[%s4 + $0x158] sm:$0xf]
    %v4369 = vld [vmem:[%s4 + $0x15c] sm:$0xf]
    %v4370 = vld [vmem:[%s4 + $0x160] sm:$0xf]
    %v4371 = vld [vmem:[%s4 + $0x164] sm:$0xf]
    %v4372 = vld [vmem:[%s4 + $0x168] sm:$0xf]
    %v4373 = vld [vmem:[%s4 + $0x16c] sm:$0xf]
    %v4374 = vld [vmem:[%s4 + $0x170] sm:$0xf]
    %v4375 = vld [vmem:[%s4 + $0x174] sm:$0xf]
    %v4376 = vld [vmem:[%s4 + $0x178] sm:$0xf]
    %v4377 = vld [vmem:[%s4 + $0x17c] sm:$0xf]
    %v4378 = vld [vmem:[%s4 + $0x180] sm:$0xf]
    %v4379 = vld [vmem:[%s4 + $0x184] sm:$0xf]
    %v4380 = vld [vmem:[%s4 + $0x188] sm:$0xf]
    %v4381 = vld [vmem:[%s4 + $0x18c] sm:$0xf]
    %v4382 = vld [vmem:[%s4 + $0x190] sm:$0xf]
    %v4383 = vld [vmem:[%s4 + $0x194] sm:$0xf]
    %v4384 = vld [vmem:[%s4 + $0x198] sm:$0xf]
    %v4385 = vld [vmem:[%s4 + $0x19c] sm:$0xf]
    %v4386 = vld [vmem:[%s4 + $0x1a0] sm:$0xf]
    %v4387 = vld [vmem:[%s4 + $0x1a4] sm:$0xf]
    %v4388 = vld [vmem:[%s4 + $0x1a8] sm:$0xf]
    %v4389 = vld [vmem:[%s4 + $0x1ac] sm:$0xf]
    %v4390 = vld [vmem:[%s4 + $0x1b0] sm:$0xf]
    %v4391 = vld [vmem:[%s4 + $0x1b4] sm:$0xf]
    %v4392 = vld [vmem:[%s4 + $0x1b8] sm:$0xf]
    %v4393 = vld [vmem:[%s4 + $0x1bc] sm:$0xf]
    %v4394 = vld [vmem:[%s4 + $0x1c0] sm:$0xf]
    %v4395 = vld [vmem:[%s4 + $0x1c4] sm:$0xf]
    %v4396 = vld [vmem:[%s4 + $0x1c8] sm:$0xf]
    %v4397 = vld [vmem:[%s4 + $0x1cc] sm:$0xf]
    %v4398 = vld [vmem:[%s4 + $0x1d0] sm:$0xf]
    %v4399 = vld [vmem:[%s4 + $0x1d4] sm:$0xf]
    %v4400 = vld [vmem:[%s4 + $0x1d8] sm:$0xf]
    %v4401 = vld [vmem:[%s4 + $0x1dc] sm:$0xf]
    %v4402 = vld [vmem:[%s4 + $0x1e0] sm:$0xf]
    %v4403 = vld [vmem:[%s4 + $0x1e4] sm:$0xf]
    %v4404 = vld [vmem:[%s4 + $0x1e8] sm:$0xf]
    %v4405 = vld [vmem:[%s4 + $0x1ec] sm:$0xf]
    %v4406 = vld [vmem:[%s4 + $0x1f0] sm:$0xf]
    %v4407 = vld [vmem:[%s4 + $0x1f4] sm:$0xf]
    %v4408 = vld [vmem:[%s4 + $0x1f8] sm:$0xf]
    %v4409 = vld [vmem:[%s4 + $0x1fc] sm:$0xf]
    %v4410 = vld [vmem:[%s4 + $0x200] sm:$0xf]
    %v4411 = vld [vmem:[%s4 + $0x204] sm:$0xf]
    %v4412 = vld [vmem:[%s4 + $0x208] sm:$0xf]
    %v4413 = vld [vmem:[%s4 + $0x20c] sm:$0xf]
    %v4414 = vld [vmem:[%s4 + $0x210] sm:$0xf]
    %v4415 = vld [vmem:[%s4 + $0x214] sm:$0xf]
    %v4416 = vld [vmem:[%s4 + $0x218] sm:$0xf]
    %v4417 = vld [vmem:[%s4 + $0x21c] sm:$0xf]
    %v4418 = vld [vmem:[%s4 + $0x220] sm:$0xf]
    %v4419 = vld [vmem:[%s4 + $0x224] sm:$0xf]
    %v4420 = vld [vmem:[%s4 + $0x228] sm:$0xf]
    %v4421 = vld [vmem:[%s4 + $0x22c] sm:$0xf]
    %v4422 = vld [vmem:[%s4 + $0x230] sm:$0xf]
    %v4423 = vld [vmem:[%s4 + $0x234] sm:$0xf]
    %v4424 = vld [vmem:[%s4 + $0x238] sm:$0xf]
    %v4425 = vld [vmem:[%s4 + $0x23c] sm:$0xf]
    %v4570 = vunpack.c.l.b16 %v4282
    %v4571 = vunpack.c.l.b16 %v4283
    %v4572 = vunpack.c.l.b16 %v4284
    %v4573 = vunpack.c.l.b16 %v4285
    %v4574 = vunpack.c.l.b16 %v4286
    %v4575 = vunpack.c.l.b16 %v4287
    %v4576 = vunpack.c.l.b16 %v4288
    %v4577 = vunpack.c.l.b16 %v4289
    %v4578 = vunpack.c.l.b16 %v4290
    %v4579 = vunpack.c.l.b16 %v4291
    %v4580 = vunpack.c.l.b16 %v4292
    %v4581 = vunpack.c.l.b16 %v4293
    %v4582 = vunpack.c.l.b16 %v4294
    %v4583 = vunpack.c.l.b16 %v4295
    %v4584 = vunpack.c.l.b16 %v4296
    %v4585 = vunpack.c.l.b16 %v4297
    %v4586 = vunpack.c.l.b16 %v4298
    %v4587 = vunpack.c.l.b16 %v4299
    %v4588 = vunpack.c.l.b16 %v4300
    %v4589 = vunpack.c.l.b16 %v4301
    %v4590 = vunpack.c.l.b16 %v4302
    %v4591 = vunpack.c.l.b16 %v4303
    %v4592 = vunpack.c.l.b16 %v4304
    %v4593 = vunpack.c.l.b16 %v4305
    %v4594 = vunpack.c.l.b16 %v4306
    %v4595 = vunpack.c.l.b16 %v4307
    %v4596 = vunpack.c.l.b16 %v4308
    %v4597 = vunpack.c.l.b16 %v4309
    %v4598 = vunpack.c.l.b16 %v4310
    %v4599 = vunpack.c.l.b16 %v4311
    %v4600 = vunpack.c.l.b16 %v4312
    %v4601 = vunpack.c.l.b16 %v4313
    %v4602 = vunpack.c.l.b16 %v4314
    %v4603 = vunpack.c.l.b16 %v4315
    %v4604 = vunpack.c.l.b16 %v4316
    %v4605 = vunpack.c.l.b16 %v4317
    %v4606 = vunpack.c.l.b16 %v4318
    %v4607 = vunpack.c.l.b16 %v4319
    %v4608 = vunpack.c.l.b16 %v4320
    %v4609 = vunpack.c.l.b16 %v4321
    %v4610 = vunpack.c.l.b16 %v4322
    %v4611 = vunpack.c.l.b16 %v4323
    %v4612 = vunpack.c.l.b16 %v4324
    %v4613 = vunpack.c.l.b16 %v4325
    %v4614 = vunpack.c.l.b16 %v4326
    %v4615 = vunpack.c.l.b16 %v4327
    %v4616 = vunpack.c.l.b16 %v4328
    %v4617 = vunpack.c.l.b16 %v4329
    %v4618 = vunpack.c.l.b16 %v4330
    %v4619 = vunpack.c.l.b16 %v4331
    %v4620 = vunpack.c.l.b16 %v4332
    %v4621 = vunpack.c.l.b16 %v4333
    %v4622 = vunpack.c.l.b16 %v4334
    %v4623 = vunpack.c.l.b16 %v4335
    %v4624 = vunpack.c.l.b16 %v4336
    %v4625 = vunpack.c.l.b16 %v4337
    %v4626 = vunpack.c.l.b16 %v4338
    %v4627 = vunpack.c.l.b16 %v4339
    %v4628 = vunpack.c.l.b16 %v4340
    %v4629 = vunpack.c.l.b16 %v4341
    %v4630 = vunpack.c.l.b16 %v4342
    %v4631 = vunpack.c.l.b16 %v4343
    %v4632 = vunpack.c.l.b16 %v4344
    %v4633 = vunpack.c.l.b16 %v4345
    %v4634 = vunpack.c.l.b16 %v4346
    %v4635 = vunpack.c.l.b16 %v4347
    %v4636 = vunpack.c.l.b16 %v4348
    %v4637 = vunpack.c.l.b16 %v4349
    %v4638 = vunpack.c.l.b16 %v4350
    %v4639 = vunpack.c.l.b16 %v4351
    %v4640 = vunpack.c.l.b16 %v4352
    %v4641 = vunpack.c.l.b16 %v4353
    %v4642 = vunpack.c.l.b16 %v4354
    %v4643 = vunpack.c.l.b16 %v4355
    %v4644 = vunpack.c.l.b16 %v4356
    %v4645 = vunpack.c.l.b16 %v4357
    %v4646 = vunpack.c.l.b16 %v4358
    %v4647 = vunpack.c.l.b16 %v4359
    %v4648 = vunpack.c.l.b16 %v4360
    %v4649 = vunpack.c.l.b16 %v4361
    %v4650 = vunpack.c.l.b16 %v4362
    %v4651 = vunpack.c.l.b16 %v4363
    %v4652 = vunpack.c.l.b16 %v4364
    %v4653 = vunpack.c.l.b16 %v4365
    %v4654 = vunpack.c.l.b16 %v4366
    %v4655 = vunpack.c.l.b16 %v4367
    %v4656 = vunpack.c.l.b16 %v4368
    %v4657 = vunpack.c.l.b16 %v4369
    %v4658 = vunpack.c.l.b16 %v4370
    %v4659 = vunpack.c.l.b16 %v4371
    %v4660 = vunpack.c.l.b16 %v4372
    %v4661 = vunpack.c.l.b16 %v4373
    %v4662 = vunpack.c.l.b16 %v4374
    %v4663 = vunpack.c.l.b16 %v4375
    %v4664 = vunpack.c.l.b16 %v4376
    %v4665 = vunpack.c.l.b16 %v4377
    %v4666 = vunpack.c.l.b16 %v4378
    %v4667 = vunpack.c.l.b16 %v4379
    %v4668 = vunpack.c.l.b16 %v4380
    %v4669 = vunpack.c.l.b16 %v4381
    %v4670 = vunpack.c.l.b16 %v4382
    %v4671 = vunpack.c.l.b16 %v4383
    %v4672 = vunpack.c.l.b16 %v4384
    %v4673 = vunpack.c.l.b16 %v4385
    %v4674 = vunpack.c.l.b16 %v4386
    %v4675 = vunpack.c.l.b16 %v4387
    %v4676 = vunpack.c.l.b16 %v4388
    %v4677 = vunpack.c.l.b16 %v4389
    %v4678 = vunpack.c.l.b16 %v4390
    %v4679 = vunpack.c.l.b16 %v4391
    %v4680 = vunpack.c.l.b16 %v4392
    %v4681 = vunpack.c.l.b16 %v4393
    %v4682 = vunpack.c.l.b16 %v4394
    %v4683 = vunpack.c.l.b16 %v4395
    %v4684 = vunpack.c.l.b16 %v4396
    %v4685 = vunpack.c.l.b16 %v4397
    %v4686 = vunpack.c.l.b16 %v4398
    %v4687 = vunpack.c.l.b16 %v4399
    %v4688 = vunpack.c.l.b16 %v4400
    %v4689 = vunpack.c.l.b16 %v4401
    %v4690 = vunpack.c.l.b16 %v4402
    %v4691 = vunpack.c.l.b16 %v4403
    %v4692 = vunpack.c.l.b16 %v4404
    %v4693 = vunpack.c.l.b16 %v4405
    %v4694 = vunpack.c.l.b16 %v4406
    %v4695 = vunpack.c.l.b16 %v4407
    %v4696 = vunpack.c.l.b16 %v4408
    %v4697 = vunpack.c.l.b16 %v4409
    %v4698 = vunpack.c.l.b16 %v4410
    %v4699 = vunpack.c.l.b16 %v4411
    %v4700 = vunpack.c.l.b16 %v4412
    %v4701 = vunpack.c.l.b16 %v4413
    %v4702 = vunpack.c.l.b16 %v4414
    %v4703 = vunpack.c.l.b16 %v4415
    %v4704 = vunpack.c.l.b16 %v4416
    %v4705 = vunpack.c.l.b16 %v4417
    %v4706 = vunpack.c.l.b16 %v4418
    %v4707 = vunpack.c.l.b16 %v4419
    %v4708 = vunpack.c.l.b16 %v4420
    %v4709 = vunpack.c.l.b16 %v4421
    %v4710 = vunpack.c.l.b16 %v4422
    %v4711 = vunpack.c.l.b16 %v4423
    %v4712 = vunpack.c.l.b16 %v4424
    %v4713 = vunpack.c.l.b16 %v4425
    %v4714 = vpack.c.b16 %v4571, %v4570
    %v4715 = vpack.c.b16 %v4573, %v4572
    %v4716 = vpack.c.b16 %v4575, %v4574
    %v4717 = vpack.c.b16 %v4577, %v4576
    %v4718 = vpack.c.b16 %v4579, %v4578
    %v4719 = vpack.c.b16 %v4581, %v4580
    %v4720 = vpack.c.b16 %v4583, %v4582
    %v4721 = vpack.c.b16 %v4585, %v4584
    %v4722 = vpack.c.b16 %v4587, %v4586
    %v4723 = vpack.c.b16 %v4589, %v4588
    %v4724 = vpack.c.b16 %v4591, %v4590
    %v4725 = vpack.c.b16 %v4593, %v4592
    %v4726 = vpack.c.b16 %v4595, %v4594
    %v4727 = vpack.c.b16 %v4597, %v4596
    %v4728 = vpack.c.b16 %v4599, %v4598
    %v4729 = vpack.c.b16 %v4601, %v4600
    %v4730 = vpack.c.b16 %v4603, %v4602
    %v4731 = vpack.c.b16 %v4605, %v4604
    %v4732 = vpack.c.b16 %v4607, %v4606
    %v4733 = vpack.c.b16 %v4609, %v4608
    %v4734 = vpack.c.b16 %v4611, %v4610
    %v4735 = vpack.c.b16 %v4613, %v4612
    %v4736 = vpack.c.b16 %v4615, %v4614
    %v4737 = vpack.c.b16 %v4617, %v4616
    %v4738 = vpack.c.b16 %v4619, %v4618
    %v4739 = vpack.c.b16 %v4621, %v4620
    %v4740 = vpack.c.b16 %v4623, %v4622
    %v4741 = vpack.c.b16 %v4625, %v4624
    %v4742 = vpack.c.b16 %v4627, %v4626
    %v4743 = vpack.c.b16 %v4629, %v4628
    %v4744 = vpack.c.b16 %v4631, %v4630
    %v4745 = vpack.c.b16 %v4633, %v4632
    %v4746 = vpack.c.b16 %v4635, %v4634
    %v4747 = vpack.c.b16 %v4637, %v4636
    %v4748 = vpack.c.b16 %v4639, %v4638
    %v4749 = vpack.c.b16 %v4641, %v4640
    %v4750 = vpack.c.b16 %v4643, %v4642
    %v4751 = vpack.c.b16 %v4645, %v4644
    %v4752 = vpack.c.b16 %v4647, %v4646
    %v4753 = vpack.c.b16 %v4649, %v4648
    %v4754 = vpack.c.b16 %v4651, %v4650
    %v4755 = vpack.c.b16 %v4653, %v4652
    %v4756 = vpack.c.b16 %v4655, %v4654
    %v4757 = vpack.c.b16 %v4657, %v4656
    %v4758 = vpack.c.b16 %v4659, %v4658
    %v4759 = vpack.c.b16 %v4661, %v4660
    %v4760 = vpack.c.b16 %v4663, %v4662
    %v4761 = vpack.c.b16 %v4665, %v4664
    %v4762 = vpack.c.b16 %v4667, %v4666
    %v4763 = vpack.c.b16 %v4669, %v4668
    %v4764 = vpack.c.b16 %v4671, %v4670
    %v4765 = vpack.c.b16 %v4673, %v4672
    %v4766 = vpack.c.b16 %v4675, %v4674
    %v4767 = vpack.c.b16 %v4677, %v4676
    %v4768 = vpack.c.b16 %v4679, %v4678
    %v4769 = vpack.c.b16 %v4681, %v4680
    %v4770 = vpack.c.b16 %v4683, %v4682
    %v4771 = vpack.c.b16 %v4685, %v4684
    %v4772 = vpack.c.b16 %v4687, %v4686
    %v4773 = vpack.c.b16 %v4689, %v4688
    %v4774 = vpack.c.b16 %v4691, %v4690
    %v4775 = vpack.c.b16 %v4693, %v4692
    %v4776 = vpack.c.b16 %v4695, %v4694
    %v4777 = vpack.c.b16 %v4697, %v4696
    %v4778 = vpack.c.b16 %v4699, %v4698
    %v4779 = vpack.c.b16 %v4701, %v4700
    %v4780 = vpack.c.b16 %v4703, %v4702
    %v4781 = vpack.c.b16 %v4705, %v4704
    %v4782 = vpack.c.b16 %v4707, %v4706
    %v4783 = vpack.c.b16 %v4709, %v4708
    %v4784 = vpack.c.b16 %v4711, %v4710
    %v4785 = vpack.c.b16 %v4713, %v4712
    %4858 = vmatprep.subr.bf16.mxu0 0
    %4859 = vmatpush1.bf16.msra.mxu0 %v4714
    %4860 = vmatprep.subr.bf16.mxu0 0
    %4861 = vmatpush1.bf16.msra.mxu0 %v4715
    %4862 = vmatprep.subr.bf16.mxu0 0
    %4863 = vmatpush1.bf16.msra.mxu0 %v4716
    %4864 = vmatprep.subr.bf16.mxu0 0
    %4865 = vmatpush1.bf16.msra.mxu0 %v4717
    %4866 = vmatprep.subr.bf16.mxu0 0
    %4867 = vmatpush1.bf16.msra.mxu0 %v4718
    %4868 = vmatprep.subr.bf16.mxu0 0
    %4869 = vmatpush1.bf16.msra.mxu0 %v4719
    %4870 = vmatprep.subr.bf16.mxu0 0
    %4871 = vmatpush1.bf16.msra.mxu0 %v4720
    %4872 = vmatprep.subr.bf16.mxu0 0
    %4873 = vmatpush1.bf16.msra.mxu0 %v4721
    %4874 = vmatprep.subr.bf16.mxu0 0
    %4875 = vmatpush1.bf16.msra.mxu0 %v4722
    %4876 = vmatprep.subr.bf16.mxu0 0
    %4877 = vmatpush1.bf16.msra.mxu0 %v4723
    %4878 = vmatprep.subr.bf16.mxu0 0
    %4879 = vmatpush1.bf16.msra.mxu0 %v4724
    %4880 = vmatprep.subr.bf16.mxu0 0
    %4881 = vmatpush1.bf16.msra.mxu0 %v4725
    %4882 = vmatprep.subr.bf16.mxu0 0
    %4883 = vmatpush1.bf16.msra.mxu0 %v4726
    %4884 = vmatprep.subr.bf16.mxu0 0
    %4885 = vmatpush1.bf16.msra.mxu0 %v4727
    %4886 = vmatprep.subr.bf16.mxu0 0
    %4887 = vmatpush1.bf16.msra.mxu0 %v4728
    %4888 = vmatprep.subr.bf16.mxu0 0
    %4889 = vmatpush1.bf16.msra.mxu0 %v4729
    %4890 = vmatprep.mubr.bf16.mxu0 %v3914
    %4891 = vmatmul.mubr.bf16.gmra.mrb[0].mxu0 %v3562
    %v4892 = vpop.f32.mrb[0].mxu0
    %v4893 = vadd.f32 0.0, %v4892
    %v4894 = vpop.f32.mrb[0].mxu0
    %v4895 = vpop.f32.mrb[0].mxu0
    %v4896 = vadd.f32 0.0, %v4895
    %v4897 = vpop.f32.mrb[0].mxu0
    %4898 = vmatprep.mubr.bf16.mxu0 %v3915
    %4899 = vmatmul.mubr.bf16.gmra.mrb[0].mxu0 %v3563
    %v4900 = vpop.f32.mrb[0].mxu0
    %v4901 = vadd.f32 0.0, %v4900
    %v4902 = vpop.f32.mrb[0].mxu0
    %v4903 = vpop.f32.mrb[0].mxu0
    %v4904 = vadd.f32 0.0, %v4903
    %v4905 = vpop.f32.mrb[0].mxu0
    %4906 = vmatprep.mubr.bf16.mxu0 %v3916
    %4907 = vmatmul.mubr.bf16.gmra.mrb[0].mxu0 %v3564
    %v4908 = vpop.f32.mrb[0].mxu0
    %v4909 = vadd.f32 0.0, %v4908
    %v4910 = vpop.f32.mrb[0].mxu0
    %v4911 = vpop.f32.mrb[0].mxu0
    %v4912 = vadd.f32 0.0, %v4911
    %v4913 = vpop.f32.mrb[0].mxu0
    %4914 = vmatprep.mubr.bf16.mxu0 %v3917
    %4915 = vmatmul.mubr.bf16.gmra.mrb[0].mxu0 %v3565
    %v4916 = vpop.f32.mrb[0].mxu0
    %v4917 = vadd.f32 0.0, %v4916
    %v4918 = vpop.f32.mrb[0].mxu0
    %v4919 = vpop.f32.mrb[0].mxu0
    %v4920 = vadd.f32 0.0, %v4919
    %v4921 = vpop.f32.mrb[0].mxu0
    %4922 = vmatprep.mubr.bf16.mxu0 %v3918
    %4923 = vmatmul.mubr.bf16.gmra.mrb[0].mxu0 %v3566
    %v4924 = vpop.f32.mrb[0].mxu0
    %v4925 = vadd.f32 0.0, %v4924
    %v4926 = vpop.f32.mrb[0].mxu0
    %v4927 = vpop.f32.mrb[0].mxu0
    %v4928 = vadd.f32 0.0, %v4927
    %v4929 = vpop.f32.mrb[0].mxu0
    %4930 = vmatprep.mubr.bf16.mxu0 %v3919
    %4931 = vmatmul.mubr.bf16.gmra.mrb[0].mxu0 %v3567
    %v4932 = vpop.f32.mrb[0].mxu0
    %v4933 = vadd.f32 0.0, %v4932
    %v4934 = vpop.f32.mrb[0].mxu0
    %v4935 = vpop.f32.mrb[0].mxu0
    %v4936 = vadd.f32 0.0, %v4935
    %v4937 = vpop.f32.mrb[0].mxu0
    %4938 = vmatprep.mubr.bf16.mxu0 %v3920
    %4939 = vmatmul.mubr.bf16.gmra.mrb[0].mxu0 %v3568
    %v4940 = vpop.f32.mrb[0].mxu0
    %v4941 = vadd.f32 0.0, %v4940
    %v4942 = vpop.f32.mrb[0].mxu0
    %v4943 = vpop.f32.mrb[0].mxu0
    %v4944 = vadd.f32 0.0, %v4943
    %v4945 = vpop.f32.mrb[0].mxu0
    %4946 = vmatprep.mubr.bf16.mxu0 %v3921
    %4947 = vmatmul.mubr.bf16.gmra.mrb[0].mxu0 %v3569
    %v4948 = vpop.f32.mrb[0].mxu0
    %v4949 = vadd.f32 0.0, %v4948
    %v4950 = vpop.f32.mrb[0].mxu0
    %v4951 = vpop.f32.mrb[0].mxu0
    %v4952 = vadd.f32 0.0, %v4951
    %v4953 = vpop.f32.mrb[0].mxu0
    %4954 = vmatprep.mubr.bf16.mxu0 %v3922
    %4955 = vmatmul.mubr.bf16.gmra.mrb[0].mxu0 %v3570
    %v4956 = vpop.f32.mrb[0].mxu0
    %v4957 = vadd.f32 0.0, %v4956
    %v4958 = vpop.f32.mrb[0].mxu0
    %v4959 = vpop.f32.mrb[0].mxu0
    %v4960 = vadd.f32 0.0, %v4959
    %v4961 = vpop.f32.mrb[0].mxu0
    %4962 = vmatprep.mubr.bf16.mxu0 %v3923
    %4963 = vmatmul.mubr.bf16.gmra.mrb[0].mxu0 %v3571
    %v4964 = vpop.f32.mrb[0].mxu0
    %v4965 = vadd.f32 0.0, %v4964
    %v4966 = vpop.f32.mrb[0].mxu0
    %v4967 = vpop.f32.mrb[0].mxu0
    %v4968 = vadd.f32 0.0, %v4967
    %v4969 = vpop.f32.mrb[0].mxu0
    %4970 = vmatprep.mubr.bf16.mxu0 %v3924
    %4971 = vmatmul.mubr.bf16.gmra.mrb[0].mxu0 %v3572
    %v4972 = vpop.f32.mrb[0].mxu0
    %v4973 = vadd.f32 0.0, %v4972
    %v4974 = vpop.f32.mrb[0].mxu0
    %v4975 = vpop.f32.mrb[0].mxu0
    %v4976 = vadd.f32 0.0, %v4975
    %v4977 = vpop.f32.mrb[0].mxu0
    %4978 = vmatprep.mubr.bf16.mxu0 %v3925
    %4979 = vmatmul.mubr.bf16.gmra.mrb[0].mxu0 %v3573
    %v4980 = vpop.f32.mrb[0].mxu0
    %v4981 = vadd.f32 0.0, %v4980
    %v4982 = vpop.f32.mrb[0].mxu0
    %v4983 = vpop.f32.mrb[0].mxu0
    %v4984 = vadd.f32 0.0, %v4983
    %v4985 = vpop.f32.mrb[0].mxu0
    %4986 = vmatprep.mubr.bf16.mxu0 %v3926
    %4987 = vmatmul.mubr.bf16.gmra.mrb[0].mxu0 %v3574
    %v4988 = vpop.f32.mrb[0].mxu0
    %v4989 = vadd.f32 0.0, %v4988
    %v4990 = vpop.f32.mrb[0].mxu0
    %v4991 = vpop.f32.mrb[0].mxu0
    %v4992 = vadd.f32 0.0, %v4991
    %v4993 = vpop.f32.mrb[0].mxu0
    %4994 = vmatprep.mubr.bf16.mxu0 %v3927
    %4995 = vmatmul.mubr.bf16.gmra.mrb[0].mxu0 %v3575
    %v4996 = vpop.f32.mrb[0].mxu0
    %v4997 = vadd.f32 0.0, %v4996
    %v4998 = vpop.f32.mrb[0].mxu0
    %v4999 = vpop.f32.mrb[0].mxu0
    %v5000 = vadd.f32 0.0, %v4999
    %v5001 = vpop.f32.mrb[0].mxu0
    %5002 = vmatprep.mubr.bf16.mxu0 %v3928
    %5003 = vmatmul.mubr.bf16.gmra.mrb[0].mxu0 %v3576
    %v5004 = vpop.f32.mrb[0].mxu0
    %v5005 = vadd.f32 0.0, %v5004
    %v5006 = vpop.f32.mrb[0].mxu0
    %v5007 = vpop.f32.mrb[0].mxu0
    %v5008 = vadd.f32 0.0, %v5007
    %v5009 = vpop.f32.mrb[0].mxu0
    %5010 = vmatprep.mubr.bf16.mxu0 %v3929
    %5011 = vmatmul.mubr.bf16.gmra.mrb[0].mxu0 %v3577
    %v5012 = vpop.f32.mrb[0].mxu0
    %v5013 = vadd.f32 0.0, %v5012
    %v5014 = vpop.f32.mrb[0].mxu0
    %v5015 = vpop.f32.mrb[0].mxu0
    %v5016 = vadd.f32 0.0, %v5015
    %v5017 = vpop.f32.mrb[0].mxu0
    %5018 = vmatprep.mubr.bf16.mxu0 %v3930
    %5019 = vmatmul.mubr.bf16.gmra.mrb[0].mxu0 %v3578
    %v5020 = vpop.f32.mrb[0].mxu0
    %v5021 = vadd.f32 0.0, %v5020
    %v5022 = vpop.f32.mrb[0].mxu0
    %v5023 = vpop.f32.mrb[0].mxu0
    %v5024 = vadd.f32 0.0, %v5023
    %v5025 = vpop.f32.mrb[0].mxu0
    %5026 = vmatprep.mubr.bf16.mxu0 %v3931
    %5027 = vmatmul.mubr.bf16.gmra.mrb[0].mxu0 %v3579
    %v5028 = vpop.f32.mrb[0].mxu0
    %v5029 = vadd.f32 0.0, %v5028
    %v5030 = vpop.f32.mrb[0].mxu0
    %v5031 = vpop.f32.mrb[0].mxu0
    %v5032 = vadd.f32 0.0, %v5031
    %v5033 = vpop.f32.mrb[0].mxu0
    %5034 = vmatprep.mubr.bf16.mxu0 %v3932
    %5035 = vmatmul.mubr.bf16.gmra.mrb[0].mxu0 %v3580
    %v5036 = vpop.f32.mrb[0].mxu0
    %v5037 = vadd.f32 0.0, %v5036
    %v5038 = vpop.f32.mrb[0].mxu0
    %v5039 = vpop.f32.mrb[0].mxu0
    %v5040 = vadd.f32 0.0, %v5039
    %v5041 = vpop.f32.mrb[0].mxu0
    %5042 = vmatprep.mubr.bf16.mxu0 %v3933
    %5043 = vmatmul.mubr.bf16.gmra.mrb[0].mxu0 %v3581
    %v5044 = vpop.f32.mrb[0].mxu0
    %v5045 = vadd.f32 0.0, %v5044
    %v5046 = vpop.f32.mrb[0].mxu0
    %v5047 = vpop.f32.mrb[0].mxu0
    %v5048 = vadd.f32 0.0, %v5047
    %v5049 = vpop.f32.mrb[0].mxu0
    %5050 = vmatprep.mubr.bf16.mxu0 %v3934
    %5051 = vmatmul.mubr.bf16.gmra.mrb[0].mxu0 %v3582
    %v5052 = vpop.f32.mrb[0].mxu0
    %v5053 = vadd.f32 0.0, %v5052
    %v5054 = vpop.f32.mrb[0].mxu0
    %v5055 = vpop.f32.mrb[0].mxu0
    %v5056 = vadd.f32 0.0, %v5055
    %v5057 = vpop.f32.mrb[0].mxu0
    %5058 = vmatprep.mubr.bf16.mxu0 %v3935
    %5059 = vmatmul.mubr.bf16.gmra.mrb[0].mxu0 %v3583
    %v5060 = vpop.f32.mrb[0].mxu0
    %v5061 = vadd.f32 0.0, %v5060
    %v5062 = vpop.f32.mrb[0].mxu0
    %v5063 = vpop.f32.mrb[0].mxu0
    %v5064 = vadd.f32 0.0, %v5063
    %v5065 = vpop.f32.mrb[0].mxu0
    %5066 = vmatprep.mubr.bf16.mxu0 %v3936
    %5067 = vmatmul.mubr.bf16.gmra.mrb[0].mxu0 %v3584
    %v5068 = vpop.f32.mrb[0].mxu0
    %v5069 = vadd.f32 0.0, %v5068
    %v5070 = vpop.f32.mrb[0].mxu0
    %v5071 = vpop.f32.mrb[0].mxu0
    %v5072 = vadd.f32 0.0, %v5071
    %v5073 = vpop.f32.mrb[0].mxu0
    %5074 = vmatprep.mubr.bf16.mxu0 %v3937
    %5075 = vmatmul.mubr.bf16.gmra.mrb[0].mxu0 %v3585
    %v5076 = vpop.f32.mrb[0].mxu0
    %v5077 = vadd.f32 0.0, %v5076
    %v5078 = vpop.f32.mrb[0].mxu0
    %v5079 = vpop.f32.mrb[0].mxu0
    %v5080 = vadd.f32 0.0, %v5079
    %v5081 = vpop.f32.mrb[0].mxu0
    %5082 = vmatprep.mubr.bf16.mxu0 %v3938
    %5083 = vmatmul.mubr.bf16.gmra.mrb[0].mxu0 %v3586
    %v5084 = vpop.f32.mrb[0].mxu0
    %v5085 = vadd.f32 0.0, %v5084
    %v5086 = vpop.f32.mrb[0].mxu0
    %v5087 = vpop.f32.mrb[0].mxu0
    %v5088 = vadd.f32 0.0, %v5087
    %v5089 = vpop.f32.mrb[0].mxu0
    %5090 = vmatprep.mubr.bf16.mxu0 %v3939
    %5091 = vmatmul.mubr.bf16.gmra.mrb[0].mxu0 %v3587
    %v5092 = vpop.f32.mrb[0].mxu0
    %v5093 = vadd.f32 0.0, %v5092
    %v5094 = vpop.f32.mrb[0].mxu0
    %v5095 = vpop.f32.mrb[0].mxu0
    %v5096 = vadd.f32 0.0, %v5095
    %v5097 = vpop.f32.mrb[0].mxu0
    %5098 = vmatprep.mubr.bf16.mxu0 %v3940
    %5099 = vmatmul.mubr.bf16.gmra.mrb[0].mxu0 %v3588
    %v5100 = vpop.f32.mrb[0].mxu0
    %v5101 = vadd.f32 0.0, %v5100
    %v5102 = vpop.f32.mrb[0].mxu0
    %v5103 = vpop.f32.mrb[0].mxu0
    %v5104 = vadd.f32 0.0, %v5103
    %v5105 = vpop.f32.mrb[0].mxu0
    %5106 = vmatprep.mubr.bf16.mxu0 %v3941
    %5107 = vmatmul.mubr.bf16.gmra.mrb[0].mxu0 %v3589
    %v5108 = vpop.f32.mrb[0].mxu0
    %v5109 = vadd.f32 0.0, %v5108
    %v5110 = vpop.f32.mrb[0].mxu0
    %v5111 = vpop.f32.mrb[0].mxu0
    %v5112 = vadd.f32 0.0, %v5111
    %v5113 = vpop.f32.mrb[0].mxu0
    %5114 = vmatprep.mubr.bf16.mxu0 %v3942
    %5115 = vmatmul.mubr.bf16.gmra.mrb[0].mxu0 %v3590
    %v5116 = vpop.f32.mrb[0].mxu0
    %v5117 = vadd.f32 0.0, %v5116
    %v5118 = vpop.f32.mrb[0].mxu0
    %v5119 = vpop.f32.mrb[0].mxu0
    %v5120 = vadd.f32 0.0, %v5119
    %v5121 = vpop.f32.mrb[0].mxu0
    %5122 = vmatprep.mubr.bf16.mxu0 %v3943
    %5123 = vmatmul.mubr.bf16.gmra.mrb[0].mxu0 %v3591
    %v5124 = vpop.f32.mrb[0].mxu0
    %v5125 = vadd.f32 0.0, %v5124
    %v5126 = vpop.f32.mrb[0].mxu0
    %v5127 = vpop.f32.mrb[0].mxu0
    %v5128 = vadd.f32 0.0, %v5127
    %v5129 = vpop.f32.mrb[0].mxu0
    %5130 = vmatprep.mubr.bf16.mxu0 %v3944
    %5131 = vmatmul.mubr.bf16.gmra.mrb[0].mxu0 %v3592
    %v5132 = vpop.f32.mrb[0].mxu0
    %v5133 = vadd.f32 0.0, %v5132
    %v5134 = vpop.f32.mrb[0].mxu0
    %v5135 = vpop.f32.mrb[0].mxu0
    %v5136 = vadd.f32 0.0, %v5135
    %v5137 = vpop.f32.mrb[0].mxu0
    %5138 = vmatprep.mubr.bf16.mxu0 %v3945
    %5139 = vmatmul.mubr.bf16.gmra.mrb[0].mxu0 %v3593
    %v5140 = vpop.f32.mrb[0].mxu0
    %v5141 = vadd.f32 0.0, %v5140
    %v5142 = vpop.f32.mrb[0].mxu0
    %v5143 = vpop.f32.mrb[0].mxu0
    %v5144 = vadd.f32 0.0, %v5143
    %v5145 = vpop.f32.mrb[0].mxu0
    %5146 = vdwg.mxu0
    %5147 = vmatprep.subr.bf16.mxu0 0
    %5148 = vmatpush1.bf16.msra.mxu0 %v4730
    %5149 = vmatprep.subr.bf16.mxu0 0
    %5150 = vmatpush1.bf16.msra.mxu0 %v4731
    %5151 = vmatprep.subr.bf16.mxu0 0
    %5152 = vmatpush1.bf16.msra.mxu0 %v4732
    %5153 = vmatprep.subr.bf16.mxu0 0
    %5154 = vmatpush1.bf16.msra.mxu0 %v4733
    %5155 = vmatprep.subr.bf16.mxu0 0
    %5156 = vmatpush1.bf16.msra.mxu0 %v4734
    %5157 = vmatprep.subr.bf16.mxu0 0
    %5158 = vmatpush1.bf16.msra.mxu0 %v4735
    %5159 = vmatprep.subr.bf16.mxu0 0
    %5160 = vmatpush1.bf16.msra.mxu0 %v4736
    %5161 = vmatprep.subr.bf16.mxu0 0
    %5162 = vmatpush1.bf16.msra.mxu0 %v4737
    %5163 = vmatprep.subr.bf16.mxu0 0
    %5164 = vmatpush1.bf16.msra.mxu0 %v4738
    %5165 = vmatprep.subr.bf16.mxu0 0
    %5166 = vmatpush1.bf16.msra.mxu0 %v4739
    %5167 = vmatprep.subr.bf16.mxu0 0
    %5168 = vmatpush1.bf16.msra.mxu0 %v4740
    %5169 = vmatprep.subr.bf16.mxu0 0
    %5170 = vmatpush1.bf16.msra.mxu0 %v4741
    %5171 = vmatprep.subr.bf16.mxu0 0
    %5172 = vmatpush1.bf16.msra.mxu0 %v4742
    %5173 = vmatprep.subr.bf16.mxu0 0
    %5174 = vmatpush1.bf16.msra.mxu0 %v4743
    %5175 = vmatprep.subr.bf16.mxu0 0
    %5176 = vmatpush1.bf16.msra.mxu0 %v4744
    %5177 = vmatprep.subr.bf16.mxu0 0
    %5178 = vmatpush1.bf16.msra.mxu0 %v4745
    %5179 = vmatprep.mubr.bf16.mxu0 %v3563
    %5180 = vmatmul.mubr.bf16.gmra.mrb[0].mxu0 %v4170
    %v5181 = vpop.f32.mrb[0].mxu0
    %v5182 = vadd.f32 %v4893, %v5181
    %v5183 = vpop.f32.mrb[0].mxu0
    %v5184 = vpop.f32.mrb[0].mxu0
    %v5185 = vadd.f32 %v4896, %v5184
    %v5186 = vpop.f32.mrb[0].mxu0
    %5187 = vmatprep.mubr.bf16.mxu0 %v3564
    %5188 = vmatmul.mubr.bf16.gmra.mrb[0].mxu0 %v4171
    %v5189 = vpop.f32.mrb[0].mxu0
    %v5190 = vadd.f32 %v4901, %v5189
    %v5191 = vpop.f32.mrb[0].mxu0
    %v5192 = vpop.f32.mrb[0].mxu0
    %v5193 = vadd.f32 %v4904, %v5192
    %v5194 = vpop.f32.mrb[0].mxu0
    %5195 = vmatprep.mubr.bf16.mxu0 %v3565
    %5196 = vmatmul.mubr.bf16.gmra.mrb[0].mxu0 %v4172
    %v5197 = vpop.f32.mrb[0].mxu0
    %v5198 = vadd.f32 %v4909, %v5197
    %v5199 = vpop.f32.mrb[0].mxu0
    %v5200 = vpop.f32.mrb[0].mxu0
    %v5201 = vadd.f32 %v4912, %v5200
    %v5202 = vpop.f32.mrb[0].mxu0
    %5203 = vmatprep.mubr.bf16.mxu0 %v3566
    %5204 = vmatmul.mubr.bf16.gmra.mrb[0].mxu0 %v4173
    %v5205 = vpop.f32.mrb[0].mxu0
    %v5206 = vadd.f32 %v4917, %v5205
    %v5207 = vpop.f32.mrb[0].mxu0
    %v5208 = vpop.f32.mrb[0].mxu0
    %v5209 = vadd.f32 %v4920, %v5208
    %v5210 = vpop.f32.mrb[0].mxu0
    %5211 = vmatprep.mubr.bf16.mxu0 %v3567
    %5212 = vmatmul.mubr.bf16.gmra.mrb[0].mxu0 %v4174
    %v5213 = vpop.f32.mrb[0].mxu0
    %v5214 = vadd.f32 %v4925, %v5213
    %v5215 = vpop.f32.mrb[0].mxu0
    %v5216 = vpop.f32.mrb[0].mxu0
    %v5217 = vadd.f32 %v4928, %v5216
    %v5218 = vpop.f32.mrb[0].mxu0
    %5219 = vmatprep.mubr.bf16.mxu0 %v3568
    %5220 = vmatmul.mubr.bf16.gmra.mrb[0].mxu0 %v4175
    %v5221 = vpop.f32.mrb[0].mxu0
    %v5222 = vadd.f32 %v4933, %v5221
    %v5223 = vpop.f32.mrb[0].mxu0
    %v5224 = vpop.f32.mrb[0].mxu0
    %v5225 = vadd.f32 %v4936, %v5224
    %v5226 = vpop.f32.mrb[0].mxu0
    %5227 = vmatprep.mubr.bf16.mxu0 %v3569
    %5228 = vmatmul.mubr.bf16.gmra.mrb[0].mxu0 %v4176
    %v5229 = vpop.f32.mrb[0].mxu0
    %v5230 = vadd.f32 %v4941, %v5229
    %v5231 = vpop.f32.mrb[0].mxu0
    %v5232 = vpop.f32.mrb[0].mxu0
    %v5233 = vadd.f32 %v4944, %v5232
    %v5234 = vpop.f32.mrb[0].mxu0
    %5235 = vmatprep.mubr.bf16.mxu0 %v3570
    %5236 = vmatmul.mubr.bf16.gmra.mrb[0].mxu0 %v4177
    %v5237 = vpop.f32.mrb[0].mxu0
    %v5238 = vadd.f32 %v4949, %v5237
    %v5239 = vpop.f32.mrb[0].mxu0
    %v5240 = vpop.f32.mrb[0].mxu0
    %v5241 = vadd.f32 %v4952, %v5240
    %v5242 = vpop.f32.mrb[0].mxu0
    %5243 = vmatprep.mubr.bf16.mxu0 %v3571
    %5244 = vmatmul.mubr.bf16.gmra.mrb[0].mxu0 %v4178
    %v5245 = vpop.f32.mrb[0].mxu0
    %v5246 = vadd.f32 %v4957, %v5245
    %v5247 = vpop.f32.mrb[0].mxu0
    %v5248 = vpop.f32.mrb[0].mxu0
    %v5249 = vadd.f32 %v4960, %v5248
    %v5250 = vpop.f32.mrb[0].mxu0
    %5251 = vmatprep.mubr.bf16.mxu0 %v3572
    %5252 = vmatmul.mubr.bf16.gmra.mrb[0].mxu0 %v4179
    %v5253 = vpop.f32.mrb[0].mxu0
    %v5254 = vadd.f32 %v4965, %v5253
    %v5255 = vpop.f32.mrb[0].mxu0
    %v5256 = vpop.f32.mrb[0].mxu0
    %v5257 = vadd.f32 %v4968, %v5256
    %v5258 = vpop.f32.mrb[0].mxu0
    %5259 = vmatprep.mubr.bf16.mxu0 %v3573
    %5260 = vmatmul.mubr.bf16.gmra.mrb[0].mxu0 %v4180
    %v5261 = vpop.f32.mrb[0].mxu0
    %v5262 = vadd.f32 %v4973, %v5261
    %v5263 = vpop.f32.mrb[0].mxu0
    %v5264 = vpop.f32.mrb[0].mxu0
    %v5265 = vadd.f32 %v4976, %v5264
    %v5266 = vpop.f32.mrb[0].mxu0
    %5267 = vmatprep.mubr.bf16.mxu0 %v3574
    %5268 = vmatmul.mubr.bf16.gmra.mrb[0].mxu0 %v4181
    %v5269 = vpop.f32.mrb[0].mxu0
    %v5270 = vadd.f32 %v4981, %v5269
    %v5271 = vpop.f32.mrb[0].mxu0
    %v5272 = vpop.f32.mrb[0].mxu0
    %v5273 = vadd.f32 %v4984, %v5272
    %v5274 = vpop.f32.mrb[0].mxu0
    %5275 = vmatprep.mubr.bf16.mxu0 %v3575
    %5276 = vmatmul.mubr.bf16.gmra.mrb[0].mxu0 %v4182
    %v5277 = vpop.f32.mrb[0].mxu0
    %v5278 = vadd.f32 %v4989, %v5277
    %v5279 = vpop.f32.mrb[0].mxu0
    %v5280 = vpop.f32.mrb[0].mxu0
    %v5281 = vadd.f32 %v4992, %v5280
    %v5282 = vpop.f32.mrb[0].mxu0
    %5283 = vmatprep.mubr.bf16.mxu0 %v3576
    %5284 = vmatmul.mubr.bf16.gmra.mrb[0].mxu0 %v4183
    %v5285 = vpop.f32.mrb[0].mxu0
    %v5286 = vadd.f32 %v4997, %v5285
    %v5287 = vpop.f32.mrb[0].mxu0
    %v5288 = vpop.f32.mrb[0].mxu0
    %v5289 = vadd.f32 %v5000, %v5288
    %v5290 = vpop.f32.mrb[0].mxu0
    %5291 = vmatprep.mubr.bf16.mxu0 %v3577
    %5292 = vmatmul.mubr.bf16.gmra.mrb[0].mxu0 %v4184
    %v5293 = vpop.f32.mrb[0].mxu0
    %v5294 = vadd.f32 %v5005, %v5293
    %v5295 = vpop.f32.mrb[0].mxu0
    %v5296 = vpop.f32.mrb[0].mxu0
    %v5297 = vadd.f32 %v5008, %v5296
    %v5298 = vpop.f32.mrb[0].mxu0
    %5299 = vmatprep.mubr.bf16.mxu0 %v4202
    %5300 = vmatmul.mubr.bf16.gmra.mrb[0].mxu0 %v4185
    %v5301 = vpop.f32.mrb[0].mxu0
    %v5302 = vadd.f32 %v5013, %v5301
    %v5303 = vpop.f32.mrb[0].mxu0
    %v5304 = vpop.f32.mrb[0].mxu0
    %v5305 = vadd.f32 %v5016, %v5304
    %v5306 = vpop.f32.mrb[0].mxu0
    %5307 = vmatprep.mubr.bf16.mxu0 %v3579
    %5308 = vmatmul.mubr.bf16.gmra.mrb[0].mxu0 %v4186
    %v5309 = vpop.f32.mrb[0].mxu0
    %v5310 = vadd.f32 %v5021, %v5309
    %v5311 = vpop.f32.mrb[0].mxu0
    %v5312 = vpop.f32.mrb[0].mxu0
    %v5313 = vadd.f32 %v5024, %v5312
    %v5314 = vpop.f32.mrb[0].mxu0
    %5315 = vmatprep.mubr.bf16.mxu0 %v3580
    %5316 = vmatmul.mubr.bf16.gmra.mrb[0].mxu0 %v4187
    %v5317 = vpop.f32.mrb[0].mxu0
    %v5318 = vadd.f32 %v5029, %v5317
    %v5319 = vpop.f32.mrb[0].mxu0
    %v5320 = vpop.f32.mrb[0].mxu0
    %v5321 = vadd.f32 %v5032, %v5320
    %v5322 = vpop.f32.mrb[0].mxu0
    %5323 = vmatprep.mubr.bf16.mxu0 %v3581
    %5324 = vmatmul.mubr.bf16.gmra.mrb[0].mxu0 %v4188
    %v5325 = vpop.f32.mrb[0].mxu0
    %v5326 = vadd.f32 %v5037, %v5325
    %v5327 = vpop.f32.mrb[0].mxu0
    %v5328 = vpop.f32.mrb[0].mxu0
    %v5329 = vadd.f32 %v5040, %v5328
    %v5330 = vpop.f32.mrb[0].mxu0
    %5331 = vmatprep.mubr.bf16.mxu0 %v3582
    %5332 = vmatmul.mubr.bf16.gmra.mrb[0].mxu0 %v4189
    %v5333 = vpop.f32.mrb[0].mxu0
    %v5334 = vadd.f32 %v5045, %v5333
    %v5335 = vpop.f32.mrb[0].mxu0
    %v5336 = vpop.f32.mrb[0].mxu0
    %v5337 = vadd.f32 %v5048, %v5336
    %v5338 = vpop.f32.mrb[0].mxu0
    %5339 = vmatprep.mubr.bf16.mxu0 %v3583
    %5340 = vmatmul.mubr.bf16.gmra.mrb[0].mxu0 %v4190
    %v5341 = vpop.f32.mrb[0].mxu0
    %v5342 = vadd.f32 %v5053, %v5341
    %v5343 = vpop.f32.mrb[0].mxu0
    %v5344 = vpop.f32.mrb[0].mxu0
    %v5345 = vadd.f32 %v5056, %v5344
    %v5346 = vpop.f32.mrb[0].mxu0
    %5347 = vmatprep.mubr.bf16.mxu0 %v3584
    %5348 = vmatmul.mubr.bf16.gmra.mrb[0].mxu0 %v4191
    %v5349 = vpop.f32.mrb[0].mxu0
    %v5350 = vadd.f32 %v5061, %v5349
    %v5351 = vpop.f32.mrb[0].mxu0
    %v5352 = vpop.f32.mrb[0].mxu0
    %v5353 = vadd.f32 %v5064, %v5352
    %v5354 = vpop.f32.mrb[0].mxu0
    %5355 = vmatprep.mubr.bf16.mxu0 %v3585
    %5356 = vmatmul.mubr.bf16.gmra.mrb[0].mxu0 %v4192
    %v5357 = vpop.f32.mrb[0].mxu0
    %v5358 = vadd.f32 %v5069, %v5357
    %v5359 = vpop.f32.mrb[0].mxu0
    %v5360 = vpop.f32.mrb[0].mxu0
    %v5361 = vadd.f32 %v5072, %v5360
    %v5362 = vpop.f32.mrb[0].mxu0
    %5363 = vmatprep.mubr.bf16.mxu0 %v3586
    %5364 = vmatmul.mubr.bf16.gmra.mrb[0].mxu0 %v4193
    %v5365 = vpop.f32.mrb[0].mxu0
    %v5366 = vadd.f32 %v5077, %v5365
    %v5367 = vpop.f32.mrb[0].mxu0
    %v5368 = vpop.f32.mrb[0].mxu0
    %v5369 = vadd.f32 %v5080, %v5368
    %v5370 = vpop.f32.mrb[0].mxu0
    %5371 = vmatprep.mubr.bf16.mxu0 %v3587
    %5372 = vmatmul.mubr.bf16.gmra.mrb[0].mxu0 %v4194
    %v5373 = vpop.f32.mrb[0].mxu0
    %v5374 = vadd.f32 %v5085, %v5373
    %v5375 = vpop.f32.mrb[0].mxu0
    %v5376 = vpop.f32.mrb[0].mxu0
    %v5377 = vadd.f32 %v5088, %v5376
    %v5378 = vpop.f32.mrb[0].mxu0
    %5379 = vmatprep.mubr.bf16.mxu0 %v3588
    %5380 = vmatmul.mubr.bf16.gmra.mrb[0].mxu0 %v4195
    %v5381 = vpop.f32.mrb[0].mxu0
    %v5382 = vadd.f32 %v5093, %v5381
    %v5383 = vpop.f32.mrb[0].mxu0
    %v5384 = vpop.f32.mrb[0].mxu0
    %v5385 = vadd.f32 %v5096, %v5384
    %v5386 = vpop.f32.mrb[0].mxu0
    %5387 = vmatprep.mubr.bf16.mxu0 %v3589
    %5388 = vmatmul.mubr.bf16.gmra.mrb[0].mxu0 %v4196
    %v5389 = vpop.f32.mrb[0].mxu0
    %v5390 = vadd.f32 %v5101, %v5389
    %v5391 = vpop.f32.mrb[0].mxu0
    %v5392 = vpop.f32.mrb[0].mxu0
    %v5393 = vadd.f32 %v5104, %v5392
    %v5394 = vpop.f32.mrb[0].mxu0
    %5395 = vmatprep.mubr.bf16.mxu0 %v3590
    %5396 = vmatmul.mubr.bf16.gmra.mrb[0].mxu0 %v4197
    %v5397 = vpop.f32.mrb[0].mxu0
    %v5398 = vadd.f32 %v5109, %v5397
    %v5399 = vpop.f32.mrb[0].mxu0
    %v5400 = vpop.f32.mrb[0].mxu0
    %v5401 = vadd.f32 %v5112, %v5400
    %v5402 = vpop.f32.mrb[0].mxu0
    %5403 = vmatprep.mubr.bf16.mxu0 %v3591
    %5404 = vmatmul.mubr.bf16.gmra.mrb[0].mxu0 %v4198
    %v5405 = vpop.f32.mrb[0].mxu0
    %v5406 = vadd.f32 %v5117, %v5405
    %v5407 = vpop.f32.mrb[0].mxu0
    %v5408 = vpop.f32.mrb[0].mxu0
    %v5409 = vadd.f32 %v5120, %v5408
    %v5410 = vpop.f32.mrb[0].mxu0
    %5411 = vmatprep.mubr.bf16.mxu0 %v3592
    %5412 = vmatmul.mubr.bf16.gmra.mrb[0].mxu0 %v4199
    %v5413 = vpop.f32.mrb[0].mxu0
    %v5414 = vadd.f32 %v5125, %v5413
    %v5415 = vpop.f32.mrb[0].mxu0
    %v5416 = vpop.f32.mrb[0].mxu0
    %v5417 = vadd.f32 %v5128, %v5416
    %v5418 = vpop.f32.mrb[0].mxu0
    %5419 = vmatprep.mubr.bf16.mxu0 %v3593
    %5420 = vmatmul.mubr.bf16.gmra.mrb[0].mxu0 %v4200
    %v5421 = vpop.f32.mrb[0].mxu0
    %v5422 = vadd.f32 %v5133, %v5421
    %v5423 = vpop.f32.mrb[0].mxu0
    %v5424 = vpop.f32.mrb[0].mxu0
    %v5425 = vadd.f32 %v5136, %v5424
    %v5426 = vpop.f32.mrb[0].mxu0
    %5427 = vmatprep.mubr.bf16.mxu0 %v4203
    %5428 = vmatmul.mubr.bf16.gmra.mrb[0].mxu0 %v4201
    %v5429 = vpop.f32.mrb[0].mxu0
    %v5430 = vadd.f32 %v5141, %v5429
    %v5431 = vpop.f32.mrb[0].mxu0
    %v5432 = vpop.f32.mrb[0].mxu0
    %v5433 = vadd.f32 %v5144, %v5432
    %v5434 = vpop.f32.mrb[0].mxu0
    %5435 = vdwg.mxu0
    %5436 = vmatprep.subr.bf16.mxu0 0
    %5437 = vmatpush1.bf16.msra.mxu0 %v4746
    %5438 = vmatprep.subr.bf16.mxu0 0
    %5439 = vmatpush1.bf16.msra.mxu0 %v4747
    %5440 = vmatprep.subr.bf16.mxu0 0
    %5441 = vmatpush1.bf16.msra.mxu0 %v4748
    %5442 = vmatprep.subr.bf16.mxu0 0
    %5443 = vmatpush1.bf16.msra.mxu0 %v4749
    %5444 = vmatprep.subr.bf16.mxu0 0
    %5445 = vmatpush1.bf16.msra.mxu0 %v4750
    %5446 = vmatprep.subr.bf16.mxu0 0
    %5447 = vmatpush1.bf16.msra.mxu0 %v4751
    %5448 = vmatprep.subr.bf16.mxu0 0
    %5449 = vmatpush1.bf16.msra.mxu0 %v4752
    %5450 = vmatprep.subr.bf16.mxu0 0
    %5451 = vmatpush1.bf16.msra.mxu0 %v4753
    %5452 = vmatprep.subr.bf16.mxu0 0
    %5453 = vmatpush1.bf16.msra.mxu0 %v4754
    %5454 = vmatprep.subr.bf16.mxu0 0
    %5455 = vmatpush1.bf16.msra.mxu0 %v4755
    %5456 = vmatprep.subr.bf16.mxu0 0
    %5457 = vmatpush1.bf16.msra.mxu0 %v4756
    %5458 = vmatprep.subr.bf16.mxu0 0
    %5459 = vmatpush1.bf16.msra.mxu0 %v4757
    %5460 = vmatprep.subr.bf16.mxu0 0
    %5461 = vmatpush1.bf16.msra.mxu0 %v4758
    %5462 = vmatprep.subr.bf16.mxu0 0
    %5463 = vmatpush1.bf16.msra.mxu0 %v4759
    %5464 = vmatprep.subr.bf16.mxu0 0
    %5465 = vmatpush1.bf16.msra.mxu0 %v4760
    %5466 = vmatprep.subr.bf16.mxu0 0
    %5467 = vmatpush1.bf16.msra.mxu0 %v4761
    %5468 = vmatprep.mubr.bf16.mxu0 %v4171
    %5469 = vmatmul.mubr.bf16.gmra.mrb[0].mxu0 %v3915
    %v5470 = vpop.f32.mrb[0].mxu0
    %v5471 = vadd.f32 %v5182, %v5470
    %v5472 = vpop.f32.mrb[0].mxu0
    %v5473 = vpop.f32.mrb[0].mxu0
    %v5474 = vadd.f32 %v5185, %v5473
    %v5475 = vpop.f32.mrb[0].mxu0
    %5476 = vmatprep.mubr.bf16.mxu0 %v4172
    %5477 = vmatmul.mubr.bf16.gmra.mrb[0].mxu0 %v3916
    %v5478 = vpop.f32.mrb[0].mxu0
    %v5479 = vadd.f32 %v5190, %v5478
    %v5480 = vpop.f32.mrb[0].mxu0
    %v5481 = vpop.f32.mrb[0].mxu0
    %v5482 = vadd.f32 %v5193, %v5481
    %v5483 = vpop.f32.mrb[0].mxu0
    %5484 = vmatprep.mubr.bf16.mxu0 %v4173
    %5485 = vmatmul.mubr.bf16.gmra.mrb[0].mxu0 %v3917
    %v5486 = vpop.f32.mrb[0].mxu0
    %v5487 = vadd.f32 %v5198, %v5486
    %v5488 = vpop.f32.mrb[0].mxu0
    %v5489 = vpop.f32.mrb[0].mxu0
    %v5490 = vadd.f32 %v5201, %v5489
    %v5491 = vpop.f32.mrb[0].mxu0
    %5492 = vmatprep.mubr.bf16.mxu0 %v4174
    %5493 = vmatmul.mubr.bf16.gmra.mrb[0].mxu0 %v3918
    %v5494 = vpop.f32.mrb[0].mxu0
    %v5495 = vadd.f32 %v5206, %v5494
    %v5496 = vpop.f32.mrb[0].mxu0
    %v5497 = vpop.f32.mrb[0].mxu0
    %v5498 = vadd.f32 %v5209, %v5497
    %v5499 = vpop.f32.mrb[0].mxu0
    %5500 = vmatprep.mubr.bf16.mxu0 %v4175
    %5501 = vmatmul.mubr.bf16.gmra.mrb[0].mxu0 %v3919
    %v5502 = vpop.f32.mrb[0].mxu0
    %v5503 = vadd.f32 %v5214, %v5502
    %v5504 = vpop.f32.mrb[0].mxu0
    %v5505 = vpop.f32.mrb[0].mxu0
    %v5506 = vadd.f32 %v5217, %v5505
    %v5507 = vpop.f32.mrb[0].mxu0
    %5508 = vmatprep.mubr.bf16.mxu0 %v4176
    %5509 = vmatmul.mubr.bf16.gmra.mrb[0].mxu0 %v3920
    %v5510 = vpop.f32.mrb[0].mxu0
    %v5511 = vadd.f32 %v5222, %v5510
    %v5512 = vpop.f32.mrb[0].mxu0
    %v5513 = vpop.f32.mrb[0].mxu0
    %v5514 = vadd.f32 %v5225, %v5513
    %v5515 = vpop.f32.mrb[0].mxu0
    %5516 = vmatprep.mubr.bf16.mxu0 %v4177
    %5517 = vmatmul.mubr.bf16.gmra.mrb[0].mxu0 %v3921
    %v5518 = vpop.f32.mrb[0].mxu0
    %v5519 = vadd.f32 %v5230, %v5518
    %v5520 = vpop.f32.mrb[0].mxu0
    %v5521 = vpop.f32.mrb[0].mxu0
    %v5522 = vadd.f32 %v5233, %v5521
    %v5523 = vpop.f32.mrb[0].mxu0
    %5524 = vmatprep.mubr.bf16.mxu0 %v4178
    %5525 = vmatmul.mubr.bf16.gmra.mrb[0].mxu0 %v3922
    %v5526 = vpop.f32.mrb[0].mxu0
    %v5527 = vadd.f32 %v5238, %v5526
    %v5528 = vpop.f32.mrb[0].mxu0
    %v5529 = vpop.f32.mrb[0].mxu0
    %v5530 = vadd.f32 %v5241, %v5529
    %v5531 = vpop.f32.mrb[0].mxu0
    %5532 = vmatprep.mubr.bf16.mxu0 %v4179
    %5533 = vmatmul.mubr.bf16.gmra.mrb[0].mxu0 %v3923
    %v5534 = vpop.f32.mrb[0].mxu0
    %v5535 = vadd.f32 %v5246, %v5534
    %v5536 = vpop.f32.mrb[0].mxu0
    %v5537 = vpop.f32.mrb[0].mxu0
    %v5538 = vadd.f32 %v5249, %v5537
    %v5539 = vpop.f32.mrb[0].mxu0
    %5540 = vmatprep.mubr.bf16.mxu0 %v4180
    %5541 = vmatmul.mubr.bf16.gmra.mrb[0].mxu0 %v3924
    %v5542 = vpop.f32.mrb[0].mxu0
    %v5543 = vadd.f32 %v5254, %v5542
    %v5544 = vpop.f32.mrb[0].mxu0
    %v5545 = vpop.f32.mrb[0].mxu0
    %v5546 = vadd.f32 %v5257, %v5545
    %v5547 = vpop.f32.mrb[0].mxu0
    %5548 = vmatprep.mubr.bf16.mxu0 %v4181
    %5549 = vmatmul.mubr.bf16.gmra.mrb[0].mxu0 %v3925
    %v5550 = vpop.f32.mrb[0].mxu0
    %v5551 = vadd.f32 %v5262, %v5550
    %v5552 = vpop.f32.mrb[0].mxu0
    %v5553 = vpop.f32.mrb[0].mxu0
    %v5554 = vadd.f32 %v5265, %v5553
    %v5555 = vpop.f32.mrb[0].mxu0
    %5556 = vmatprep.mubr.bf16.mxu0 %v4182
    %5557 = vmatmul.mubr.bf16.gmra.mrb[0].mxu0 %v3926
    %v5558 = vpop.f32.mrb[0].mxu0
    %v5559 = vadd.f32 %v5270, %v5558
    %v5560 = vpop.f32.mrb[0].mxu0
    %v5561 = vpop.f32.mrb[0].mxu0
    %v5562 = vadd.f32 %v5273, %v5561
    %v5563 = vpop.f32.mrb[0].mxu0
    %5564 = vmatprep.mubr.bf16.mxu0 %v4183
    %5565 = vmatmul.mubr.bf16.gmra.mrb[0].mxu0 %v3927
    %v5566 = vpop.f32.mrb[0].mxu0
    %v5567 = vadd.f32 %v5278, %v5566
    %v5568 = vpop.f32.mrb[0].mxu0
    %v5569 = vpop.f32.mrb[0].mxu0
    %v5570 = vadd.f32 %v5281, %v5569
    %v5571 = vpop.f32.mrb[0].mxu0
    %5572 = vmatprep.mubr.bf16.mxu0 %v4184
    %5573 = vmatmul.mubr.bf16.gmra.mrb[0].mxu0 %v3928
    %v5574 = vpop.f32.mrb[0].mxu0
    %v5575 = vadd.f32 %v5286, %v5574
    %v5576 = vpop.f32.mrb[0].mxu0
    %v5577 = vpop.f32.mrb[0].mxu0
    %v5578 = vadd.f32 %v5289, %v5577
    %v5579 = vpop.f32.mrb[0].mxu0
    %5580 = vmatprep.mubr.bf16.mxu0 %v4185
    %5581 = vmatmul.mubr.bf16.gmra.mrb[0].mxu0 %v3929
    %v5582 = vpop.f32.mrb[0].mxu0
    %v5583 = vadd.f32 %v5294, %v5582
    %v5584 = vpop.f32.mrb[0].mxu0
    %v5585 = vpop.f32.mrb[0].mxu0
    %v5586 = vadd.f32 %v5297, %v5585
    %v5587 = vpop.f32.mrb[0].mxu0
    %5588 = vmatprep.mubr.bf16.mxu0 %v4240
    %5589 = vmatmul.mubr.bf16.gmra.mrb[0].mxu0 %v4224
    %v5590 = vpop.f32.mrb[0].mxu0
    %v5591 = vadd.f32 %v5302, %v5590
    %v5592 = vpop.f32.mrb[0].mxu0
    %v5593 = vpop.f32.mrb[0].mxu0
    %v5594 = vadd.f32 %v5305, %v5593
    %v5595 = vpop.f32.mrb[0].mxu0
    %5596 = vmatprep.mubr.bf16.mxu0 %v4187
    %5597 = vmatmul.mubr.bf16.gmra.mrb[0].mxu0 %v3931
    %v5598 = vpop.f32.mrb[0].mxu0
    %v5599 = vadd.f32 %v5310, %v5598
    %v5600 = vpop.f32.mrb[0].mxu0
    %v5601 = vpop.f32.mrb[0].mxu0
    %v5602 = vadd.f32 %v5313, %v5601
    %v5603 = vpop.f32.mrb[0].mxu0
    %5604 = vmatprep.mubr.bf16.mxu0 %v4188
    %5605 = vmatmul.mubr.bf16.gmra.mrb[0].mxu0 %v3932
    %v5606 = vpop.f32.mrb[0].mxu0
    %v5607 = vadd.f32 %v5318, %v5606
    %v5608 = vpop.f32.mrb[0].mxu0
    %v5609 = vpop.f32.mrb[0].mxu0
    %v5610 = vadd.f32 %v5321, %v5609
    %v5611 = vpop.f32.mrb[0].mxu0
    %5612 = vmatprep.mubr.bf16.mxu0 %v4189
    %5613 = vmatmul.mubr.bf16.gmra.mrb[0].mxu0 %v3933
    %v5614 = vpop.f32.mrb[0].mxu0
    %v5615 = vadd.f32 %v5326, %v5614
    %v5616 = vpop.f32.mrb[0].mxu0
    %v5617 = vpop.f32.mrb[0].mxu0
    %v5618 = vadd.f32 %v5329, %v5617
    %v5619 = vpop.f32.mrb[0].mxu0
    %5620 = vmatprep.mubr.bf16.mxu0 %v4190
    %5621 = vmatmul.mubr.bf16.gmra.mrb[0].mxu0 %v3934
    %v5622 = vpop.f32.mrb[0].mxu0
    %v5623 = vadd.f32 %v5334, %v5622
    %v5624 = vpop.f32.mrb[0].mxu0
    %v5625 = vpop.f32.mrb[0].mxu0
    %v5626 = vadd.f32 %v5337, %v5625
    %v5627 = vpop.f32.mrb[0].mxu0
    %5628 = vmatprep.mubr.bf16.mxu0 %v4191
    %5629 = vmatmul.mubr.bf16.gmra.mrb[0].mxu0 %v3935
    %v5630 = vpop.f32.mrb[0].mxu0
    %v5631 = vadd.f32 %v5342, %v5630
    %v5632 = vpop.f32.mrb[0].mxu0
    %v5633 = vpop.f32.mrb[0].mxu0
    %v5634 = vadd.f32 %v5345, %v5633
    %v5635 = vpop.f32.mrb[0].mxu0
    %5636 = vmatprep.mubr.bf16.mxu0 %v4192
    %5637 = vmatmul.mubr.bf16.gmra.mrb[0].mxu0 %v3936
    %v5638 = vpop.f32.mrb[0].mxu0
    %v5639 = vadd.f32 %v5350, %v5638
    %v5640 = vpop.f32.mrb[0].mxu0
    %v5641 = vpop.f32.mrb[0].mxu0
    %v5642 = vadd.f32 %v5353, %v5641
    %v5643 = vpop.f32.mrb[0].mxu0
    %5644 = vmatprep.mubr.bf16.mxu0 %v4193
    %5645 = vmatmul.mubr.bf16.gmra.mrb[0].mxu0 %v3937
    %v5646 = vpop.f32.mrb[0].mxu0
    %v5647 = vadd.f32 %v5358, %v5646
    %v5648 = vpop.f32.mrb[0].mxu0
    %v5649 = vpop.f32.mrb[0].mxu0
    %v5650 = vadd.f32 %v5361, %v5649
    %v5651 = vpop.f32.mrb[0].mxu0
    %5652 = vmatprep.mubr.bf16.mxu0 %v4194
    %5653 = vmatmul.mubr.bf16.gmra.mrb[0].mxu0 %v3938
    %v5654 = vpop.f32.mrb[0].mxu0
    %v5655 = vadd.f32 %v5366, %v5654
    %v5656 = vpop.f32.mrb[0].mxu0
    %v5657 = vpop.f32.mrb[0].mxu0
    %v5658 = vadd.f32 %v5369, %v5657
    %v5659 = vpop.f32.mrb[0].mxu0
    %5660 = vmatprep.mubr.bf16.mxu0 %v4195
    %5661 = vmatmul.mubr.bf16.gmra.mrb[0].mxu0 %v3939
    %v5662 = vpop.f32.mrb[0].mxu0
    %v5663 = vadd.f32 %v5374, %v5662
    %v5664 = vpop.f32.mrb[0].mxu0
    %v5665 = vpop.f32.mrb[0].mxu0
    %v5666 = vadd.f32 %v5377, %v5665
    %v5667 = vpop.f32.mrb[0].mxu0
    %5668 = vmatprep.mubr.bf16.mxu0 %v4196
    %5669 = vmatmul.mubr.bf16.gmra.mrb[0].mxu0 %v3940
    %v5670 = vpop.f32.mrb[0].mxu0
    %v5671 = vadd.f32 %v5382, %v5670
    %v5672 = vpop.f32.mrb[0].mxu0
    %v5673 = vpop.f32.mrb[0].mxu0
    %v5674 = vadd.f32 %v5385, %v5673
    %v5675 = vpop.f32.mrb[0].mxu0
    %5676 = vmatprep.mubr.bf16.mxu0 %v4197
    %5677 = vmatmul.mubr.bf16.gmra.mrb[0].mxu0 %v3941
    %v5678 = vpop.f32.mrb[0].mxu0
    %v5679 = vadd.f32 %v5390, %v5678
    %v5680 = vpop.f32.mrb[0].mxu0
    %v5681 = vpop.f32.mrb[0].mxu0
    %v5682 = vadd.f32 %v5393, %v5681
    %v5683 = vpop.f32.mrb[0].mxu0
    %5684 = vmatprep.mubr.bf16.mxu0 %v4198
    %5685 = vmatmul.mubr.bf16.gmra.mrb[0].mxu0 %v3942
    %v5686 = vpop.f32.mrb[0].mxu0
    %v5687 = vadd.f32 %v5398, %v5686
    %v5688 = vpop.f32.mrb[0].mxu0
    %v5689 = vpop.f32.mrb[0].mxu0
    %v5690 = vadd.f32 %v5401, %v5689
    %v5691 = vpop.f32.mrb[0].mxu0
    %5692 = vmatprep.mubr.bf16.mxu0 %v4199
    %5693 = vmatmul.mubr.bf16.gmra.mrb[0].mxu0 %v3943
    %v5694 = vpop.f32.mrb[0].mxu0
    %v5695 = vadd.f32 %v5406, %v5694
    %v5696 = vpop.f32.mrb[0].mxu0
    %v5697 = vpop.f32.mrb[0].mxu0
    %v5698 = vadd.f32 %v5409, %v5697
    %v5699 = vpop.f32.mrb[0].mxu0
    %5700 = vmatprep.mubr.bf16.mxu0 %v4200
    %5701 = vmatmul.mubr.bf16.gmra.mrb[0].mxu0 %v3944
    %v5702 = vpop.f32.mrb[0].mxu0
    %v5703 = vadd.f32 %v5414, %v5702
    %v5704 = vpop.f32.mrb[0].mxu0
    %v5705 = vpop.f32.mrb[0].mxu0
    %v5706 = vadd.f32 %v5417, %v5705
    %v5707 = vpop.f32.mrb[0].mxu0
    %5708 = vmatprep.mubr.bf16.mxu0 %v4201
    %5709 = vmatmul.mubr.bf16.gmra.mrb[0].mxu0 %v3945
    %v5710 = vpop.f32.mrb[0].mxu0
    %v5711 = vadd.f32 %v5422, %v5710
    %v5712 = vpop.f32.mrb[0].mxu0
    %v5713 = vpop.f32.mrb[0].mxu0
    %v5714 = vadd.f32 %v5425, %v5713
    %v5715 = vpop.f32.mrb[0].mxu0
    %5716 = vmatprep.mubr.bf16.mxu0 %v4241
    %5717 = vmatmul.mubr.bf16.gmra.mrb[0].mxu0 %v4225
    %v5718 = vpop.f32.mrb[0].mxu0
    %v5719 = vadd.f32 %v5430, %v5718
    %v5720 = vpop.f32.mrb[0].mxu0
    %v5721 = vpop.f32.mrb[0].mxu0
    %v5722 = vadd.f32 %v5433, %v5721
    %v5723 = vpop.f32.mrb[0].mxu0
    %5724 = vdwg.mxu0
    %5725 = vmatprep.subr.bf16.mxu0 0
    %5726 = vmatpush1.bf16.msra.mxu0 %v4762
    %5727 = vmatprep.subr.bf16.mxu0 0
    %5728 = vmatpush1.bf16.msra.mxu0 %v4763
    %5729 = vmatprep.subr.bf16.mxu0 0
    %5730 = vmatpush1.bf16.msra.mxu0 %v4764
    %5731 = vmatprep.subr.bf16.mxu0 0
    %5732 = vmatpush1.bf16.msra.mxu0 %v4765
    %5733 = vmatprep.subr.bf16.mxu0 0
    %5734 = vmatpush1.bf16.msra.mxu0 %v4766
    %5735 = vmatprep.subr.bf16.mxu0 0
    %5736 = vmatpush1.bf16.msra.mxu0 %v4767
    %5737 = vmatprep.subr.bf16.mxu0 0
    %5738 = vmatpush1.bf16.msra.mxu0 %v4768
    %5739 = vmatprep.subr.bf16.mxu0 0
    %5740 = vmatpush1.bf16.msra.mxu0 %v4769
    %5741 = vmatprep.subr.bf16.mxu0 0
    %5742 = vmatpush1.bf16.msra.mxu0 %v4770
    %5743 = vmatprep.subr.bf16.mxu0 0
    %5744 = vmatpush1.bf16.msra.mxu0 %v4771
    %5745 = vmatprep.subr.bf16.mxu0 0
    %5746 = vmatpush1.bf16.msra.mxu0 %v4772
    %5747 = vmatprep.subr.bf16.mxu0 0
    %5748 = vmatpush1.bf16.msra.mxu0 %v4773
    %5749 = vmatprep.subr.bf16.mxu0 0
    %5750 = vmatpush1.bf16.msra.mxu0 %v4774
    %5751 = vmatprep.subr.bf16.mxu0 0
    %5752 = vmatpush1.bf16.msra.mxu0 %v4775
    %5753 = vmatprep.subr.bf16.mxu0 0
    %5754 = vmatpush1.bf16.msra.mxu0 %v4776
    %5755 = vmatprep.subr.bf16.mxu0 0
    %5756 = vmatpush1.bf16.msra.mxu0 %v4777
    %5757 = vmatprep.mubr.bf16.mxu0 %v3916
    %5758 = vmatmul.mubr.bf16.gmra.mrb[0].mxu0 %v3564
    %v5759 = vpop.f32.mrb[0].mxu0
    %v5760 = vadd.f32 %v5471, %v5759
    %v5761 = vpop.f32.mrb[0].mxu0
    %v5762 = vpop.f32.mrb[0].mxu0
    %v5763 = vadd.f32 %v5474, %v5762
    %v5764 = vpop.f32.mrb[0].mxu0
    %5765 = vmatprep.mubr.bf16.mxu0 %v3917
    %5766 = vmatmul.mubr.bf16.gmra.mrb[0].mxu0 %v3565
    %v5767 = vpop.f32.mrb[0].mxu0
    %v5768 = vadd.f32 %v5479, %v5767
    %v5769 = vpop.f32.mrb[0].mxu0
    %v5770 = vpop.f32.mrb[0].mxu0
    %v5771 = vadd.f32 %v5482, %v5770
    %v5772 = vpop.f32.mrb[0].mxu0
    %5773 = vmatprep.mubr.bf16.mxu0 %v3918
    %5774 = vmatmul.mubr.bf16.gmra.mrb[0].mxu0 %v3566
    %v5775 = vpop.f32.mrb[0].mxu0
    %v5776 = vadd.f32 %v5487, %v5775
    %v5777 = vpop.f32.mrb[0].mxu0
    %v5778 = vpop.f32.mrb[0].mxu0
    %v5779 = vadd.f32 %v5490, %v5778
    %v5780 = vpop.f32.mrb[0].mxu0
    %5781 = vmatprep.mubr.bf16.mxu0 %v3919
    %5782 = vmatmul.mubr.bf16.gmra.mrb[0].mxu0 %v3567
    %v5783 = vpop.f32.mrb[0].mxu0
    %v5784 = vadd.f32 %v5495, %v5783
    %v5785 = vpop.f32.mrb[0].mxu0
    %v5786 = vpop.f32.mrb[0].mxu0
    %v5787 = vadd.f32 %v5498, %v5786
    %v5788 = vpop.f32.mrb[0].mxu0
    %5789 = vmatprep.mubr.bf16.mxu0 %v3920
    %5790 = vmatmul.mubr.bf16.gmra.mrb[0].mxu0 %v3568
    %v5791 = vpop.f32.mrb[0].mxu0
    %v5792 = vadd.f32 %v5503, %v5791
    %v5793 = vpop.f32.mrb[0].mxu0
    %v5794 = vpop.f32.mrb[0].mxu0
    %v5795 = vadd.f32 %v5506, %v5794
    %v5796 = vpop.f32.mrb[0].mxu0
    %5797 = vmatprep.mubr.bf16.mxu0 %v3921
    %5798 = vmatmul.mubr.bf16.gmra.mrb[0].mxu0 %v3569
    %v5799 = vpop.f32.mrb[0].mxu0
    %v5800 = vadd.f32 %v5511, %v5799
    %v5801 = vpop.f32.mrb[0].mxu0
    %v5802 = vpop.f32.mrb[0].mxu0
    %v5803 = vadd.f32 %v5514, %v5802
    %v5804 = vpop.f32.mrb[0].mxu0
    %5805 = vmatprep.mubr.bf16.mxu0 %v3922
    %5806 = vmatmul.mubr.bf16.gmra.mrb[0].mxu0 %v3570
    %v5807 = vpop.f32.mrb[0].mxu0
    %v5808 = vadd.f32 %v5519, %v5807
    %v5809 = vpop.f32.mrb[0].mxu0
    %v5810 = vpop.f32.mrb[0].mxu0
    %v5811 = vadd.f32 %v5522, %v5810
    %v5812 = vpop.f32.mrb[0].mxu0
    %5813 = vmatprep.mubr.bf16.mxu0 %v3923
    %5814 = vmatmul.mubr.bf16.gmra.mrb[0].mxu0 %v3571
    %v5815 = vpop.f32.mrb[0].mxu0
    %v5816 = vadd.f32 %v5527, %v5815
    %v5817 = vpop.f32.mrb[0].mxu0
    %v5818 = vpop.f32.mrb[0].mxu0
    %v5819 = vadd.f32 %v5530, %v5818
    %v5820 = vpop.f32.mrb[0].mxu0
    %5821 = vmatprep.mubr.bf16.mxu0 %v3924
    %5822 = vmatmul.mubr.bf16.gmra.mrb[0].mxu0 %v3572
    %v5823 = vpop.f32.mrb[0].mxu0
    %v5824 = vadd.f32 %v5535, %v5823
    %v5825 = vpop.f32.mrb[0].mxu0
    %v5826 = vpop.f32.mrb[0].mxu0
    %v5827 = vadd.f32 %v5538, %v5826
    %v5828 = vpop.f32.mrb[0].mxu0
    %5829 = vmatprep.mubr.bf16.mxu0 %v3925
    %5830 = vmatmul.mubr.bf16.gmra.mrb[0].mxu0 %v3573
    %v5831 = vpop.f32.mrb[0].mxu0
    %v5832 = vadd.f32 %v5543, %v5831
    %v5833 = vpop.f32.mrb[0].mxu0
    %v5834 = vpop.f32.mrb[0].mxu0
    %v5835 = vadd.f32 %v5546, %v5834
    %v5836 = vpop.f32.mrb[0].mxu0
    %5837 = vmatprep.mubr.bf16.mxu0 %v3926
    %5838 = vmatmul.mubr.bf16.gmra.mrb[0].mxu0 %v3574
    %v5839 = vpop.f32.mrb[0].mxu0
    %v5840 = vadd.f32 %v5551, %v5839
    %v5841 = vpop.f32.mrb[0].mxu0
    %v5842 = vpop.f32.mrb[0].mxu0
    %v5843 = vadd.f32 %v5554, %v5842
    %v5844 = vpop.f32.mrb[0].mxu0
    %5845 = vmatprep.mubr.bf16.mxu0 %v3927
    %5846 = vmatmul.mubr.bf16.gmra.mrb[0].mxu0 %v3575
    %v5847 = vpop.f32.mrb[0].mxu0
    %v5848 = vadd.f32 %v5559, %v5847
    %v5849 = vpop.f32.mrb[0].mxu0
    %v5850 = vpop.f32.mrb[0].mxu0
    %v5851 = vadd.f32 %v5562, %v5850
    %v5852 = vpop.f32.mrb[0].mxu0
    %5853 = vmatprep.mubr.bf16.mxu0 %v3928
    %5854 = vmatmul.mubr.bf16.gmra.mrb[0].mxu0 %v3576
    %v5855 = vpop.f32.mrb[0].mxu0
    %v5856 = vadd.f32 %v5567, %v5855
    %v5857 = vpop.f32.mrb[0].mxu0
    %v5858 = vpop.f32.mrb[0].mxu0
    %v5859 = vadd.f32 %v5570, %v5858
    %v5860 = vpop.f32.mrb[0].mxu0
    %5861 = vmatprep.mubr.bf16.mxu0 %v3929
    %5862 = vmatmul.mubr.bf16.gmra.mrb[0].mxu0 %v3577
    %v5863 = vpop.f32.mrb[0].mxu0
    %v5864 = vadd.f32 %v5575, %v5863
    %v5865 = vpop.f32.mrb[0].mxu0
    %v5866 = vpop.f32.mrb[0].mxu0
    %v5867 = vadd.f32 %v5578, %v5866
    %v5868 = vpop.f32.mrb[0].mxu0
    %5869 = vmatprep.mubr.bf16.mxu0 %v4224
    %5870 = vmatmul.mubr.bf16.gmra.mrb[0].mxu0 %v4202
    %v5871 = vpop.f32.mrb[0].mxu0
    %v5872 = vadd.f32 %v5583, %v5871
    %v5873 = vpop.f32.mrb[0].mxu0
    %v5874 = vpop.f32.mrb[0].mxu0
    %v5875 = vadd.f32 %v5586, %v5874
    %v5876 = vpop.f32.mrb[0].mxu0
    %5877 = vmatprep.mubr.bf16.mxu0 %v4264
    %5878 = vmatmul.mubr.bf16.gmra.mrb[0].mxu0 %v4242
    %v5879 = vpop.f32.mrb[0].mxu0
    %v5880 = vadd.f32 %v5591, %v5879
    %v5881 = vpop.f32.mrb[0].mxu0
    %v5882 = vpop.f32.mrb[0].mxu0
    %v5883 = vadd.f32 %v5594, %v5882
    %v5884 = vpop.f32.mrb[0].mxu0
    %5885 = vmatprep.mubr.bf16.mxu0 %v3932
    %5886 = vmatmul.mubr.bf16.gmra.mrb[0].mxu0 %v3580
    %v5887 = vpop.f32.mrb[0].mxu0
    %v5888 = vadd.f32 %v5599, %v5887
    %v5889 = vpop.f32.mrb[0].mxu0
    %v5890 = vpop.f32.mrb[0].mxu0
    %v5891 = vadd.f32 %v5602, %v5890
    %v5892 = vpop.f32.mrb[0].mxu0
    %5893 = vmatprep.mubr.bf16.mxu0 %v3933
    %5894 = vmatmul.mubr.bf16.gmra.mrb[0].mxu0 %v3581
    %v5895 = vpop.f32.mrb[0].mxu0
    %v5896 = vadd.f32 %v5607, %v5895
    %v5897 = vpop.f32.mrb[0].mxu0
    %v5898 = vpop.f32.mrb[0].mxu0
    %v5899 = vadd.f32 %v5610, %v5898
    %v5900 = vpop.f32.mrb[0].mxu0
    %5901 = vmatprep.mubr.bf16.mxu0 %v3934
    %5902 = vmatmul.mubr.bf16.gmra.mrb[0].mxu0 %v3582
    %v5903 = vpop.f32.mrb[0].mxu0
    %v5904 = vadd.f32 %v5615, %v5903
    %v5905 = vpop.f32.mrb[0].mxu0
    %v5906 = vpop.f32.mrb[0].mxu0
    %v5907 = vadd.f32 %v5618, %v5906
    %v5908 = vpop.f32.mrb[0].mxu0
    %5909 = vmatprep.mubr.bf16.mxu0 %v3935
    %5910 = vmatmul.mubr.bf16.gmra.mrb[0].mxu0 %v3583
    %v5911 = vpop.f32.mrb[0].mxu0
    %v5912 = vadd.f32 %v5623, %v5911
    %v5913 = vpop.f32.mrb[0].mxu0
    %v5914 = vpop.f32.mrb[0].mxu0
    %v5915 = vadd.f32 %v5626, %v5914
    %v5916 = vpop.f32.mrb[0].mxu0
    %5917 = vmatprep.mubr.bf16.mxu0 %v3936
    %5918 = vmatmul.mubr.bf16.gmra.mrb[0].mxu0 %v3584
    %v5919 = vpop.f32.mrb[0].mxu0
    %v5920 = vadd.f32 %v5631, %v5919
    %v5921 = vpop.f32.mrb[0].mxu0
    %v5922 = vpop.f32.mrb[0].mxu0
    %v5923 = vadd.f32 %v5634, %v5922
    %v5924 = vpop.f32.mrb[0].mxu0
    %5925 = vmatprep.mubr.bf16.mxu0 %v3937
    %5926 = vmatmul.mubr.bf16.gmra.mrb[0].mxu0 %v3585
    %v5927 = vpop.f32.mrb[0].mxu0
    %v5928 = vadd.f32 %v5639, %v5927
    %v5929 = vpop.f32.mrb[0].mxu0
    %v5930 = vpop.f32.mrb[0].mxu0
    %v5931 = vadd.f32 %v5642, %v5930
    %v5932 = vpop.f32.mrb[0].mxu0
    %5933 = vmatprep.mubr.bf16.mxu0 %v3938
    %5934 = vmatmul.mubr.bf16.gmra.mrb[0].mxu0 %v3586
    %v5935 = vpop.f32.mrb[0].mxu0
    %v5936 = vadd.f32 %v5647, %v5935
    %v5937 = vpop.f32.mrb[0].mxu0
    %v5938 = vpop.f32.mrb[0].mxu0
    %v5939 = vadd.f32 %v5650, %v5938
    %v5940 = vpop.f32.mrb[0].mxu0
    %5941 = vmatprep.mubr.bf16.mxu0 %v3939
    %5942 = vmatmul.mubr.bf16.gmra.mrb[0].mxu0 %v3587
    %v5943 = vpop.f32.mrb[0].mxu0
    %v5944 = vadd.f32 %v5655, %v5943
    %v5945 = vpop.f32.mrb[0].mxu0
    %v5946 = vpop.f32.mrb[0].mxu0
    %v5947 = vadd.f32 %v5658, %v5946
    %v5948 = vpop.f32.mrb[0].mxu0
    %5949 = vmatprep.mubr.bf16.mxu0 %v3940
    %5950 = vmatmul.mubr.bf16.gmra.mrb[0].mxu0 %v3588
    %v5951 = vpop.f32.mrb[0].mxu0
    %v5952 = vadd.f32 %v5663, %v5951
    %v5953 = vpop.f32.mrb[0].mxu0
    %v5954 = vpop.f32.mrb[0].mxu0
    %v5955 = vadd.f32 %v5666, %v5954
    %v5956 = vpop.f32.mrb[0].mxu0
    %5957 = vmatprep.mubr.bf16.mxu0 %v3941
    %5958 = vmatmul.mubr.bf16.gmra.mrb[0].mxu0 %v3589
    %v5959 = vpop.f32.mrb[0].mxu0
    %v5960 = vadd.f32 %v5671, %v5959
    %v5961 = vpop.f32.mrb[0].mxu0
    %v5962 = vpop.f32.mrb[0].mxu0
    %v5963 = vadd.f32 %v5674, %v5962
    %v5964 = vpop.f32.mrb[0].mxu0
    %5965 = vmatprep.mubr.bf16.mxu0 %v3942
    %5966 = vmatmul.mubr.bf16.gmra.mrb[0].mxu0 %v3590
    %v5967 = vpop.f32.mrb[0].mxu0
    %v5968 = vadd.f32 %v5679, %v5967
    %v5969 = vpop.f32.mrb[0].mxu0
    %v5970 = vpop.f32.mrb[0].mxu0
    %v5971 = vadd.f32 %v5682, %v5970
    %v5972 = vpop.f32.mrb[0].mxu0
    %5973 = vmatprep.mubr.bf16.mxu0 %v3943
    %5974 = vmatmul.mubr.bf16.gmra.mrb[0].mxu0 %v3591
    %v5975 = vpop.f32.mrb[0].mxu0
    %v5976 = vadd.f32 %v5687, %v5975
    %v5977 = vpop.f32.mrb[0].mxu0
    %v5978 = vpop.f32.mrb[0].mxu0
    %v5979 = vadd.f32 %v5690, %v5978
    %v5980 = vpop.f32.mrb[0].mxu0
    %5981 = vmatprep.mubr.bf16.mxu0 %v3944
    %5982 = vmatmul.mubr.bf16.gmra.mrb[0].mxu0 %v3592
    %v5983 = vpop.f32.mrb[0].mxu0
    %v5984 = vadd.f32 %v5695, %v5983
    %v5985 = vpop.f32.mrb[0].mxu0
    %v5986 = vpop.f32.mrb[0].mxu0
    %v5987 = vadd.f32 %v5698, %v5986
    %v5988 = vpop.f32.mrb[0].mxu0
    %5989 = vmatprep.mubr.bf16.mxu0 %v3945
    %5990 = vmatmul.mubr.bf16.gmra.mrb[0].mxu0 %v3593
    %v5991 = vpop.f32.mrb[0].mxu0
    %v5992 = vadd.f32 %v5703, %v5991
    %v5993 = vpop.f32.mrb[0].mxu0
    %v5994 = vpop.f32.mrb[0].mxu0
    %v5995 = vadd.f32 %v5706, %v5994
    %v5996 = vpop.f32.mrb[0].mxu0
    %5997 = vmatprep.mubr.bf16.mxu0 %v4225
    %5998 = vmatmul.mubr.bf16.gmra.mrb[0].mxu0 %v4203
    %v5999 = vpop.f32.mrb[0].mxu0
    %v6000 = vadd.f32 %v5711, %v5999
    %v6001 = vpop.f32.mrb[0].mxu0
    %v6002 = vpop.f32.mrb[0].mxu0
    %v6003 = vadd.f32 %v5714, %v6002
    %v6004 = vpop.f32.mrb[0].mxu0
    %6005 = vmatprep.mubr.bf16.mxu0 %v4265
    %6006 = vmatmul.mubr.bf16.gmra.mrb[0].mxu0 %v4243
    %v6007 = vpop.f32.mrb[0].mxu0
    %v6008 = vadd.f32 %v5719, %v6007
    %v6009 = vpop.f32.mrb[0].mxu0
    %v6010 = vpop.f32.mrb[0].mxu0
    %v6011 = vadd.f32 %v5722, %v6010
    %v6012 = vpop.f32.mrb[0].mxu0
    %6013 = vdwg.mxu0
    %6014 = vmatprep.subr.bf16.mxu0 0
    %6015 = vmatpush1.bf16.msra.mxu0 %v4778
    %6016 = vmatprep.subr.bf16.mxu0 0
    %6017 = vmatpush1.bf16.msra.mxu0 %v4779
    %6018 = vmatprep.subr.bf16.mxu0 0
    %6019 = vmatpush1.bf16.msra.mxu0 %v4780
    %6020 = vmatprep.subr.bf16.mxu0 0
    %6021 = vmatpush1.bf16.msra.mxu0 %v4781
    %6022 = vmatprep.subr.bf16.mxu0 0
    %6023 = vmatpush1.bf16.msra.mxu0 %v4782
    %6024 = vmatprep.subr.bf16.mxu0 0
    %6025 = vmatpush1.bf16.msra.mxu0 %v4783
    %6026 = vmatprep.subr.bf16.mxu0 0
    %6027 = vmatpush1.bf16.msra.mxu0 %v4784
    %6028 = vmatprep.subr.bf16.mxu0 0
    %6029 = vmatpush1.bf16.msra.mxu0 %v4785
    %6030 = vmatprep.subr.bf16.mxu0 0
    %6031 = vmatpush1.bf16.msra.mxu0 0
    %6032 = vmatprep.subr.bf16.mxu0 0
    %6033 = vmatpush1.bf16.msra.mxu0 0
    %6034 = vmatprep.subr.bf16.mxu0 0
    %6035 = vmatpush1.bf16.msra.mxu0 0
    %6036 = vmatprep.subr.bf16.mxu0 0
    %6037 = vmatpush1.bf16.msra.mxu0 0
    %6038 = vmatprep.subr.bf16.mxu0 0
    %6039 = vmatpush1.bf16.msra.mxu0 0
    %6040 = vmatprep.subr.bf16.mxu0 0
    %6041 = vmatpush1.bf16.msra.mxu0 0
    %6042 = vmatprep.subr.bf16.mxu0 0
    %6043 = vmatpush1.bf16.msra.mxu0 0
    %6044 = vmatprep.subr.bf16.mxu0 0
    %6045 = vmatpush1.bf16.msra.mxu0 0
    %6046 = vmatprep.mubr.bf16.mxu0 0
    %6047 = vmatmul.mubr.bf16.gmra.mrb[0].mxu0 %v4172
    %v6048 = vpop.f32.mrb[0].mxu0
    %v6049 = vadd.f32 %v5760, %v6048
    %v6050 = vpop.f32.mrb[0].mxu0
    %v6051 = vpop.f32.mrb[0].mxu0
    %v6052 = vadd.f32 %v5763, %v6051
    %v6053 = vpop.f32.mrb[0].mxu0
    %6054 = vmatprep.mubr.bf16.mxu0 0
    %6055 = vmatmul.mubr.bf16.gmra.mrb[0].mxu0 %v4173
    %v6056 = vpop.f32.mrb[0].mxu0
    %v6057 = vadd.f32 %v5768, %v6056
    %v6058 = vpop.f32.mrb[0].mxu0
    %v6059 = vpop.f32.mrb[0].mxu0
    %v6060 = vadd.f32 %v5771, %v6059
    %v6061 = vpop.f32.mrb[0].mxu0
    %6062 = vmatprep.mubr.bf16.mxu0 0
    %6063 = vmatmul.mubr.bf16.gmra.mrb[0].mxu0 %v4174
    %v6064 = vpop.f32.mrb[0].mxu0
    %v6065 = vadd.f32 %v5776, %v6064
    %v6066 = vpop.f32.mrb[0].mxu0
    %v6067 = vpop.f32.mrb[0].mxu0
    %v6068 = vadd.f32 %v5779, %v6067
    %v6069 = vpop.f32.mrb[0].mxu0
    %6070 = vmatprep.mubr.bf16.mxu0 0
    %6071 = vmatmul.mubr.bf16.gmra.mrb[0].mxu0 %v4175
    %v6072 = vpop.f32.mrb[0].mxu0
    %v6073 = vadd.f32 %v5784, %v6072
    %v6074 = vpop.f32.mrb[0].mxu0
    %v6075 = vpop.f32.mrb[0].mxu0
    %v6076 = vadd.f32 %v5787, %v6075
    %v6077 = vpop.f32.mrb[0].mxu0
    %6078 = vmatprep.mubr.bf16.mxu0 0
    %6079 = vmatmul.mubr.bf16.gmra.mrb[0].mxu0 %v4176
    %v6080 = vpop.f32.mrb[0].mxu0
    %v6081 = vadd.f32 %v5792, %v6080
    %v6082 = vpop.f32.mrb[0].mxu0
    %v6083 = vpop.f32.mrb[0].mxu0
    %v6084 = vadd.f32 %v5795, %v6083
    %v6085 = vpop.f32.mrb[0].mxu0
    %6086 = vmatprep.mubr.bf16.mxu0 0
    %6087 = vmatmul.mubr.bf16.gmra.mrb[0].mxu0 %v4177
    %v6088 = vpop.f32.mrb[0].mxu0
    %v6089 = vadd.f32 %v5800, %v6088
    %v6090 = vpop.f32.mrb[0].mxu0
    %v6091 = vpop.f32.mrb[0].mxu0
    %v6092 = vadd.f32 %v5803, %v6091
    %v6093 = vpop.f32.mrb[0].mxu0
    %6094 = vmatprep.mubr.bf16.mxu0 0
    %6095 = vmatmul.mubr.bf16.gmra.mrb[0].mxu0 %v4178
    %v6096 = vpop.f32.mrb[0].mxu0
    %v6097 = vadd.f32 %v5808, %v6096
    %v6098 = vpop.f32.mrb[0].mxu0
    %v6099 = vpop.f32.mrb[0].mxu0
    %v6100 = vadd.f32 %v5811, %v6099
    %v6101 = vpop.f32.mrb[0].mxu0
    %6102 = vmatprep.mubr.bf16.mxu0 0
    %6103 = vmatmul.mubr.bf16.gmra.mrb[0].mxu0 %v4179
    %v6104 = vpop.f32.mrb[0].mxu0
    %v6105 = vadd.f32 %v5816, %v6104
    %v6106 = vpop.f32.mrb[0].mxu0
    %v6107 = vpop.f32.mrb[0].mxu0
    %v6108 = vadd.f32 %v5819, %v6107
    %v6109 = vpop.f32.mrb[0].mxu0
    %6110 = vmatprep.mubr.bf16.mxu0 0
    %6111 = vmatmul.mubr.bf16.gmra.mrb[0].mxu0 %v4180
    %v6112 = vpop.f32.mrb[0].mxu0
    %v6113 = vadd.f32 %v5824, %v6112
    %v6114 = vpop.f32.mrb[0].mxu0
    %v6115 = vpop.f32.mrb[0].mxu0
    %v6116 = vadd.f32 %v5827, %v6115
    %v6117 = vpop.f32.mrb[0].mxu0
    %6118 = vmatprep.mubr.bf16.mxu0 0
    %6119 = vmatmul.mubr.bf16.gmra.mrb[0].mxu0 %v4181
    %v6120 = vpop.f32.mrb[0].mxu0
    %v6121 = vadd.f32 %v5832, %v6120
    %v6122 = vpop.f32.mrb[0].mxu0
    %v6123 = vpop.f32.mrb[0].mxu0
    %v6124 = vadd.f32 %v5835, %v6123
    %v6125 = vpop.f32.mrb[0].mxu0
    %6126 = vmatprep.mubr.bf16.mxu0 0
    %6127 = vmatmul.mubr.bf16.gmra.mrb[0].mxu0 %v4182
    %v6128 = vpop.f32.mrb[0].mxu0
    %v6129 = vadd.f32 %v5840, %v6128
    %v6130 = vpop.f32.mrb[0].mxu0
    %v6131 = vpop.f32.mrb[0].mxu0
    %v6132 = vadd.f32 %v5843, %v6131
    %v6133 = vpop.f32.mrb[0].mxu0
    %6134 = vmatprep.mubr.bf16.mxu0 0
    %6135 = vmatmul.mubr.bf16.gmra.mrb[0].mxu0 %v4183
    %v6136 = vpop.f32.mrb[0].mxu0
    %v6137 = vadd.f32 %v5848, %v6136
    %v6138 = vpop.f32.mrb[0].mxu0
    %v6139 = vpop.f32.mrb[0].mxu0
    %v6140 = vadd.f32 %v5851, %v6139
    %v6141 = vpop.f32.mrb[0].mxu0
    %6142 = vmatprep.mubr.bf16.mxu0 0
    %6143 = vmatmul.mubr.bf16.gmra.mrb[0].mxu0 %v4184
    %v6144 = vpop.f32.mrb[0].mxu0
    %v6145 = vadd.f32 %v5856, %v6144
    %v6146 = vpop.f32.mrb[0].mxu0
    %v6147 = vpop.f32.mrb[0].mxu0
    %v6148 = vadd.f32 %v5859, %v6147
    %v6149 = vpop.f32.mrb[0].mxu0
    %6150 = vmatprep.mubr.bf16.mxu0 0
    %6151 = vmatmul.mubr.bf16.gmra.mrb[0].mxu0 %v4185
    %v6152 = vpop.f32.mrb[0].mxu0
    %v6153 = vadd.f32 %v5864, %v6152
    %v6154 = vpop.f32.mrb[0].mxu0
    %v6155 = vpop.f32.mrb[0].mxu0
    %v6156 = vadd.f32 %v5867, %v6155
    %v6157 = vpop.f32.mrb[0].mxu0
    %6158 = vmatprep.mubr.bf16.mxu0 0
    %6159 = vmatmul.mubr.bf16.gmra.mrb[0].mxu0 %v4240
    %v6160 = vpop.f32.mrb[0].mxu0
    %v6161 = vadd.f32 %v5872, %v6160
    %v6162 = vpop.f32.mrb[0].mxu0
    %v6163 = vpop.f32.mrb[0].mxu0
    %v6164 = vadd.f32 %v5875, %v6163
    %v6165 = vpop.f32.mrb[0].mxu0
    %6166 = vmatprep.mubr.bf16.mxu0 0
    %6167 = vmatmul.mubr.bf16.gmra.mrb[0].mxu0 %v4280
    %v6168 = vpop.f32.mrb[0].mxu0
    %v6169 = vadd.f32 %v5880, %v6168
    %v6170 = vpop.f32.mrb[0].mxu0
    %v6171 = vpop.f32.mrb[0].mxu0
    %v6172 = vadd.f32 %v5883, %v6171
    %v6173 = vpop.f32.mrb[0].mxu0
    %6174 = vmatprep.mubr.bf16.mxu0 0
    %6175 = vmatmul.mubr.bf16.gmra.mrb[0].mxu0 %v4188
    %v6176 = vpop.f32.mrb[0].mxu0
    %v6177 = vadd.f32 %v5888, %v6176
    %v6178 = vpop.f32.mrb[0].mxu0
    %v6179 = vpop.f32.mrb[0].mxu0
    %v6180 = vadd.f32 %v5891, %v6179
    %v6181 = vpop.f32.mrb[0].mxu0
    %6182 = vmatprep.mubr.bf16.mxu0 0
    %6183 = vmatmul.mubr.bf16.gmra.mrb[0].mxu0 %v4189
    %v6184 = vpop.f32.mrb[0].mxu0
    %v6185 = vadd.f32 %v5896, %v6184
    %v6186 = vpop.f32.mrb[0].mxu0
    %v6187 = vpop.f32.mrb[0].mxu0
    %v6188 = vadd.f32 %v5899, %v6187
    %v6189 = vpop.f32.mrb[0].mxu0
    %6190 = vmatprep.mubr.bf16.mxu0 0
    %6191 = vmatmul.mubr.bf16.gmra.mrb[0].mxu0 %v4190
    %v6192 = vpop.f32.mrb[0].mxu0
    %v6193 = vadd.f32 %v5904, %v6192
    %v6194 = vpop.f32.mrb[0].mxu0
    %v6195 = vpop.f32.mrb[0].mxu0
    %v6196 = vadd.f32 %v5907, %v6195
    %v6197 = vpop.f32.mrb[0].mxu0
    %6198 = vmatprep.mubr.bf16.mxu0 0
    %6199 = vmatmul.mubr.bf16.gmra.mrb[0].mxu0 %v4191
    %v6200 = vpop.f32.mrb[0].mxu0
    %v6201 = vadd.f32 %v5912, %v6200
    %v6202 = vpop.f32.mrb[0].mxu0
    %v6203 = vpop.f32.mrb[0].mxu0
    %v6204 = vadd.f32 %v5915, %v6203
    %v6205 = vpop.f32.mrb[0].mxu0
    %6206 = vmatprep.mubr.bf16.mxu0 0
    %6207 = vmatmul.mubr.bf16.gmra.mrb[0].mxu0 %v4192
    %v6208 = vpop.f32.mrb[0].mxu0
    %v6209 = vadd.f32 %v5920, %v6208
    %v6210 = vpop.f32.mrb[0].mxu0
    %v6211 = vpop.f32.mrb[0].mxu0
    %v6212 = vadd.f32 %v5923, %v6211
    %v6213 = vpop.f32.mrb[0].mxu0
    %6214 = vmatprep.mubr.bf16.mxu0 0
    %6215 = vmatmul.mubr.bf16.gmra.mrb[0].mxu0 %v4193
    %v6216 = vpop.f32.mrb[0].mxu0
    %v6217 = vadd.f32 %v5928, %v6216
    %v6218 = vpop.f32.mrb[0].mxu0
    %v6219 = vpop.f32.mrb[0].mxu0
    %v6220 = vadd.f32 %v5931, %v6219
    %v6221 = vpop.f32.mrb[0].mxu0
    %6222 = vmatprep.mubr.bf16.mxu0 0
    %6223 = vmatmul.mubr.bf16.gmra.mrb[0].mxu0 %v4194
    %v6224 = vpop.f32.mrb[0].mxu0
    %v6225 = vadd.f32 %v5936, %v6224
    %v6226 = vpop.f32.mrb[0].mxu0
    %v6227 = vpop.f32.mrb[0].mxu0
    %v6228 = vadd.f32 %v5939, %v6227
    %v6229 = vpop.f32.mrb[0].mxu0
    %6230 = vmatprep.mubr.bf16.mxu0 0
    %6231 = vmatmul.mubr.bf16.gmra.mrb[0].mxu0 %v4195
    %v6232 = vpop.f32.mrb[0].mxu0
    %v6233 = vadd.f32 %v5944, %v6232
    %v6234 = vpop.f32.mrb[0].mxu0
    %v6235 = vpop.f32.mrb[0].mxu0
    %v6236 = vadd.f32 %v5947, %v6235
    %v6237 = vpop.f32.mrb[0].mxu0
    %6238 = vmatprep.mubr.bf16.mxu0 0
    %6239 = vmatmul.mubr.bf16.gmra.mrb[0].mxu0 %v4196
    %v6240 = vpop.f32.mrb[0].mxu0
    %v6241 = vadd.f32 %v5952, %v6240
    %v6242 = vpop.f32.mrb[0].mxu0
    %v6243 = vpop.f32.mrb[0].mxu0
    %v6244 = vadd.f32 %v5955, %v6243
    %v6245 = vpop.f32.mrb[0].mxu0
    %6246 = vmatprep.mubr.bf16.mxu0 0
    %6247 = vmatmul.mubr.bf16.gmra.mrb[0].mxu0 %v4197
    %v6248 = vpop.f32.mrb[0].mxu0
    %v6249 = vadd.f32 %v5960, %v6248
    %v6250 = vpop.f32.mrb[0].mxu0
    %v6251 = vpop.f32.mrb[0].mxu0
    %v6252 = vadd.f32 %v5963, %v6251
    %v6253 = vpop.f32.mrb[0].mxu0
    %6254 = vmatprep.mubr.bf16.mxu0 0
    %6255 = vmatmul.mubr.bf16.gmra.mrb[0].mxu0 %v4198
    %v6256 = vpop.f32.mrb[0].mxu0
    %v6257 = vadd.f32 %v5968, %v6256
    %v6258 = vpop.f32.mrb[0].mxu0
    %v6259 = vpop.f32.mrb[0].mxu0
    %v6260 = vadd.f32 %v5971, %v6259
    %v6261 = vpop.f32.mrb[0].mxu0
    %6262 = vmatprep.mubr.bf16.mxu0 0
    %6263 = vmatmul.mubr.bf16.gmra.mrb[0].mxu0 %v4199
    %v6264 = vpop.f32.mrb[0].mxu0
    %v6265 = vadd.f32 %v5976, %v6264
    %v6266 = vpop.f32.mrb[0].mxu0
    %v6267 = vpop.f32.mrb[0].mxu0
    %v6268 = vadd.f32 %v5979, %v6267
    %v6269 = vpop.f32.mrb[0].mxu0
    %6270 = vmatprep.mubr.bf16.mxu0 0
    %6271 = vmatmul.mubr.bf16.gmra.mrb[0].mxu0 %v4200
    %v6272 = vpop.f32.mrb[0].mxu0
    %v6273 = vadd.f32 %v5984, %v6272
    %v6274 = vpop.f32.mrb[0].mxu0
    %v6275 = vpop.f32.mrb[0].mxu0
    %v6276 = vadd.f32 %v5987, %v6275
    %v6277 = vpop.f32.mrb[0].mxu0
    %6278 = vmatprep.mubr.bf16.mxu0 0
    %6279 = vmatmul.mubr.bf16.gmra.mrb[0].mxu0 %v4201
    %v6280 = vpop.f32.mrb[0].mxu0
    %v6281 = vadd.f32 %v5992, %v6280
    %v6282 = vpop.f32.mrb[0].mxu0
    %v6283 = vpop.f32.mrb[0].mxu0
    %v6284 = vadd.f32 %v5995, %v6283
    %v6285 = vpop.f32.mrb[0].mxu0
    %6286 = vmatprep.mubr.bf16.mxu0 0
    %6287 = vmatmul.mubr.bf16.gmra.mrb[0].mxu0 %v4241
    %v6288 = vpop.f32.mrb[0].mxu0
    %v6289 = vadd.f32 %v6000, %v6288
    %v6290 = vpop.f32.mrb[0].mxu0
    %v6291 = vpop.f32.mrb[0].mxu0
    %v6292 = vadd.f32 %v6003, %v6291
    %v6293 = vpop.f32.mrb[0].mxu0
    %6294 = vmatprep.mubr.bf16.mxu0 0
    %6295 = vmatmul.mubr.bf16.gmra.mrb[0].mxu0 %v4281
    %v6296 = vpop.f32.mrb[0].mxu0
    %v6297 = vadd.f32 %v6008, %v6296
    %v6298 = vpop.f32.mrb[0].mxu0
    %v6299 = vpop.f32.mrb[0].mxu0
    %v6300 = vadd.f32 %v6011, %v6299
    %v6301 = vpop.f32.mrb[0].mxu0
    %6302 = vdwg.mxu0
    %v6303 = vld [vmem:[%s5] sm:$0x1]
    %v6304 = vld [vmem:[%s6] sm:$0x1]
    %v6305 = vadd.f32 %v6049, %v6052
    %v6306 = vadd.f32 %v6305, %v6057
    %v6307 = vadd.f32 %v6306, %v6060
    %v6308 = vadd.f32 %v6307, %v6065
    %v6309 = vadd.f32 %v6308, %v6068
    %v6310 = vadd.f32 %v6309, %v6073
    %v6311 = vadd.f32 %v6310, %v6076
    %v6312 = vadd.f32 %v6311, %v6081
    %v6313 = vadd.f32 %v6312, %v6084
    %v6314 = vadd.f32 %v6313, %v6089
    %v6315 = vadd.f32 %v6314, %v6092
    %v6316 = vadd.f32 %v6315, %v6097
    %v6317 = vadd.f32 %v6316, %v6100
    %v6318 = vadd.f32 %v6317, %v6105
    %v6319 = vadd.f32 %v6318, %v6108
    %v6320 = vadd.f32 %v6319, %v6113
    %v6321 = vadd.f32 %v6320, %v6116
    %v6322 = vadd.f32 %v6321, %v6121
    %v6323 = vadd.f32 %v6322, %v6124
    %v6324 = vadd.f32 %v6323, %v6129
    %v6325 = vadd.f32 %v6324, %v6132
    %v6326 = vadd.f32 %v6325, %v6137
    %v6327 = vadd.f32 %v6326, %v6140
    %v6328 = vadd.f32 %v6327, %v6145
    %v6329 = vadd.f32 %v6328, %v6148
    %v6330 = vadd.f32 %v6329, %v6153
    %v6331 = vadd.f32 %v6330, %v6156
    %v6332 = vadd.f32 %v6331, %v6161
    %v6333 = vadd.f32 %v6332, %v6164
    %v6334 = vadd.f32 %v6333, %v6169
    %v6335 = vadd.f32 %v6334, %v6172
    %v6336 = vadd.f32 %v6335, %v6177
    %v6337 = vadd.f32 %v6336, %v6180
    %v6338 = vadd.f32 %v6337, %v6185
    %v6339 = vadd.f32 %v6338, %v6188
    %v6340 = vadd.f32 %v6339, %v6193
    %v6341 = vadd.f32 %v6340, %v6196
    %v6342 = vadd.f32 %v6341, %v6201
    %v6343 = vadd.f32 %v6342, %v6204
    %v6344 = vadd.f32 %v6343, %v6209
    %v6345 = vadd.f32 %v6344, %v6212
    %v6346 = vadd.f32 %v6345, %v6217
    %v6347 = vadd.f32 %v6346, %v6220
    %v6348 = vadd.f32 %v6347, %v6225
    %v6349 = vadd.f32 %v6348, %v6228
    %v6350 = vadd.f32 %v6349, %v6233
    %v6351 = vadd.f32 %v6350, %v6236
    %v6352 = vadd.f32 %v6351, %v6241
    %v6353 = vadd.f32 %v6352, %v6244
    %v6354 = vadd.f32 %v6353, %v6249
    %v6355 = vadd.f32 %v6354, %v6252
    %v6356 = vadd.f32 %v6355, %v6257
    %v6357 = vadd.f32 %v6356, %v6260
    %v6358 = vadd.f32 %v6357, %v6265
    %v6359 = vadd.f32 %v6358, %v6268
    %v6360 = vadd.f32 %v6359, %v6273
    %v6361 = vadd.f32 %v6360, %v6276
    %v6362 = vadd.f32 %v6361, %v6281
    %v6363 = vadd.f32 %v6362, %v6284
    %v6364 = vadd.f32 %v6363, %v6289
    %v6365 = vadd.f32 %v6364, %v6292
    %v6366 = vadd.f32 %v6365, %v6297
    %v6367 = vadd.f32 %v6366, %v6300
    %v6368 = vrot.slane %v6367, 4
    %v6369 = vadd.f32 %v6367, %v6368
    %v6370 = vrot.slane %v6369, 2
    %v6371 = vadd.f32 %v6369, %v6370
    %v6372 = vrot.slane %v6371, 1
    %v6373 = vadd.f32 %v6371, %v6372
    %v6374 = vmul.f32 %v6049, %v6049
    %v6375 = vmul.f32 %v6052, %v6052
    %v6376 = vmul.f32 %v6057, %v6057
    %v6377 = vmul.f32 %v6060, %v6060
    %v6378 = vmul.f32 %v6065, %v6065
    %v6379 = vmul.f32 %v6068, %v6068
    %v6380 = vmul.f32 %v6073, %v6073
    %v6381 = vmul.f32 %v6076, %v6076
    %v6382 = vmul.f32 %v6081, %v6081
    %v6383 = vmul.f32 %v6084, %v6084
    %v6384 = vmul.f32 %v6089, %v6089
    %v6385 = vmul.f32 %v6092, %v6092
    %v6386 = vmul.f32 %v6097, %v6097
    %v6387 = vmul.f32 %v6100, %v6100
    %v6388 = vmul.f32 %v6105, %v6105
    %v6389 = vmul.f32 %v6108, %v6108
    %v6390 = vmul.f32 %v6113, %v6113
    %v6391 = vmul.f32 %v6116, %v6116
    %v6392 = vmul.f32 %v6121, %v6121
    %v6393 = vmul.f32 %v6124, %v6124
    %v6394 = vmul.f32 %v6129, %v6129
    %v6395 = vmul.f32 %v6132, %v6132
    %v6396 = vmul.f32 %v6137, %v6137
    %v6397 = vmul.f32 %v6140, %v6140
    %v6398 = vmul.f32 %v6145, %v6145
    %v6399 = vmul.f32 %v6148, %v6148
    %v6400 = vmul.f32 %v6153, %v6153
    %v6401 = vmul.f32 %v6156, %v6156
    %v6402 = vmul.f32 %v6161, %v6161
    %v6403 = vmul.f32 %v6164, %v6164
    %v6404 = vmul.f32 %v6169, %v6169
    %v6405 = vmul.f32 %v6172, %v6172
    %v6406 = vmul.f32 %v6177, %v6177
    %v6407 = vmul.f32 %v6180, %v6180
    %v6408 = vmul.f32 %v6185, %v6185
    %v6409 = vmul.f32 %v6188, %v6188
    %v6410 = vmul.f32 %v6193, %v6193
    %v6411 = vmul.f32 %v6196, %v6196
    %v6412 = vmul.f32 %v6201, %v6201
    %v6413 = vmul.f32 %v6204, %v6204
    %v6414 = vmul.f32 %v6209, %v6209
    %v6415 = vmul.f32 %v6212, %v6212
    %v6416 = vmul.f32 %v6217, %v6217
    %v6417 = vmul.f32 %v6220, %v6220
    %v6418 = vmul.f32 %v6225, %v6225
    %v6419 = vmul.f32 %v6228, %v6228
    %v6420 = vmul.f32 %v6233, %v6233
    %v6421 = vmul.f32 %v6236, %v6236
    %v6422 = vmul.f32 %v6241, %v6241
    %v6423 = vmul.f32 %v6244, %v6244
    %v6424 = vmul.f32 %v6249, %v6249
    %v6425 = vmul.f32 %v6252, %v6252
    %v6426 = vmul.f32 %v6257, %v6257
    %v6427 = vmul.f32 %v6260, %v6260
    %v6428 = vmul.f32 %v6265, %v6265
    %v6429 = vmul.f32 %v6268, %v6268
    %v6430 = vmul.f32 %v6273, %v6273
    %v6431 = vmul.f32 %v6276, %v6276
    %v6432 = vmul.f32 %v6281, %v6281
    %v6433 = vmul.f32 %v6284, %v6284
    %v6434 = vmul.f32 %v6289, %v6289
    %v6435 = vmul.f32 %v6292, %v6292
    %v6436 = vmul.f32 %v6297, %v6297
    %v6437 = vmul.f32 %v6300, %v6300
    %v6438 = vadd.f32 %v6374, %v6375
    %v6439 = vadd.f32 %v6438, %v6376
    %v6440 = vadd.f32 %v6439, %v6377
    %v6441 = vadd.f32 %v6440, %v6378
    %v6442 = vadd.f32 %v6441, %v6379
    %v6443 = vadd.f32 %v6442, %v6380
    %v6444 = vadd.f32 %v6443, %v6381
    %v6445 = vadd.f32 %v6444, %v6382
    %v6446 = vadd.f32 %v6445, %v6383
    %v6447 = vadd.f32 %v6446, %v6384
    %v6448 = vadd.f32 %v6447, %v6385
    %v6449 = vadd.f32 %v6448, %v6386
    %v6450 = vadd.f32 %v6449, %v6387
    %v6451 = vadd.f32 %v6450, %v6388
    %v6452 = vadd.f32 %v6451, %v6389
    %v6453 = vadd.f32 %v6452, %v6390
    %v6454 = vadd.f32 %v6453, %v6391
    %v6455 = vadd.f32 %v6454, %v6392
    %v6456 = vadd.f32 %v6455, %v6393
    %v6457 = vadd.f32 %v6456, %v6394
    %v6458 = vadd.f32 %v6457, %v6395
    %v6459 = vadd.f32 %v6458, %v6396
    %v6460 = vadd.f32 %v6459, %v6397
    %v6461 = vadd.f32 %v6460, %v6398
    %v6462 = vadd.f32 %v6461, %v6399
    %v6463 = vadd.f32 %v6462, %v6400
    %v6464 = vadd.f32 %v6463, %v6401
    %v6465 = vadd.f32 %v6464, %v6402
    %v6466 = vadd.f32 %v6465, %v6403
    %v6467 = vadd.f32 %v6466, %v6404
    %v6468 = vadd.f32 %v6467, %v6405
    %v6469 = vadd.f32 %v6468, %v6406
    %v6470 = vadd.f32 %v6469, %v6407
    %v6471 = vadd.f32 %v6470, %v6408
    %v6472 = vadd.f32 %v6471, %v6409
    %v6473 = vadd.f32 %v6472, %v6410
    %v6474 = vadd.f32 %v6473, %v6411
    %v6475 = vadd.f32 %v6474, %v6412
    %v6476 = vadd.f32 %v6475, %v6413
    %v6477 = vadd.f32 %v6476, %v6414
    %v6478 = vadd.f32 %v6477, %v6415
    %v6479 = vadd.f32 %v6478, %v6416
    %v6480 = vadd.f32 %v6479, %v6417
    %v6481 = vadd.f32 %v6480, %v6418
    %v6482 = vadd.f32 %v6481, %v6419
    %v6483 = vadd.f32 %v6482, %v6420
    %v6484 = vadd.f32 %v6483, %v6421
    %v6485 = vadd.f32 %v6484, %v6422
    %v6486 = vadd.f32 %v6485, %v6423
    %v6487 = vadd.f32 %v6486, %v6424
    %v6488 = vadd.f32 %v6487, %v6425
    %v6489 = vadd.f32 %v6488, %v6426
    %v6490 = vadd.f32 %v6489, %v6427
    %v6491 = vadd.f32 %v6490, %v6428
    %v6492 = vadd.f32 %v6491, %v6429
    %v6493 = vadd.f32 %v6492, %v6430
    %v6494 = vadd.f32 %v6493, %v6431
    %v6495 = vadd.f32 %v6494, %v6432
    %v6496 = vadd.f32 %v6495, %v6433
    %v6497 = vadd.f32 %v6496, %v6434
    %v6498 = vadd.f32 %v6497, %v6435
    %v6499 = vadd.f32 %v6498, %v6436
    %v6500 = vadd.f32 %v6499, %v6437
    %v6501 = vrot.slane %v6500, 4
    %v6502 = vadd.f32 %v6500, %v6501
    %v6503 = vrot.slane %v6502, 2
    %v6504 = vadd.f32 %v6502, %v6503
    %v6505 = vrot.slane %v6504, 1
    %v6506 = vadd.f32 %v6504, %v6505
    %v6507 = vmul.f32 %v6373, 0.001953125
    %v6508 = vmul.f32 %v6506, 0.001953125
    %v6509 = vmul.f32 %v6507, %v6507
    %v6510 = vsub.f32 %v6508, %v6509
    %v6511 = vmax.f32 %v6510, 0.0
    %v6512 = vadd.f32 %v6511, 1e-05
    %v6513 = vrsqrt.pop %v6512
    %v6514 = vmul.f32 %v6513, %v6303
    %v6515 = vmul.f32 %v6507, %v6514
    %v6516 = vsub.f32 %v6304, %v6515
    %v6517 = vlaneseq
    %v6518 = vshrl.u32 %v6517, 7
    %v6519 = vsub.s32 0, %v6518
    %v6520 = vrot.slane %v6514, %v6519
    %v6521 = vmul.f32 %v6049, %v6520
    %v6522 = vmul.f32 %v6052, %v6520
    %v6523 = vmul.f32 %v6057, %v6520
    %v6524 = vmul.f32 %v6060, %v6520
    %v6525 = vmul.f32 %v6065, %v6520
    %v6526 = vmul.f32 %v6068, %v6520
    %v6527 = vmul.f32 %v6073, %v6520
    %v6528 = vmul.f32 %v6076, %v6520
    %v6529 = vmul.f32 %v6081, %v6520
    %v6530 = vmul.f32 %v6084, %v6520
    %v6531 = vmul.f32 %v6089, %v6520
    %v6532 = vmul.f32 %v6092, %v6520
    %v6533 = vmul.f32 %v6097, %v6520
    %v6534 = vmul.f32 %v6100, %v6520
    %v6535 = vmul.f32 %v6105, %v6520
    %v6536 = vmul.f32 %v6108, %v6520
    %v6537 = vmul.f32 %v6113, %v6520
    %v6538 = vmul.f32 %v6116, %v6520
    %v6539 = vmul.f32 %v6121, %v6520
    %v6540 = vmul.f32 %v6124, %v6520
    %v6541 = vmul.f32 %v6129, %v6520
    %v6542 = vmul.f32 %v6132, %v6520
    %v6543 = vmul.f32 %v6137, %v6520
    %v6544 = vmul.f32 %v6140, %v6520
    %v6545 = vmul.f32 %v6145, %v6520
    %v6546 = vmul.f32 %v6148, %v6520
    %v6547 = vmul.f32 %v6153, %v6520
    %v6548 = vmul.f32 %v6156, %v6520
    %v6549 = vmul.f32 %v6161, %v6520
    %v6550 = vmul.f32 %v6164, %v6520
    %v6551 = vmul.f32 %v6169, %v6520
    %v6552 = vmul.f32 %v6172, %v6520
    %v6553 = vmul.f32 %v6177, %v6520
    %v6554 = vmul.f32 %v6180, %v6520
    %v6555 = vmul.f32 %v6185, %v6520
    %v6556 = vmul.f32 %v6188, %v6520
    %v6557 = vmul.f32 %v6193, %v6520
    %v6558 = vmul.f32 %v6196, %v6520
    %v6559 = vmul.f32 %v6201, %v6520
    %v6560 = vmul.f32 %v6204, %v6520
    %v6561 = vmul.f32 %v6209, %v6520
    %v6562 = vmul.f32 %v6212, %v6520
    %v6563 = vmul.f32 %v6217, %v6520
    %v6564 = vmul.f32 %v6220, %v6520
    %v6565 = vmul.f32 %v6225, %v6520
    %v6566 = vmul.f32 %v6228, %v6520
    %v6567 = vmul.f32 %v6233, %v6520
    %v6568 = vmul.f32 %v6236, %v6520
    %v6569 = vmul.f32 %v6241, %v6520
    %v6570 = vmul.f32 %v6244, %v6520
    %v6571 = vmul.f32 %v6249, %v6520
    %v6572 = vmul.f32 %v6252, %v6520
    %v6573 = vmul.f32 %v6257, %v6520
    %v6574 = vmul.f32 %v6260, %v6520
    %v6575 = vmul.f32 %v6265, %v6520
    %v6576 = vmul.f32 %v6268, %v6520
    %v6577 = vmul.f32 %v6273, %v6520
    %v6578 = vmul.f32 %v6276, %v6520
    %v6579 = vmul.f32 %v6281, %v6520
    %v6580 = vmul.f32 %v6284, %v6520
    %v6581 = vmul.f32 %v6289, %v6520
    %v6582 = vmul.f32 %v6292, %v6520
    %v6583 = vmul.f32 %v6297, %v6520
    %v6584 = vmul.f32 %v6300, %v6520
    %v6586 = vlaneseq
    %v6587 = vshrl.u32 %v6586, 7
    %v6588 = vsub.s32 0, %v6587
    %v6589 = vrot.slane %v6516, %v6588
    %v6591 = vadd.f32 %v6521, %v6589
    %v6592 = vadd.f32 %v6522, %v6589
    %v6593 = vadd.f32 %v6523, %v6589
    %v6594 = vadd.f32 %v6524, %v6589
    %v6595 = vadd.f32 %v6525, %v6589
    %v6596 = vadd.f32 %v6526, %v6589
    %v6597 = vadd.f32 %v6527, %v6589
    %v6598 = vadd.f32 %v6528, %v6589
    %v6599 = vadd.f32 %v6529, %v6589
    %v6600 = vadd.f32 %v6530, %v6589
    %v6601 = vadd.f32 %v6531, %v6589
    %v6602 = vadd.f32 %v6532, %v6589
    %v6603 = vadd.f32 %v6533, %v6589
    %v6604 = vadd.f32 %v6534, %v6589
    %v6605 = vadd.f32 %v6535, %v6589
    %v6606 = vadd.f32 %v6536, %v6589
    %v6607 = vadd.f32 %v6537, %v6589
    %v6608 = vadd.f32 %v6538, %v6589
    %v6609 = vadd.f32 %v6539, %v6589
    %v6610 = vadd.f32 %v6540, %v6589
    %v6611 = vadd.f32 %v6541, %v6589
    %v6612 = vadd.f32 %v6542, %v6589
    %v6613 = vadd.f32 %v6543, %v6589
    %v6614 = vadd.f32 %v6544, %v6589
    %v6615 = vadd.f32 %v6545, %v6589
    %v6616 = vadd.f32 %v6546, %v6589
    %v6617 = vadd.f32 %v6547, %v6589
    %v6618 = vadd.f32 %v6548, %v6589
    %v6619 = vadd.f32 %v6549, %v6589
    %v6620 = vadd.f32 %v6550, %v6589
    %v6621 = vadd.f32 %v6551, %v6589
    %v6622 = vadd.f32 %v6552, %v6589
    %v6623 = vadd.f32 %v6553, %v6589
    %v6624 = vadd.f32 %v6554, %v6589
    %v6625 = vadd.f32 %v6555, %v6589
    %v6626 = vadd.f32 %v6556, %v6589
    %v6627 = vadd.f32 %v6557, %v6589
    %v6628 = vadd.f32 %v6558, %v6589
    %v6629 = vadd.f32 %v6559, %v6589
    %v6630 = vadd.f32 %v6560, %v6589
    %v6631 = vadd.f32 %v6561, %v6589
    %v6632 = vadd.f32 %v6562, %v6589
    %v6633 = vadd.f32 %v6563, %v6589
    %v6634 = vadd.f32 %v6564, %v6589
    %v6635 = vadd.f32 %v6565, %v6589
    %v6636 = vadd.f32 %v6566, %v6589
    %v6637 = vadd.f32 %v6567, %v6589
    %v6638 = vadd.f32 %v6568, %v6589
    %v6639 = vadd.f32 %v6569, %v6589
    %v6640 = vadd.f32 %v6570, %v6589
    %v6641 = vadd.f32 %v6571, %v6589
    %v6642 = vadd.f32 %v6572, %v6589
    %v6643 = vadd.f32 %v6573, %v6589
    %v6644 = vadd.f32 %v6574, %v6589
    %v6645 = vadd.f32 %v6575, %v6589
    %v6646 = vadd.f32 %v6576, %v6589
    %v6647 = vadd.f32 %v6577, %v6589
    %v6648 = vadd.f32 %v6578, %v6589
    %v6649 = vadd.f32 %v6579, %v6589
    %v6650 = vadd.f32 %v6580, %v6589
    %v6651 = vadd.f32 %v6581, %v6589
    %v6652 = vadd.f32 %v6582, %v6589
    %v6653 = vadd.f32 %v6583, %v6589
    %v6654 = vadd.f32 %v6584, %v6589
    %v6655 = vld [vmem:[%s7] sm:$0xf]
    %v6656 = vld [vmem:[%s7 + $0x4] sm:$0xf]
    %v6657 = vld [vmem:[%s7 + $0x8] sm:$0xf]
    %v6658 = vld [vmem:[%s7 + $0xc] sm:$0xf]
    %v6659 = vld [vmem:[%s7 + $0x10] sm:$0xf]
    %v6660 = vld [vmem:[%s7 + $0x14] sm:$0xf]
    %v6661 = vld [vmem:[%s7 + $0x18] sm:$0xf]
    %v6662 = vld [vmem:[%s7 + $0x1c] sm:$0xf]
    %v6663 = vld [vmem:[%s7 + $0x20] sm:$0xf]
    %v6664 = vld [vmem:[%s7 + $0x24] sm:$0xf]
    %v6665 = vld [vmem:[%s7 + $0x28] sm:$0xf]
    %v6666 = vld [vmem:[%s7 + $0x2c] sm:$0xf]
    %v6667 = vld [vmem:[%s7 + $0x30] sm:$0xf]
    %v6668 = vld [vmem:[%s7 + $0x34] sm:$0xf]
    %v6669 = vld [vmem:[%s7 + $0x38] sm:$0xf]
    %v6670 = vld [vmem:[%s7 + $0x3c] sm:$0xf]
    %v6687 = vunpack.c.l.b16 %v6655
    %v6688 = vunpack.c.l.b16 %v6656
    %v6689 = vunpack.c.l.b16 %v6657
    %v6690 = vunpack.c.l.b16 %v6658
    %v6691 = vunpack.c.l.b16 %v6659
    %v6692 = vunpack.c.l.b16 %v6660
    %v6693 = vunpack.c.l.b16 %v6661
    %v6694 = vunpack.c.l.b16 %v6662
    %v6695 = vunpack.c.l.b16 %v6663
    %v6696 = vunpack.c.l.b16 %v6664
    %v6697 = vunpack.c.l.b16 %v6665
    %v6698 = vunpack.c.l.b16 %v6666
    %v6699 = vunpack.c.l.b16 %v6667
    %v6700 = vunpack.c.l.b16 %v6668
    %v6701 = vunpack.c.l.b16 %v6669
    %v6702 = vunpack.c.l.b16 %v6670
    %v6703 = vpack.c.b16 %v6688, %v6687
    %v6704 = vpack.c.b16 %v6690, %v6689
    %v6705 = vpack.c.b16 %v6692, %v6691
    %v6706 = vpack.c.b16 %v6694, %v6693
    %v6707 = vpack.c.b16 %v6696, %v6695
    %v6708 = vpack.c.b16 %v6698, %v6697
    %v6709 = vpack.c.b16 %v6700, %v6699
    %v6710 = vpack.c.b16 %v6702, %v6701
    %6719 = vmatprep.subr.bf16.mxu0 0
    %6720 = vmatpush1.bf16.msra.mxu0 %v6703
    %6721 = vmatprep.subr.bf16.mxu0 0
    %6722 = vmatpush1.bf16.msra.mxu0 %v6704
    %6723 = vmatprep.subr.bf16.mxu0 0
    %6724 = vmatpush1.bf16.msra.mxu0 %v6705
    %6725 = vmatprep.subr.bf16.mxu0 0
    %6726 = vmatpush1.bf16.msra.mxu0 %v6706
    %6727 = vmatprep.subr.bf16.mxu0 0
    %6728 = vmatpush1.bf16.msra.mxu0 %v6707
    %6729 = vmatprep.subr.bf16.mxu0 0
    %6730 = vmatpush1.bf16.msra.mxu0 %v6708
    %6731 = vmatprep.subr.bf16.mxu0 0
    %6732 = vmatpush1.bf16.msra.mxu0 %v6709
    %6733 = vmatprep.subr.bf16.mxu0 0
    %6734 = vmatpush1.bf16.msra.mxu0 %v6710
    %6735 = vmatprep.subr.bf16.mxu0 0
    %6736 = vmatpush1.bf16.msra.mxu0 0
    %6737 = vmatprep.subr.bf16.mxu0 0
    %6738 = vmatpush1.bf16.msra.mxu0 0
    %6739 = vmatprep.subr.bf16.mxu0 0
    %6740 = vmatpush1.bf16.msra.mxu0 0
    %6741 = vmatprep.subr.bf16.mxu0 0
    %6742 = vmatpush1.bf16.msra.mxu0 0
    %6743 = vmatprep.subr.bf16.mxu0 0
    %6744 = vmatpush1.bf16.msra.mxu0 0
    %6745 = vmatprep.subr.bf16.mxu0 0
    %6746 = vmatpush1.bf16.msra.mxu0 0
    %6747 = vmatprep.subr.bf16.mxu0 0
    %6748 = vmatpush1.bf16.msra.mxu0 0
    %6749 = vmatprep.subr.bf16.mxu0 0
    %6750 = vmatpush1.bf16.msra.mxu0 0
    %6751 = vmatprep.mubr.bf16.mxu0 0
    %6752 = vmatmul.mubr.bf16.gmra.mrb[0].mxu0 %v499
    %v6753 = vpop.f32.mrb[0].mxu0
    %v6754 = vadd.f32 0.0, %v6753
    %v6755 = vpop.f32.mrb[0].mxu0
    %v6756 = vpop.f32.mrb[0].mxu0
    %v6757 = vadd.f32 0.0, %v6756
    %v6758 = vpop.f32.mrb[0].mxu0
    %6759 = vmatprep.mubr.bf16.mxu0 0
    %6760 = vmatmul.mubr.bf16.gmra.mrb[0].mxu0 %v500
    %v6761 = vpop.f32.mrb[0].mxu0
    %v6762 = vadd.f32 0.0, %v6761
    %v6763 = vpop.f32.mrb[0].mxu0
    %v6764 = vpop.f32.mrb[0].mxu0
    %v6765 = vadd.f32 0.0, %v6764
    %v6766 = vpop.f32.mrb[0].mxu0
    %6767 = vmatprep.mubr.bf16.mxu0 0
    %6768 = vmatmul.mubr.bf16.gmra.mrb[0].mxu0 %v501
    %v6769 = vpop.f32.mrb[0].mxu0
    %v6770 = vadd.f32 0.0, %v6769
    %v6771 = vpop.f32.mrb[0].mxu0
    %v6772 = vpop.f32.mrb[0].mxu0
    %v6773 = vadd.f32 0.0, %v6772
    %v6774 = vpop.f32.mrb[0].mxu0
    %6775 = vmatprep.mubr.bf16.mxu0 0
    %6776 = vmatmul.mubr.bf16.gmra.mrb[0].mxu0 %v502
    %v6777 = vpop.f32.mrb[0].mxu0
    %v6778 = vadd.f32 0.0, %v6777
    %v6779 = vpop.f32.mrb[0].mxu0
    %v6780 = vpop.f32.mrb[0].mxu0
    %v6781 = vadd.f32 0.0, %v6780
    %v6782 = vpop.f32.mrb[0].mxu0
    %6783 = vmatprep.mubr.bf16.mxu0 0
    %6784 = vmatmul.mubr.bf16.gmra.mrb[0].mxu0 %v503
    %v6785 = vpop.f32.mrb[0].mxu0
    %v6786 = vadd.f32 0.0, %v6785
    %v6787 = vpop.f32.mrb[0].mxu0
    %v6788 = vpop.f32.mrb[0].mxu0
    %v6789 = vadd.f32 0.0, %v6788
    %v6790 = vpop.f32.mrb[0].mxu0
    %6791 = vmatprep.mubr.bf16.mxu0 0
    %6792 = vmatmul.mubr.bf16.gmra.mrb[0].mxu0 %v504
    %v6793 = vpop.f32.mrb[0].mxu0
    %v6794 = vadd.f32 0.0, %v6793
    %v6795 = vpop.f32.mrb[0].mxu0
    %v6796 = vpop.f32.mrb[0].mxu0
    %v6797 = vadd.f32 0.0, %v6796
    %v6798 = vpop.f32.mrb[0].mxu0
    %6799 = vmatprep.mubr.bf16.mxu0 0
    %6800 = vmatmul.mubr.bf16.gmra.mrb[0].mxu0 %v505
    %v6801 = vpop.f32.mrb[0].mxu0
    %v6802 = vadd.f32 0.0, %v6801
    %v6803 = vpop.f32.mrb[0].mxu0
    %v6804 = vpop.f32.mrb[0].mxu0
    %v6805 = vadd.f32 0.0, %v6804
    %v6806 = vpop.f32.mrb[0].mxu0
    %6807 = vmatprep.mubr.bf16.mxu0 0
    %6808 = vmatmul.mubr.bf16.gmra.mrb[0].mxu0 %v506
    %v6809 = vpop.f32.mrb[0].mxu0
    %v6810 = vadd.f32 0.0, %v6809
    %v6811 = vpop.f32.mrb[0].mxu0
    %v6812 = vpop.f32.mrb[0].mxu0
    %v6813 = vadd.f32 0.0, %v6812
    %v6814 = vpop.f32.mrb[0].mxu0
    %6815 = vmatprep.mubr.bf16.mxu0 0
    %6816 = vmatmul.mubr.bf16.gmra.mrb[0].mxu0 %v507
    %v6817 = vpop.f32.mrb[0].mxu0
    %v6818 = vadd.f32 0.0, %v6817
    %v6819 = vpop.f32.mrb[0].mxu0
    %v6820 = vpop.f32.mrb[0].mxu0
    %v6821 = vadd.f32 0.0, %v6820
    %v6822 = vpop.f32.mrb[0].mxu0
    %6823 = vmatprep.mubr.bf16.mxu0 0
    %6824 = vmatmul.mubr.bf16.gmra.mrb[0].mxu0 %v508
    %v6825 = vpop.f32.mrb[0].mxu0
    %v6826 = vadd.f32 0.0, %v6825
    %v6827 = vpop.f32.mrb[0].mxu0
    %v6828 = vpop.f32.mrb[0].mxu0
    %v6829 = vadd.f32 0.0, %v6828
    %v6830 = vpop.f32.mrb[0].mxu0
    %6831 = vmatprep.mubr.bf16.mxu0 0
    %6832 = vmatmul.mubr.bf16.gmra.mrb[0].mxu0 %v509
    %v6833 = vpop.f32.mrb[0].mxu0
    %v6834 = vadd.f32 0.0, %v6833
    %v6835 = vpop.f32.mrb[0].mxu0
    %v6836 = vpop.f32.mrb[0].mxu0
    %v6837 = vadd.f32 0.0, %v6836
    %v6838 = vpop.f32.mrb[0].mxu0
    %6839 = vmatprep.mubr.bf16.mxu0 0
    %6840 = vmatmul.mubr.bf16.gmra.mrb[0].mxu0 %v510
    %v6841 = vpop.f32.mrb[0].mxu0
    %v6842 = vadd.f32 0.0, %v6841
    %v6843 = vpop.f32.mrb[0].mxu0
    %v6844 = vpop.f32.mrb[0].mxu0
    %v6845 = vadd.f32 0.0, %v6844
    %v6846 = vpop.f32.mrb[0].mxu0
    %6847 = vmatprep.mubr.bf16.mxu0 0
    %6848 = vmatmul.mubr.bf16.gmra.mrb[0].mxu0 %v511
    %v6849 = vpop.f32.mrb[0].mxu0
    %v6850 = vadd.f32 0.0, %v6849
    %v6851 = vpop.f32.mrb[0].mxu0
    %v6852 = vpop.f32.mrb[0].mxu0
    %v6853 = vadd.f32 0.0, %v6852
    %v6854 = vpop.f32.mrb[0].mxu0
    %6855 = vmatprep.mubr.bf16.mxu0 0
    %6856 = vmatmul.mubr.bf16.gmra.mrb[0].mxu0 %v512
    %v6857 = vpop.f32.mrb[0].mxu0
    %v6858 = vadd.f32 0.0, %v6857
    %v6859 = vpop.f32.mrb[0].mxu0
    %v6860 = vpop.f32.mrb[0].mxu0
    %v6861 = vadd.f32 0.0, %v6860
    %v6862 = vpop.f32.mrb[0].mxu0
    %6863 = vmatprep.mubr.bf16.mxu0 0
    %6864 = vmatmul.mubr.bf16.gmra.mrb[0].mxu0 %v513
    %v6865 = vpop.f32.mrb[0].mxu0
    %v6866 = vadd.f32 0.0, %v6865
    %v6867 = vpop.f32.mrb[0].mxu0
    %v6868 = vpop.f32.mrb[0].mxu0
    %v6869 = vadd.f32 0.0, %v6868
    %v6870 = vpop.f32.mrb[0].mxu0
    %6871 = vmatprep.mubr.bf16.mxu0 0
    %6872 = vmatmul.mubr.bf16.gmra.mrb[0].mxu0 %v809
    %v6873 = vpop.f32.mrb[0].mxu0
    %v6874 = vadd.f32 0.0, %v6873
    %v6875 = vpop.f32.mrb[0].mxu0
    %v6876 = vpop.f32.mrb[0].mxu0
    %v6877 = vadd.f32 0.0, %v6876
    %v6878 = vpop.f32.mrb[0].mxu0
    %6879 = vmatprep.mubr.bf16.mxu0 0
    %6880 = vmatmul.mubr.bf16.gmra.mrb[0].mxu0 %v515
    %v6881 = vpop.f32.mrb[0].mxu0
    %v6882 = vadd.f32 0.0, %v6881
    %v6883 = vpop.f32.mrb[0].mxu0
    %v6884 = vpop.f32.mrb[0].mxu0
    %v6885 = vadd.f32 0.0, %v6884
    %v6886 = vpop.f32.mrb[0].mxu0
    %6887 = vmatprep.mubr.bf16.mxu0 0
    %6888 = vmatmul.mubr.bf16.gmra.mrb[0].mxu0 %v516
    %v6889 = vpop.f32.mrb[0].mxu0
    %v6890 = vadd.f32 0.0, %v6889
    %v6891 = vpop.f32.mrb[0].mxu0
    %v6892 = vpop.f32.mrb[0].mxu0
    %v6893 = vadd.f32 0.0, %v6892
    %v6894 = vpop.f32.mrb[0].mxu0
    %6895 = vmatprep.mubr.bf16.mxu0 0
    %6896 = vmatmul.mubr.bf16.gmra.mrb[0].mxu0 %v517
    %v6897 = vpop.f32.mrb[0].mxu0
    %v6898 = vadd.f32 0.0, %v6897
    %v6899 = vpop.f32.mrb[0].mxu0
    %v6900 = vpop.f32.mrb[0].mxu0
    %v6901 = vadd.f32 0.0, %v6900
    %v6902 = vpop.f32.mrb[0].mxu0
    %6903 = vmatprep.mubr.bf16.mxu0 0
    %6904 = vmatmul.mubr.bf16.gmra.mrb[0].mxu0 %v518
    %v6905 = vpop.f32.mrb[0].mxu0
    %v6906 = vadd.f32 0.0, %v6905
    %v6907 = vpop.f32.mrb[0].mxu0
    %v6908 = vpop.f32.mrb[0].mxu0
    %v6909 = vadd.f32 0.0, %v6908
    %v6910 = vpop.f32.mrb[0].mxu0
    %6911 = vmatprep.mubr.bf16.mxu0 0
    %6912 = vmatmul.mubr.bf16.gmra.mrb[0].mxu0 %v519
    %v6913 = vpop.f32.mrb[0].mxu0
    %v6914 = vadd.f32 0.0, %v6913
    %v6915 = vpop.f32.mrb[0].mxu0
    %v6916 = vpop.f32.mrb[0].mxu0
    %v6917 = vadd.f32 0.0, %v6916
    %v6918 = vpop.f32.mrb[0].mxu0
    %6919 = vmatprep.mubr.bf16.mxu0 0
    %6920 = vmatmul.mubr.bf16.gmra.mrb[0].mxu0 %v520
    %v6921 = vpop.f32.mrb[0].mxu0
    %v6922 = vadd.f32 0.0, %v6921
    %v6923 = vpop.f32.mrb[0].mxu0
    %v6924 = vpop.f32.mrb[0].mxu0
    %v6925 = vadd.f32 0.0, %v6924
    %v6926 = vpop.f32.mrb[0].mxu0
    %6927 = vmatprep.mubr.bf16.mxu0 0
    %6928 = vmatmul.mubr.bf16.gmra.mrb[0].mxu0 %v521
    %v6929 = vpop.f32.mrb[0].mxu0
    %v6930 = vadd.f32 0.0, %v6929
    %v6931 = vpop.f32.mrb[0].mxu0
    %v6932 = vpop.f32.mrb[0].mxu0
    %v6933 = vadd.f32 0.0, %v6932
    %v6934 = vpop.f32.mrb[0].mxu0
    %6935 = vmatprep.mubr.bf16.mxu0 0
    %6936 = vmatmul.mubr.bf16.gmra.mrb[0].mxu0 %v522
    %v6937 = vpop.f32.mrb[0].mxu0
    %v6938 = vadd.f32 0.0, %v6937
    %v6939 = vpop.f32.mrb[0].mxu0
    %v6940 = vpop.f32.mrb[0].mxu0
    %v6941 = vadd.f32 0.0, %v6940
    %v6942 = vpop.f32.mrb[0].mxu0
    %6943 = vmatprep.mubr.bf16.mxu0 0
    %6944 = vmatmul.mubr.bf16.gmra.mrb[0].mxu0 %v523
    %v6945 = vpop.f32.mrb[0].mxu0
    %v6946 = vadd.f32 0.0, %v6945
    %v6947 = vpop.f32.mrb[0].mxu0
    %v6948 = vpop.f32.mrb[0].mxu0
    %v6949 = vadd.f32 0.0, %v6948
    %v6950 = vpop.f32.mrb[0].mxu0
    %6951 = vmatprep.mubr.bf16.mxu0 0
    %6952 = vmatmul.mubr.bf16.gmra.mrb[0].mxu0 %v524
    %v6953 = vpop.f32.mrb[0].mxu0
    %v6954 = vadd.f32 0.0, %v6953
    %v6955 = vpop.f32.mrb[0].mxu0
    %v6956 = vpop.f32.mrb[0].mxu0
    %v6957 = vadd.f32 0.0, %v6956
    %v6958 = vpop.f32.mrb[0].mxu0
    %6959 = vmatprep.mubr.bf16.mxu0 0
    %6960 = vmatmul.mubr.bf16.gmra.mrb[0].mxu0 %v525
    %v6961 = vpop.f32.mrb[0].mxu0
    %v6962 = vadd.f32 0.0, %v6961
    %v6963 = vpop.f32.mrb[0].mxu0
    %v6964 = vpop.f32.mrb[0].mxu0
    %v6965 = vadd.f32 0.0, %v6964
    %v6966 = vpop.f32.mrb[0].mxu0
    %6967 = vmatprep.mubr.bf16.mxu0 0
    %6968 = vmatmul.mubr.bf16.gmra.mrb[0].mxu0 %v526
    %v6969 = vpop.f32.mrb[0].mxu0
    %v6970 = vadd.f32 0.0, %v6969
    %v6971 = vpop.f32.mrb[0].mxu0
    %v6972 = vpop.f32.mrb[0].mxu0
    %v6973 = vadd.f32 0.0, %v6972
    %v6974 = vpop.f32.mrb[0].mxu0
    %6975 = vmatprep.mubr.bf16.mxu0 0
    %6976 = vmatmul.mubr.bf16.gmra.mrb[0].mxu0 %v527
    %v6977 = vpop.f32.mrb[0].mxu0
    %v6978 = vadd.f32 0.0, %v6977
    %v6979 = vpop.f32.mrb[0].mxu0
    %v6980 = vpop.f32.mrb[0].mxu0
    %v6981 = vadd.f32 0.0, %v6980
    %v6982 = vpop.f32.mrb[0].mxu0
    %6983 = vmatprep.mubr.bf16.mxu0 0
    %6984 = vmatmul.mubr.bf16.gmra.mrb[0].mxu0 %v528
    %v6985 = vpop.f32.mrb[0].mxu0
    %v6986 = vadd.f32 0.0, %v6985
    %v6987 = vpop.f32.mrb[0].mxu0
    %v6988 = vpop.f32.mrb[0].mxu0
    %v6989 = vadd.f32 0.0, %v6988
    %v6990 = vpop.f32.mrb[0].mxu0
    %6991 = vmatprep.mubr.bf16.mxu0 0
    %6992 = vmatmul.mubr.bf16.gmra.mrb[0].mxu0 %v529
    %v6993 = vpop.f32.mrb[0].mxu0
    %v6994 = vadd.f32 0.0, %v6993
    %v6995 = vpop.f32.mrb[0].mxu0
    %v6996 = vpop.f32.mrb[0].mxu0
    %v6997 = vadd.f32 0.0, %v6996
    %v6998 = vpop.f32.mrb[0].mxu0
    %6999 = vmatprep.mubr.bf16.mxu0 0
    %7000 = vmatmul.mubr.bf16.gmra.mrb[0].mxu0 %v810
    %v7001 = vpop.f32.mrb[0].mxu0
    %v7002 = vadd.f32 0.0, %v7001
    %v7003 = vpop.f32.mrb[0].mxu0
    %v7004 = vpop.f32.mrb[0].mxu0
    %v7005 = vadd.f32 0.0, %v7004
    %v7006 = vpop.f32.mrb[0].mxu0
    %7007 = vdwg.mxu0
    %v7008 = vld [vmem:[%s8] sm:$0x1]
    %v7009 = vld [vmem:[%s9] sm:$0x1]
    %v7010 = vadd.f32 %v6754, %v6757
    %v7011 = vadd.f32 %v7010, %v6762
    %v7012 = vadd.f32 %v7011, %v6765
    %v7013 = vadd.f32 %v7012, %v6770
    %v7014 = vadd.f32 %v7013, %v6773
    %v7015 = vadd.f32 %v7014, %v6778
    %v7016 = vadd.f32 %v7015, %v6781
    %v7017 = vadd.f32 %v7016, %v6786
    %v7018 = vadd.f32 %v7017, %v6789
    %v7019 = vadd.f32 %v7018, %v6794
    %v7020 = vadd.f32 %v7019, %v6797
    %v7021 = vadd.f32 %v7020, %v6802
    %v7022 = vadd.f32 %v7021, %v6805
    %v7023 = vadd.f32 %v7022, %v6810
    %v7024 = vadd.f32 %v7023, %v6813
    %v7025 = vadd.f32 %v7024, %v6818
    %v7026 = vadd.f32 %v7025, %v6821
    %v7027 = vadd.f32 %v7026, %v6826
    %v7028 = vadd.f32 %v7027, %v6829
    %v7029 = vadd.f32 %v7028, %v6834
    %v7030 = vadd.f32 %v7029, %v6837
    %v7031 = vadd.f32 %v7030, %v6842
    %v7032 = vadd.f32 %v7031, %v6845
    %v7033 = vadd.f32 %v7032, %v6850
    %v7034 = vadd.f32 %v7033, %v6853
    %v7035 = vadd.f32 %v7034, %v6858
    %v7036 = vadd.f32 %v7035, %v6861
    %v7037 = vadd.f32 %v7036, %v6866
    %v7038 = vadd.f32 %v7037, %v6869
    %v7039 = vadd.f32 %v7038, %v6874
    %v7040 = vadd.f32 %v7039, %v6877
    %v7041 = vadd.f32 %v7040, %v6882
    %v7042 = vadd.f32 %v7041, %v6885
    %v7043 = vadd.f32 %v7042, %v6890
    %v7044 = vadd.f32 %v7043, %v6893
    %v7045 = vadd.f32 %v7044, %v6898
    %v7046 = vadd.f32 %v7045, %v6901
    %v7047 = vadd.f32 %v7046, %v6906
    %v7048 = vadd.f32 %v7047, %v6909
    %v7049 = vadd.f32 %v7048, %v6914
    %v7050 = vadd.f32 %v7049, %v6917
    %v7051 = vadd.f32 %v7050, %v6922
    %v7052 = vadd.f32 %v7051, %v6925
    %v7053 = vadd.f32 %v7052, %v6930
    %v7054 = vadd.f32 %v7053, %v6933
    %v7055 = vadd.f32 %v7054, %v6938
    %v7056 = vadd.f32 %v7055, %v6941
    %v7057 = vadd.f32 %v7056, %v6946
    %v7058 = vadd.f32 %v7057, %v6949
    %v7059 = vadd.f32 %v7058, %v6954
    %v7060 = vadd.f32 %v7059, %v6957
    %v7061 = vadd.f32 %v7060, %v6962
    %v7062 = vadd.f32 %v7061, %v6965
    %v7063 = vadd.f32 %v7062, %v6970
    %v7064 = vadd.f32 %v7063, %v6973
    %v7065 = vadd.f32 %v7064, %v6978
    %v7066 = vadd.f32 %v7065, %v6981
    %v7067 = vadd.f32 %v7066, %v6986
    %v7068 = vadd.f32 %v7067, %v6989
    %v7069 = vadd.f32 %v7068, %v6994
    %v7070 = vadd.f32 %v7069, %v6997
    %v7071 = vadd.f32 %v7070, %v7002
    %v7072 = vadd.f32 %v7071, %v7005
    %v7073 = vrot.slane %v7072, 4
    %v7074 = vadd.f32 %v7072, %v7073
    %v7075 = vrot.slane %v7074, 2
    %v7076 = vadd.f32 %v7074, %v7075
    %v7077 = vrot.slane %v7076, 1
    %v7078 = vadd.f32 %v7076, %v7077
    %v7079 = vmul.f32 %v6754, %v6754
    %v7080 = vmul.f32 %v6757, %v6757
    %v7081 = vmul.f32 %v6762, %v6762
    %v7082 = vmul.f32 %v6765, %v6765
    %v7083 = vmul.f32 %v6770, %v6770
    %v7084 = vmul.f32 %v6773, %v6773
    %v7085 = vmul.f32 %v6778, %v6778
    %v7086 = vmul.f32 %v6781, %v6781
    %v7087 = vmul.f32 %v6786, %v6786
    %v7088 = vmul.f32 %v6789, %v6789
    %v7089 = vmul.f32 %v6794, %v6794
    %v7090 = vmul.f32 %v6797, %v6797
    %v7091 = vmul.f32 %v6802, %v6802
    %v7092 = vmul.f32 %v6805, %v6805
    %v7093 = vmul.f32 %v6810, %v6810
    %v7094 = vmul.f32 %v6813, %v6813
    %v7095 = vmul.f32 %v6818, %v6818
    %v7096 = vmul.f32 %v6821, %v6821
    %v7097 = vmul.f32 %v6826, %v6826
    %v7098 = vmul.f32 %v6829, %v6829
    %v7099 = vmul.f32 %v6834, %v6834
    %v7100 = vmul.f32 %v6837, %v6837
    %v7101 = vmul.f32 %v6842, %v6842
    %v7102 = vmul.f32 %v6845, %v6845
    %v7103 = vmul.f32 %v6850, %v6850
    %v7104 = vmul.f32 %v6853, %v6853
    %v7105 = vmul.f32 %v6858, %v6858
    %v7106 = vmul.f32 %v6861, %v6861
    %v7107 = vmul.f32 %v6866, %v6866
    %v7108 = vmul.f32 %v6869, %v6869
    %v7109 = vmul.f32 %v6874, %v6874
    %v7110 = vmul.f32 %v6877, %v6877
    %v7111 = vmul.f32 %v6882, %v6882
    %v7112 = vmul.f32 %v6885, %v6885
    %v7113 = vmul.f32 %v6890, %v6890
    %v7114 = vmul.f32 %v6893, %v6893
    %v7115 = vmul.f32 %v6898, %v6898
    %v7116 = vmul.f32 %v6901, %v6901
    %v7117 = vmul.f32 %v6906, %v6906
    %v7118 = vmul.f32 %v6909, %v6909
    %v7119 = vmul.f32 %v6914, %v6914
    %v7120 = vmul.f32 %v6917, %v6917
    %v7121 = vmul.f32 %v6922, %v6922
    %v7122 = vmul.f32 %v6925, %v6925
    %v7123 = vmul.f32 %v6930, %v6930
    %v7124 = vmul.f32 %v6933, %v6933
    %v7125 = vmul.f32 %v6938, %v6938
    %v7126 = vmul.f32 %v6941, %v6941
    %v7127 = vmul.f32 %v6946, %v6946
    %v7128 = vmul.f32 %v6949, %v6949
    %v7129 = vmul.f32 %v6954, %v6954
    %v7130 = vmul.f32 %v6957, %v6957
    %v7131 = vmul.f32 %v6962, %v6962
    %v7132 = vmul.f32 %v6965, %v6965
    %v7133 = vmul.f32 %v6970, %v6970
    %v7134 = vmul.f32 %v6973, %v6973
    %v7135 = vmul.f32 %v6978, %v6978
    %v7136 = vmul.f32 %v6981, %v6981
    %v7137 = vmul.f32 %v6986, %v6986
    %v7138 = vmul.f32 %v6989, %v6989
    %v7139 = vmul.f32 %v6994, %v6994
    %v7140 = vmul.f32 %v6997, %v6997
    %v7141 = vmul.f32 %v7002, %v7002
    %v7142 = vmul.f32 %v7005, %v7005
    %v7143 = vadd.f32 %v7079, %v7080
    %v7144 = vadd.f32 %v7143, %v7081
    %v7145 = vadd.f32 %v7144, %v7082
    %v7146 = vadd.f32 %v7145, %v7083
    %v7147 = vadd.f32 %v7146, %v7084
    %v7148 = vadd.f32 %v7147, %v7085
    %v7149 = vadd.f32 %v7148, %v7086
    %v7150 = vadd.f32 %v7149, %v7087
    %v7151 = vadd.f32 %v7150, %v7088
    %v7152 = vadd.f32 %v7151, %v7089
    %v7153 = vadd.f32 %v7152, %v7090
    %v7154 = vadd.f32 %v7153, %v7091
    %v7155 = vadd.f32 %v7154, %v7092
    %v7156 = vadd.f32 %v7155, %v7093
    %v7157 = vadd.f32 %v7156, %v7094
    %v7158 = vadd.f32 %v7157, %v7095
    %v7159 = vadd.f32 %v7158, %v7096
    %v7160 = vadd.f32 %v7159, %v7097
    %v7161 = vadd.f32 %v7160, %v7098
    %v7162 = vadd.f32 %v7161, %v7099
    %v7163 = vadd.f32 %v7162, %v7100
    %v7164 = vadd.f32 %v7163, %v7101
    %v7165 = vadd.f32 %v7164, %v7102
    %v7166 = vadd.f32 %v7165, %v7103
    %v7167 = vadd.f32 %v7166, %v7104
    %v7168 = vadd.f32 %v7167, %v7105
    %v7169 = vadd.f32 %v7168, %v7106
    %v7170 = vadd.f32 %v7169, %v7107
    %v7171 = vadd.f32 %v7170, %v7108
    %v7172 = vadd.f32 %v7171, %v7109
    %v7173 = vadd.f32 %v7172, %v7110
    %v7174 = vadd.f32 %v7173, %v7111
    %v7175 = vadd.f32 %v7174, %v7112
    %v7176 = vadd.f32 %v7175, %v7113
    %v7177 = vadd.f32 %v7176, %v7114
    %v7178 = vadd.f32 %v7177, %v7115
    %v7179 = vadd.f32 %v7178, %v7116
    %v7180 = vadd.f32 %v7179, %v7117
    %v7181 = vadd.f32 %v7180, %v7118
    %v7182 = vadd.f32 %v7181, %v7119
    %v7183 = vadd.f32 %v7182, %v7120
    %v7184 = vadd.f32 %v7183, %v7121
    %v7185 = vadd.f32 %v7184, %v7122
    %v7186 = vadd.f32 %v7185, %v7123
    %v7187 = vadd.f32 %v7186, %v7124
    %v7188 = vadd.f32 %v7187, %v7125
    %v7189 = vadd.f32 %v7188, %v7126
    %v7190 = vadd.f32 %v7189, %v7127
    %v7191 = vadd.f32 %v7190, %v7128
    %v7192 = vadd.f32 %v7191, %v7129
    %v7193 = vadd.f32 %v7192, %v7130
    %v7194 = vadd.f32 %v7193, %v7131
    %v7195 = vadd.f32 %v7194, %v7132
    %v7196 = vadd.f32 %v7195, %v7133
    %v7197 = vadd.f32 %v7196, %v7134
    %v7198 = vadd.f32 %v7197, %v7135
    %v7199 = vadd.f32 %v7198, %v7136
    %v7200 = vadd.f32 %v7199, %v7137
    %v7201 = vadd.f32 %v7200, %v7138
    %v7202 = vadd.f32 %v7201, %v7139
    %v7203 = vadd.f32 %v7202, %v7140
    %v7204 = vadd.f32 %v7203, %v7141
    %v7205 = vadd.f32 %v7204, %v7142
    %v7206 = vrot.slane %v7205, 4
    %v7207 = vadd.f32 %v7205, %v7206
    %v7208 = vrot.slane %v7207, 2
    %v7209 = vadd.f32 %v7207, %v7208
    %v7210 = vrot.slane %v7209, 1
    %v7211 = vadd.f32 %v7209, %v7210
    %v7212 = vmul.f32 %v7078, 0.001953125
    %v7213 = vmul.f32 %v7211, 0.001953125
    %v7214 = vmul.f32 %v7212, %v7212
    %v7215 = vsub.f32 %v7213, %v7214
    %v7216 = vmax.f32 %v7215, 0.0
    %v7217 = vadd.f32 %v7216, 1e-05
    %v7218 = vrsqrt.pop %v7217
    %v7219 = vmul.f32 %v7218, %v7008
    %v7220 = vmul.f32 %v7212, %v7219
    %v7221 = vsub.f32 %v7009, %v7220
    %v7222 = vlaneseq
    %v7223 = vshrl.u32 %v7222, 7
    %v7224 = vsub.s32 0, %v7223
    %v7225 = vrot.slane %v7219, %v7224
    %v7226 = vmul.f32 %v6754, %v7225
    %v7227 = vmul.f32 %v6757, %v7225
    %v7228 = vmul.f32 %v6762, %v7225
    %v7229 = vmul.f32 %v6765, %v7225
    %v7230 = vmul.f32 %v6770, %v7225
    %v7231 = vmul.f32 %v6773, %v7225
    %v7232 = vmul.f32 %v6778, %v7225
    %v7233 = vmul.f32 %v6781, %v7225
    %v7234 = vmul.f32 %v6786, %v7225
    %v7235 = vmul.f32 %v6789, %v7225
    %v7236 = vmul.f32 %v6794, %v7225
    %v7237 = vmul.f32 %v6797, %v7225
    %v7238 = vmul.f32 %v6802, %v7225
    %v7239 = vmul.f32 %v6805, %v7225
    %v7240 = vmul.f32 %v6810, %v7225
    %v7241 = vmul.f32 %v6813, %v7225
    %v7242 = vmul.f32 %v6818, %v7225
    %v7243 = vmul.f32 %v6821, %v7225
    %v7244 = vmul.f32 %v6826, %v7225
    %v7245 = vmul.f32 %v6829, %v7225
    %v7246 = vmul.f32 %v6834, %v7225
    %v7247 = vmul.f32 %v6837, %v7225
    %v7248 = vmul.f32 %v6842, %v7225
    %v7249 = vmul.f32 %v6845, %v7225
    %v7250 = vmul.f32 %v6850, %v7225
    %v7251 = vmul.f32 %v6853, %v7225
    %v7252 = vmul.f32 %v6858, %v7225
    %v7253 = vmul.f32 %v6861, %v7225
    %v7254 = vmul.f32 %v6866, %v7225
    %v7255 = vmul.f32 %v6869, %v7225
    %v7256 = vmul.f32 %v6874, %v7225
    %v7257 = vmul.f32 %v6877, %v7225
    %v7258 = vmul.f32 %v6882, %v7225
    %v7259 = vmul.f32 %v6885, %v7225
    %v7260 = vmul.f32 %v6890, %v7225
    %v7261 = vmul.f32 %v6893, %v7225
    %v7262 = vmul.f32 %v6898, %v7225
    %v7263 = vmul.f32 %v6901, %v7225
    %v7264 = vmul.f32 %v6906, %v7225
    %v7265 = vmul.f32 %v6909, %v7225
    %v7266 = vmul.f32 %v6914, %v7225
    %v7267 = vmul.f32 %v6917, %v7225
    %v7268 = vmul.f32 %v6922, %v7225
    %v7269 = vmul.f32 %v6925, %v7225
    %v7270 = vmul.f32 %v6930, %v7225
    %v7271 = vmul.f32 %v6933, %v7225
    %v7272 = vmul.f32 %v6938, %v7225
    %v7273 = vmul.f32 %v6941, %v7225
    %v7274 = vmul.f32 %v6946, %v7225
    %v7275 = vmul.f32 %v6949, %v7225
    %v7276 = vmul.f32 %v6954, %v7225
    %v7277 = vmul.f32 %v6957, %v7225
    %v7278 = vmul.f32 %v6962, %v7225
    %v7279 = vmul.f32 %v6965, %v7225
    %v7280 = vmul.f32 %v6970, %v7225
    %v7281 = vmul.f32 %v6973, %v7225
    %v7282 = vmul.f32 %v6978, %v7225
    %v7283 = vmul.f32 %v6981, %v7225
    %v7284 = vmul.f32 %v6986, %v7225
    %v7285 = vmul.f32 %v6989, %v7225
    %v7286 = vmul.f32 %v6994, %v7225
    %v7287 = vmul.f32 %v6997, %v7225
    %v7288 = vmul.f32 %v7002, %v7225
    %v7289 = vmul.f32 %v7005, %v7225
    %v7291 = vlaneseq
    %v7292 = vshrl.u32 %v7291, 7
    %v7293 = vsub.s32 0, %v7292
    %v7294 = vrot.slane %v7221, %v7293
    %v7296 = vadd.f32 %v7226, %v7294
    %v7297 = vadd.f32 %v7227, %v7294
    %v7298 = vadd.f32 %v7228, %v7294
    %v7299 = vadd.f32 %v7229, %v7294
    %v7300 = vadd.f32 %v7230, %v7294
    %v7301 = vadd.f32 %v7231, %v7294
    %v7302 = vadd.f32 %v7232, %v7294
    %v7303 = vadd.f32 %v7233, %v7294
    %v7304 = vadd.f32 %v7234, %v7294
    %v7305 = vadd.f32 %v7235, %v7294
    %v7306 = vadd.f32 %v7236, %v7294
    %v7307 = vadd.f32 %v7237, %v7294
    %v7308 = vadd.f32 %v7238, %v7294
    %v7309 = vadd.f32 %v7239, %v7294
    %v7310 = vadd.f32 %v7240, %v7294
    %v7311 = vadd.f32 %v7241, %v7294
    %v7312 = vadd.f32 %v7242, %v7294
    %v7313 = vadd.f32 %v7243, %v7294
    %v7314 = vadd.f32 %v7244, %v7294
    %v7315 = vadd.f32 %v7245, %v7294
    %v7316 = vadd.f32 %v7246, %v7294
    %v7317 = vadd.f32 %v7247, %v7294
    %v7318 = vadd.f32 %v7248, %v7294
    %v7319 = vadd.f32 %v7249, %v7294
    %v7320 = vadd.f32 %v7250, %v7294
    %v7321 = vadd.f32 %v7251, %v7294
    %v7322 = vadd.f32 %v7252, %v7294
    %v7323 = vadd.f32 %v7253, %v7294
    %v7324 = vadd.f32 %v7254, %v7294
    %v7325 = vadd.f32 %v7255, %v7294
    %v7326 = vadd.f32 %v7256, %v7294
    %v7327 = vadd.f32 %v7257, %v7294
    %v7328 = vadd.f32 %v7258, %v7294
    %v7329 = vadd.f32 %v7259, %v7294
    %v7330 = vadd.f32 %v7260, %v7294
    %v7331 = vadd.f32 %v7261, %v7294
    %v7332 = vadd.f32 %v7262, %v7294
    %v7333 = vadd.f32 %v7263, %v7294
    %v7334 = vadd.f32 %v7264, %v7294
    %v7335 = vadd.f32 %v7265, %v7294
    %v7336 = vadd.f32 %v7266, %v7294
    %v7337 = vadd.f32 %v7267, %v7294
    %v7338 = vadd.f32 %v7268, %v7294
    %v7339 = vadd.f32 %v7269, %v7294
    %v7340 = vadd.f32 %v7270, %v7294
    %v7341 = vadd.f32 %v7271, %v7294
    %v7342 = vadd.f32 %v7272, %v7294
    %v7343 = vadd.f32 %v7273, %v7294
    %v7344 = vadd.f32 %v7274, %v7294
    %v7345 = vadd.f32 %v7275, %v7294
    %v7346 = vadd.f32 %v7276, %v7294
    %v7347 = vadd.f32 %v7277, %v7294
    %v7348 = vadd.f32 %v7278, %v7294
    %v7349 = vadd.f32 %v7279, %v7294
    %v7350 = vadd.f32 %v7280, %v7294
    %v7351 = vadd.f32 %v7281, %v7294
    %v7352 = vadd.f32 %v7282, %v7294
    %v7353 = vadd.f32 %v7283, %v7294
    %v7354 = vadd.f32 %v7284, %v7294
    %v7355 = vadd.f32 %v7285, %v7294
    %v7356 = vadd.f32 %v7286, %v7294
    %v7357 = vadd.f32 %v7287, %v7294
    %v7358 = vadd.f32 %v7288, %v7294
    %v7359 = vadd.f32 %v7289, %v7294
    %v7360 = vadd.f32 %v6591, %v7296
    %v7361 = vadd.f32 %v6592, %v7297
    %v7362 = vadd.f32 %v6593, %v7298
    %v7363 = vadd.f32 %v6594, %v7299
    %v7364 = vadd.f32 %v6595, %v7300
    %v7365 = vadd.f32 %v6596, %v7301
    %v7366 = vadd.f32 %v6597, %v7302
    %v7367 = vadd.f32 %v6598, %v7303
    %v7368 = vadd.f32 %v6599, %v7304
    %v7369 = vadd.f32 %v6600, %v7305
    %v7370 = vadd.f32 %v6601, %v7306
    %v7371 = vadd.f32 %v6602, %v7307
    %v7372 = vadd.f32 %v6603, %v7308
    %v7373 = vadd.f32 %v6604, %v7309
    %v7374 = vadd.f32 %v6605, %v7310
    %v7375 = vadd.f32 %v6606, %v7311
    %v7376 = vadd.f32 %v6607, %v7312
    %v7377 = vadd.f32 %v6608, %v7313
    %v7378 = vadd.f32 %v6609, %v7314
    %v7379 = vadd.f32 %v6610, %v7315
    %v7380 = vadd.f32 %v6611, %v7316
    %v7381 = vadd.f32 %v6612, %v7317
    %v7382 = vadd.f32 %v6613, %v7318
    %v7383 = vadd.f32 %v6614, %v7319
    %v7384 = vadd.f32 %v6615, %v7320
    %v7385 = vadd.f32 %v6616, %v7321
    %v7386 = vadd.f32 %v6617, %v7322
    %v7387 = vadd.f32 %v6618, %v7323
    %v7388 = vadd.f32 %v6619, %v7324
    %v7389 = vadd.f32 %v6620, %v7325
    %v7390 = vadd.f32 %v6621, %v7326
    %v7391 = vadd.f32 %v6622, %v7327
    %v7392 = vadd.f32 %v6623, %v7328
    %v7393 = vadd.f32 %v6624, %v7329
    %v7394 = vadd.f32 %v6625, %v7330
    %v7395 = vadd.f32 %v6626, %v7331
    %v7396 = vadd.f32 %v6627, %v7332
    %v7397 = vadd.f32 %v6628, %v7333
    %v7398 = vadd.f32 %v6629, %v7334
    %v7399 = vadd.f32 %v6630, %v7335
    %v7400 = vadd.f32 %v6631, %v7336
    %v7401 = vadd.f32 %v6632, %v7337
    %v7402 = vadd.f32 %v6633, %v7338
    %v7403 = vadd.f32 %v6634, %v7339
    %v7404 = vadd.f32 %v6635, %v7340
    %v7405 = vadd.f32 %v6636, %v7341
    %v7406 = vadd.f32 %v6637, %v7342
    %v7407 = vadd.f32 %v6638, %v7343
    %v7408 = vadd.f32 %v6639, %v7344
    %v7409 = vadd.f32 %v6640, %v7345
    %v7410 = vadd.f32 %v6641, %v7346
    %v7411 = vadd.f32 %v6642, %v7347
    %v7412 = vadd.f32 %v6643, %v7348
    %v7413 = vadd.f32 %v6644, %v7349
    %v7414 = vadd.f32 %v6645, %v7350
    %v7415 = vadd.f32 %v6646, %v7351
    %v7416 = vadd.f32 %v6647, %v7352
    %v7417 = vadd.f32 %v6648, %v7353
    %v7418 = vadd.f32 %v6649, %v7354
    %v7419 = vadd.f32 %v6650, %v7355
    %v7420 = vadd.f32 %v6651, %v7356
    %v7421 = vadd.f32 %v6652, %v7357
    %v7422 = vadd.f32 %v6653, %v7358
    %v7423 = vadd.f32 %v6654, %v7359
    %v7424 = vmax.f32 %v7360, 0.0
    %v7425 = vmax.f32 %v7361, 0.0
    %v7426 = vmax.f32 %v7362, 0.0
    %v7427 = vmax.f32 %v7363, 0.0
    %v7428 = vmax.f32 %v7364, 0.0
    %v7429 = vmax.f32 %v7365, 0.0
    %v7430 = vmax.f32 %v7366, 0.0
    %v7431 = vmax.f32 %v7367, 0.0
    %v7432 = vmax.f32 %v7368, 0.0
    %v7433 = vmax.f32 %v7369, 0.0
    %v7434 = vmax.f32 %v7370, 0.0
    %v7435 = vmax.f32 %v7371, 0.0
    %v7436 = vmax.f32 %v7372, 0.0
    %v7437 = vmax.f32 %v7373, 0.0
    %v7438 = vmax.f32 %v7374, 0.0
    %v7439 = vmax.f32 %v7375, 0.0
    %v7440 = vmax.f32 %v7376, 0.0
    %v7441 = vmax.f32 %v7377, 0.0
    %v7442 = vmax.f32 %v7378, 0.0
    %v7443 = vmax.f32 %v7379, 0.0
    %v7444 = vmax.f32 %v7380, 0.0
    %v7445 = vmax.f32 %v7381, 0.0
    %v7446 = vmax.f32 %v7382, 0.0
    %v7447 = vmax.f32 %v7383, 0.0
    %v7448 = vmax.f32 %v7384, 0.0
    %v7449 = vmax.f32 %v7385, 0.0
    %v7450 = vmax.f32 %v7386, 0.0
    %v7451 = vmax.f32 %v7387, 0.0
    %v7452 = vmax.f32 %v7388, 0.0
    %v7453 = vmax.f32 %v7389, 0.0
    %v7454 = vmax.f32 %v7390, 0.0
    %v7455 = vmax.f32 %v7391, 0.0
    %v7456 = vmax.f32 %v7392, 0.0
    %v7457 = vmax.f32 %v7393, 0.0
    %v7458 = vmax.f32 %v7394, 0.0
    %v7459 = vmax.f32 %v7395, 0.0
    %v7460 = vmax.f32 %v7396, 0.0
    %v7461 = vmax.f32 %v7397, 0.0
    %v7462 = vmax.f32 %v7398, 0.0
    %v7463 = vmax.f32 %v7399, 0.0
    %v7464 = vmax.f32 %v7400, 0.0
    %v7465 = vmax.f32 %v7401, 0.0
    %v7466 = vmax.f32 %v7402, 0.0
    %v7467 = vmax.f32 %v7403, 0.0
    %v7468 = vmax.f32 %v7404, 0.0
    %v7469 = vmax.f32 %v7405, 0.0
    %v7470 = vmax.f32 %v7406, 0.0
    %v7471 = vmax.f32 %v7407, 0.0
    %v7472 = vmax.f32 %v7408, 0.0
    %v7473 = vmax.f32 %v7409, 0.0
    %v7474 = vmax.f32 %v7410, 0.0
    %v7475 = vmax.f32 %v7411, 0.0
    %v7476 = vmax.f32 %v7412, 0.0
    %v7477 = vmax.f32 %v7413, 0.0
    %v7478 = vmax.f32 %v7414, 0.0
    %v7479 = vmax.f32 %v7415, 0.0
    %v7480 = vmax.f32 %v7416, 0.0
    %v7481 = vmax.f32 %v7417, 0.0
    %v7482 = vmax.f32 %v7418, 0.0
    %v7483 = vmax.f32 %v7419, 0.0
    %v7484 = vmax.f32 %v7420, 0.0
    %v7485 = vmax.f32 %v7421, 0.0
    %v7486 = vmax.f32 %v7422, 0.0
    %v7487 = vmax.f32 %v7423, 0.0
    %7488 = vst [vmem:[#allocation3] sm:$0xff] %v7424
    %7489 = vst [vmem:[#allocation3 + $0x8] sm:$0xff] %v7425
    %7490 = vst [vmem:[#allocation3 + $0x10] sm:$0xff] %v7426
    %7491 = vst [vmem:[#allocation3 + $0x18] sm:$0xff] %v7427
    %7492 = vst [vmem:[#allocation3 + $0x20] sm:$0xff] %v7428
    %7493 = vst [vmem:[#allocation3 + $0x28] sm:$0xff] %v7429
    %7494 = vst [vmem:[#allocation3 + $0x30] sm:$0xff] %v7430
    %7495 = vst [vmem:[#allocation3 + $0x38] sm:$0xff] %v7431
    %7496 = vst [vmem:[#allocation3 + $0x40] sm:$0xff] %v7432
    %7497 = vst [vmem:[#allocation3 + $0x48] sm:$0xff] %v7433
    %7498 = vst [vmem:[#allocation3 + $0x50] sm:$0xff] %v7434
    %7499 = vst [vmem:[#allocation3 + $0x58] sm:$0xff] %v7435
    %7500 = vst [vmem:[#allocation3 + $0x60] sm:$0xff] %v7436
    %7501 = vst [vmem:[#allocation3 + $0x68] sm:$0xff] %v7437
    %7502 = vst [vmem:[#allocation3 + $0x70] sm:$0xff] %v7438
    %7503 = vst [vmem:[#allocation3 + $0x78] sm:$0xff] %v7439
    %7504 = vst [vmem:[#allocation3 + $0x80] sm:$0xff] %v7440
    %7505 = vst [vmem:[#allocation3 + $0x88] sm:$0xff] %v7441
    %7506 = vst [vmem:[#allocation3 + $0x90] sm:$0xff] %v7442
    %7507 = vst [vmem:[#allocation3 + $0x98] sm:$0xff] %v7443
    %7508 = vst [vmem:[#allocation3 + $0xa0] sm:$0xff] %v7444
    %7509 = vst [vmem:[#allocation3 + $0xa8] sm:$0xff] %v7445
    %7510 = vst [vmem:[#allocation3 + $0xb0] sm:$0xff] %v7446
    %7511 = vst [vmem:[#allocation3 + $0xb8] sm:$0xff] %v7447
    %7512 = vst [vmem:[#allocation3 + $0xc0] sm:$0xff] %v7448
    %7513 = vst [vmem:[#allocation3 + $0xc8] sm:$0xff] %v7449
    %7514 = vst [vmem:[#allocation3 + $0xd0] sm:$0xff] %v7450
    %7515 = vst [vmem:[#allocation3 + $0xd8] sm:$0xff] %v7451
    %7516 = vst [vmem:[#allocation3 + $0xe0] sm:$0xff] %v7452
    %7517 = vst [vmem:[#allocation3 + $0xe8] sm:$0xff] %v7453
    %7518 = vst [vmem:[#allocation3 + $0xf0] sm:$0xff] %v7454
    %7519 = vst [vmem:[#allocation3 + $0xf8] sm:$0xff] %v7455
    %7520 = vst [vmem:[#allocation3 + $0x100] sm:$0xff] %v7456
    %7521 = vst [vmem:[#allocation3 + $0x108] sm:$0xff] %v7457
    %7522 = vst [vmem:[#allocation3 + $0x110] sm:$0xff] %v7458
    %7523 = vst [vmem:[#allocation3 + $0x118] sm:$0xff] %v7459
    %7524 = vst [vmem:[#allocation3 + $0x120] sm:$0xff] %v7460
    %7525 = vst [vmem:[#allocation3 + $0x128] sm:$0xff] %v7461
    %7526 = vst [vmem:[#allocation3 + $0x130] sm:$0xff] %v7462
    %7527 = vst [vmem:[#allocation3 + $0x138] sm:$0xff] %v7463
    %7528 = vst [vmem:[#allocation3 + $0x140] sm:$0xff] %v7464
    %7529 = vst [vmem:[#allocation3 + $0x148] sm:$0xff] %v7465
    %7530 = vst [vmem:[#allocation3 + $0x150] sm:$0xff] %v7466
    %7531 = vst [vmem:[#allocation3 + $0x158] sm:$0xff] %v7467
    %7532 = vst [vmem:[#allocation3 + $0x160] sm:$0xff] %v7468
    %7533 = vst [vmem:[#allocation3 + $0x168] sm:$0xff] %v7469
    %7534 = vst [vmem:[#allocation3 + $0x170] sm:$0xff] %v7470
    %7535 = vst [vmem:[#allocation3 + $0x178] sm:$0xff] %v7471
    %7536 = vst [vmem:[#allocation3 + $0x180] sm:$0xff] %v7472
    %7537 = vst [vmem:[#allocation3 + $0x188] sm:$0xff] %v7473
    %7538 = vst [vmem:[#allocation3 + $0x190] sm:$0xff] %v7474
    %7539 = vst [vmem:[#allocation3 + $0x198] sm:$0xff] %v7475
    %7540 = vst [vmem:[#allocation3 + $0x1a0] sm:$0xff] %v7476
    %7541 = vst [vmem:[#allocation3 + $0x1a8] sm:$0xff] %v7477
    %7542 = vst [vmem:[#allocation3 + $0x1b0] sm:$0xff] %v7478
    %7543 = vst [vmem:[#allocation3 + $0x1b8] sm:$0xff] %v7479
    %7544 = vst [vmem:[#allocation3 + $0x1c0] sm:$0xff] %v7480
    %7545 = vst [vmem:[#allocation3 + $0x1c8] sm:$0xff] %v7481
    %7546 = vst [vmem:[#allocation3 + $0x1d0] sm:$0xff] %v7482
    %7547 = vst [vmem:[#allocation3 + $0x1d8] sm:$0xff] %v7483
    %7548 = vst [vmem:[#allocation3 + $0x1e0] sm:$0xff] %v7484
    %7549 = vst [vmem:[#allocation3 + $0x1e8] sm:$0xff] %v7485
    %7550 = vst [vmem:[#allocation3 + $0x1f0] sm:$0xff] %v7486
    %7551 = vst [vmem:[#allocation3 + $0x1f8] sm:$0xff] %v7487
    // Predicated region
    $region42: #{tpu_custom_call.1} parent=1 // pred_check
      _
    $region43: #{tpu_custom_call.1} parent=1 // pred_check_branch
      %7553 = sbr.rel (0) target = $region45
    $region44: #{tpu_custom_call.1} parent=1 // pred_region
      %s7555 = ssub.s32 8192, 8192
      %7556 = vsyncadd [#allocation4], %s7555
      %s7557 = sshll.u32 [#allocation3], 4
      %s7558 = int_to_ptr.vmem [resolvable:$true] %s7557
      %7563 = dma.vmem_to_hbm [thread:$0]  %s7558, 8192, %s10, [#allocation4], 128, 128, 8
    $region45: #{tpu_custom_call.1} parent=1 // pred_fallthru
      _
    // Predicated region
    $region46: #{tpu_custom_call.1} parent=1 // pred_check
      _
    $region47: #{tpu_custom_call.1} parent=1 // pred_check_branch
      %7565 = sbr.rel (0) target = $region49
    $region48: #{tpu_custom_call.1} parent=1 // pred_region
      %7566 = dma.done [#allocation4], 8192
    $region49: #{tpu_custom_call.1} parent=1 // pred_fallthru
      _
    %7567 = vsyncpa [#allocation4], 1

</llo_original>
